<compile_context>
chip_gen: v7x
topology: tpu7x:2x2x1
jax: 0.10.0
libtpu: 0.0.40
codegen_flags: <defaults>
</compile_context>

<pallas_src>
import functools
import math

import jax
import jax.numpy as jnp
import numpy as np
from jax.experimental import pallas as pl
from jax.experimental.pallas import tpu as pltpu

# Module-consistent small shapes: emb=32, heads=4, window=4, 8x8 tokens, batch=2.
EMB = 32
HEADS = 4
HD = EMB // HEADS            # 8
WS = 4
HGT = WID = 8
SEQ = HGT * WID              # 64
BATCH = 2


# ----------------------------- fused Pallas kernel ------------------------------

def _swin_encoder_kernel(
    x_ref, g_ref, b_ref,
    w_qkv0_ref, b_qkv0_ref, w_p0_ref, b_p0_ref, bias0_ref,
    w_qkv1_ref, b_qkv1_ref, w_p1_ref, b_p1_ref, bias1_ref, perm_ref,
    mw1_ref, mb1_ref, mw2_ref, mb2_ref,
    o_ref,
):
    f32 = jnp.float32
    gamma = g_ref[...]
    beta = b_ref[...]

    def layer_norm(t):
        mu = jnp.mean(t, axis=-1, keepdims=True)
        var = jnp.mean(jnp.square(t - mu), axis=-1, keepdims=True)
        return (t - mu) * jax.lax.rsqrt(var + 1e-5) * gamma + beta

    def msa(t, w_qkv, b_qkv, w_p, b_p, bias, shifted):
        """(Shifted-)window MSA with LN, projection and residual fused in."""
        xn = layer_norm(t)                                   # (B*S, E)
        rows = []
        for bi in range(BATCH):
            xb = xn[bi * SEQ:(bi + 1) * SEQ, :]              # (S, E)
            if shifted:
                # cyclic shift as an exact permutation-matrix matmul (stays in VMEM)
                xb = jnp.dot(perm_ref[...], xb, preferred_element_type=f32)
            qkv = jnp.dot(xb, w_qkv, preferred_element_type=f32) + b_qkv   # (S, 3E)
            heads = []
            for h in range(HEADS):
                q = qkv[:, h * HD:(h + 1) * HD]                       # (S, hd), scale folded
                k = qkv[:, EMB + h * HD:EMB + (h + 1) * HD]           # (S, hd)
                v = qkv[:, 2 * EMB + h * HD:2 * EMB + (h + 1) * HD]   # (S, hd)
                # lane-dense (64, 64) scores; bias encodes window structure + rel-pos + shift masks
                s = jnp.einsum("qd,kd->qk", q, k, preferred_element_type=f32)
                s = s + bias
                m = jnp.max(s, axis=-1, keepdims=True)
                p = jnp.exp(s - m)
                p = p * pl.reciprocal(jnp.sum(p, axis=-1, keepdims=True), approx=True)
                heads.append(jnp.dot(p, v, preferred_element_type=f32))  # (S, hd)
            rows.append(jnp.concatenate(heads, axis=-1))     # (S, E), '(H e)' head-major layout
        o = jnp.concatenate(rows, axis=0)                    # (B*S, E) — never leaves VMEM
        return t + jnp.dot(o, w_p, preferred_element_type=f32) + b_p

    def mlp(t):
        xn = layer_norm(t)
        hid = jnp.dot(xn, mw1_ref[...], preferred_element_type=f32) + mb1_ref[...]  # (B*S, 4E)
        hid = 0.5 * hid * (1.0 + jax.lax.erf(hid * (1.0 / math.sqrt(2.0))))          # exact GELU
        return t + jnp.dot(hid, mw2_ref[...], preferred_element_type=f32) + mb2_ref[...]

    x = x_ref[...].astype(f32)
    x = msa(x, w_qkv0_ref[...], b_qkv0_ref[...], w_p0_ref[...], b_p0_ref[...],
            bias0_ref[...], shifted=False)
    x = mlp(x)
    x = msa(x, w_qkv1_ref[...], b_qkv1_ref[...], w_p1_ref[...], b_p1_ref[...],
            bias1_ref[...], shifted=True)
    x = mlp(x)
    o_ref[...] = x.astype(o_ref.dtype)


def swin_encoder_forward(x, kp):
    """Whole SwinEncoder forward in one pallas_call (no grid; everything in VMEM)."""
    B, S, E = x.shape
    out = pl.pallas_call(
        _swin_encoder_kernel,
        out_shape=jax.ShapeDtypeStruct((B * S, E), x.dtype),
    )(
        x.reshape(B * S, E),
        kp["ln_g"], kp["ln_b"],
        kp["wmsa_wqkv"], kp["wmsa_bqkv"], kp["wmsa_wproj"], kp["wmsa_bproj"], kp["wmsa_bias"],
        kp["swmsa_wqkv"], kp["swmsa_bqkv"], kp["swmsa_wproj"], kp["swmsa_bproj"], kp["swmsa_bias"],
        kp["roll_perm"],
        kp["mlp_w1"], kp["mlp_b1"], kp["mlp_w2"], kp["mlp_b2"],
    )
    return out.reshape(B, S, E)


# ----------------------------- parameter construction ---------------------------

def relative_indices(window_size):
    idx = np.array([[i, j] for i in range(window_size) for j in range(window_size)], np.int32)
    return idx[None, :, :] - idx[:, None, :] + (window_size - 1)     # (ws2, ws2, 2)


def init_native_params(key, emb, num_heads, window_size):
    """PyTorch-layout parameters (nn.Linear default init; pos_embeddings ~ N(0,1))."""
    def linear(k, fan_in, fan_out):
        kw, kb = jax.random.split(k)
        bound = 1.0 / math.sqrt(fan_in)
        w = jax.random.uniform(kw, (fan_in, fan_out), jnp.float32, -bound, bound)
        b = jax.random.uniform(kb, (fan_out,), jnp.float32, -bound, bound)
        return w, b

    k = jax.random.split(key, 8)
    nat = {"ln_g": jnp.ones((emb,), jnp.float32), "ln_b": jnp.zeros((emb,), jnp.float32)}
    for name, (k1, k2, k3) in (("wmsa", (k[0], k[1], k[2])), ("swmsa", (k[3], k[4], k[5]))):
        w1, b1 = linear(k1, emb, 3 * emb)
        w2, b2 = linear(k2, emb, emb)
        pos = jax.random.normal(k3, (2 * window_size - 1, 2 * window_size - 1), jnp.float32)
        nat[name] = {"w1": w1, "b1": b1, "w2": w2, "b2": b2, "pos": pos}
    nat["mlp_w1"], nat["mlp_b1"] = linear(k[6], emb, 4 * emb)
    nat["mlp_w2"], nat["mlp_b2"] = linear(k[7], 4 * emb, emb)
    return nat


def build_kernel_params(nat, emb, num_heads, window_size, height, width):
    """Derive kernel-friendly constants: permuted/scaled QKV weights, full-sequence
    attention biases (window structure + rel-pos + shift masks), roll permutation."""
    hd = emb // num_heads
    scale = 1.0 / math.sqrt(emb / num_heads)
    rel_idx = relative_indices(window_size)
    neg = np.float32(-1e9)

    def qkv_weights(w1, b1):
        # native output col = (e*H + h)*3 + k  ('(c k)' with c='(e H)');
        # kernel layout  col = k*E + h*hd + e  ([Q|K|V], head-major, hd contiguous)
        cols = np.empty(3 * emb, np.int32)
        for kk in range(3):
            for h in range(num_heads):
                for e in range(hd):
                    cols[kk * emb + h * hd + e] = (e * num_heads + h) * 3 + kk
        w = np.asarray(w1)[:, cols].copy()
        b = np.asarray(b1)[cols].copy()
        w[:, :emb] *= scale                      # fold 1/sqrt(h_dim) into Q
        b[:emb] *= scale
        return jnp.asarray(w), jnp.asarray(b.reshape(1, 3 * emb))

    def full_bias(pos, shifted):
        ws, ws2 = window_size, window_size * window_size
        n_wh, n_ww = height // ws, width // ws
        S = height * width
        rel = np.asarray(pos)[rel_idx[..., 0], rel_idx[..., 1]]       # (ws2, ws2)
        m = ws * (ws // 2)
        row_mask = np.zeros((ws2, ws2), np.float32)
        row_mask[-m:, :-m] = neg
        row_mask[:-m, -m:] = neg
        col_mask = row_mask.reshape(ws, ws, ws, ws).transpose(1, 0, 3, 2).reshape(ws2, ws2)
        bias = np.full((S, S), neg, np.float32)                       # cross-window = masked
        for p in range(S):
            rp, cp = divmod(p, width)
            wrp, wcp, ip = rp // ws, cp // ws, (rp % ws) * ws + (cp % ws)
            for q in range(S):
                rq, cq = divmod(q, width)
                wrq, wcq, iq = rq // ws, cq // ws, (rq % ws) * ws + (cq % ws)
                if (wrp, wcp) != (wrq, wcq):
                    continue
                val = rel[ip, iq]
                if shifted:
                    if wrp == n_wh - 1:
                        val = val + row_mask[ip, iq]
                    if wcp == n_ww - 1:
                        val = val + col_mask[ip, iq]
                bias[p, q] = val
        return jnp.asarray(bias)

    def roll_perm():
        S = height * width
        shift = (-window_size) // 2              # matches torch: -window_size // 2
        P = np.zeros((S, S), np.float32)
        for p in range(S):
            r, c = divmod(p, width)
            src = ((r - shift) % height) * width + ((c - shift) % width)
            P[p, src] = 1.0
        return jnp.asarray(P)

    kp = {"ln_g": nat["ln_g"].reshape(1, emb), "ln_b": nat["ln_b"].reshape(1, emb)}
    for name, shifted in (("wmsa", False), ("swmsa", True)):
        w_qkv, b_qkv = qkv_weights(nat[name]["w1"], nat[name]["b1"])
        kp[name + "_wqkv"] = w_qkv
        kp[name + "_bqkv"] = b_qkv
        kp[name + "_wproj"] = nat[name]["w2"]
        kp[name + "_bproj"] = nat[name]["b2"].reshape(1, emb)
        kp[name + "_bias"] = full_bias(nat[name]["pos"], shifted)
    kp["roll_perm"] = roll_perm()
    kp["mlp_w1"] = nat["mlp_w1"]
    kp["mlp_b1"] = nat["mlp_b1"].reshape(1, 4 * emb)
    kp["mlp_w2"] = nat["mlp_w2"]
    kp["mlp_b2"] = nat["mlp_b2"].reshape(1, emb)
    return kp


# --------------------------- pure-JAX reference (PyTorch mirror) ----------------

def _ref_ln(x, g, b):
    mu = jnp.mean(x, axis=-1, keepdims=True)
    var = jnp.mean(jnp.square(x - mu), axis=-1, keepdims=True)
    return (x - mu) * jax.lax.rsqrt(var + 1e-5) * g + b


def _ref_msa(x, p, num_heads, window_size, shifted):
    B, S, E = x.shape
    H, ws = num_heads, window_size
    hd = E // H
    height = width = int(round(math.sqrt(S)))
    n_wh, n_ww = height // ws, width // ws
    ws2 = ws * ws
    h_dim = E / H

    y = x @ p["w1"] + p["b1"]                               # linear1
    y = y.reshape(B, height, width, E, 3)                   # 'b (h w) (c k) -> b h w c k'
    if shifted:
        y = jnp.roll(y, shift=((-ws) // 2, (-ws) // 2), axis=(1, 2))
    y = y.reshape(B, n_wh, ws, n_ww, ws, hd, H, 3)          # '(Wh w1)(Ww w2)(e H) k'
    y = y.transpose(0, 6, 1, 3, 2, 4, 5, 7)                 # b H Wh Ww w1 w2 e k
    y = y.reshape(B, H, n_wh, n_ww, ws2, hd, 3)
    q, k, v = y[..., 0], y[..., 1], y[..., 2]
    wei = jnp.einsum("bhxyqe,bhxyke->bhxyqk", q, k) / np.sqrt(h_dim)
    rel_idx = relative_indices(ws)
    wei = wei + p["pos"][rel_idx[..., 0], rel_idx[..., 1]]
    if shifted:
        m = ws * (ws // 2)
        row_mask = np.zeros((ws2, ws2), np.float32)
        row_mask[-m:, :-m] = -1e9
        row_mask[:-m, -m:] = -1e9
        col_mask = row_mask.reshape(ws, ws, ws, ws).transpose(1, 0, 3, 2).reshape(ws2, ws2)
        wei = wei.at[:, :, -1, :, :, :].add(row_mask)
        wei = wei.at[:, :, :, -1, :, :].add(col_mask)
    attn = jax.nn.softmax(wei, axis=-1)
    o = jnp.einsum("bhxyqk,bhxyke->bhxyqe", attn, v)
    o = o.reshape(B, H, n_wh, n_ww, ws, ws, hd)
    o = o.transpose(0, 2, 4, 3, 5, 1, 6).reshape(B, S, E)   # -> 'b (Wh w1)(Ww w2)(H e)'
    return o @ p["w2"] + p["b2"]                            # linear2 (no reverse roll, as in spec)


def _ref_mlp(x, nat):
    h = x @ nat["mlp_w1"] + nat["mlp_b1"]
    h = 0.5 * h * (1.0 + jax.scipy.special.erf(h / np.sqrt(2.0)))
    return h @ nat["mlp_w2"] + nat["mlp_b2"]


def ref_swin_encoder(x, nat, num_heads, window_size):
    g, b = nat["ln_g"], nat["ln_b"]
    x = x + _ref_msa(_ref_ln(x, g, b), nat["wmsa"], num_heads, window_size, False)
    x = x + _ref_mlp(_ref_ln(x, g, b), nat)
    x = x + _ref_msa(_ref_ln(x, g, b), nat["swmsa"], num_heads, window_size, True)
    x = x + _ref_mlp(_ref_ln(x, g, b), nat)
    return x


# ---------------------------------- main -----------------------------------------

if __name__ == "__main__":
    key = jax.random.PRNGKey(0)
    kx, kparam = jax.random.split(key)
    x = jax.random.normal(kx, (BATCH, SEQ, EMB), jnp.float32)

    native = init_native_params(kparam, EMB, HEADS, WS)
    kernel_params = build_kernel_params(native, EMB, HEADS, WS, HGT, WID)

    fwd = jax.jit(swin_encoder_forward)
    out = jax.block_until_ready(fwd(x, kernel_params))

    ref = jax.block_until_ready(ref_swin_encoder(x, native, HEADS, WS))

    assert out.shape == (BATCH, SEQ, EMB)
    assert bool(jnp.all(jnp.isfinite(out)))
    max_err = float(jnp.max(jnp.abs(out - ref)))
    assert max_err < 5e-2, f"mismatch vs reference: {max_err}"
    print("KERNEL_OK")
</pallas_src>

<mosaic_0001>
module attributes {stable_mosaic.version = 11 : i64} {
  func.func @_swin_encoder_kernel(%arg0: memref<128x32xf32, #tpu.memory_space<vmem>>, %arg1: memref<1x32xf32, #tpu.memory_space<vmem>>, %arg2: memref<1x32xf32, #tpu.memory_space<vmem>>, %arg3: memref<32x96xf32, #tpu.memory_space<vmem>>, %arg4: memref<1x96xf32, #tpu.memory_space<vmem>>, %arg5: memref<32x32xf32, #tpu.memory_space<vmem>>, %arg6: memref<1x32xf32, #tpu.memory_space<vmem>>, %arg7: memref<64x64xf32, #tpu.memory_space<vmem>>, %arg8: memref<32x96xf32, #tpu.memory_space<vmem>>, %arg9: memref<1x96xf32, #tpu.memory_space<vmem>>, %arg10: memref<32x32xf32, #tpu.memory_space<vmem>>, %arg11: memref<1x32xf32, #tpu.memory_space<vmem>>, %arg12: memref<64x64xf32, #tpu.memory_space<vmem>>, %arg13: memref<64x64xf32, #tpu.memory_space<vmem>>, %arg14: memref<32x128xf32, #tpu.memory_space<vmem>>, %arg15: memref<1x128xf32, #tpu.memory_space<vmem>>, %arg16: memref<128x32xf32, #tpu.memory_space<vmem>>, %arg17: memref<1x32xf32, #tpu.memory_space<vmem>>, %arg18: memref<128x32xf32, #tpu.memory_space<vmem>>) attributes {dimension_semantics = [], scalar_prefetch = 0 : i64, scratch_operands = 0 : i64, tpu.core_type = #tpu.core_type<tc>} {
    %c0 = arith.constant 0 : index
    %c0_0 = arith.constant 0 : index
    %0 = vector.load %arg1[%c0, %c0_0] : memref<1x32xf32, #tpu.memory_space<vmem>>, vector<1x32xf32>
    %c0_1 = arith.constant 0 : index
    %c0_2 = arith.constant 0 : index
    %1 = vector.load %arg2[%c0_1, %c0_2] : memref<1x32xf32, #tpu.memory_space<vmem>>, vector<1x32xf32>
    %c0_3 = arith.constant 0 : index
    %c0_4 = arith.constant 0 : index
    %2 = vector.load %arg0[%c0_3, %c0_4] : memref<128x32xf32, #tpu.memory_space<vmem>>, vector<128x32xf32>
    %c0_5 = arith.constant 0 : index
    %c0_6 = arith.constant 0 : index
    %3 = vector.load %arg3[%c0_5, %c0_6] : memref<32x96xf32, #tpu.memory_space<vmem>>, vector<32x96xf32>
    %c0_7 = arith.constant 0 : index
    %c0_8 = arith.constant 0 : index
    %4 = vector.load %arg4[%c0_7, %c0_8] : memref<1x96xf32, #tpu.memory_space<vmem>>, vector<1x96xf32>
    %c0_9 = arith.constant 0 : index
    %c0_10 = arith.constant 0 : index
    %5 = vector.load %arg5[%c0_9, %c0_10] : memref<32x32xf32, #tpu.memory_space<vmem>>, vector<32x32xf32>
    %c0_11 = arith.constant 0 : index
    %c0_12 = arith.constant 0 : index
    %6 = vector.load %arg6[%c0_11, %c0_12] : memref<1x32xf32, #tpu.memory_space<vmem>>, vector<1x32xf32>
    %c0_13 = arith.constant 0 : index
    %c0_14 = arith.constant 0 : index
    %7 = vector.load %arg7[%c0_13, %c0_14] : memref<64x64xf32, #tpu.memory_space<vmem>>, vector<64x64xf32>
    %cst = arith.constant dense<0.000000e+00> : vector<128xf32>
    %8 = vector.multi_reduction <add>, %2, %cst [1] : vector<128x32xf32> to vector<128xf32>
    %9 = vector.shape_cast %8 : vector<128xf32> to vector<128x1xf32>
    %cst_15 = arith.constant 3.200000e+01 : f32
    %10 = vector.broadcast %cst_15 : f32 to vector<128x1xf32>
    %11 = arith.divf %9, %10 : vector<128x1xf32>
    %12 = vector.broadcast %11 : vector<128x1xf32> to vector<128x32xf32>
    %13 = arith.subf %2, %12 : vector<128x32xf32>
    %14 = arith.mulf %13, %13 : vector<128x32xf32>
    %cst_16 = arith.constant dense<0.000000e+00> : vector<128xf32>
    %15 = vector.multi_reduction <add>, %14, %cst_16 [1] : vector<128x32xf32> to vector<128xf32>
    %16 = vector.shape_cast %15 : vector<128xf32> to vector<128x1xf32>
    %cst_17 = arith.constant 3.200000e+01 : f32
    %17 = vector.broadcast %cst_17 : f32 to vector<128x1xf32>
    %18 = arith.divf %16, %17 : vector<128x1xf32>
    %19 = vector.broadcast %11 : vector<128x1xf32> to vector<128x32xf32>
    %20 = arith.subf %2, %19 : vector<128x32xf32>
    %cst_18 = arith.constant 9.99999974E-6 : f32
    %21 = vector.broadcast %cst_18 : f32 to vector<128x1xf32>
    %22 = arith.addf %18, %21 : vector<128x1xf32>
    %23 = math.rsqrt %22 : vector<128x1xf32>
    %24 = vector.broadcast %23 : vector<128x1xf32> to vector<128x32xf32>
    %25 = arith.mulf %20, %24 : vector<128x32xf32>
    %26 = vector.broadcast %0 : vector<1x32xf32> to vector<128x32xf32>
    %27 = arith.mulf %25, %26 : vector<128x32xf32>
    %28 = vector.broadcast %1 : vector<1x32xf32> to vector<128x32xf32>
    %29 = arith.addf %27, %28 : vector<128x32xf32>
    %30 = vector.extract_strided_slice %29 {offsets = [0, 0], sizes = [64, 32], strides = [1, 1]} : vector<128x32xf32> to vector<64x32xf32>
    %cst_19 = arith.constant dense<0.000000e+00> : vector<64x96xf32>
    %31 = tpu.matmul %30, %3, %cst_19 {dimension_numbers = #tpu.dot_dimension_numbers<[1], [0], [0], [1], [0, 0, 1, 1], [], []>} : vector<64x32xf32>, vector<32x96xf32>, vector<64x96xf32> -> vector<64x96xf32>
    %32 = vector.broadcast %4 : vector<1x96xf32> to vector<64x96xf32>
    %33 = arith.addf %31, %32 : vector<64x96xf32>
    %34 = vector.extract_strided_slice %33 {offsets = [0, 0], sizes = [64, 8], strides = [1, 1]} : vector<64x96xf32> to vector<64x8xf32>
    %35 = vector.extract_strided_slice %33 {offsets = [0, 32], sizes = [64, 8], strides = [1, 1]} : vector<64x96xf32> to vector<64x8xf32>
    %36 = vector.extract_strided_slice %33 {offsets = [0, 64], sizes = [64, 8], strides = [1, 1]} : vector<64x96xf32> to vector<64x8xf32>
    "tpu.trace_start"() <{level = 10 : i32, message = "qd,kd->qk"}> : () -> ()
    %cst_20 = arith.constant dense<0.000000e+00> : vector<64x64xf32>
    %37 = tpu.matmul %34, %35, %cst_20 {dimension_numbers = #tpu.dot_dimension_numbers<[1], [1], [0], [0], [0, 0, 1, 0], [], []>} : vector<64x8xf32>, vector<64x8xf32>, vector<64x64xf32> -> vector<64x64xf32>
    "tpu.trace_stop"() : () -> ()
    %38 = arith.addf %37, %7 : vector<64x64xf32>
    %cst_21 = arith.constant dense<0xFF800000> : vector<64xf32>
    %39 = vector.multi_reduction <maximumf>, %38, %cst_21 [1] : vector<64x64xf32> to vector<64xf32>
    %40 = vector.shape_cast %39 : vector<64xf32> to vector<64x1xf32>
    %41 = vector.broadcast %40 : vector<64x1xf32> to vector<64x64xf32>
    %42 = arith.subf %38, %41 : vector<64x64xf32>
    %43 = math.exp %42 : vector<64x64xf32>
    %cst_22 = arith.constant dense<0.000000e+00> : vector<64xf32>
    %44 = vector.multi_reduction <add>, %43, %cst_22 [1] : vector<64x64xf32> to vector<64xf32>
    %45 = vector.shape_cast %44 : vector<64xf32> to vector<64x1xf32>
    %46 = tpu.reciprocal %45 {approx = true} : vector<64x1xf32> -> vector<64x1xf32>
    %47 = vector.broadcast %46 : vector<64x1xf32> to vector<64x64xf32>
    %48 = arith.mulf %43, %47 : vector<64x64xf32>
    %cst_23 = arith.constant dense<0.000000e+00> : vector<64x8xf32>
    %49 = tpu.matmul %48, %36, %cst_23 {dimension_numbers = #tpu.dot_dimension_numbers<[1], [0], [0], [1], [0, 0, 1, 1], [], []>} : vector<64x64xf32>, vector<64x8xf32>, vector<64x8xf32> -> vector<64x8xf32>
    %50 = vector.extract_strided_slice %33 {offsets = [0, 8], sizes = [64, 8], strides = [1, 1]} : vector<64x96xf32> to vector<64x8xf32>
    %51 = vector.extract_strided_slice %33 {offsets = [0, 40], sizes = [64, 8], strides = [1, 1]} : vector<64x96xf32> to vector<64x8xf32>
    %52 = vector.extract_strided_slice %33 {offsets = [0, 72], sizes = [64, 8], strides = [1, 1]} : vector<64x96xf32> to vector<64x8xf32>
    "tpu.trace_start"() <{level = 10 : i32, message = "qd,kd->qk"}> : () -> ()
    %cst_24 = arith.constant dense<0.000000e+00> : vector<64x64xf32>
    %53 = tpu.matmul %50, %51, %cst_24 {dimension_numbers = #tpu.dot_dimension_numbers<[1], [1], [0], [0], [0, 0, 1, 0], [], []>} : vector<64x8xf32>, vector<64x8xf32>, vector<64x64xf32> -> vector<64x64xf32>
    "tpu.trace_stop"() : () -> ()
    %54 = arith.addf %53, %7 : vector<64x64xf32>
    %cst_25 = arith.constant dense<0xFF800000> : vector<64xf32>
    %55 = vector.multi_reduction <maximumf>, %54, %cst_25 [1] : vector<64x64xf32> to vector<64xf32>
    %56 = vector.shape_cast %55 : vector<64xf32> to vector<64x1xf32>
    %57 = vector.broadcast %56 : vector<64x1xf32> to vector<64x64xf32>
    %58 = arith.subf %54, %57 : vector<64x64xf32>
    %59 = math.exp %58 : vector<64x64xf32>
    %cst_26 = arith.constant dense<0.000000e+00> : vector<64xf32>
    %60 = vector.multi_reduction <add>, %59, %cst_26 [1] : vector<64x64xf32> to vector<64xf32>
    %61 = vector.shape_cast %60 : vector<64xf32> to vector<64x1xf32>
    %62 = tpu.reciprocal %61 {approx = true} : vector<64x1xf32> -> vector<64x1xf32>
    %63 = vector.broadcast %62 : vector<64x1xf32> to vector<64x64xf32>
    %64 = arith.mulf %59, %63 : vector<64x64xf32>
    %cst_27 = arith.constant dense<0.000000e+00> : vector<64x8xf32>
    %65 = tpu.matmul %64, %52, %cst_27 {dimension_numbers = #tpu.dot_dimension_numbers<[1], [0], [0], [1], [0, 0, 1, 1], [], []>} : vector<64x64xf32>, vector<64x8xf32>, vector<64x8xf32> -> vector<64x8xf32>
    %66 = vector.extract_strided_slice %33 {offsets = [0, 16], sizes = [64, 8], strides = [1, 1]} : vector<64x96xf32> to vector<64x8xf32>
    %67 = vector.extract_strided_slice %33 {offsets = [0, 48], sizes = [64, 8], strides = [1, 1]} : vector<64x96xf32> to vector<64x8xf32>
    %68 = vector.extract_strided_slice %33 {offsets = [0, 80], sizes = [64, 8], strides = [1, 1]} : vector<64x96xf32> to vector<64x8xf32>
    "tpu.trace_start"() <{level = 10 : i32, message = "qd,kd->qk"}> : () -> ()
    %cst_28 = arith.constant dense<0.000000e+00> : vector<64x64xf32>
    %69 = tpu.matmul %66, %67, %cst_28 {dimension_numbers = #tpu.dot_dimension_numbers<[1], [1], [0], [0], [0, 0, 1, 0], [], []>} : vector<64x8xf32>, vector<64x8xf32>, vector<64x64xf32> -> vector<64x64xf32>
    "tpu.trace_stop"() : () -> ()
    %70 = arith.addf %69, %7 : vector<64x64xf32>
    %cst_29 = arith.constant dense<0xFF800000> : vector<64xf32>
    %71 = vector.multi_reduction <maximumf>, %70, %cst_29 [1] : vector<64x64xf32> to vector<64xf32>
    %72 = vector.shape_cast %71 : vector<64xf32> to vector<64x1xf32>
    %73 = vector.broadcast %72 : vector<64x1xf32> to vector<64x64xf32>
    %74 = arith.subf %70, %73 : vector<64x64xf32>
    %75 = math.exp %74 : vector<64x64xf32>
    %cst_30 = arith.constant dense<0.000000e+00> : vector<64xf32>
    %76 = vector.multi_reduction <add>, %75, %cst_30 [1] : vector<64x64xf32> to vector<64xf32>
    %77 = vector.shape_cast %76 : vector<64xf32> to vector<64x1xf32>
    %78 = tpu.reciprocal %77 {approx = true} : vector<64x1xf32> -> vector<64x1xf32>
    %79 = vector.broadcast %78 : vector<64x1xf32> to vector<64x64xf32>
    %80 = arith.mulf %75, %79 : vector<64x64xf32>
    %cst_31 = arith.constant dense<0.000000e+00> : vector<64x8xf32>
    %81 = tpu.matmul %80, %68, %cst_31 {dimension_numbers = #tpu.dot_dimension_numbers<[1], [0], [0], [1], [0, 0, 1, 1], [], []>} : vector<64x64xf32>, vector<64x8xf32>, vector<64x8xf32> -> vector<64x8xf32>
    %82 = vector.extract_strided_slice %33 {offsets = [0, 24], sizes = [64, 8], strides = [1, 1]} : vector<64x96xf32> to vector<64x8xf32>
    %83 = vector.extract_strided_slice %33 {offsets = [0, 56], sizes = [64, 8], strides = [1, 1]} : vector<64x96xf32> to vector<64x8xf32>
    %84 = vector.extract_strided_slice %33 {offsets = [0, 88], sizes = [64, 8], strides = [1, 1]} : vector<64x96xf32> to vector<64x8xf32>
    "tpu.trace_start"() <{level = 10 : i32, message = "qd,kd->qk"}> : () -> ()
    %cst_32 = arith.constant dense<0.000000e+00> : vector<64x64xf32>
    %85 = tpu.matmul %82, %83, %cst_32 {dimension_numbers = #tpu.dot_dimension_numbers<[1], [1], [0], [0], [0, 0, 1, 0], [], []>} : vector<64x8xf32>, vector<64x8xf32>, vector<64x64xf32> -> vector<64x64xf32>
    "tpu.trace_stop"() : () -> ()
    %86 = arith.addf %85, %7 : vector<64x64xf32>
    %cst_33 = arith.constant dense<0xFF800000> : vector<64xf32>
    %87 = vector.multi_reduction <maximumf>, %86, %cst_33 [1] : vector<64x64xf32> to vector<64xf32>
    %88 = vector.shape_cast %87 : vector<64xf32> to vector<64x1xf32>
    %89 = vector.broadcast %88 : vector<64x1xf32> to vector<64x64xf32>
    %90 = arith.subf %86, %89 : vector<64x64xf32>
    %91 = math.exp %90 : vector<64x64xf32>
    %cst_34 = arith.constant dense<0.000000e+00> : vector<64xf32>
    %92 = vector.multi_reduction <add>, %91, %cst_34 [1] : vector<64x64xf32> to vector<64xf32>
    %93 = vector.shape_cast %92 : vector<64xf32> to vector<64x1xf32>
    %94 = tpu.reciprocal %93 {approx = true} : vector<64x1xf32> -> vector<64x1xf32>
    %95 = vector.broadcast %94 : vector<64x1xf32> to vector<64x64xf32>
    %96 = arith.mulf %91, %95 : vector<64x64xf32>
    %cst_35 = arith.constant dense<0.000000e+00> : vector<64x8xf32>
    %97 = tpu.matmul %96, %84, %cst_35 {dimension_numbers = #tpu.dot_dimension_numbers<[1], [0], [0], [1], [0, 0, 1, 1], [], []>} : vector<64x64xf32>, vector<64x8xf32>, vector<64x8xf32> -> vector<64x8xf32>
    %98 = tpu.concatenate %49, %65, %81, %97 in 1 : vector<64x8xf32>, vector<64x8xf32>, vector<64x8xf32>, vector<64x8xf32> -> vector<64x32xf32>
    %99 = vector.extract_strided_slice %29 {offsets = [64, 0], sizes = [64, 32], strides = [1, 1]} : vector<128x32xf32> to vector<64x32xf32>
    %cst_36 = arith.constant dense<0.000000e+00> : vector<64x96xf32>
    %100 = tpu.matmul %99, %3, %cst_36 {dimension_numbers = #tpu.dot_dimension_numbers<[1], [0], [0], [1], [0, 0, 1, 1], [], []>} : vector<64x32xf32>, vector<32x96xf32>, vector<64x96xf32> -> vector<64x96xf32>
    %101 = vector.broadcast %4 : vector<1x96xf32> to vector<64x96xf32>
    %102 = arith.addf %100, %101 : vector<64x96xf32>
    %103 = vector.extract_strided_slice %102 {offsets = [0, 0], sizes = [64, 8], strides = [1, 1]} : vector<64x96xf32> to vector<64x8xf32>
    %104 = vector.extract_strided_slice %102 {offsets = [0, 32], sizes = [64, 8], strides = [1, 1]} : vector<64x96xf32> to vector<64x8xf32>
    %105 = vector.extract_strided_slice %102 {offsets = [0, 64], sizes = [64, 8], strides = [1, 1]} : vector<64x96xf32> to vector<64x8xf32>
    "tpu.trace_start"() <{level = 10 : i32, message = "qd,kd->qk"}> : () -> ()
    %cst_37 = arith.constant dense<0.000000e+00> : vector<64x64xf32>
    %106 = tpu.matmul %103, %104, %cst_37 {dimension_numbers = #tpu.dot_dimension_numbers<[1], [1], [0], [0], [0, 0, 1, 0], [], []>} : vector<64x8xf32>, vector<64x8xf32>, vector<64x64xf32> -> vector<64x64xf32>
    "tpu.trace_stop"() : () -> ()
    %107 = arith.addf %106, %7 : vector<64x64xf32>
    %cst_38 = arith.constant dense<0xFF800000> : vector<64xf32>
    %108 = vector.multi_reduction <maximumf>, %107, %cst_38 [1] : vector<64x64xf32> to vector<64xf32>
    %109 = vector.shape_cast %108 : vector<64xf32> to vector<64x1xf32>
    %110 = vector.broadcast %109 : vector<64x1xf32> to vector<64x64xf32>
    %111 = arith.subf %107, %110 : vector<64x64xf32>
    %112 = math.exp %111 : vector<64x64xf32>
    %cst_39 = arith.constant dense<0.000000e+00> : vector<64xf32>
    %113 = vector.multi_reduction <add>, %112, %cst_39 [1] : vector<64x64xf32> to vector<64xf32>
    %114 = vector.shape_cast %113 : vector<64xf32> to vector<64x1xf32>
    %115 = tpu.reciprocal %114 {approx = true} : vector<64x1xf32> -> vector<64x1xf32>
    %116 = vector.broadcast %115 : vector<64x1xf32> to vector<64x64xf32>
    %117 = arith.mulf %112, %116 : vector<64x64xf32>
    %cst_40 = arith.constant dense<0.000000e+00> : vector<64x8xf32>
    %118 = tpu.matmul %117, %105, %cst_40 {dimension_numbers = #tpu.dot_dimension_numbers<[1], [0], [0], [1], [0, 0, 1, 1], [], []>} : vector<64x64xf32>, vector<64x8xf32>, vector<64x8xf32> -> vector<64x8xf32>
    %119 = vector.extract_strided_slice %102 {offsets = [0, 8], sizes = [64, 8], strides = [1, 1]} : vector<64x96xf32> to vector<64x8xf32>
    %120 = vector.extract_strided_slice %102 {offsets = [0, 40], sizes = [64, 8], strides = [1, 1]} : vector<64x96xf32> to vector<64x8xf32>
    %121 = vector.extract_strided_slice %102 {offsets = [0, 72], sizes = [64, 8], strides = [1, 1]} : vector<64x96xf32> to vector<64x8xf32>
    "tpu.trace_start"() <{level = 10 : i32, message = "qd,kd->qk"}> : () -> ()
    %cst_41 = arith.constant dense<0.000000e+00> : vector<64x64xf32>
    %122 = tpu.matmul %119, %120, %cst_41 {dimension_numbers = #tpu.dot_dimension_numbers<[1], [1], [0], [0], [0, 0, 1, 0], [], []>} : vector<64x8xf32>, vector<64x8xf32>, vector<64x64xf32> -> vector<64x64xf32>
    "tpu.trace_stop"() : () -> ()
    %123 = arith.addf %122, %7 : vector<64x64xf32>
    %cst_42 = arith.constant dense<0xFF800000> : vector<64xf32>
    %124 = vector.multi_reduction <maximumf>, %123, %cst_42 [1] : vector<64x64xf32> to vector<64xf32>
    %125 = vector.shape_cast %124 : vector<64xf32> to vector<64x1xf32>
    %126 = vector.broadcast %125 : vector<64x1xf32> to vector<64x64xf32>
    %127 = arith.subf %123, %126 : vector<64x64xf32>
    %128 = math.exp %127 : vector<64x64xf32>
    %cst_43 = arith.constant dense<0.000000e+00> : vector<64xf32>
    %129 = vector.multi_reduction <add>, %128, %cst_43 [1] : vector<64x64xf32> to vector<64xf32>
    %130 = vector.shape_cast %129 : vector<64xf32> to vector<64x1xf32>
    %131 = tpu.reciprocal %130 {approx = true} : vector<64x1xf32> -> vector<64x1xf32>
    %132 = vector.broadcast %131 : vector<64x1xf32> to vector<64x64xf32>
    %133 = arith.mulf %128, %132 : vector<64x64xf32>
    %cst_44 = arith.constant dense<0.000000e+00> : vector<64x8xf32>
    %134 = tpu.matmul %133, %121, %cst_44 {dimension_numbers = #tpu.dot_dimension_numbers<[1], [0], [0], [1], [0, 0, 1, 1], [], []>} : vector<64x64xf32>, vector<64x8xf32>, vector<64x8xf32> -> vector<64x8xf32>
    %135 = vector.extract_strided_slice %102 {offsets = [0, 16], sizes = [64, 8], strides = [1, 1]} : vector<64x96xf32> to vector<64x8xf32>
    %136 = vector.extract_strided_slice %102 {offsets = [0, 48], sizes = [64, 8], strides = [1, 1]} : vector<64x96xf32> to vector<64x8xf32>
    %137 = vector.extract_strided_slice %102 {offsets = [0, 80], sizes = [64, 8], strides = [1, 1]} : vector<64x96xf32> to vector<64x8xf32>
    "tpu.trace_start"() <{level = 10 : i32, message = "qd,kd->qk"}> : () -> ()
    %cst_45 = arith.constant dense<0.000000e+00> : vector<64x64xf32>
    %138 = tpu.matmul %135, %136, %cst_45 {dimension_numbers = #tpu.dot_dimension_numbers<[1], [1], [0], [0], [0, 0, 1, 0], [], []>} : vector<64x8xf32>, vector<64x8xf32>, vector<64x64xf32> -> vector<64x64xf32>
    "tpu.trace_stop"() : () -> ()
    %139 = arith.addf %138, %7 : vector<64x64xf32>
    %cst_46 = arith.constant dense<0xFF800000> : vector<64xf32>
    %140 = vector.multi_reduction <maximumf>, %139, %cst_46 [1] : vector<64x64xf32> to vector<64xf32>
    %141 = vector.shape_cast %140 : vector<64xf32> to vector<64x1xf32>
    %142 = vector.broadcast %141 : vector<64x1xf32> to vector<64x64xf32>
    %143 = arith.subf %139, %142 : vector<64x64xf32>
    %144 = math.exp %143 : vector<64x64xf32>
    %cst_47 = arith.constant dense<0.000000e+00> : vector<64xf32>
    %145 = vector.multi_reduction <add>, %144, %cst_47 [1] : vector<64x64xf32> to vector<64xf32>
    %146 = vector.shape_cast %145 : vector<64xf32> to vector<64x1xf32>
    %147 = tpu.reciprocal %146 {approx = true} : vector<64x1xf32> -> vector<64x1xf32>
    %148 = vector.broadcast %147 : vector<64x1xf32> to vector<64x64xf32>
    %149 = arith.mulf %144, %148 : vector<64x64xf32>
    %cst_48 = arith.constant dense<0.000000e+00> : vector<64x8xf32>
    %150 = tpu.matmul %149, %137, %cst_48 {dimension_numbers = #tpu.dot_dimension_numbers<[1], [0], [0], [1], [0, 0, 1, 1], [], []>} : vector<64x64xf32>, vector<64x8xf32>, vector<64x8xf32> -> vector<64x8xf32>
    %151 = vector.extract_strided_slice %102 {offsets = [0, 24], sizes = [64, 8], strides = [1, 1]} : vector<64x96xf32> to vector<64x8xf32>
    %152 = vector.extract_strided_slice %102 {offsets = [0, 56], sizes = [64, 8], strides = [1, 1]} : vector<64x96xf32> to vector<64x8xf32>
    %153 = vector.extract_strided_slice %102 {offsets = [0, 88], sizes = [64, 8], strides = [1, 1]} : vector<64x96xf32> to vector<64x8xf32>
    "tpu.trace_start"() <{level = 10 : i32, message = "qd,kd->qk"}> : () -> ()
    %cst_49 = arith.constant dense<0.000000e+00> : vector<64x64xf32>
    %154 = tpu.matmul %151, %152, %cst_49 {dimension_numbers = #tpu.dot_dimension_numbers<[1], [1], [0], [0], [0, 0, 1, 0], [], []>} : vector<64x8xf32>, vector<64x8xf32>, vector<64x64xf32> -> vector<64x64xf32>
    "tpu.trace_stop"() : () -> ()
    %155 = arith.addf %154, %7 : vector<64x64xf32>
    %cst_50 = arith.constant dense<0xFF800000> : vector<64xf32>
    %156 = vector.multi_reduction <maximumf>, %155, %cst_50 [1] : vector<64x64xf32> to vector<64xf32>
    %157 = vector.shape_cast %156 : vector<64xf32> to vector<64x1xf32>
    %158 = vector.broadcast %157 : vector<64x1xf32> to vector<64x64xf32>
    %159 = arith.subf %155, %158 : vector<64x64xf32>
    %160 = math.exp %159 : vector<64x64xf32>
    %cst_51 = arith.constant dense<0.000000e+00> : vector<64xf32>
    %161 = vector.multi_reduction <add>, %160, %cst_51 [1] : vector<64x64xf32> to vector<64xf32>
    %162 = vector.shape_cast %161 : vector<64xf32> to vector<64x1xf32>
    %163 = tpu.reciprocal %162 {approx = true} : vector<64x1xf32> -> vector<64x1xf32>
    %164 = vector.broadcast %163 : vector<64x1xf32> to vector<64x64xf32>
    %165 = arith.mulf %160, %164 : vector<64x64xf32>
    %cst_52 = arith.constant dense<0.000000e+00> : vector<64x8xf32>
    %166 = tpu.matmul %165, %153, %cst_52 {dimension_numbers = #tpu.dot_dimension_numbers<[1], [0], [0], [1], [0, 0, 1, 1], [], []>} : vector<64x64xf32>, vector<64x8xf32>, vector<64x8xf32> -> vector<64x8xf32>
    %167 = tpu.concatenate %118, %134, %150, %166 in 1 : vector<64x8xf32>, vector<64x8xf32>, vector<64x8xf32>, vector<64x8xf32> -> vector<64x32xf32>
    %168 = tpu.concatenate %98, %167 in 0 : vector<64x32xf32>, vector<64x32xf32> -> vector<128x32xf32>
    %cst_53 = arith.constant dense<0.000000e+00> : vector<128x32xf32>
    %169 = tpu.matmul %168, %5, %cst_53 {dimension_numbers = #tpu.dot_dimension_numbers<[1], [0], [0], [1], [0, 0, 1, 1], [], []>} : vector<128x32xf32>, vector<32x32xf32>, vector<128x32xf32> -> vector<128x32xf32>
    %170 = arith.addf %2, %169 : vector<128x32xf32>
    %171 = vector.broadcast %6 : vector<1x32xf32> to vector<128x32xf32>
    %172 = arith.addf %170, %171 : vector<128x32xf32>
    %cst_54 = arith.constant dense<0.000000e+00> : vector<128xf32>
    %173 = vector.multi_reduction <add>, %172, %cst_54 [1] : vector<128x32xf32> to vector<128xf32>
    %174 = vector.shape_cast %173 : vector<128xf32> to vector<128x1xf32>
    %cst_55 = arith.constant 3.200000e+01 : f32
    %175 = vector.broadcast %cst_55 : f32 to vector<128x1xf32>
    %176 = arith.divf %174, %175 : vector<128x1xf32>
    %177 = vector.broadcast %176 : vector<128x1xf32> to vector<128x32xf32>
    %178 = arith.subf %172, %177 : vector<128x32xf32>
    %179 = arith.mulf %178, %178 : vector<128x32xf32>
    %cst_56 = arith.constant dense<0.000000e+00> : vector<128xf32>
    %180 = vector.multi_reduction <add>, %179, %cst_56 [1] : vector<128x32xf32> to vector<128xf32>
    %181 = vector.shape_cast %180 : vector<128xf32> to vector<128x1xf32>
    %cst_57 = arith.constant 3.200000e+01 : f32
    %182 = vector.broadcast %cst_57 : f32 to vector<128x1xf32>
    %183 = arith.divf %181, %182 : vector<128x1xf32>
    %184 = vector.broadcast %176 : vector<128x1xf32> to vector<128x32xf32>
    %185 = arith.subf %172, %184 : vector<128x32xf32>
    %cst_58 = arith.constant 9.99999974E-6 : f32
    %186 = vector.broadcast %cst_58 : f32 to vector<128x1xf32>
    %187 = arith.addf %183, %186 : vector<128x1xf32>
    %188 = math.rsqrt %187 : vector<128x1xf32>
    %189 = vector.broadcast %188 : vector<128x1xf32> to vector<128x32xf32>
    %190 = arith.mulf %185, %189 : vector<128x32xf32>
    %191 = vector.broadcast %0 : vector<1x32xf32> to vector<128x32xf32>
    %192 = arith.mulf %190, %191 : vector<128x32xf32>
    %193 = vector.broadcast %1 : vector<1x32xf32> to vector<128x32xf32>
    %194 = arith.addf %192, %193 : vector<128x32xf32>
    %c0_59 = arith.constant 0 : index
    %c0_60 = arith.constant 0 : index
    %195 = vector.load %arg14[%c0_59, %c0_60] : memref<32x128xf32, #tpu.memory_space<vmem>>, vector<32x128xf32>
    %cst_61 = arith.constant dense<0.000000e+00> : vector<128x128xf32>
    %196 = tpu.matmul %194, %195, %cst_61 {dimension_numbers = #tpu.dot_dimension_numbers<[1], [0], [0], [1], [0, 0, 1, 1], [], []>} : vector<128x32xf32>, vector<32x128xf32>, vector<128x128xf32> -> vector<128x128xf32>
    %c0_62 = arith.constant 0 : index
    %c0_63 = arith.constant 0 : index
    %197 = vector.load %arg15[%c0_62, %c0_63] : memref<1x128xf32, #tpu.memory_space<vmem>>, vector<1x128xf32>
    %198 = vector.broadcast %197 : vector<1x128xf32> to vector<128x128xf32>
    %199 = arith.addf %196, %198 : vector<128x128xf32>
    %cst_64 = arith.constant 5.000000e-01 : f32
    %200 = vector.broadcast %cst_64 : f32 to vector<128x128xf32>
    %201 = arith.mulf %200, %199 : vector<128x128xf32>
    %cst_65 = arith.constant 0.707106769 : f32
    %202 = vector.broadcast %cst_65 : f32 to vector<128x128xf32>
    %203 = arith.mulf %199, %202 : vector<128x128xf32>
    %204 = math.erf %203 : vector<128x128xf32>
    %cst_66 = arith.constant 1.000000e+00 : f32
    %205 = vector.broadcast %cst_66 : f32 to vector<128x128xf32>
    %206 = arith.addf %205, %204 : vector<128x128xf32>
    %207 = arith.mulf %201, %206 : vector<128x128xf32>
    %c0_67 = arith.constant 0 : index
    %c0_68 = arith.constant 0 : index
    %208 = vector.load %arg16[%c0_67, %c0_68] : memref<128x32xf32, #tpu.memory_space<vmem>>, vector<128x32xf32>
    %cst_69 = arith.constant dense<0.000000e+00> : vector<128x32xf32>
    %209 = tpu.matmul %207, %208, %cst_69 {dimension_numbers = #tpu.dot_dimension_numbers<[1], [0], [0], [1], [0, 0, 1, 1], [], []>} : vector<128x128xf32>, vector<128x32xf32>, vector<128x32xf32> -> vector<128x32xf32>
    %210 = arith.addf %172, %209 : vector<128x32xf32>
    %c0_70 = arith.constant 0 : index
    %c0_71 = arith.constant 0 : index
    %211 = vector.load %arg17[%c0_70, %c0_71] : memref<1x32xf32, #tpu.memory_space<vmem>>, vector<1x32xf32>
    %212 = vector.broadcast %211 : vector<1x32xf32> to vector<128x32xf32>
    %213 = arith.addf %210, %212 : vector<128x32xf32>
    %c0_72 = arith.constant 0 : index
    %c0_73 = arith.constant 0 : index
    %214 = vector.load %arg8[%c0_72, %c0_73] : memref<32x96xf32, #tpu.memory_space<vmem>>, vector<32x96xf32>
    %c0_74 = arith.constant 0 : index
    %c0_75 = arith.constant 0 : index
    %215 = vector.load %arg9[%c0_74, %c0_75] : memref<1x96xf32, #tpu.memory_space<vmem>>, vector<1x96xf32>
    %c0_76 = arith.constant 0 : index
    %c0_77 = arith.constant 0 : index
    %216 = vector.load %arg10[%c0_76, %c0_77] : memref<32x32xf32, #tpu.memory_space<vmem>>, vector<32x32xf32>
    %c0_78 = arith.constant 0 : index
    %c0_79 = arith.constant 0 : index
    %217 = vector.load %arg11[%c0_78, %c0_79] : memref<1x32xf32, #tpu.memory_space<vmem>>, vector<1x32xf32>
    %c0_80 = arith.constant 0 : index
    %c0_81 = arith.constant 0 : index
    %218 = vector.load %arg12[%c0_80, %c0_81] : memref<64x64xf32, #tpu.memory_space<vmem>>, vector<64x64xf32>
    %cst_82 = arith.constant dense<0.000000e+00> : vector<128xf32>
    %219 = vector.multi_reduction <add>, %213, %cst_82 [1] : vector<128x32xf32> to vector<128xf32>
    %220 = vector.shape_cast %219 : vector<128xf32> to vector<128x1xf32>
    %cst_83 = arith.constant 3.200000e+01 : f32
    %221 = vector.broadcast %cst_83 : f32 to vector<128x1xf32>
    %222 = arith.divf %220, %221 : vector<128x1xf32>
    %223 = vector.broadcast %222 : vector<128x1xf32> to vector<128x32xf32>
    %224 = arith.subf %213, %223 : vector<128x32xf32>
    %225 = arith.mulf %224, %224 : vector<128x32xf32>
    %cst_84 = arith.constant dense<0.000000e+00> : vector<128xf32>
    %226 = vector.multi_reduction <add>, %225, %cst_84 [1] : vector<128x32xf32> to vector<128xf32>
    %227 = vector.shape_cast %226 : vector<128xf32> to vector<128x1xf32>
    %cst_85 = arith.constant 3.200000e+01 : f32
    %228 = vector.broadcast %cst_85 : f32 to vector<128x1xf32>
    %229 = arith.divf %227, %228 : vector<128x1xf32>
    %230 = vector.broadcast %222 : vector<128x1xf32> to vector<128x32xf32>
    %231 = arith.subf %213, %230 : vector<128x32xf32>
    %cst_86 = arith.constant 9.99999974E-6 : f32
    %232 = vector.broadcast %cst_86 : f32 to vector<128x1xf32>
    %233 = arith.addf %229, %232 : vector<128x1xf32>
    %234 = math.rsqrt %233 : vector<128x1xf32>
    %235 = vector.broadcast %234 : vector<128x1xf32> to vector<128x32xf32>
    %236 = arith.mulf %231, %235 : vector<128x32xf32>
    %237 = vector.broadcast %0 : vector<1x32xf32> to vector<128x32xf32>
    %238 = arith.mulf %236, %237 : vector<128x32xf32>
    %239 = vector.broadcast %1 : vector<1x32xf32> to vector<128x32xf32>
    %240 = arith.addf %238, %239 : vector<128x32xf32>
    %241 = vector.extract_strided_slice %240 {offsets = [0, 0], sizes = [64, 32], strides = [1, 1]} : vector<128x32xf32> to vector<64x32xf32>
    %c0_87 = arith.constant 0 : index
    %c0_88 = arith.constant 0 : index
    %242 = vector.load %arg13[%c0_87, %c0_88] : memref<64x64xf32, #tpu.memory_space<vmem>>, vector<64x64xf32>
    %cst_89 = arith.constant dense<0.000000e+00> : vector<64x32xf32>
    %243 = tpu.matmul %242, %241, %cst_89 {dimension_numbers = #tpu.dot_dimension_numbers<[1], [0], [0], [1], [0, 0, 1, 1], [], []>} : vector<64x64xf32>, vector<64x32xf32>, vector<64x32xf32> -> vector<64x32xf32>
    %cst_90 = arith.constant dense<0.000000e+00> : vector<64x96xf32>
    %244 = tpu.matmul %243, %214, %cst_90 {dimension_numbers = #tpu.dot_dimension_numbers<[1], [0], [0], [1], [0, 0, 1, 1], [], []>} : vector<64x32xf32>, vector<32x96xf32>, vector<64x96xf32> -> vector<64x96xf32>
    %245 = vector.broadcast %215 : vector<1x96xf32> to vector<64x96xf32>
    %246 = arith.addf %244, %245 : vector<64x96xf32>
    %247 = vector.extract_strided_slice %246 {offsets = [0, 0], sizes = [64, 8], strides = [1, 1]} : vector<64x96xf32> to vector<64x8xf32>
    %248 = vector.extract_strided_slice %246 {offsets = [0, 32], sizes = [64, 8], strides = [1, 1]} : vector<64x96xf32> to vector<64x8xf32>
    %249 = vector.extract_strided_slice %246 {offsets = [0, 64], sizes = [64, 8], strides = [1, 1]} : vector<64x96xf32> to vector<64x8xf32>
    "tpu.trace_start"() <{level = 10 : i32, message = "qd,kd->qk"}> : () -> ()
    %cst_91 = arith.constant dense<0.000000e+00> : vector<64x64xf32>
    %250 = tpu.matmul %247, %248, %cst_91 {dimension_numbers = #tpu.dot_dimension_numbers<[1], [1], [0], [0], [0, 0, 1, 0], [], []>} : vector<64x8xf32>, vector<64x8xf32>, vector<64x64xf32> -> vector<64x64xf32>
    "tpu.trace_stop"() : () -> ()
    %251 = arith.addf %250, %218 : vector<64x64xf32>
    %cst_92 = arith.constant dense<0xFF800000> : vector<64xf32>
    %252 = vector.multi_reduction <maximumf>, %251, %cst_92 [1] : vector<64x64xf32> to vector<64xf32>
    %253 = vector.shape_cast %252 : vector<64xf32> to vector<64x1xf32>
    %254 = vector.broadcast %253 : vector<64x1xf32> to vector<64x64xf32>
    %255 = arith.subf %251, %254 : vector<64x64xf32>
    %256 = math.exp %255 : vector<64x64xf32>
    %cst_93 = arith.constant dense<0.000000e+00> : vector<64xf32>
    %257 = vector.multi_reduction <add>, %256, %cst_93 [1] : vector<64x64xf32> to vector<64xf32>
    %258 = vector.shape_cast %257 : vector<64xf32> to vector<64x1xf32>
    %259 = tpu.reciprocal %258 {approx = true} : vector<64x1xf32> -> vector<64x1xf32>
    %260 = vector.broadcast %259 : vector<64x1xf32> to vector<64x64xf32>
    %261 = arith.mulf %256, %260 : vector<64x64xf32>
    %cst_94 = arith.constant dense<0.000000e+00> : vector<64x8xf32>
    %262 = tpu.matmul %261, %249, %cst_94 {dimension_numbers = #tpu.dot_dimension_numbers<[1], [0], [0], [1], [0, 0, 1, 1], [], []>} : vector<64x64xf32>, vector<64x8xf32>, vector<64x8xf32> -> vector<64x8xf32>
    %263 = vector.extract_strided_slice %246 {offsets = [0, 8], sizes = [64, 8], strides = [1, 1]} : vector<64x96xf32> to vector<64x8xf32>
    %264 = vector.extract_strided_slice %246 {offsets = [0, 40], sizes = [64, 8], strides = [1, 1]} : vector<64x96xf32> to vector<64x8xf32>
    %265 = vector.extract_strided_slice %246 {offsets = [0, 72], sizes = [64, 8], strides = [1, 1]} : vector<64x96xf32> to vector<64x8xf32>
    "tpu.trace_start"() <{level = 10 : i32, message = "qd,kd->qk"}> : () -> ()
    %cst_95 = arith.constant dense<0.000000e+00> : vector<64x64xf32>
    %266 = tpu.matmul %263, %264, %cst_95 {dimension_numbers = #tpu.dot_dimension_numbers<[1], [1], [0], [0], [0, 0, 1, 0], [], []>} : vector<64x8xf32>, vector<64x8xf32>, vector<64x64xf32> -> vector<64x64xf32>
    "tpu.trace_stop"() : () -> ()
    %267 = arith.addf %266, %218 : vector<64x64xf32>
    %cst_96 = arith.constant dense<0xFF800000> : vector<64xf32>
    %268 = vector.multi_reduction <maximumf>, %267, %cst_96 [1] : vector<64x64xf32> to vector<64xf32>
    %269 = vector.shape_cast %268 : vector<64xf32> to vector<64x1xf32>
    %270 = vector.broadcast %269 : vector<64x1xf32> to vector<64x64xf32>
    %271 = arith.subf %267, %270 : vector<64x64xf32>
    %272 = math.exp %271 : vector<64x64xf32>
    %cst_97 = arith.constant dense<0.000000e+00> : vector<64xf32>
    %273 = vector.multi_reduction <add>, %272, %cst_97 [1] : vector<64x64xf32> to vector<64xf32>
    %274 = vector.shape_cast %273 : vector<64xf32> to vector<64x1xf32>
    %275 = tpu.reciprocal %274 {approx = true} : vector<64x1xf32> -> vector<64x1xf32>
    %276 = vector.broadcast %275 : vector<64x1xf32> to vector<64x64xf32>
    %277 = arith.mulf %272, %276 : vector<64x64xf32>
    %cst_98 = arith.constant dense<0.000000e+00> : vector<64x8xf32>
    %278 = tpu.matmul %277, %265, %cst_98 {dimension_numbers = #tpu.dot_dimension_numbers<[1], [0], [0], [1], [0, 0, 1, 1], [], []>} : vector<64x64xf32>, vector<64x8xf32>, vector<64x8xf32> -> vector<64x8xf32>
    %279 = vector.extract_strided_slice %246 {offsets = [0, 16], sizes = [64, 8], strides = [1, 1]} : vector<64x96xf32> to vector<64x8xf32>
    %280 = vector.extract_strided_slice %246 {offsets = [0, 48], sizes = [64, 8], strides = [1, 1]} : vector<64x96xf32> to vector<64x8xf32>
    %281 = vector.extract_strided_slice %246 {offsets = [0, 80], sizes = [64, 8], strides = [1, 1]} : vector<64x96xf32> to vector<64x8xf32>
    "tpu.trace_start"() <{level = 10 : i32, message = "qd,kd->qk"}> : () -> ()
    %cst_99 = arith.constant dense<0.000000e+00> : vector<64x64xf32>
    %282 = tpu.matmul %279, %280, %cst_99 {dimension_numbers = #tpu.dot_dimension_numbers<[1], [1], [0], [0], [0, 0, 1, 0], [], []>} : vector<64x8xf32>, vector<64x8xf32>, vector<64x64xf32> -> vector<64x64xf32>
    "tpu.trace_stop"() : () -> ()
    %283 = arith.addf %282, %218 : vector<64x64xf32>
    %cst_100 = arith.constant dense<0xFF800000> : vector<64xf32>
    %284 = vector.multi_reduction <maximumf>, %283, %cst_100 [1] : vector<64x64xf32> to vector<64xf32>
    %285 = vector.shape_cast %284 : vector<64xf32> to vector<64x1xf32>
    %286 = vector.broadcast %285 : vector<64x1xf32> to vector<64x64xf32>
    %287 = arith.subf %283, %286 : vector<64x64xf32>
    %288 = math.exp %287 : vector<64x64xf32>
    %cst_101 = arith.constant dense<0.000000e+00> : vector<64xf32>
    %289 = vector.multi_reduction <add>, %288, %cst_101 [1] : vector<64x64xf32> to vector<64xf32>
    %290 = vector.shape_cast %289 : vector<64xf32> to vector<64x1xf32>
    %291 = tpu.reciprocal %290 {approx = true} : vector<64x1xf32> -> vector<64x1xf32>
    %292 = vector.broadcast %291 : vector<64x1xf32> to vector<64x64xf32>
    %293 = arith.mulf %288, %292 : vector<64x64xf32>
    %cst_102 = arith.constant dense<0.000000e+00> : vector<64x8xf32>
    %294 = tpu.matmul %293, %281, %cst_102 {dimension_numbers = #tpu.dot_dimension_numbers<[1], [0], [0], [1], [0, 0, 1, 1], [], []>} : vector<64x64xf32>, vector<64x8xf32>, vector<64x8xf32> -> vector<64x8xf32>
    %295 = vector.extract_strided_slice %246 {offsets = [0, 24], sizes = [64, 8], strides = [1, 1]} : vector<64x96xf32> to vector<64x8xf32>
    %296 = vector.extract_strided_slice %246 {offsets = [0, 56], sizes = [64, 8], strides = [1, 1]} : vector<64x96xf32> to vector<64x8xf32>
    %297 = vector.extract_strided_slice %246 {offsets = [0, 88], sizes = [64, 8], strides = [1, 1]} : vector<64x96xf32> to vector<64x8xf32>
    "tpu.trace_start"() <{level = 10 : i32, message = "qd,kd->qk"}> : () -> ()
    %cst_103 = arith.constant dense<0.000000e+00> : vector<64x64xf32>
    %298 = tpu.matmul %295, %296, %cst_103 {dimension_numbers = #tpu.dot_dimension_numbers<[1], [1], [0], [0], [0, 0, 1, 0], [], []>} : vector<64x8xf32>, vector<64x8xf32>, vector<64x64xf32> -> vector<64x64xf32>
    "tpu.trace_stop"() : () -> ()
    %299 = arith.addf %298, %218 : vector<64x64xf32>
    %cst_104 = arith.constant dense<0xFF800000> : vector<64xf32>
    %300 = vector.multi_reduction <maximumf>, %299, %cst_104 [1] : vector<64x64xf32> to vector<64xf32>
    %301 = vector.shape_cast %300 : vector<64xf32> to vector<64x1xf32>
    %302 = vector.broadcast %301 : vector<64x1xf32> to vector<64x64xf32>
    %303 = arith.subf %299, %302 : vector<64x64xf32>
    %304 = math.exp %303 : vector<64x64xf32>
    %cst_105 = arith.constant dense<0.000000e+00> : vector<64xf32>
    %305 = vector.multi_reduction <add>, %304, %cst_105 [1] : vector<64x64xf32> to vector<64xf32>
    %306 = vector.shape_cast %305 : vector<64xf32> to vector<64x1xf32>
    %307 = tpu.reciprocal %306 {approx = true} : vector<64x1xf32> -> vector<64x1xf32>
    %308 = vector.broadcast %307 : vector<64x1xf32> to vector<64x64xf32>
    %309 = arith.mulf %304, %308 : vector<64x64xf32>
    %cst_106 = arith.constant dense<0.000000e+00> : vector<64x8xf32>
    %310 = tpu.matmul %309, %297, %cst_106 {dimension_numbers = #tpu.dot_dimension_numbers<[1], [0], [0], [1], [0, 0, 1, 1], [], []>} : vector<64x64xf32>, vector<64x8xf32>, vector<64x8xf32> -> vector<64x8xf32>
    %311 = tpu.concatenate %262, %278, %294, %310 in 1 : vector<64x8xf32>, vector<64x8xf32>, vector<64x8xf32>, vector<64x8xf32> -> vector<64x32xf32>
    %312 = vector.extract_strided_slice %240 {offsets = [64, 0], sizes = [64, 32], strides = [1, 1]} : vector<128x32xf32> to vector<64x32xf32>
    %c0_107 = arith.constant 0 : index
    %c0_108 = arith.constant 0 : index
    %313 = vector.load %arg13[%c0_107, %c0_108] : memref<64x64xf32, #tpu.memory_space<vmem>>, vector<64x64xf32>
    %cst_109 = arith.constant dense<0.000000e+00> : vector<64x32xf32>
    %314 = tpu.matmul %313, %312, %cst_109 {dimension_numbers = #tpu.dot_dimension_numbers<[1], [0], [0], [1], [0, 0, 1, 1], [], []>} : vector<64x64xf32>, vector<64x32xf32>, vector<64x32xf32> -> vector<64x32xf32>
    %cst_110 = arith.constant dense<0.000000e+00> : vector<64x96xf32>
    %315 = tpu.matmul %314, %214, %cst_110 {dimension_numbers = #tpu.dot_dimension_numbers<[1], [0], [0], [1], [0, 0, 1, 1], [], []>} : vector<64x32xf32>, vector<32x96xf32>, vector<64x96xf32> -> vector<64x96xf32>
    %316 = vector.broadcast %215 : vector<1x96xf32> to vector<64x96xf32>
    %317 = arith.addf %315, %316 : vector<64x96xf32>
    %318 = vector.extract_strided_slice %317 {offsets = [0, 0], sizes = [64, 8], strides = [1, 1]} : vector<64x96xf32> to vector<64x8xf32>
    %319 = vector.extract_strided_slice %317 {offsets = [0, 32], sizes = [64, 8], strides = [1, 1]} : vector<64x96xf32> to vector<64x8xf32>
    %320 = vector.extract_strided_slice %317 {offsets = [0, 64], sizes = [64, 8], strides = [1, 1]} : vector<64x96xf32> to vector<64x8xf32>
    "tpu.trace_start"() <{level = 10 : i32, message = "qd,kd->qk"}> : () -> ()
    %cst_111 = arith.constant dense<0.000000e+00> : vector<64x64xf32>
    %321 = tpu.matmul %318, %319, %cst_111 {dimension_numbers = #tpu.dot_dimension_numbers<[1], [1], [0], [0], [0, 0, 1, 0], [], []>} : vector<64x8xf32>, vector<64x8xf32>, vector<64x64xf32> -> vector<64x64xf32>
    "tpu.trace_stop"() : () -> ()
    %322 = arith.addf %321, %218 : vector<64x64xf32>
    %cst_112 = arith.constant dense<0xFF800000> : vector<64xf32>
    %323 = vector.multi_reduction <maximumf>, %322, %cst_112 [1] : vector<64x64xf32> to vector<64xf32>
    %324 = vector.shape_cast %323 : vector<64xf32> to vector<64x1xf32>
    %325 = vector.broadcast %324 : vector<64x1xf32> to vector<64x64xf32>
    %326 = arith.subf %322, %325 : vector<64x64xf32>
    %327 = math.exp %326 : vector<64x64xf32>
    %cst_113 = arith.constant dense<0.000000e+00> : vector<64xf32>
    %328 = vector.multi_reduction <add>, %327, %cst_113 [1] : vector<64x64xf32> to vector<64xf32>
    %329 = vector.shape_cast %328 : vector<64xf32> to vector<64x1xf32>
    %330 = tpu.reciprocal %329 {approx = true} : vector<64x1xf32> -> vector<64x1xf32>
    %331 = vector.broadcast %330 : vector<64x1xf32> to vector<64x64xf32>
    %332 = arith.mulf %327, %331 : vector<64x64xf32>
    %cst_114 = arith.constant dense<0.000000e+00> : vector<64x8xf32>
    %333 = tpu.matmul %332, %320, %cst_114 {dimension_numbers = #tpu.dot_dimension_numbers<[1], [0], [0], [1], [0, 0, 1, 1], [], []>} : vector<64x64xf32>, vector<64x8xf32>, vector<64x8xf32> -> vector<64x8xf32>
    %334 = vector.extract_strided_slice %317 {offsets = [0, 8], sizes = [64, 8], strides = [1, 1]} : vector<64x96xf32> to vector<64x8xf32>
    %335 = vector.extract_strided_slice %317 {offsets = [0, 40], sizes = [64, 8], strides = [1, 1]} : vector<64x96xf32> to vector<64x8xf32>
    %336 = vector.extract_strided_slice %317 {offsets = [0, 72], sizes = [64, 8], strides = [1, 1]} : vector<64x96xf32> to vector<64x8xf32>
    "tpu.trace_start"() <{level = 10 : i32, message = "qd,kd->qk"}> : () -> ()
    %cst_115 = arith.constant dense<0.000000e+00> : vector<64x64xf32>
    %337 = tpu.matmul %334, %335, %cst_115 {dimension_numbers = #tpu.dot_dimension_numbers<[1], [1], [0], [0], [0, 0, 1, 0], [], []>} : vector<64x8xf32>, vector<64x8xf32>, vector<64x64xf32> -> vector<64x64xf32>
    "tpu.trace_stop"() : () -> ()
    %338 = arith.addf %337, %218 : vector<64x64xf32>
    %cst_116 = arith.constant dense<0xFF800000> : vector<64xf32>
    %339 = vector.multi_reduction <maximumf>, %338, %cst_116 [1] : vector<64x64xf32> to vector<64xf32>
    %340 = vector.shape_cast %339 : vector<64xf32> to vector<64x1xf32>
    %341 = vector.broadcast %340 : vector<64x1xf32> to vector<64x64xf32>
    %342 = arith.subf %338, %341 : vector<64x64xf32>
    %343 = math.exp %342 : vector<64x64xf32>
    %cst_117 = arith.constant dense<0.000000e+00> : vector<64xf32>
    %344 = vector.multi_reduction <add>, %343, %cst_117 [1] : vector<64x64xf32> to vector<64xf32>
    %345 = vector.shape_cast %344 : vector<64xf32> to vector<64x1xf32>
    %346 = tpu.reciprocal %345 {approx = true} : vector<64x1xf32> -> vector<64x1xf32>
    %347 = vector.broadcast %346 : vector<64x1xf32> to vector<64x64xf32>
    %348 = arith.mulf %343, %347 : vector<64x64xf32>
    %cst_118 = arith.constant dense<0.000000e+00> : vector<64x8xf32>
    %349 = tpu.matmul %348, %336, %cst_118 {dimension_numbers = #tpu.dot_dimension_numbers<[1], [0], [0], [1], [0, 0, 1, 1], [], []>} : vector<64x64xf32>, vector<64x8xf32>, vector<64x8xf32> -> vector<64x8xf32>
    %350 = vector.extract_strided_slice %317 {offsets = [0, 16], sizes = [64, 8], strides = [1, 1]} : vector<64x96xf32> to vector<64x8xf32>
    %351 = vector.extract_strided_slice %317 {offsets = [0, 48], sizes = [64, 8], strides = [1, 1]} : vector<64x96xf32> to vector<64x8xf32>
    %352 = vector.extract_strided_slice %317 {offsets = [0, 80], sizes = [64, 8], strides = [1, 1]} : vector<64x96xf32> to vector<64x8xf32>
    "tpu.trace_start"() <{level = 10 : i32, message = "qd,kd->qk"}> : () -> ()
    %cst_119 = arith.constant dense<0.000000e+00> : vector<64x64xf32>
    %353 = tpu.matmul %350, %351, %cst_119 {dimension_numbers = #tpu.dot_dimension_numbers<[1], [1], [0], [0], [0, 0, 1, 0], [], []>} : vector<64x8xf32>, vector<64x8xf32>, vector<64x64xf32> -> vector<64x64xf32>
    "tpu.trace_stop"() : () -> ()
    %354 = arith.addf %353, %218 : vector<64x64xf32>
    %cst_120 = arith.constant dense<0xFF800000> : vector<64xf32>
    %355 = vector.multi_reduction <maximumf>, %354, %cst_120 [1] : vector<64x64xf32> to vector<64xf32>
    %356 = vector.shape_cast %355 : vector<64xf32> to vector<64x1xf32>
    %357 = vector.broadcast %356 : vector<64x1xf32> to vector<64x64xf32>
    %358 = arith.subf %354, %357 : vector<64x64xf32>
    %359 = math.exp %358 : vector<64x64xf32>
    %cst_121 = arith.constant dense<0.000000e+00> : vector<64xf32>
    %360 = vector.multi_reduction <add>, %359, %cst_121 [1] : vector<64x64xf32> to vector<64xf32>
    %361 = vector.shape_cast %360 : vector<64xf32> to vector<64x1xf32>
    %362 = tpu.reciprocal %361 {approx = true} : vector<64x1xf32> -> vector<64x1xf32>
    %363 = vector.broadcast %362 : vector<64x1xf32> to vector<64x64xf32>
    %364 = arith.mulf %359, %363 : vector<64x64xf32>
    %cst_122 = arith.constant dense<0.000000e+00> : vector<64x8xf32>
    %365 = tpu.matmul %364, %352, %cst_122 {dimension_numbers = #tpu.dot_dimension_numbers<[1], [0], [0], [1], [0, 0, 1, 1], [], []>} : vector<64x64xf32>, vector<64x8xf32>, vector<64x8xf32> -> vector<64x8xf32>
    %366 = vector.extract_strided_slice %317 {offsets = [0, 24], sizes = [64, 8], strides = [1, 1]} : vector<64x96xf32> to vector<64x8xf32>
    %367 = vector.extract_strided_slice %317 {offsets = [0, 56], sizes = [64, 8], strides = [1, 1]} : vector<64x96xf32> to vector<64x8xf32>
    %368 = vector.extract_strided_slice %317 {offsets = [0, 88], sizes = [64, 8], strides = [1, 1]} : vector<64x96xf32> to vector<64x8xf32>
    "tpu.trace_start"() <{level = 10 : i32, message = "qd,kd->qk"}> : () -> ()
    %cst_123 = arith.constant dense<0.000000e+00> : vector<64x64xf32>
    %369 = tpu.matmul %366, %367, %cst_123 {dimension_numbers = #tpu.dot_dimension_numbers<[1], [1], [0], [0], [0, 0, 1, 0], [], []>} : vector<64x8xf32>, vector<64x8xf32>, vector<64x64xf32> -> vector<64x64xf32>
    "tpu.trace_stop"() : () -> ()
    %370 = arith.addf %369, %218 : vector<64x64xf32>
    %cst_124 = arith.constant dense<0xFF800000> : vector<64xf32>
    %371 = vector.multi_reduction <maximumf>, %370, %cst_124 [1] : vector<64x64xf32> to vector<64xf32>
    %372 = vector.shape_cast %371 : vector<64xf32> to vector<64x1xf32>
    %373 = vector.broadcast %372 : vector<64x1xf32> to vector<64x64xf32>
    %374 = arith.subf %370, %373 : vector<64x64xf32>
    %375 = math.exp %374 : vector<64x64xf32>
    %cst_125 = arith.constant dense<0.000000e+00> : vector<64xf32>
    %376 = vector.multi_reduction <add>, %375, %cst_125 [1] : vector<64x64xf32> to vector<64xf32>
    %377 = vector.shape_cast %376 : vector<64xf32> to vector<64x1xf32>
    %378 = tpu.reciprocal %377 {approx = true} : vector<64x1xf32> -> vector<64x1xf32>
    %379 = vector.broadcast %378 : vector<64x1xf32> to vector<64x64xf32>
    %380 = arith.mulf %375, %379 : vector<64x64xf32>
    %cst_126 = arith.constant dense<0.000000e+00> : vector<64x8xf32>
    %381 = tpu.matmul %380, %368, %cst_126 {dimension_numbers = #tpu.dot_dimension_numbers<[1], [0], [0], [1], [0, 0, 1, 1], [], []>} : vector<64x64xf32>, vector<64x8xf32>, vector<64x8xf32> -> vector<64x8xf32>
    %382 = tpu.concatenate %333, %349, %365, %381 in 1 : vector<64x8xf32>, vector<64x8xf32>, vector<64x8xf32>, vector<64x8xf32> -> vector<64x32xf32>
    %383 = tpu.concatenate %311, %382 in 0 : vector<64x32xf32>, vector<64x32xf32> -> vector<128x32xf32>
    %cst_127 = arith.constant dense<0.000000e+00> : vector<128x32xf32>
    %384 = tpu.matmul %383, %216, %cst_127 {dimension_numbers = #tpu.dot_dimension_numbers<[1], [0], [0], [1], [0, 0, 1, 1], [], []>} : vector<128x32xf32>, vector<32x32xf32>, vector<128x32xf32> -> vector<128x32xf32>
    %385 = arith.addf %213, %384 : vector<128x32xf32>
    %386 = vector.broadcast %217 : vector<1x32xf32> to vector<128x32xf32>
    %387 = arith.addf %385, %386 : vector<128x32xf32>
    %cst_128 = arith.constant dense<0.000000e+00> : vector<128xf32>
    %388 = vector.multi_reduction <add>, %387, %cst_128 [1] : vector<128x32xf32> to vector<128xf32>
    %389 = vector.shape_cast %388 : vector<128xf32> to vector<128x1xf32>
    %cst_129 = arith.constant 3.200000e+01 : f32
    %390 = vector.broadcast %cst_129 : f32 to vector<128x1xf32>
    %391 = arith.divf %389, %390 : vector<128x1xf32>
    %392 = vector.broadcast %391 : vector<128x1xf32> to vector<128x32xf32>
    %393 = arith.subf %387, %392 : vector<128x32xf32>
    %394 = arith.mulf %393, %393 : vector<128x32xf32>
    %cst_130 = arith.constant dense<0.000000e+00> : vector<128xf32>
    %395 = vector.multi_reduction <add>, %394, %cst_130 [1] : vector<128x32xf32> to vector<128xf32>
    %396 = vector.shape_cast %395 : vector<128xf32> to vector<128x1xf32>
    %cst_131 = arith.constant 3.200000e+01 : f32
    %397 = vector.broadcast %cst_131 : f32 to vector<128x1xf32>
    %398 = arith.divf %396, %397 : vector<128x1xf32>
    %399 = vector.broadcast %391 : vector<128x1xf32> to vector<128x32xf32>
    %400 = arith.subf %387, %399 : vector<128x32xf32>
    %cst_132 = arith.constant 9.99999974E-6 : f32
    %401 = vector.broadcast %cst_132 : f32 to vector<128x1xf32>
    %402 = arith.addf %398, %401 : vector<128x1xf32>
    %403 = math.rsqrt %402 : vector<128x1xf32>
    %404 = vector.broadcast %403 : vector<128x1xf32> to vector<128x32xf32>
    %405 = arith.mulf %400, %404 : vector<128x32xf32>
    %406 = vector.broadcast %0 : vector<1x32xf32> to vector<128x32xf32>
    %407 = arith.mulf %405, %406 : vector<128x32xf32>
    %408 = vector.broadcast %1 : vector<1x32xf32> to vector<128x32xf32>
    %409 = arith.addf %407, %408 : vector<128x32xf32>
    %c0_133 = arith.constant 0 : index
    %c0_134 = arith.constant 0 : index
    %410 = vector.load %arg14[%c0_133, %c0_134] : memref<32x128xf32, #tpu.memory_space<vmem>>, vector<32x128xf32>
    %cst_135 = arith.constant dense<0.000000e+00> : vector<128x128xf32>
    %411 = tpu.matmul %409, %410, %cst_135 {dimension_numbers = #tpu.dot_dimension_numbers<[1], [0], [0], [1], [0, 0, 1, 1], [], []>} : vector<128x32xf32>, vector<32x128xf32>, vector<128x128xf32> -> vector<128x128xf32>
    %c0_136 = arith.constant 0 : index
    %c0_137 = arith.constant 0 : index
    %412 = vector.load %arg15[%c0_136, %c0_137] : memref<1x128xf32, #tpu.memory_space<vmem>>, vector<1x128xf32>
    %413 = vector.broadcast %412 : vector<1x128xf32> to vector<128x128xf32>
    %414 = arith.addf %411, %413 : vector<128x128xf32>
    %cst_138 = arith.constant 5.000000e-01 : f32
    %415 = vector.broadcast %cst_138 : f32 to vector<128x128xf32>
    %416 = arith.mulf %415, %414 : vector<128x128xf32>
    %cst_139 = arith.constant 0.707106769 : f32
    %417 = vector.broadcast %cst_139 : f32 to vector<128x128xf32>
    %418 = arith.mulf %414, %417 : vector<128x128xf32>
    %419 = math.erf %418 : vector<128x128xf32>
    %cst_140 = arith.constant 1.000000e+00 : f32
    %420 = vector.broadcast %cst_140 : f32 to vector<128x128xf32>
    %421 = arith.addf %420, %419 : vector<128x128xf32>
    %422 = arith.mulf %416, %421 : vector<128x128xf32>
    %c0_141 = arith.constant 0 : index
    %c0_142 = arith.constant 0 : index
    %423 = vector.load %arg16[%c0_141, %c0_142] : memref<128x32xf32, #tpu.memory_space<vmem>>, vector<128x32xf32>
    %cst_143 = arith.constant dense<0.000000e+00> : vector<128x32xf32>
    %424 = tpu.matmul %422, %423, %cst_143 {dimension_numbers = #tpu.dot_dimension_numbers<[1], [0], [0], [1], [0, 0, 1, 1], [], []>} : vector<128x128xf32>, vector<128x32xf32>, vector<128x32xf32> -> vector<128x32xf32>
    %425 = arith.addf %387, %424 : vector<128x32xf32>
    %c0_144 = arith.constant 0 : index
    %c0_145 = arith.constant 0 : index
    %426 = vector.load %arg17[%c0_144, %c0_145] : memref<1x32xf32, #tpu.memory_space<vmem>>, vector<1x32xf32>
    %427 = vector.broadcast %426 : vector<1x32xf32> to vector<128x32xf32>
    %428 = arith.addf %425, %427 : vector<128x32xf32>
    %c0_146 = arith.constant 0 : index
    %c0_147 = arith.constant 0 : index
    %429 = vector.load %arg18[%c0_146, %c0_147] : memref<128x32xf32, #tpu.memory_space<vmem>>, vector<128x32xf32>
    tpu.vector_store %arg18[%c0_146, %c0_147], %428 {strides = array<i32>} : memref<128x32xf32, #tpu.memory_space<vmem>>, vector<128x32xf32>,
    return
  }
}

</mosaic_0001>

<llo_original>
// kernel: swin_encoder_forward.1
$region0: #{swin_encoder_forward.1}
  #allocation0 [shape = 'u32[]', space=smem, size = 0x4, offset = 0x4, fixed_abs, tag = 'smem constant byte address 0x4 - core index']
  #allocation1 [shape = 'u32[144,128]{1,0:T(1,128)}', space=vmem, size = 0x12000, scoped, tag = 'internal scratch']
  %s0 = inlined_call_operand.vmem [shape: f32[128,32], index: 0, kind: input, shape index: {}]
  %s1 = inlined_call_operand.vmem [shape: f32[1,32], index: 1, kind: input, shape index: {}]
  %s2 = inlined_call_operand.vmem [shape: f32[1,32], index: 2, kind: input, shape index: {}]
  %s3 = inlined_call_operand.vmem [shape: f32[32,96], index: 3, kind: input, shape index: {}]
  %s4 = inlined_call_operand.vmem [shape: f32[1,96], index: 4, kind: input, shape index: {}]
  %s5 = inlined_call_operand.vmem [shape: f32[32,32], index: 5, kind: input, shape index: {}]
  %s6 = inlined_call_operand.vmem [shape: f32[1,32], index: 6, kind: input, shape index: {}]
  %s7 = inlined_call_operand.vmem [shape: f32[64,64], index: 7, kind: input, shape index: {}]
  %s8 = inlined_call_operand.vmem [shape: f32[32,96], index: 8, kind: input, shape index: {}]
  %s9 = inlined_call_operand.vmem [shape: f32[1,96], index: 9, kind: input, shape index: {}]
  %s10 = inlined_call_operand.vmem [shape: f32[32,32], index: 10, kind: input, shape index: {}]
  %s11 = inlined_call_operand.vmem [shape: f32[1,32], index: 11, kind: input, shape index: {}]
  %s12 = inlined_call_operand.vmem [shape: f32[64,64], index: 12, kind: input, shape index: {}]
  %s13 = inlined_call_operand.vmem [shape: f32[64,64], index: 13, kind: input, shape index: {}]
  %s14 = inlined_call_operand.hbm [shape: f32[32,128], index: 14, kind: input, shape index: {}]
  %s15 = inlined_call_operand.vmem [shape: f32[1,128], index: 15, kind: input, shape index: {}]
  %s16 = inlined_call_operand.vmem [shape: f32[128,32], index: 16, kind: input, shape index: {}]
  %s17 = inlined_call_operand.vmem [shape: f32[1,32], index: 17, kind: input, shape index: {}]
  %s18 = inlined_call_operand.vmem [shape: f32[128,32], index: 18, kind: output, shape index: {}]
  %s19 = sld [smem:[#allocation0]]
  $region86: #{swin_encoder_forward.1} parent=0
    _
  %s21 = ssub.s32 1, %s19
  %s22 = scalar_select 0, %s21, %s19
  $region1: #{swin_encoder_forward.1} parent=0
    #allocation2 [shape = 'u8[16384]{0}', space=vmem, size = 0x4000, scoped, tag = 'input window, operand 14, single buffered']
    #allocation3 [shape = 's32[1]{0}', space=sflag, size = 0x4, scoped, tag = 'scoped memory for swin_encoder_forward.1']
    %23 = vsyncpa [#allocation3], 0
    // Predicated region
    $region2: #{swin_encoder_forward.1} parent=1 // pred_check
      _
    $region3: #{swin_encoder_forward.1} parent=1 // pred_check_branch
      %25 = sbr.rel (0) target = $region5
    $region4: #{swin_encoder_forward.1} parent=1 // pred_region
      _
    $region5: #{swin_encoder_forward.1} parent=1 // pred_fallthru
      _
    // Predicated region
    $region6: #{swin_encoder_forward.1} parent=1 // pred_check
      _
    $region7: #{swin_encoder_forward.1} parent=1 // pred_check_branch
      %27 = sbr.rel (0) target = $region9
    $region8: #{swin_encoder_forward.1} parent=1 // pred_region
      _
    $region9: #{swin_encoder_forward.1} parent=1 // pred_fallthru
      _
    // Predicated region
    $region10: #{swin_encoder_forward.1} parent=1 // pred_check
      _
    $region11: #{swin_encoder_forward.1} parent=1 // pred_check_branch
      %29 = sbr.rel (0) target = $region13
    $region12: #{swin_encoder_forward.1} parent=1 // pred_region
      _
    $region13: #{swin_encoder_forward.1} parent=1 // pred_fallthru
      _
    // Predicated region
    $region14: #{swin_encoder_forward.1} parent=1 // pred_check
      _
    $region15: #{swin_encoder_forward.1} parent=1 // pred_check_branch
      %31 = sbr.rel (0) target = $region17
    $region16: #{swin_encoder_forward.1} parent=1 // pred_region
      _
    $region17: #{swin_encoder_forward.1} parent=1 // pred_fallthru
      _
    // Predicated region
    $region18: #{swin_encoder_forward.1} parent=1 // pred_check
      _
    $region19: #{swin_encoder_forward.1} parent=1 // pred_check_branch
      %33 = sbr.rel (0) target = $region21
    $region20: #{swin_encoder_forward.1} parent=1 // pred_region
      _
    $region21: #{swin_encoder_forward.1} parent=1 // pred_fallthru
      _
    // Predicated region
    $region22: #{swin_encoder_forward.1} parent=1 // pred_check
      _
    $region23: #{swin_encoder_forward.1} parent=1 // pred_check_branch
      %35 = sbr.rel (0) target = $region25
    $region24: #{swin_encoder_forward.1} parent=1 // pred_region
      _
    $region25: #{swin_encoder_forward.1} parent=1 // pred_fallthru
      _
    // Predicated region
    $region26: #{swin_encoder_forward.1} parent=1 // pred_check
      _
    $region27: #{swin_encoder_forward.1} parent=1 // pred_check_branch
      %37 = sbr.rel (0) target = $region29
    $region28: #{swin_encoder_forward.1} parent=1 // pred_region
      _
    $region29: #{swin_encoder_forward.1} parent=1 // pred_fallthru
      _
    // Predicated region
    $region30: #{swin_encoder_forward.1} parent=1 // pred_check
      _
    $region31: #{swin_encoder_forward.1} parent=1 // pred_check_branch
      %39 = sbr.rel (0) target = $region33
    $region32: #{swin_encoder_forward.1} parent=1 // pred_region
      _
    $region33: #{swin_encoder_forward.1} parent=1 // pred_fallthru
      _
    // Predicated region
    $region34: #{swin_encoder_forward.1} parent=1 // pred_check
      _
    $region35: #{swin_encoder_forward.1} parent=1 // pred_check_branch
      %41 = sbr.rel (0) target = $region37
    $region36: #{swin_encoder_forward.1} parent=1 // pred_region
      _
    $region37: #{swin_encoder_forward.1} parent=1 // pred_fallthru
      _
    // Predicated region
    $region38: #{swin_encoder_forward.1} parent=1 // pred_check
      _
    $region39: #{swin_encoder_forward.1} parent=1 // pred_check_branch
      %43 = sbr.rel (0) target = $region41
    $region40: #{swin_encoder_forward.1} parent=1 // pred_region
      _
    $region41: #{swin_encoder_forward.1} parent=1 // pred_fallthru
      _
    // Predicated region
    $region42: #{swin_encoder_forward.1} parent=1 // pred_check
      _
    $region43: #{swin_encoder_forward.1} parent=1 // pred_check_branch
      %45 = sbr.rel (0) target = $region45
    $region44: #{swin_encoder_forward.1} parent=1 // pred_region
      _
    $region45: #{swin_encoder_forward.1} parent=1 // pred_fallthru
      _
    // Predicated region
    $region46: #{swin_encoder_forward.1} parent=1 // pred_check
      _
    $region47: #{swin_encoder_forward.1} parent=1 // pred_check_branch
      %47 = sbr.rel (0) target = $region49
    $region48: #{swin_encoder_forward.1} parent=1 // pred_region
      _
    $region49: #{swin_encoder_forward.1} parent=1 // pred_fallthru
      _
    // Predicated region
    $region50: #{swin_encoder_forward.1} parent=1 // pred_check
      _
    $region51: #{swin_encoder_forward.1} parent=1 // pred_check_branch
      %49 = sbr.rel (0) target = $region53
    $region52: #{swin_encoder_forward.1} parent=1 // pred_region
      _
    $region53: #{swin_encoder_forward.1} parent=1 // pred_fallthru
      _
    // Predicated region
    $region54: #{swin_encoder_forward.1} parent=1 // pred_check
      _
    $region55: #{swin_encoder_forward.1} parent=1 // pred_check_branch
      %51 = sbr.rel (0) target = $region57
    $region56: #{swin_encoder_forward.1} parent=1 // pred_region
      _
    $region57: #{swin_encoder_forward.1} parent=1 // pred_fallthru
      _
    // Predicated region
    $region58: #{swin_encoder_forward.1} parent=1 // pred_check
      _
    $region59: #{swin_encoder_forward.1} parent=1 // pred_check_branch
      %53 = sbr.rel (0) target = $region61
    $region60: #{swin_encoder_forward.1} parent=1 // pred_region
      %s55 = ssub.s32 512, 512
      %56 = vsyncadd [#allocation3], %s55
      %s57 = sshll.u32 [#allocation2], 4
      %s58 = int_to_ptr.vmem [resolvable:$true] %s57
      %63 = dma.hbm_to_vmem [thread:$0]  %s14, 512, %s58, [#allocation3], 128, 128, 8
    $region61: #{swin_encoder_forward.1} parent=1 // pred_fallthru
      _
    // Predicated region
    $region62: #{swin_encoder_forward.1} parent=1 // pred_check
      _
    $region63: #{swin_encoder_forward.1} parent=1 // pred_check_branch
      %65 = sbr.rel (0) target = $region65
    $region64: #{swin_encoder_forward.1} parent=1 // pred_region
      _
    $region65: #{swin_encoder_forward.1} parent=1 // pred_fallthru
      _
    // Predicated region
    $region66: #{swin_encoder_forward.1} parent=1 // pred_check
      _
    $region67: #{swin_encoder_forward.1} parent=1 // pred_check_branch
      %67 = sbr.rel (0) target = $region69
    $region68: #{swin_encoder_forward.1} parent=1 // pred_region
      _
    $region69: #{swin_encoder_forward.1} parent=1 // pred_fallthru
      _
    // Predicated region
    $region70: #{swin_encoder_forward.1} parent=1 // pred_check
      _
    $region71: #{swin_encoder_forward.1} parent=1 // pred_check_branch
      %69 = sbr.rel (0) target = $region73
    $region72: #{swin_encoder_forward.1} parent=1 // pred_region
      _
    $region73: #{swin_encoder_forward.1} parent=1 // pred_fallthru
      _
    // Predicated region
    $region74: #{swin_encoder_forward.1} parent=1 // pred_check
      _
    $region75: #{swin_encoder_forward.1} parent=1 // pred_check_branch
      %71 = sbr.rel (0) target = $region77
    $region76: #{swin_encoder_forward.1} parent=1 // pred_region
      %72 = dma.done [#allocation3], 512
    $region77: #{swin_encoder_forward.1} parent=1 // pred_fallthru
      _
    %v73 = vld [vmem:[%s1] sm:$0x1]
    %v74 = vld [vmem:[%s2] sm:$0x1]
    %v75 = vld [vmem:[%s0] sm:$0xff]
    %v76 = vld [vmem:[%s0 + $0x8] sm:$0xff]
    %v77 = vld [vmem:[%s0 + $0x10] sm:$0xff]
    %v78 = vld [vmem:[%s0 + $0x18] sm:$0xff]
    %v79 = vld [vmem:[%s0 + $0x20] sm:$0xff]
    %v80 = vld [vmem:[%s0 + $0x28] sm:$0xff]
    %v81 = vld [vmem:[%s0 + $0x30] sm:$0xff]
    %v82 = vld [vmem:[%s0 + $0x38] sm:$0xff]
    %v83 = vld [vmem:[%s0 + $0x40] sm:$0xff]
    %v84 = vld [vmem:[%s0 + $0x48] sm:$0xff]
    %v85 = vld [vmem:[%s0 + $0x50] sm:$0xff]
    %v86 = vld [vmem:[%s0 + $0x58] sm:$0xff]
    %v87 = vld [vmem:[%s0 + $0x60] sm:$0xff]
    %v88 = vld [vmem:[%s0 + $0x68] sm:$0xff]
    %v89 = vld [vmem:[%s0 + $0x70] sm:$0xff]
    %v90 = vld [vmem:[%s0 + $0x78] sm:$0xff]
    %v91 = vld [vmem:[%s3] sm:$0xff]
    %v92 = vld [vmem:[%s3 + $0x8] sm:$0xff]
    %v93 = vld [vmem:[%s3 + $0x10] sm:$0xff]
    %v94 = vld [vmem:[%s3 + $0x18] sm:$0xff]
    %v95 = vld [vmem:[%s4] sm:$0x1]
    %v96 = vld [vmem:[%s5] sm:$0xff]
    %v97 = vld [vmem:[%s5 + $0x8] sm:$0xff]
    %v98 = vld [vmem:[%s5 + $0x10] sm:$0xff]
    %v99 = vld [vmem:[%s5 + $0x18] sm:$0xff]
    %v100 = vld [vmem:[%s6] sm:$0x1]
    %v101 = vld [vmem:[%s7] sm:$0xff]
    %v102 = vld [vmem:[%s7 + $0x8] sm:$0xff]
    %v103 = vld [vmem:[%s7 + $0x10] sm:$0xff]
    %v104 = vld [vmem:[%s7 + $0x18] sm:$0xff]
    %v105 = vld [vmem:[%s7 + $0x20] sm:$0xff]
    %v106 = vld [vmem:[%s7 + $0x28] sm:$0xff]
    %v107 = vld [vmem:[%s7 + $0x30] sm:$0xff]
    %v108 = vld [vmem:[%s7 + $0x38] sm:$0xff]
    %vm109 = vcmask 261120
    %v110 = vsel %vm109, %v75, 0.0
    %111 = vadd.xlane.f32.xlu0 %v110
    %v112 = vpop.xlane.xlu0 %111
    %v113 = vsel %vm109, %v76, 0.0
    %114 = vadd.xlane.f32.xlu0 %v113
    %v115 = vpop.xlane.xlu0 %114
    %v116 = vsel %vm109, %v77, 0.0
    %117 = vadd.xlane.f32.xlu0 %v116
    %v118 = vpop.xlane.xlu0 %117
    %v119 = vsel %vm109, %v78, 0.0
    %120 = vadd.xlane.f32.xlu0 %v119
    %v121 = vpop.xlane.xlu0 %120
    %v122 = vsel %vm109, %v79, 0.0
    %123 = vadd.xlane.f32.xlu0 %v122
    %v124 = vpop.xlane.xlu0 %123
    %v125 = vsel %vm109, %v80, 0.0
    %126 = vadd.xlane.f32.xlu0 %v125
    %v127 = vpop.xlane.xlu0 %126
    %v128 = vsel %vm109, %v81, 0.0
    %129 = vadd.xlane.f32.xlu0 %v128
    %v130 = vpop.xlane.xlu0 %129
    %v131 = vsel %vm109, %v82, 0.0
    %132 = vadd.xlane.f32.xlu0 %v131
    %v133 = vpop.xlane.xlu0 %132
    %v134 = vsel %vm109, %v83, 0.0
    %135 = vadd.xlane.f32.xlu0 %v134
    %v136 = vpop.xlane.xlu0 %135
    %v137 = vsel %vm109, %v84, 0.0
    %138 = vadd.xlane.f32.xlu0 %v137
    %v139 = vpop.xlane.xlu0 %138
    %v140 = vsel %vm109, %v85, 0.0
    %141 = vadd.xlane.f32.xlu0 %v140
    %v142 = vpop.xlane.xlu0 %141
    %v143 = vsel %vm109, %v86, 0.0
    %144 = vadd.xlane.f32.xlu0 %v143
    %v145 = vpop.xlane.xlu0 %144
    %v146 = vsel %vm109, %v87, 0.0
    %147 = vadd.xlane.f32.xlu0 %v146
    %v148 = vpop.xlane.xlu0 %147
    %v149 = vsel %vm109, %v88, 0.0
    %150 = vadd.xlane.f32.xlu0 %v149
    %v151 = vpop.xlane.xlu0 %150
    %v152 = vsel %vm109, %v89, 0.0
    %153 = vadd.xlane.f32.xlu0 %v152
    %v154 = vpop.xlane.xlu0 %153
    %v155 = vsel %vm109, %v90, 0.0
    %156 = vadd.xlane.f32.xlu0 %v155
    %v157 = vpop.xlane.xlu0 %156
    %v158 = vrcp.pop 32.0
    %v159 = vmul.f32 %v112, %v158
    %v160 = vmul.f32 %v115, %v158
    %v161 = vmul.f32 %v118, %v158
    %v162 = vmul.f32 %v121, %v158
    %v163 = vmul.f32 %v124, %v158
    %v164 = vmul.f32 %v127, %v158
    %v165 = vmul.f32 %v130, %v158
    %v166 = vmul.f32 %v133, %v158
    %v167 = vmul.f32 %v136, %v158
    %v168 = vmul.f32 %v139, %v158
    %v169 = vmul.f32 %v142, %v158
    %v170 = vmul.f32 %v145, %v158
    %v171 = vmul.f32 %v148, %v158
    %v172 = vmul.f32 %v151, %v158
    %v173 = vmul.f32 %v154, %v158
    %v174 = vmul.f32 %v157, %v158
    %v175 = vsub.f32 %v75, %v159
    %v176 = vsub.f32 %v76, %v160
    %v177 = vsub.f32 %v77, %v161
    %v178 = vsub.f32 %v78, %v162
    %v179 = vsub.f32 %v79, %v163
    %v180 = vsub.f32 %v80, %v164
    %v181 = vsub.f32 %v81, %v165
    %v182 = vsub.f32 %v82, %v166
    %v183 = vsub.f32 %v83, %v167
    %v184 = vsub.f32 %v84, %v168
    %v185 = vsub.f32 %v85, %v169
    %v186 = vsub.f32 %v86, %v170
    %v187 = vsub.f32 %v87, %v171
    %v188 = vsub.f32 %v88, %v172
    %v189 = vsub.f32 %v89, %v173
    %v190 = vsub.f32 %v90, %v174
    %v191 = vmul.f32 %v175, %v175
    %v192 = vmul.f32 %v176, %v176
    %v193 = vmul.f32 %v177, %v177
    %v194 = vmul.f32 %v178, %v178
    %v195 = vmul.f32 %v179, %v179
    %v196 = vmul.f32 %v180, %v180
    %v197 = vmul.f32 %v181, %v181
    %v198 = vmul.f32 %v182, %v182
    %v199 = vmul.f32 %v183, %v183
    %v200 = vmul.f32 %v184, %v184
    %v201 = vmul.f32 %v185, %v185
    %v202 = vmul.f32 %v186, %v186
    %v203 = vmul.f32 %v187, %v187
    %v204 = vmul.f32 %v188, %v188
    %v205 = vmul.f32 %v189, %v189
    %v206 = vmul.f32 %v190, %v190
    %v207 = vsel %vm109, %v191, 0.0
    %208 = vadd.xlane.f32.xlu0 %v207
    %v209 = vpop.xlane.xlu0 %208
    %v210 = vsel %vm109, %v192, 0.0
    %211 = vadd.xlane.f32.xlu0 %v210
    %v212 = vpop.xlane.xlu0 %211
    %v213 = vsel %vm109, %v193, 0.0
    %214 = vadd.xlane.f32.xlu0 %v213
    %v215 = vpop.xlane.xlu0 %214
    %v216 = vsel %vm109, %v194, 0.0
    %217 = vadd.xlane.f32.xlu0 %v216
    %v218 = vpop.xlane.xlu0 %217
    %v219 = vsel %vm109, %v195, 0.0
    %220 = vadd.xlane.f32.xlu0 %v219
    %v221 = vpop.xlane.xlu0 %220
    %v222 = vsel %vm109, %v196, 0.0
    %223 = vadd.xlane.f32.xlu0 %v222
    %v224 = vpop.xlane.xlu0 %223
    %v225 = vsel %vm109, %v197, 0.0
    %226 = vadd.xlane.f32.xlu0 %v225
    %v227 = vpop.xlane.xlu0 %226
    %v228 = vsel %vm109, %v198, 0.0
    %229 = vadd.xlane.f32.xlu0 %v228
    %v230 = vpop.xlane.xlu0 %229
    %v231 = vsel %vm109, %v199, 0.0
    %232 = vadd.xlane.f32.xlu0 %v231
    %v233 = vpop.xlane.xlu0 %232
    %v234 = vsel %vm109, %v200, 0.0
    %235 = vadd.xlane.f32.xlu0 %v234
    %v236 = vpop.xlane.xlu0 %235
    %v237 = vsel %vm109, %v201, 0.0
    %238 = vadd.xlane.f32.xlu0 %v237
    %v239 = vpop.xlane.xlu0 %238
    %v240 = vsel %vm109, %v202, 0.0
    %241 = vadd.xlane.f32.xlu0 %v240
    %v242 = vpop.xlane.xlu0 %241
    %v243 = vsel %vm109, %v203, 0.0
    %244 = vadd.xlane.f32.xlu0 %v243
    %v245 = vpop.xlane.xlu0 %244
    %v246 = vsel %vm109, %v204, 0.0
    %247 = vadd.xlane.f32.xlu0 %v246
    %v248 = vpop.xlane.xlu0 %247
    %v249 = vsel %vm109, %v205, 0.0
    %250 = vadd.xlane.f32.xlu0 %v249
    %v251 = vpop.xlane.xlu0 %250
    %v252 = vsel %vm109, %v206, 0.0
    %253 = vadd.xlane.f32.xlu0 %v252
    %v254 = vpop.xlane.xlu0 %253
    %v255 = vmul.f32 %v209, %v158
    %v256 = vmul.f32 %v212, %v158
    %v257 = vmul.f32 %v215, %v158
    %v258 = vmul.f32 %v218, %v158
    %v259 = vmul.f32 %v221, %v158
    %v260 = vmul.f32 %v224, %v158
    %v261 = vmul.f32 %v227, %v158
    %v262 = vmul.f32 %v230, %v158
    %v263 = vmul.f32 %v233, %v158
    %v264 = vmul.f32 %v236, %v158
    %v265 = vmul.f32 %v239, %v158
    %v266 = vmul.f32 %v242, %v158
    %v267 = vmul.f32 %v245, %v158
    %v268 = vmul.f32 %v248, %v158
    %v269 = vmul.f32 %v251, %v158
    %v270 = vmul.f32 %v254, %v158
    %v271 = vadd.f32 %v255, 1e-05
    %v272 = vadd.f32 %v256, 1e-05
    %v273 = vadd.f32 %v257, 1e-05
    %v274 = vadd.f32 %v258, 1e-05
    %v275 = vadd.f32 %v259, 1e-05
    %v276 = vadd.f32 %v260, 1e-05
    %v277 = vadd.f32 %v261, 1e-05
    %v278 = vadd.f32 %v262, 1e-05
    %v279 = vadd.f32 %v263, 1e-05
    %v280 = vadd.f32 %v264, 1e-05
    %v281 = vadd.f32 %v265, 1e-05
    %v282 = vadd.f32 %v266, 1e-05
    %v283 = vadd.f32 %v267, 1e-05
    %v284 = vadd.f32 %v268, 1e-05
    %v285 = vadd.f32 %v269, 1e-05
    %v286 = vadd.f32 %v270, 1e-05
    %v287 = vrsqrt.pop %v271
    %v288 = vrsqrt.pop %v272
    %v289 = vrsqrt.pop %v273
    %v290 = vrsqrt.pop %v274
    %v291 = vrsqrt.pop %v275
    %v292 = vrsqrt.pop %v276
    %v293 = vrsqrt.pop %v277
    %v294 = vrsqrt.pop %v278
    %v295 = vrsqrt.pop %v279
    %v296 = vrsqrt.pop %v280
    %v297 = vrsqrt.pop %v281
    %v298 = vrsqrt.pop %v282
    %v299 = vrsqrt.pop %v283
    %v300 = vrsqrt.pop %v284
    %v301 = vrsqrt.pop %v285
    %v302 = vrsqrt.pop %v286
    %v303 = vmul.f32 %v175, %v287
    %v304 = vmul.f32 %v176, %v288
    %v305 = vmul.f32 %v177, %v289
    %v306 = vmul.f32 %v178, %v290
    %v307 = vmul.f32 %v179, %v291
    %v308 = vmul.f32 %v180, %v292
    %v309 = vmul.f32 %v181, %v293
    %v310 = vmul.f32 %v182, %v294
    %v311 = vmul.f32 %v183, %v295
    %v312 = vmul.f32 %v184, %v296
    %v313 = vmul.f32 %v185, %v297
    %v314 = vmul.f32 %v186, %v298
    %v315 = vmul.f32 %v187, %v299
    %v316 = vmul.f32 %v188, %v300
    %v317 = vmul.f32 %v189, %v301
    %v318 = vmul.f32 %v190, %v302
    %v320 = vlaneseq
    %v321 = vshrl.u32 %v320, 7
    %v322 = vsub.s32 0, %v321
    %v323 = vrot.slane %v73, %v322
    %v325 = vmul.f32 %v303, %v323
    %v326 = vmul.f32 %v304, %v323
    %v327 = vmul.f32 %v305, %v323
    %v328 = vmul.f32 %v306, %v323
    %v329 = vmul.f32 %v307, %v323
    %v330 = vmul.f32 %v308, %v323
    %v331 = vmul.f32 %v309, %v323
    %v332 = vmul.f32 %v310, %v323
    %v333 = vmul.f32 %v311, %v323
    %v334 = vmul.f32 %v312, %v323
    %v335 = vmul.f32 %v313, %v323
    %v336 = vmul.f32 %v314, %v323
    %v337 = vmul.f32 %v315, %v323
    %v338 = vmul.f32 %v316, %v323
    %v339 = vmul.f32 %v317, %v323
    %v340 = vmul.f32 %v318, %v323
    %v342 = vlaneseq
    %v343 = vshrl.u32 %v342, 7
    %v344 = vsub.s32 0, %v343
    %v345 = vrot.slane %v74, %v344
    %v347 = vadd.f32 %v325, %v345
    %v348 = vadd.f32 %v326, %v345
    %v349 = vadd.f32 %v327, %v345
    %v350 = vadd.f32 %v328, %v345
    %v351 = vadd.f32 %v329, %v345
    %v352 = vadd.f32 %v330, %v345
    %v353 = vadd.f32 %v331, %v345
    %v354 = vadd.f32 %v332, %v345
    %v355 = vadd.f32 %v333, %v345
    %v356 = vadd.f32 %v334, %v345
    %v357 = vadd.f32 %v335, %v345
    %v358 = vadd.f32 %v336, %v345
    %v359 = vadd.f32 %v337, %v345
    %v360 = vadd.f32 %v338, %v345
    %v361 = vadd.f32 %v339, %v345
    %v362 = vadd.f32 %v340, %v345
    %v364 = vlaneseq
    %v365 = vshrl.u32 %v364, 7
    %v366 = vsub.s32 0, %v365
    %v367 = vrot.slane %v95, %v366
    %v370 = vsel %vm109, %v347, 0
    %v373 = vsel %vm109, %v348, 0
    %v376 = vsel %vm109, %v349, 0
    %v379 = vsel %vm109, %v350, 0
    %v382 = vsel %vm109, %v351, 0
    %v385 = vsel %vm109, %v352, 0
    %v388 = vsel %vm109, %v353, 0
    %v391 = vsel %vm109, %v354, 0
    %393 = vmatprep.subr.mxu0 0.0
    %394 = vmatpush1.msra.mxu0 %v91
    %395 = vmatprep.subr.mxu0 0.0
    %396 = vmatpush1.msra.mxu0 %v92
    %397 = vmatprep.subr.mxu0 0.0
    %398 = vmatpush1.msra.mxu0 %v93
    %399 = vmatprep.subr.mxu0 0.0
    %400 = vmatpush1.msra.mxu0 %v94
    %401 = vmatprep.subr.mxu0 0.0
    %402 = vmatpush1.msra.mxu0 0.0
    %403 = vmatprep.subr.mxu0 0.0
    %404 = vmatpush1.msra.mxu0 0.0
    %405 = vmatprep.subr.mxu0 0.0
    %406 = vmatpush1.msra.mxu0 0.0
    %407 = vmatprep.subr.mxu0 0.0
    %408 = vmatpush1.msra.mxu0 0.0
    %409 = vmatprep.subr.mxu0 0.0
    %410 = vmatpush1.msra.mxu0 0.0
    %411 = vmatprep.subr.mxu0 0.0
    %412 = vmatpush1.msra.mxu0 0.0
    %413 = vmatprep.subr.mxu0 0.0
    %414 = vmatpush1.msra.mxu0 0.0
    %415 = vmatprep.subr.mxu0 0.0
    %416 = vmatpush1.msra.mxu0 0.0
    %417 = vmatprep.subr.mxu0 0.0
    %418 = vmatpush1.msra.mxu0 0.0
    %419 = vmatprep.subr.mxu0 0.0
    %420 = vmatpush1.msra.mxu0 0.0
    %421 = vmatprep.subr.mxu0 0.0
    %422 = vmatpush1.msra.mxu0 0.0
    %423 = vmatprep.subr.mxu0 0.0
    %424 = vmatpush1.msra.mxu0 0.0
    %425 = vmatprep.subr.mxu0 0.0
    %426 = vmatpush1.msra.mxu0 0.0
    %427 = vmatprep.subr.mxu0 0.0
    %428 = vmatpush1.msra.mxu0 0.0
    %429 = vmatprep.subr.mxu0 0.0
    %430 = vmatpush1.msra.mxu0 0.0
    %431 = vmatprep.subr.mxu0 0.0
    %432 = vmatpush1.msra.mxu0 0.0
    %433 = vmatprep.subr.mxu0 0.0
    %434 = vmatpush1.msra.mxu0 0.0
    %435 = vmatprep.subr.mxu0 0.0
    %436 = vmatpush1.msra.mxu0 0.0
    %437 = vmatprep.subr.mxu0 0.0
    %438 = vmatpush1.msra.mxu0 0.0
    %439 = vmatprep.subr.mxu0 0.0
    %440 = vmatpush1.msra.mxu0 0.0
    %441 = vmatprep.subr.mxu0 0.0
    %442 = vmatpush1.msra.mxu0 0.0
    %443 = vmatprep.subr.mxu0 0.0
    %444 = vmatpush1.msra.mxu0 0.0
    %445 = vmatprep.subr.mxu0 0.0
    %446 = vmatpush1.msra.mxu0 0.0
    %447 = vmatprep.subr.mxu0 0.0
    %448 = vmatpush1.msra.mxu0 0.0
    %449 = vmatprep.subr.mxu0 0.0
    %450 = vmatpush1.msra.mxu0 0.0
    %451 = vmatprep.subr.mxu0 0.0
    %452 = vmatpush1.msra.mxu0 0.0
    %453 = vmatprep.subr.mxu0 0.0
    %454 = vmatpush1.msra.mxu0 0.0
    %455 = vmatprep.subr.mxu0 0.0
    %456 = vmatpush1.msra.mxu0 0.0
    %457 = vmatprep.mubr.f32.mxu0 0.0
    %458 = vmatmul.mubr.f32.gmra.mrb[0].mxu0 %v370
    %v459 = vpop.f32.mrb[0].mxu0
    %v460 = vadd.f32 %v367, %v459
    %v461 = vpop.f32.mrb[0].mxu0
    %462 = vmatprep.mubr.f32.mxu0 0.0
    %463 = vmatmul.mubr.f32.gmra.mrb[0].mxu0 %v373
    %v464 = vpop.f32.mrb[0].mxu0
    %v465 = vadd.f32 %v367, %v464
    %v466 = vpop.f32.mrb[0].mxu0
    %467 = vmatprep.mubr.f32.mxu0 0.0
    %468 = vmatmul.mubr.f32.gmra.mrb[0].mxu0 %v376
    %v469 = vpop.f32.mrb[0].mxu0
    %v470 = vadd.f32 %v367, %v469
    %v471 = vpop.f32.mrb[0].mxu0
    %472 = vmatprep.mubr.f32.mxu0 0.0
    %473 = vmatmul.mubr.f32.gmra.mrb[0].mxu0 %v379
    %v474 = vpop.f32.mrb[0].mxu0
    %v475 = vadd.f32 %v367, %v474
    %v476 = vpop.f32.mrb[0].mxu0
    %477 = vmatprep.mubr.f32.mxu0 0.0
    %478 = vmatmul.mubr.f32.gmra.mrb[0].mxu0 %v382
    %v479 = vpop.f32.mrb[0].mxu0
    %v480 = vadd.f32 %v367, %v479
    %v481 = vpop.f32.mrb[0].mxu0
    %482 = vmatprep.mubr.f32.mxu0 0.0
    %483 = vmatmul.mubr.f32.gmra.mrb[0].mxu0 %v385
    %v484 = vpop.f32.mrb[0].mxu0
    %v485 = vadd.f32 %v367, %v484
    %v486 = vpop.f32.mrb[0].mxu0
    %487 = vmatprep.mubr.f32.mxu0 0.0
    %488 = vmatmul.mubr.f32.gmra.mrb[0].mxu0 %v388
    %v489 = vpop.f32.mrb[0].mxu0
    %v490 = vadd.f32 %v367, %v489
    %v491 = vpop.f32.mrb[0].mxu0
    %492 = vmatprep.mubr.f32.mxu0 0.0
    %493 = vmatmul.mubr.f32.gmra.mrb[0].mxu0 %v391
    %v494 = vpop.f32.mrb[0].mxu0
    %v495 = vadd.f32 %v367, %v494
    %v496 = vpop.f32.mrb[0].mxu0
    %497 = vdwg.mxu0
    %506 = vrot.lane.b32.xlu0 %v460, 96
    %v507 = vpop.permute.xlu0 %506
    %508 = vrot.lane.b32.xlu0 %v465, 96
    %v509 = vpop.permute.xlu0 %508
    %510 = vrot.lane.b32.xlu0 %v470, 96
    %v511 = vpop.permute.xlu0 %510
    %512 = vrot.lane.b32.xlu0 %v475, 96
    %v513 = vpop.permute.xlu0 %512
    %514 = vrot.lane.b32.xlu0 %v480, 96
    %v515 = vpop.permute.xlu0 %514
    %516 = vrot.lane.b32.xlu0 %v485, 96
    %v517 = vpop.permute.xlu0 %516
    %518 = vrot.lane.b32.xlu0 %v490, 96
    %v519 = vpop.permute.xlu0 %518
    %520 = vrot.lane.b32.xlu0 %v495, 96
    %v521 = vpop.permute.xlu0 %520
    %vm522 = vcmask 64512
    %v523 = vsel %vm522, %v460, 0
    %v525 = vsel %vm522, %v465, 0
    %v527 = vsel %vm522, %v470, 0
    %v529 = vsel %vm522, %v475, 0
    %v531 = vsel %vm522, %v480, 0
    %v533 = vsel %vm522, %v485, 0
    %v535 = vsel %vm522, %v490, 0
    %v537 = vsel %vm522, %v495, 0
    %v539 = vsel %vm522, %v507, 0
    %v541 = vsel %vm522, %v509, 0
    %v543 = vsel %vm522, %v511, 0
    %v545 = vsel %vm522, %v513, 0
    %v547 = vsel %vm522, %v515, 0
    %v549 = vsel %vm522, %v517, 0
    %v551 = vsel %vm522, %v519, 0
    %v553 = vsel %vm522, %v521, 0
    %555 = vmatprep.subr.mxu0 0.0
    %556 = vmatpush1.xpose.msra.mxu0 %v539
    %557 = vmatprep.subr.mxu0 0.0
    %558 = vmatpush1.xpose.msra.mxu0 %v541
    %559 = vmatprep.subr.mxu0 0.0
    %560 = vmatpush1.xpose.msra.mxu0 %v543
    %561 = vmatprep.subr.mxu0 0.0
    %562 = vmatpush1.xpose.msra.mxu0 %v545
    %563 = vmatprep.subr.mxu0 0.0
    %564 = vmatpush1.xpose.msra.mxu0 %v547
    %565 = vmatprep.subr.mxu0 0.0
    %566 = vmatpush1.xpose.msra.mxu0 %v549
    %567 = vmatprep.subr.mxu0 0.0
    %568 = vmatpush1.xpose.msra.mxu0 %v551
    %569 = vmatprep.subr.mxu0 0.0
    %570 = vmatpush1.xpose.msra.mxu0 %v553
    %571 = vmatprep.subr.mxu0 0.0
    %572 = vmatpush1.xpose.msra.mxu0 0.0
    %573 = vmatprep.subr.mxu0 0.0
    %574 = vmatpush1.xpose.msra.mxu0 0.0
    %575 = vmatprep.subr.mxu0 0.0
    %576 = vmatpush1.xpose.msra.mxu0 0.0
    %577 = vmatprep.subr.mxu0 0.0
    %578 = vmatpush1.xpose.msra.mxu0 0.0
    %579 = vmatprep.subr.mxu0 0.0
    %580 = vmatpush1.xpose.msra.mxu0 0.0
    %581 = vmatprep.subr.mxu0 0.0
    %582 = vmatpush1.xpose.msra.mxu0 0.0
    %583 = vmatprep.subr.mxu0 0.0
    %584 = vmatpush1.xpose.msra.mxu0 0.0
    %585 = vmatprep.subr.mxu0 0.0
    %586 = vmatpush1.xpose.msra.mxu0 0.0
    %587 = vmatprep.subr.mxu0 0.0
    %588 = vmatpush1.xpose.msra.mxu0 0.0
    %589 = vmatprep.subr.mxu0 0.0
    %590 = vmatpush1.xpose.msra.mxu0 0.0
    %591 = vmatprep.subr.mxu0 0.0
    %592 = vmatpush1.xpose.msra.mxu0 0.0
    %593 = vmatprep.subr.mxu0 0.0
    %594 = vmatpush1.xpose.msra.mxu0 0.0
    %595 = vmatprep.subr.mxu0 0.0
    %596 = vmatpush1.xpose.msra.mxu0 0.0
    %597 = vmatprep.subr.mxu0 0.0
    %598 = vmatpush1.xpose.msra.mxu0 0.0
    %599 = vmatprep.subr.mxu0 0.0
    %600 = vmatpush1.xpose.msra.mxu0 0.0
    %601 = vmatprep.subr.mxu0 0.0
    %602 = vmatpush1.xpose.msra.mxu0 0.0
    %603 = vmatprep.subr.mxu0 0.0
    %604 = vmatpush1.xpose.msra.mxu0 0.0
    %605 = vmatprep.subr.mxu0 0.0
    %606 = vmatpush1.xpose.msra.mxu0 0.0
    %607 = vmatprep.subr.mxu0 0.0
    %608 = vmatpush1.xpose.msra.mxu0 0.0
    %609 = vmatprep.subr.mxu0 0.0
    %610 = vmatpush1.xpose.msra.mxu0 0.0
    %611 = vmatprep.subr.mxu0 0.0
    %612 = vmatpush1.xpose.msra.mxu0 0.0
    %613 = vmatprep.subr.mxu0 0.0
    %614 = vmatpush1.xpose.msra.mxu0 0.0
    %615 = vmatprep.subr.mxu0 0.0
    %616 = vmatpush1.xpose.msra.mxu0 0.0
    %617 = vmatprep.subr.mxu0 0.0
    %618 = vmatpush1.xpose.msra.mxu0 0.0
    %619 = vmatprep.mubr.f32.mxu0 0.0
    %620 = vmatmul.mubr.f32.gmra.mrb[0].mxu0 %v523
    %v621 = vpop.f32.mrb[0].mxu0
    %v622 = vadd.f32 %v101, %v621
    %v623 = vpop.f32.mrb[0].mxu0
    %624 = vmatprep.mubr.f32.mxu0 0.0
    %625 = vmatmul.mubr.f32.gmra.mrb[0].mxu0 %v525
    %v626 = vpop.f32.mrb[0].mxu0
    %v627 = vadd.f32 %v102, %v626
    %v628 = vpop.f32.mrb[0].mxu0
    %629 = vmatprep.mubr.f32.mxu0 0.0
    %630 = vmatmul.mubr.f32.gmra.mrb[0].mxu0 %v527
    %v631 = vpop.f32.mrb[0].mxu0
    %v632 = vadd.f32 %v103, %v631
    %v633 = vpop.f32.mrb[0].mxu0
    %634 = vmatprep.mubr.f32.mxu0 0.0
    %635 = vmatmul.mubr.f32.gmra.mrb[0].mxu0 %v529
    %v636 = vpop.f32.mrb[0].mxu0
    %v637 = vadd.f32 %v104, %v636
    %v638 = vpop.f32.mrb[0].mxu0
    %639 = vmatprep.mubr.f32.mxu0 0.0
    %640 = vmatmul.mubr.f32.gmra.mrb[0].mxu0 %v531
    %v641 = vpop.f32.mrb[0].mxu0
    %v642 = vadd.f32 %v105, %v641
    %v643 = vpop.f32.mrb[0].mxu0
    %644 = vmatprep.mubr.f32.mxu0 0.0
    %645 = vmatmul.mubr.f32.gmra.mrb[0].mxu0 %v533
    %v646 = vpop.f32.mrb[0].mxu0
    %v647 = vadd.f32 %v106, %v646
    %v648 = vpop.f32.mrb[0].mxu0
    %649 = vmatprep.mubr.f32.mxu0 0.0
    %650 = vmatmul.mubr.f32.gmra.mrb[0].mxu0 %v535
    %v651 = vpop.f32.mrb[0].mxu0
    %v652 = vadd.f32 %v107, %v651
    %v653 = vpop.f32.mrb[0].mxu0
    %654 = vmatprep.mubr.f32.mxu0 0.0
    %655 = vmatmul.mubr.f32.gmra.mrb[0].mxu0 %v537
    %v656 = vpop.f32.mrb[0].mxu0
    %v657 = vadd.f32 %v108, %v656
    %v658 = vpop.f32.mrb[0].mxu0
    %659 = vdwg.mxu0
    %vm660 = vcmask 523264
    %v661 = vsel %vm660, %v622, -inf
    %662 = vmax.xlane.f32.xlu0 %v661
    %v663 = vpop.xlane.xlu0 %662
    %v664 = vsel %vm660, %v627, -inf
    %665 = vmax.xlane.f32.xlu0 %v664
    %v666 = vpop.xlane.xlu0 %665
    %v667 = vsel %vm660, %v632, -inf
    %668 = vmax.xlane.f32.xlu0 %v667
    %v669 = vpop.xlane.xlu0 %668
    %v670 = vsel %vm660, %v637, -inf
    %671 = vmax.xlane.f32.xlu0 %v670
    %v672 = vpop.xlane.xlu0 %671
    %v673 = vsel %vm660, %v642, -inf
    %674 = vmax.xlane.f32.xlu0 %v673
    %v675 = vpop.xlane.xlu0 %674
    %v676 = vsel %vm660, %v647, -inf
    %677 = vmax.xlane.f32.xlu0 %v676
    %v678 = vpop.xlane.xlu0 %677
    %v679 = vsel %vm660, %v652, -inf
    %680 = vmax.xlane.f32.xlu0 %v679
    %v681 = vpop.xlane.xlu0 %680
    %v682 = vsel %vm660, %v657, -inf
    %683 = vmax.xlane.f32.xlu0 %v682
    %v684 = vpop.xlane.xlu0 %683
    %v685 = vsub.f32 %v622, %v663
    %v686 = vsub.f32 %v627, %v666
    %v687 = vsub.f32 %v632, %v669
    %v688 = vsub.f32 %v637, %v672
    %v689 = vsub.f32 %v642, %v675
    %v690 = vsub.f32 %v647, %v678
    %v691 = vsub.f32 %v652, %v681
    %v692 = vsub.f32 %v657, %v684
    %v693 = vmul.f32 %v685, 1.442695
    %v694 = vpow.pop %v693
    %v695 = vmul.f32 %v686, 1.442695
    %v696 = vpow.pop %v695
    %v697 = vmul.f32 %v687, 1.442695
    %v698 = vpow.pop %v697
    %v699 = vmul.f32 %v688, 1.442695
    %v700 = vpow.pop %v699
    %v701 = vmul.f32 %v689, 1.442695
    %v702 = vpow.pop %v701
    %v703 = vmul.f32 %v690, 1.442695
    %v704 = vpow.pop %v703
    %v705 = vmul.f32 %v691, 1.442695
    %v706 = vpow.pop %v705
    %v707 = vmul.f32 %v692, 1.442695
    %v708 = vpow.pop %v707
    %v709 = vsel %vm660, %v694, 0.0
    %710 = vadd.xlane.f32.xlu0 %v709
    %v711 = vpop.xlane.xlu0 %710
    %v712 = vsel %vm660, %v696, 0.0
    %713 = vadd.xlane.f32.xlu0 %v712
    %v714 = vpop.xlane.xlu0 %713
    %v715 = vsel %vm660, %v698, 0.0
    %716 = vadd.xlane.f32.xlu0 %v715
    %v717 = vpop.xlane.xlu0 %716
    %v718 = vsel %vm660, %v700, 0.0
    %719 = vadd.xlane.f32.xlu0 %v718
    %v720 = vpop.xlane.xlu0 %719
    %v721 = vsel %vm660, %v702, 0.0
    %722 = vadd.xlane.f32.xlu0 %v721
    %v723 = vpop.xlane.xlu0 %722
    %v724 = vsel %vm660, %v704, 0.0
    %725 = vadd.xlane.f32.xlu0 %v724
    %v726 = vpop.xlane.xlu0 %725
    %v727 = vsel %vm660, %v706, 0.0
    %728 = vadd.xlane.f32.xlu0 %v727
    %v729 = vpop.xlane.xlu0 %728
    %v730 = vsel %vm660, %v708, 0.0
    %731 = vadd.xlane.f32.xlu0 %v730
    %v732 = vpop.xlane.xlu0 %731
    %v733 = vrcp.pop %v711
    %v734 = vrcp.pop %v714
    %v735 = vrcp.pop %v717
    %v736 = vrcp.pop %v720
    %v737 = vrcp.pop %v723
    %v738 = vrcp.pop %v726
    %v739 = vrcp.pop %v729
    %v740 = vrcp.pop %v732
    %v741 = vmul.f32 %v694, %v733
    %v742 = vmul.f32 %v696, %v734
    %v743 = vmul.f32 %v698, %v735
    %v744 = vmul.f32 %v700, %v736
    %v745 = vmul.f32 %v702, %v737
    %v746 = vmul.f32 %v704, %v738
    %v747 = vmul.f32 %v706, %v739
    %v748 = vmul.f32 %v708, %v740
    %749 = vrot.lane.b32.xlu0 %v460, 64
    %v750 = vpop.permute.xlu0 %749
    %751 = vrot.lane.b32.xlu0 %v465, 64
    %v752 = vpop.permute.xlu0 %751
    %753 = vrot.lane.b32.xlu0 %v470, 64
    %v754 = vpop.permute.xlu0 %753
    %755 = vrot.lane.b32.xlu0 %v475, 64
    %v756 = vpop.permute.xlu0 %755
    %757 = vrot.lane.b32.xlu0 %v480, 64
    %v758 = vpop.permute.xlu0 %757
    %759 = vrot.lane.b32.xlu0 %v485, 64
    %v760 = vpop.permute.xlu0 %759
    %761 = vrot.lane.b32.xlu0 %v490, 64
    %v762 = vpop.permute.xlu0 %761
    %763 = vrot.lane.b32.xlu0 %v495, 64
    %v764 = vpop.permute.xlu0 %763
    %v774 = vsel %vm660, %v741, 0
    %v777 = vsel %vm660, %v742, 0
    %v780 = vsel %vm660, %v743, 0
    %v783 = vsel %vm660, %v744, 0
    %v786 = vsel %vm660, %v745, 0
    %v789 = vsel %vm660, %v746, 0
    %v792 = vsel %vm660, %v747, 0
    %v795 = vsel %vm660, %v748, 0
    %797 = vmatprep.subr.mxu0 0.0
    %798 = vmatpush1.msra.mxu0 %v750
    %799 = vmatprep.subr.mxu0 0.0
    %800 = vmatpush1.msra.mxu0 %v752
    %801 = vmatprep.subr.mxu0 0.0
    %802 = vmatpush1.msra.mxu0 %v754
    %803 = vmatprep.subr.mxu0 0.0
    %804 = vmatpush1.msra.mxu0 %v756
    %805 = vmatprep.subr.mxu0 0.0
    %806 = vmatpush1.msra.mxu0 %v758
    %807 = vmatprep.subr.mxu0 0.0
    %808 = vmatpush1.msra.mxu0 %v760
    %809 = vmatprep.subr.mxu0 0.0
    %810 = vmatpush1.msra.mxu0 %v762
    %811 = vmatprep.subr.mxu0 0.0
    %812 = vmatpush1.msra.mxu0 %v764
    %813 = vmatprep.subr.mxu0 0.0
    %814 = vmatpush1.msra.mxu0 0.0
    %815 = vmatprep.subr.mxu0 0.0
    %816 = vmatpush1.msra.mxu0 0.0
    %817 = vmatprep.subr.mxu0 0.0
    %818 = vmatpush1.msra.mxu0 0.0
    %819 = vmatprep.subr.mxu0 0.0
    %820 = vmatpush1.msra.mxu0 0.0
    %821 = vmatprep.subr.mxu0 0.0
    %822 = vmatpush1.msra.mxu0 0.0
    %823 = vmatprep.subr.mxu0 0.0
    %824 = vmatpush1.msra.mxu0 0.0
    %825 = vmatprep.subr.mxu0 0.0
    %826 = vmatpush1.msra.mxu0 0.0
    %827 = vmatprep.subr.mxu0 0.0
    %828 = vmatpush1.msra.mxu0 0.0
    %829 = vmatprep.subr.mxu0 0.0
    %830 = vmatpush1.msra.mxu0 0.0
    %831 = vmatprep.subr.mxu0 0.0
    %832 = vmatpush1.msra.mxu0 0.0
    %833 = vmatprep.subr.mxu0 0.0
    %834 = vmatpush1.msra.mxu0 0.0
    %835 = vmatprep.subr.mxu0 0.0
    %836 = vmatpush1.msra.mxu0 0.0
    %837 = vmatprep.subr.mxu0 0.0
    %838 = vmatpush1.msra.mxu0 0.0
    %839 = vmatprep.subr.mxu0 0.0
    %840 = vmatpush1.msra.mxu0 0.0
    %841 = vmatprep.subr.mxu0 0.0
    %842 = vmatpush1.msra.mxu0 0.0
    %843 = vmatprep.subr.mxu0 0.0
    %844 = vmatpush1.msra.mxu0 0.0
    %845 = vmatprep.subr.mxu0 0.0
    %846 = vmatpush1.msra.mxu0 0.0
    %847 = vmatprep.subr.mxu0 0.0
    %848 = vmatpush1.msra.mxu0 0.0
    %849 = vmatprep.subr.mxu0 0.0
    %850 = vmatpush1.msra.mxu0 0.0
    %851 = vmatprep.subr.mxu0 0.0
    %852 = vmatpush1.msra.mxu0 0.0
    %853 = vmatprep.subr.mxu0 0.0
    %854 = vmatpush1.msra.mxu0 0.0
    %855 = vmatprep.subr.mxu0 0.0
    %856 = vmatpush1.msra.mxu0 0.0
    %857 = vmatprep.subr.mxu0 0.0
    %858 = vmatpush1.msra.mxu0 0.0
    %859 = vmatprep.subr.mxu0 0.0
    %860 = vmatpush1.msra.mxu0 0.0
    %861 = vmatprep.mubr.f32.mxu0 0.0
    %862 = vmatmul.mubr.f32.gmra.mrb[0].mxu0 %v774
    %v863 = vpop.f32.mrb[0].mxu0
    %v864 = vadd.f32 0.0, %v863
    %v865 = vpop.f32.mrb[0].mxu0
    %866 = vmatprep.mubr.f32.mxu0 0.0
    %867 = vmatmul.mubr.f32.gmra.mrb[0].mxu0 %v777
    %v868 = vpop.f32.mrb[0].mxu0
    %v869 = vadd.f32 0.0, %v868
    %v870 = vpop.f32.mrb[0].mxu0
    %871 = vmatprep.mubr.f32.mxu0 0.0
    %872 = vmatmul.mubr.f32.gmra.mrb[0].mxu0 %v780
    %v873 = vpop.f32.mrb[0].mxu0
    %v874 = vadd.f32 0.0, %v873
    %v875 = vpop.f32.mrb[0].mxu0
    %876 = vmatprep.mubr.f32.mxu0 0.0
    %877 = vmatmul.mubr.f32.gmra.mrb[0].mxu0 %v783
    %v878 = vpop.f32.mrb[0].mxu0
    %v879 = vadd.f32 0.0, %v878
    %v880 = vpop.f32.mrb[0].mxu0
    %881 = vmatprep.mubr.f32.mxu0 0.0
    %882 = vmatmul.mubr.f32.gmra.mrb[0].mxu0 %v786
    %v883 = vpop.f32.mrb[0].mxu0
    %v884 = vadd.f32 0.0, %v883
    %v885 = vpop.f32.mrb[0].mxu0
    %886 = vmatprep.mubr.f32.mxu0 0.0
    %887 = vmatmul.mubr.f32.gmra.mrb[0].mxu0 %v789
    %v888 = vpop.f32.mrb[0].mxu0
    %v889 = vadd.f32 0.0, %v888
    %v890 = vpop.f32.mrb[0].mxu0
    %891 = vmatprep.mubr.f32.mxu0 0.0
    %892 = vmatmul.mubr.f32.gmra.mrb[0].mxu0 %v792
    %v893 = vpop.f32.mrb[0].mxu0
    %v894 = vadd.f32 0.0, %v893
    %v895 = vpop.f32.mrb[0].mxu0
    %896 = vmatprep.mubr.f32.mxu0 0.0
    %897 = vmatmul.mubr.f32.gmra.mrb[0].mxu0 %v795
    %v898 = vpop.f32.mrb[0].mxu0
    %v899 = vadd.f32 0.0, %v898
    %v900 = vpop.f32.mrb[0].mxu0
    %901 = vdwg.mxu0
    %902 = vrot.lane.b32.xlu0 %v460, 120
    %v903 = vpop.permute.xlu0 %902
    %904 = vrot.lane.b32.xlu0 %v465, 120
    %v905 = vpop.permute.xlu0 %904
    %906 = vrot.lane.b32.xlu0 %v470, 120
    %v907 = vpop.permute.xlu0 %906
    %908 = vrot.lane.b32.xlu0 %v475, 120
    %v909 = vpop.permute.xlu0 %908
    %910 = vrot.lane.b32.xlu0 %v480, 120
    %v911 = vpop.permute.xlu0 %910
    %912 = vrot.lane.b32.xlu0 %v485, 120
    %v913 = vpop.permute.xlu0 %912
    %914 = vrot.lane.b32.xlu0 %v490, 120
    %v915 = vpop.permute.xlu0 %914
    %916 = vrot.lane.b32.xlu0 %v495, 120
    %v917 = vpop.permute.xlu0 %916
    %918 = vrot.lane.b32.xlu0 %v460, 88
    %v919 = vpop.permute.xlu0 %918
    %920 = vrot.lane.b32.xlu0 %v465, 88
    %v921 = vpop.permute.xlu0 %920
    %922 = vrot.lane.b32.xlu0 %v470, 88
    %v923 = vpop.permute.xlu0 %922
    %924 = vrot.lane.b32.xlu0 %v475, 88
    %v925 = vpop.permute.xlu0 %924
    %926 = vrot.lane.b32.xlu0 %v480, 88
    %v927 = vpop.permute.xlu0 %926
    %928 = vrot.lane.b32.xlu0 %v485, 88
    %v929 = vpop.permute.xlu0 %928
    %930 = vrot.lane.b32.xlu0 %v490, 88
    %v931 = vpop.permute.xlu0 %930
    %932 = vrot.lane.b32.xlu0 %v495, 88
    %v933 = vpop.permute.xlu0 %932
    %v934 = vsel %vm522, %v903, 0
    %v936 = vsel %vm522, %v905, 0
    %v938 = vsel %vm522, %v907, 0
    %v940 = vsel %vm522, %v909, 0
    %v942 = vsel %vm522, %v911, 0
    %v944 = vsel %vm522, %v913, 0
    %v946 = vsel %vm522, %v915, 0
    %v948 = vsel %vm522, %v917, 0
    %v950 = vsel %vm522, %v919, 0
    %v952 = vsel %vm522, %v921, 0
    %v954 = vsel %vm522, %v923, 0
    %v956 = vsel %vm522, %v925, 0
    %v958 = vsel %vm522, %v927, 0
    %v960 = vsel %vm522, %v929, 0
    %v962 = vsel %vm522, %v931, 0
    %v964 = vsel %vm522, %v933, 0
    %966 = vmatprep.subr.mxu0 0.0
    %967 = vmatpush1.xpose.msra.mxu0 %v950
    %968 = vmatprep.subr.mxu0 0.0
    %969 = vmatpush1.xpose.msra.mxu0 %v952
    %970 = vmatprep.subr.mxu0 0.0
    %971 = vmatpush1.xpose.msra.mxu0 %v954
    %972 = vmatprep.subr.mxu0 0.0
    %973 = vmatpush1.xpose.msra.mxu0 %v956
    %974 = vmatprep.subr.mxu0 0.0
    %975 = vmatpush1.xpose.msra.mxu0 %v958
    %976 = vmatprep.subr.mxu0 0.0
    %977 = vmatpush1.xpose.msra.mxu0 %v960
    %978 = vmatprep.subr.mxu0 0.0
    %979 = vmatpush1.xpose.msra.mxu0 %v962
    %980 = vmatprep.subr.mxu0 0.0
    %981 = vmatpush1.xpose.msra.mxu0 %v964
    %982 = vmatprep.subr.mxu0 0.0
    %983 = vmatpush1.xpose.msra.mxu0 0.0
    %984 = vmatprep.subr.mxu0 0.0
    %985 = vmatpush1.xpose.msra.mxu0 0.0
    %986 = vmatprep.subr.mxu0 0.0
    %987 = vmatpush1.xpose.msra.mxu0 0.0
    %988 = vmatprep.subr.mxu0 0.0
    %989 = vmatpush1.xpose.msra.mxu0 0.0
    %990 = vmatprep.subr.mxu0 0.0
    %991 = vmatpush1.xpose.msra.mxu0 0.0
    %992 = vmatprep.subr.mxu0 0.0
    %993 = vmatpush1.xpose.msra.mxu0 0.0
    %994 = vmatprep.subr.mxu0 0.0
    %995 = vmatpush1.xpose.msra.mxu0 0.0
    %996 = vmatprep.subr.mxu0 0.0
    %997 = vmatpush1.xpose.msra.mxu0 0.0
    %998 = vmatprep.subr.mxu0 0.0
    %999 = vmatpush1.xpose.msra.mxu0 0.0
    %1000 = vmatprep.subr.mxu0 0.0
    %1001 = vmatpush1.xpose.msra.mxu0 0.0
    %1002 = vmatprep.subr.mxu0 0.0
    %1003 = vmatpush1.xpose.msra.mxu0 0.0
    %1004 = vmatprep.subr.mxu0 0.0
    %1005 = vmatpush1.xpose.msra.mxu0 0.0
    %1006 = vmatprep.subr.mxu0 0.0
    %1007 = vmatpush1.xpose.msra.mxu0 0.0
    %1008 = vmatprep.subr.mxu0 0.0
    %1009 = vmatpush1.xpose.msra.mxu0 0.0
    %1010 = vmatprep.subr.mxu0 0.0
    %1011 = vmatpush1.xpose.msra.mxu0 0.0
    %1012 = vmatprep.subr.mxu0 0.0
    %1013 = vmatpush1.xpose.msra.mxu0 0.0
    %1014 = vmatprep.subr.mxu0 0.0
    %1015 = vmatpush1.xpose.msra.mxu0 0.0
    %1016 = vmatprep.subr.mxu0 0.0
    %1017 = vmatpush1.xpose.msra.mxu0 0.0
    %1018 = vmatprep.subr.mxu0 0.0
    %1019 = vmatpush1.xpose.msra.mxu0 0.0
    %1020 = vmatprep.subr.mxu0 0.0
    %1021 = vmatpush1.xpose.msra.mxu0 0.0
    %1022 = vmatprep.subr.mxu0 0.0
    %1023 = vmatpush1.xpose.msra.mxu0 0.0
    %1024 = vmatprep.subr.mxu0 0.0
    %1025 = vmatpush1.xpose.msra.mxu0 0.0
    %1026 = vmatprep.subr.mxu0 0.0
    %1027 = vmatpush1.xpose.msra.mxu0 0.0
    %1028 = vmatprep.subr.mxu0 0.0
    %1029 = vmatpush1.xpose.msra.mxu0 0.0
    %1030 = vmatprep.mubr.f32.mxu0 0.0
    %1031 = vmatmul.mubr.f32.gmra.mrb[0].mxu0 %v934
    %v1032 = vpop.f32.mrb[0].mxu0
    %v1033 = vadd.f32 %v101, %v1032
    %v1034 = vpop.f32.mrb[0].mxu0
    %1035 = vmatprep.mubr.f32.mxu0 0.0
    %1036 = vmatmul.mubr.f32.gmra.mrb[0].mxu0 %v936
    %v1037 = vpop.f32.mrb[0].mxu0
    %v1038 = vadd.f32 %v102, %v1037
    %v1039 = vpop.f32.mrb[0].mxu0
    %1040 = vmatprep.mubr.f32.mxu0 0.0
    %1041 = vmatmul.mubr.f32.gmra.mrb[0].mxu0 %v938
    %v1042 = vpop.f32.mrb[0].mxu0
    %v1043 = vadd.f32 %v103, %v1042
    %v1044 = vpop.f32.mrb[0].mxu0
    %1045 = vmatprep.mubr.f32.mxu0 0.0
    %1046 = vmatmul.mubr.f32.gmra.mrb[0].mxu0 %v940
    %v1047 = vpop.f32.mrb[0].mxu0
    %v1048 = vadd.f32 %v104, %v1047
    %v1049 = vpop.f32.mrb[0].mxu0
    %1050 = vmatprep.mubr.f32.mxu0 0.0
    %1051 = vmatmul.mubr.f32.gmra.mrb[0].mxu0 %v942
    %v1052 = vpop.f32.mrb[0].mxu0
    %v1053 = vadd.f32 %v105, %v1052
    %v1054 = vpop.f32.mrb[0].mxu0
    %1055 = vmatprep.mubr.f32.mxu0 0.0
    %1056 = vmatmul.mubr.f32.gmra.mrb[0].mxu0 %v944
    %v1057 = vpop.f32.mrb[0].mxu0
    %v1058 = vadd.f32 %v106, %v1057
    %v1059 = vpop.f32.mrb[0].mxu0
    %1060 = vmatprep.mubr.f32.mxu0 0.0
    %1061 = vmatmul.mubr.f32.gmra.mrb[0].mxu0 %v946
    %v1062 = vpop.f32.mrb[0].mxu0
    %v1063 = vadd.f32 %v107, %v1062
    %v1064 = vpop.f32.mrb[0].mxu0
    %1065 = vmatprep.mubr.f32.mxu0 0.0
    %1066 = vmatmul.mubr.f32.gmra.mrb[0].mxu0 %v948
    %v1067 = vpop.f32.mrb[0].mxu0
    %v1068 = vadd.f32 %v108, %v1067
    %v1069 = vpop.f32.mrb[0].mxu0
    %1070 = vdwg.mxu0
    %v1071 = vsel %vm660, %v1033, -inf
    %1072 = vmax.xlane.f32.xlu0 %v1071
    %v1073 = vpop.xlane.xlu0 %1072
    %v1074 = vsel %vm660, %v1038, -inf
    %1075 = vmax.xlane.f32.xlu0 %v1074
    %v1076 = vpop.xlane.xlu0 %1075
    %v1077 = vsel %vm660, %v1043, -inf
    %1078 = vmax.xlane.f32.xlu0 %v1077
    %v1079 = vpop.xlane.xlu0 %1078
    %v1080 = vsel %vm660, %v1048, -inf
    %1081 = vmax.xlane.f32.xlu0 %v1080
    %v1082 = vpop.xlane.xlu0 %1081
    %v1083 = vsel %vm660, %v1053, -inf
    %1084 = vmax.xlane.f32.xlu0 %v1083
    %v1085 = vpop.xlane.xlu0 %1084
    %v1086 = vsel %vm660, %v1058, -inf
    %1087 = vmax.xlane.f32.xlu0 %v1086
    %v1088 = vpop.xlane.xlu0 %1087
    %v1089 = vsel %vm660, %v1063, -inf
    %1090 = vmax.xlane.f32.xlu0 %v1089
    %v1091 = vpop.xlane.xlu0 %1090
    %v1092 = vsel %vm660, %v1068, -inf
    %1093 = vmax.xlane.f32.xlu0 %v1092
    %v1094 = vpop.xlane.xlu0 %1093
    %v1095 = vsub.f32 %v1033, %v1073
    %v1096 = vsub.f32 %v1038, %v1076
    %v1097 = vsub.f32 %v1043, %v1079
    %v1098 = vsub.f32 %v1048, %v1082
    %v1099 = vsub.f32 %v1053, %v1085
    %v1100 = vsub.f32 %v1058, %v1088
    %v1101 = vsub.f32 %v1063, %v1091
    %v1102 = vsub.f32 %v1068, %v1094
    %v1103 = vmul.f32 %v1095, 1.442695
    %v1104 = vpow.pop %v1103
    %v1105 = vmul.f32 %v1096, 1.442695
    %v1106 = vpow.pop %v1105
    %v1107 = vmul.f32 %v1097, 1.442695
    %v1108 = vpow.pop %v1107
    %v1109 = vmul.f32 %v1098, 1.442695
    %v1110 = vpow.pop %v1109
    %v1111 = vmul.f32 %v1099, 1.442695
    %v1112 = vpow.pop %v1111
    %v1113 = vmul.f32 %v1100, 1.442695
    %v1114 = vpow.pop %v1113
    %v1115 = vmul.f32 %v1101, 1.442695
    %v1116 = vpow.pop %v1115
    %v1117 = vmul.f32 %v1102, 1.442695
    %v1118 = vpow.pop %v1117
    %v1119 = vsel %vm660, %v1104, 0.0
    %1120 = vadd.xlane.f32.xlu0 %v1119
    %v1121 = vpop.xlane.xlu0 %1120
    %v1122 = vsel %vm660, %v1106, 0.0
    %1123 = vadd.xlane.f32.xlu0 %v1122
    %v1124 = vpop.xlane.xlu0 %1123
    %v1125 = vsel %vm660, %v1108, 0.0
    %1126 = vadd.xlane.f32.xlu0 %v1125
    %v1127 = vpop.xlane.xlu0 %1126
    %v1128 = vsel %vm660, %v1110, 0.0
    %1129 = vadd.xlane.f32.xlu0 %v1128
    %v1130 = vpop.xlane.xlu0 %1129
    %v1131 = vsel %vm660, %v1112, 0.0
    %1132 = vadd.xlane.f32.xlu0 %v1131
    %v1133 = vpop.xlane.xlu0 %1132
    %v1134 = vsel %vm660, %v1114, 0.0
    %1135 = vadd.xlane.f32.xlu0 %v1134
    %v1136 = vpop.xlane.xlu0 %1135
    %v1137 = vsel %vm660, %v1116, 0.0
    %1138 = vadd.xlane.f32.xlu0 %v1137
    %v1139 = vpop.xlane.xlu0 %1138
    %v1140 = vsel %vm660, %v1118, 0.0
    %1141 = vadd.xlane.f32.xlu0 %v1140
    %v1142 = vpop.xlane.xlu0 %1141
    %v1143 = vrcp.pop %v1121
    %v1144 = vrcp.pop %v1124
    %v1145 = vrcp.pop %v1127
    %v1146 = vrcp.pop %v1130
    %v1147 = vrcp.pop %v1133
    %v1148 = vrcp.pop %v1136
    %v1149 = vrcp.pop %v1139
    %v1150 = vrcp.pop %v1142
    %v1151 = vmul.f32 %v1104, %v1143
    %v1152 = vmul.f32 %v1106, %v1144
    %v1153 = vmul.f32 %v1108, %v1145
    %v1154 = vmul.f32 %v1110, %v1146
    %v1155 = vmul.f32 %v1112, %v1147
    %v1156 = vmul.f32 %v1114, %v1148
    %v1157 = vmul.f32 %v1116, %v1149
    %v1158 = vmul.f32 %v1118, %v1150
    %1159 = vrot.lane.b32.xlu0 %v460, 56
    %v1160 = vpop.permute.xlu0 %1159
    %1161 = vrot.lane.b32.xlu0 %v465, 56
    %v1162 = vpop.permute.xlu0 %1161
    %1163 = vrot.lane.b32.xlu0 %v470, 56
    %v1164 = vpop.permute.xlu0 %1163
    %1165 = vrot.lane.b32.xlu0 %v475, 56
    %v1166 = vpop.permute.xlu0 %1165
    %1167 = vrot.lane.b32.xlu0 %v480, 56
    %v1168 = vpop.permute.xlu0 %1167
    %1169 = vrot.lane.b32.xlu0 %v485, 56
    %v1170 = vpop.permute.xlu0 %1169
    %1171 = vrot.lane.b32.xlu0 %v490, 56
    %v1172 = vpop.permute.xlu0 %1171
    %1173 = vrot.lane.b32.xlu0 %v495, 56
    %v1174 = vpop.permute.xlu0 %1173
    %v1184 = vsel %vm660, %v1151, 0
    %v1187 = vsel %vm660, %v1152, 0
    %v1190 = vsel %vm660, %v1153, 0
    %v1193 = vsel %vm660, %v1154, 0
    %v1196 = vsel %vm660, %v1155, 0
    %v1199 = vsel %vm660, %v1156, 0
    %v1202 = vsel %vm660, %v1157, 0
    %v1205 = vsel %vm660, %v1158, 0
    %1207 = vmatprep.subr.mxu0 0.0
    %1208 = vmatpush1.msra.mxu0 %v1160
    %1209 = vmatprep.subr.mxu0 0.0
    %1210 = vmatpush1.msra.mxu0 %v1162
    %1211 = vmatprep.subr.mxu0 0.0
    %1212 = vmatpush1.msra.mxu0 %v1164
    %1213 = vmatprep.subr.mxu0 0.0
    %1214 = vmatpush1.msra.mxu0 %v1166
    %1215 = vmatprep.subr.mxu0 0.0
    %1216 = vmatpush1.msra.mxu0 %v1168
    %1217 = vmatprep.subr.mxu0 0.0
    %1218 = vmatpush1.msra.mxu0 %v1170
    %1219 = vmatprep.subr.mxu0 0.0
    %1220 = vmatpush1.msra.mxu0 %v1172
    %1221 = vmatprep.subr.mxu0 0.0
    %1222 = vmatpush1.msra.mxu0 %v1174
    %1223 = vmatprep.subr.mxu0 0.0
    %1224 = vmatpush1.msra.mxu0 0.0
    %1225 = vmatprep.subr.mxu0 0.0
    %1226 = vmatpush1.msra.mxu0 0.0
    %1227 = vmatprep.subr.mxu0 0.0
    %1228 = vmatpush1.msra.mxu0 0.0
    %1229 = vmatprep.subr.mxu0 0.0
    %1230 = vmatpush1.msra.mxu0 0.0
    %1231 = vmatprep.subr.mxu0 0.0
    %1232 = vmatpush1.msra.mxu0 0.0
    %1233 = vmatprep.subr.mxu0 0.0
    %1234 = vmatpush1.msra.mxu0 0.0
    %1235 = vmatprep.subr.mxu0 0.0
    %1236 = vmatpush1.msra.mxu0 0.0
    %1237 = vmatprep.subr.mxu0 0.0
    %1238 = vmatpush1.msra.mxu0 0.0
    %1239 = vmatprep.subr.mxu0 0.0
    %1240 = vmatpush1.msra.mxu0 0.0
    %1241 = vmatprep.subr.mxu0 0.0
    %1242 = vmatpush1.msra.mxu0 0.0
    %1243 = vmatprep.subr.mxu0 0.0
    %1244 = vmatpush1.msra.mxu0 0.0
    %1245 = vmatprep.subr.mxu0 0.0
    %1246 = vmatpush1.msra.mxu0 0.0
    %1247 = vmatprep.subr.mxu0 0.0
    %1248 = vmatpush1.msra.mxu0 0.0
    %1249 = vmatprep.subr.mxu0 0.0
    %1250 = vmatpush1.msra.mxu0 0.0
    %1251 = vmatprep.subr.mxu0 0.0
    %1252 = vmatpush1.msra.mxu0 0.0
    %1253 = vmatprep.subr.mxu0 0.0
    %1254 = vmatpush1.msra.mxu0 0.0
    %1255 = vmatprep.subr.mxu0 0.0
    %1256 = vmatpush1.msra.mxu0 0.0
    %1257 = vmatprep.subr.mxu0 0.0
    %1258 = vmatpush1.msra.mxu0 0.0
    %1259 = vmatprep.subr.mxu0 0.0
    %1260 = vmatpush1.msra.mxu0 0.0
    %1261 = vmatprep.subr.mxu0 0.0
    %1262 = vmatpush1.msra.mxu0 0.0
    %1263 = vmatprep.subr.mxu0 0.0
    %1264 = vmatpush1.msra.mxu0 0.0
    %1265 = vmatprep.subr.mxu0 0.0
    %1266 = vmatpush1.msra.mxu0 0.0
    %1267 = vmatprep.subr.mxu0 0.0
    %1268 = vmatpush1.msra.mxu0 0.0
    %1269 = vmatprep.subr.mxu0 0.0
    %1270 = vmatpush1.msra.mxu0 0.0
    %1271 = vmatprep.mubr.f32.mxu0 0.0
    %1272 = vmatmul.mubr.f32.gmra.mrb[0].mxu0 %v1184
    %v1273 = vpop.f32.mrb[0].mxu0
    %v1274 = vadd.f32 0.0, %v1273
    %v1275 = vpop.f32.mrb[0].mxu0
    %1276 = vmatprep.mubr.f32.mxu0 0.0
    %1277 = vmatmul.mubr.f32.gmra.mrb[0].mxu0 %v1187
    %v1278 = vpop.f32.mrb[0].mxu0
    %v1279 = vadd.f32 0.0, %v1278
    %v1280 = vpop.f32.mrb[0].mxu0
    %1281 = vmatprep.mubr.f32.mxu0 0.0
    %1282 = vmatmul.mubr.f32.gmra.mrb[0].mxu0 %v1190
    %v1283 = vpop.f32.mrb[0].mxu0
    %v1284 = vadd.f32 0.0, %v1283
    %v1285 = vpop.f32.mrb[0].mxu0
    %1286 = vmatprep.mubr.f32.mxu0 0.0
    %1287 = vmatmul.mubr.f32.gmra.mrb[0].mxu0 %v1193
    %v1288 = vpop.f32.mrb[0].mxu0
    %v1289 = vadd.f32 0.0, %v1288
    %v1290 = vpop.f32.mrb[0].mxu0
    %1291 = vmatprep.mubr.f32.mxu0 0.0
    %1292 = vmatmul.mubr.f32.gmra.mrb[0].mxu0 %v1196
    %v1293 = vpop.f32.mrb[0].mxu0
    %v1294 = vadd.f32 0.0, %v1293
    %v1295 = vpop.f32.mrb[0].mxu0
    %1296 = vmatprep.mubr.f32.mxu0 0.0
    %1297 = vmatmul.mubr.f32.gmra.mrb[0].mxu0 %v1199
    %v1298 = vpop.f32.mrb[0].mxu0
    %v1299 = vadd.f32 0.0, %v1298
    %v1300 = vpop.f32.mrb[0].mxu0
    %1301 = vmatprep.mubr.f32.mxu0 0.0
    %1302 = vmatmul.mubr.f32.gmra.mrb[0].mxu0 %v1202
    %v1303 = vpop.f32.mrb[0].mxu0
    %v1304 = vadd.f32 0.0, %v1303
    %v1305 = vpop.f32.mrb[0].mxu0
    %1306 = vmatprep.mubr.f32.mxu0 0.0
    %1307 = vmatmul.mubr.f32.gmra.mrb[0].mxu0 %v1205
    %v1308 = vpop.f32.mrb[0].mxu0
    %v1309 = vadd.f32 0.0, %v1308
    %v1310 = vpop.f32.mrb[0].mxu0
    %1311 = vdwg.mxu0
    %1312 = vrot.lane.b32.xlu0 %v460, 112
    %v1313 = vpop.permute.xlu0 %1312
    %1314 = vrot.lane.b32.xlu0 %v465, 112
    %v1315 = vpop.permute.xlu0 %1314
    %1316 = vrot.lane.b32.xlu0 %v470, 112
    %v1317 = vpop.permute.xlu0 %1316
    %1318 = vrot.lane.b32.xlu0 %v475, 112
    %v1319 = vpop.permute.xlu0 %1318
    %1320 = vrot.lane.b32.xlu0 %v480, 112
    %v1321 = vpop.permute.xlu0 %1320
    %1322 = vrot.lane.b32.xlu0 %v485, 112
    %v1323 = vpop.permute.xlu0 %1322
    %1324 = vrot.lane.b32.xlu0 %v490, 112
    %v1325 = vpop.permute.xlu0 %1324
    %1326 = vrot.lane.b32.xlu0 %v495, 112
    %v1327 = vpop.permute.xlu0 %1326
    %1328 = vrot.lane.b32.xlu0 %v460, 80
    %v1329 = vpop.permute.xlu0 %1328
    %1330 = vrot.lane.b32.xlu0 %v465, 80
    %v1331 = vpop.permute.xlu0 %1330
    %1332 = vrot.lane.b32.xlu0 %v470, 80
    %v1333 = vpop.permute.xlu0 %1332
    %1334 = vrot.lane.b32.xlu0 %v475, 80
    %v1335 = vpop.permute.xlu0 %1334
    %1336 = vrot.lane.b32.xlu0 %v480, 80
    %v1337 = vpop.permute.xlu0 %1336
    %1338 = vrot.lane.b32.xlu0 %v485, 80
    %v1339 = vpop.permute.xlu0 %1338
    %1340 = vrot.lane.b32.xlu0 %v490, 80
    %v1341 = vpop.permute.xlu0 %1340
    %1342 = vrot.lane.b32.xlu0 %v495, 80
    %v1343 = vpop.permute.xlu0 %1342
    %v1344 = vsel %vm522, %v1313, 0
    %v1346 = vsel %vm522, %v1315, 0
    %v1348 = vsel %vm522, %v1317, 0
    %v1350 = vsel %vm522, %v1319, 0
    %v1352 = vsel %vm522, %v1321, 0
    %v1354 = vsel %vm522, %v1323, 0
    %v1356 = vsel %vm522, %v1325, 0
    %v1358 = vsel %vm522, %v1327, 0
    %v1360 = vsel %vm522, %v1329, 0
    %v1362 = vsel %vm522, %v1331, 0
    %v1364 = vsel %vm522, %v1333, 0
    %v1366 = vsel %vm522, %v1335, 0
    %v1368 = vsel %vm522, %v1337, 0
    %v1370 = vsel %vm522, %v1339, 0
    %v1372 = vsel %vm522, %v1341, 0
    %v1374 = vsel %vm522, %v1343, 0
    %1376 = vmatprep.subr.mxu0 0.0
    %1377 = vmatpush1.xpose.msra.mxu0 %v1360
    %1378 = vmatprep.subr.mxu0 0.0
    %1379 = vmatpush1.xpose.msra.mxu0 %v1362
    %1380 = vmatprep.subr.mxu0 0.0
    %1381 = vmatpush1.xpose.msra.mxu0 %v1364
    %1382 = vmatprep.subr.mxu0 0.0
    %1383 = vmatpush1.xpose.msra.mxu0 %v1366
    %1384 = vmatprep.subr.mxu0 0.0
    %1385 = vmatpush1.xpose.msra.mxu0 %v1368
    %1386 = vmatprep.subr.mxu0 0.0
    %1387 = vmatpush1.xpose.msra.mxu0 %v1370
    %1388 = vmatprep.subr.mxu0 0.0
    %1389 = vmatpush1.xpose.msra.mxu0 %v1372
    %1390 = vmatprep.subr.mxu0 0.0
    %1391 = vmatpush1.xpose.msra.mxu0 %v1374
    %1392 = vmatprep.subr.mxu0 0.0
    %1393 = vmatpush1.xpose.msra.mxu0 0.0
    %1394 = vmatprep.subr.mxu0 0.0
    %1395 = vmatpush1.xpose.msra.mxu0 0.0
    %1396 = vmatprep.subr.mxu0 0.0
    %1397 = vmatpush1.xpose.msra.mxu0 0.0
    %1398 = vmatprep.subr.mxu0 0.0
    %1399 = vmatpush1.xpose.msra.mxu0 0.0
    %1400 = vmatprep.subr.mxu0 0.0
    %1401 = vmatpush1.xpose.msra.mxu0 0.0
    %1402 = vmatprep.subr.mxu0 0.0
    %1403 = vmatpush1.xpose.msra.mxu0 0.0
    %1404 = vmatprep.subr.mxu0 0.0
    %1405 = vmatpush1.xpose.msra.mxu0 0.0
    %1406 = vmatprep.subr.mxu0 0.0
    %1407 = vmatpush1.xpose.msra.mxu0 0.0
    %1408 = vmatprep.subr.mxu0 0.0
    %1409 = vmatpush1.xpose.msra.mxu0 0.0
    %1410 = vmatprep.subr.mxu0 0.0
    %1411 = vmatpush1.xpose.msra.mxu0 0.0
    %1412 = vmatprep.subr.mxu0 0.0
    %1413 = vmatpush1.xpose.msra.mxu0 0.0
    %1414 = vmatprep.subr.mxu0 0.0
    %1415 = vmatpush1.xpose.msra.mxu0 0.0
    %1416 = vmatprep.subr.mxu0 0.0
    %1417 = vmatpush1.xpose.msra.mxu0 0.0
    %1418 = vmatprep.subr.mxu0 0.0
    %1419 = vmatpush1.xpose.msra.mxu0 0.0
    %1420 = vmatprep.subr.mxu0 0.0
    %1421 = vmatpush1.xpose.msra.mxu0 0.0
    %1422 = vmatprep.subr.mxu0 0.0
    %1423 = vmatpush1.xpose.msra.mxu0 0.0
    %1424 = vmatprep.subr.mxu0 0.0
    %1425 = vmatpush1.xpose.msra.mxu0 0.0
    %1426 = vmatprep.subr.mxu0 0.0
    %1427 = vmatpush1.xpose.msra.mxu0 0.0
    %1428 = vmatprep.subr.mxu0 0.0
    %1429 = vmatpush1.xpose.msra.mxu0 0.0
    %1430 = vmatprep.subr.mxu0 0.0
    %1431 = vmatpush1.xpose.msra.mxu0 0.0
    %1432 = vmatprep.subr.mxu0 0.0
    %1433 = vmatpush1.xpose.msra.mxu0 0.0
    %1434 = vmatprep.subr.mxu0 0.0
    %1435 = vmatpush1.xpose.msra.mxu0 0.0
    %1436 = vmatprep.subr.mxu0 0.0
    %1437 = vmatpush1.xpose.msra.mxu0 0.0
    %1438 = vmatprep.subr.mxu0 0.0
    %1439 = vmatpush1.xpose.msra.mxu0 0.0
    %1440 = vmatprep.mubr.f32.mxu0 0.0
    %1441 = vmatmul.mubr.f32.gmra.mrb[0].mxu0 %v1344
    %v1442 = vpop.f32.mrb[0].mxu0
    %v1443 = vadd.f32 %v101, %v1442
    %v1444 = vpop.f32.mrb[0].mxu0
    %1445 = vmatprep.mubr.f32.mxu0 0.0
    %1446 = vmatmul.mubr.f32.gmra.mrb[0].mxu0 %v1346
    %v1447 = vpop.f32.mrb[0].mxu0
    %v1448 = vadd.f32 %v102, %v1447
    %v1449 = vpop.f32.mrb[0].mxu0
    %1450 = vmatprep.mubr.f32.mxu0 0.0
    %1451 = vmatmul.mubr.f32.gmra.mrb[0].mxu0 %v1348
    %v1452 = vpop.f32.mrb[0].mxu0
    %v1453 = vadd.f32 %v103, %v1452
    %v1454 = vpop.f32.mrb[0].mxu0
    %1455 = vmatprep.mubr.f32.mxu0 0.0
    %1456 = vmatmul.mubr.f32.gmra.mrb[0].mxu0 %v1350
    %v1457 = vpop.f32.mrb[0].mxu0
    %v1458 = vadd.f32 %v104, %v1457
    %v1459 = vpop.f32.mrb[0].mxu0
    %1460 = vmatprep.mubr.f32.mxu0 0.0
    %1461 = vmatmul.mubr.f32.gmra.mrb[0].mxu0 %v1352
    %v1462 = vpop.f32.mrb[0].mxu0
    %v1463 = vadd.f32 %v105, %v1462
    %v1464 = vpop.f32.mrb[0].mxu0
    %1465 = vmatprep.mubr.f32.mxu0 0.0
    %1466 = vmatmul.mubr.f32.gmra.mrb[0].mxu0 %v1354
    %v1467 = vpop.f32.mrb[0].mxu0
    %v1468 = vadd.f32 %v106, %v1467
    %v1469 = vpop.f32.mrb[0].mxu0
    %1470 = vmatprep.mubr.f32.mxu0 0.0
    %1471 = vmatmul.mubr.f32.gmra.mrb[0].mxu0 %v1356
    %v1472 = vpop.f32.mrb[0].mxu0
    %v1473 = vadd.f32 %v107, %v1472
    %v1474 = vpop.f32.mrb[0].mxu0
    %1475 = vmatprep.mubr.f32.mxu0 0.0
    %1476 = vmatmul.mubr.f32.gmra.mrb[0].mxu0 %v1358
    %v1477 = vpop.f32.mrb[0].mxu0
    %v1478 = vadd.f32 %v108, %v1477
    %v1479 = vpop.f32.mrb[0].mxu0
    %1480 = vdwg.mxu0
    %v1481 = vsel %vm660, %v1443, -inf
    %1482 = vmax.xlane.f32.xlu0 %v1481
    %v1483 = vpop.xlane.xlu0 %1482
    %v1484 = vsel %vm660, %v1448, -inf
    %1485 = vmax.xlane.f32.xlu0 %v1484
    %v1486 = vpop.xlane.xlu0 %1485
    %v1487 = vsel %vm660, %v1453, -inf
    %1488 = vmax.xlane.f32.xlu0 %v1487
    %v1489 = vpop.xlane.xlu0 %1488
    %v1490 = vsel %vm660, %v1458, -inf
    %1491 = vmax.xlane.f32.xlu0 %v1490
    %v1492 = vpop.xlane.xlu0 %1491
    %v1493 = vsel %vm660, %v1463, -inf
    %1494 = vmax.xlane.f32.xlu0 %v1493
    %v1495 = vpop.xlane.xlu0 %1494
    %v1496 = vsel %vm660, %v1468, -inf
    %1497 = vmax.xlane.f32.xlu0 %v1496
    %v1498 = vpop.xlane.xlu0 %1497
    %v1499 = vsel %vm660, %v1473, -inf
    %1500 = vmax.xlane.f32.xlu0 %v1499
    %v1501 = vpop.xlane.xlu0 %1500
    %v1502 = vsel %vm660, %v1478, -inf
    %1503 = vmax.xlane.f32.xlu0 %v1502
    %v1504 = vpop.xlane.xlu0 %1503
    %v1505 = vsub.f32 %v1443, %v1483
    %v1506 = vsub.f32 %v1448, %v1486
    %v1507 = vsub.f32 %v1453, %v1489
    %v1508 = vsub.f32 %v1458, %v1492
    %v1509 = vsub.f32 %v1463, %v1495
    %v1510 = vsub.f32 %v1468, %v1498
    %v1511 = vsub.f32 %v1473, %v1501
    %v1512 = vsub.f32 %v1478, %v1504
    %v1513 = vmul.f32 %v1505, 1.442695
    %v1514 = vpow.pop %v1513
    %v1515 = vmul.f32 %v1506, 1.442695
    %v1516 = vpow.pop %v1515
    %v1517 = vmul.f32 %v1507, 1.442695
    %v1518 = vpow.pop %v1517
    %v1519 = vmul.f32 %v1508, 1.442695
    %v1520 = vpow.pop %v1519
    %v1521 = vmul.f32 %v1509, 1.442695
    %v1522 = vpow.pop %v1521
    %v1523 = vmul.f32 %v1510, 1.442695
    %v1524 = vpow.pop %v1523
    %v1525 = vmul.f32 %v1511, 1.442695
    %v1526 = vpow.pop %v1525
    %v1527 = vmul.f32 %v1512, 1.442695
    %v1528 = vpow.pop %v1527
    %v1529 = vsel %vm660, %v1514, 0.0
    %1530 = vadd.xlane.f32.xlu0 %v1529
    %v1531 = vpop.xlane.xlu0 %1530
    %v1532 = vsel %vm660, %v1516, 0.0
    %1533 = vadd.xlane.f32.xlu0 %v1532
    %v1534 = vpop.xlane.xlu0 %1533
    %v1535 = vsel %vm660, %v1518, 0.0
    %1536 = vadd.xlane.f32.xlu0 %v1535
    %v1537 = vpop.xlane.xlu0 %1536
    %v1538 = vsel %vm660, %v1520, 0.0
    %1539 = vadd.xlane.f32.xlu0 %v1538
    %v1540 = vpop.xlane.xlu0 %1539
    %v1541 = vsel %vm660, %v1522, 0.0
    %1542 = vadd.xlane.f32.xlu0 %v1541
    %v1543 = vpop.xlane.xlu0 %1542
    %v1544 = vsel %vm660, %v1524, 0.0
    %1545 = vadd.xlane.f32.xlu0 %v1544
    %v1546 = vpop.xlane.xlu0 %1545
    %v1547 = vsel %vm660, %v1526, 0.0
    %1548 = vadd.xlane.f32.xlu0 %v1547
    %v1549 = vpop.xlane.xlu0 %1548
    %v1550 = vsel %vm660, %v1528, 0.0
    %1551 = vadd.xlane.f32.xlu0 %v1550
    %v1552 = vpop.xlane.xlu0 %1551
    %v1553 = vrcp.pop %v1531
    %v1554 = vrcp.pop %v1534
    %v1555 = vrcp.pop %v1537
    %v1556 = vrcp.pop %v1540
    %v1557 = vrcp.pop %v1543
    %v1558 = vrcp.pop %v1546
    %v1559 = vrcp.pop %v1549
    %v1560 = vrcp.pop %v1552
    %v1561 = vmul.f32 %v1514, %v1553
    %v1562 = vmul.f32 %v1516, %v1554
    %v1563 = vmul.f32 %v1518, %v1555
    %v1564 = vmul.f32 %v1520, %v1556
    %v1565 = vmul.f32 %v1522, %v1557
    %v1566 = vmul.f32 %v1524, %v1558
    %v1567 = vmul.f32 %v1526, %v1559
    %v1568 = vmul.f32 %v1528, %v1560
    %1569 = vrot.lane.b32.xlu0 %v460, 48
    %v1570 = vpop.permute.xlu0 %1569
    %1571 = vrot.lane.b32.xlu0 %v465, 48
    %v1572 = vpop.permute.xlu0 %1571
    %1573 = vrot.lane.b32.xlu0 %v470, 48
    %v1574 = vpop.permute.xlu0 %1573
    %1575 = vrot.lane.b32.xlu0 %v475, 48
    %v1576 = vpop.permute.xlu0 %1575
    %1577 = vrot.lane.b32.xlu0 %v480, 48
    %v1578 = vpop.permute.xlu0 %1577
    %1579 = vrot.lane.b32.xlu0 %v485, 48
    %v1580 = vpop.permute.xlu0 %1579
    %1581 = vrot.lane.b32.xlu0 %v490, 48
    %v1582 = vpop.permute.xlu0 %1581
    %1583 = vrot.lane.b32.xlu0 %v495, 48
    %v1584 = vpop.permute.xlu0 %1583
    %v1594 = vsel %vm660, %v1561, 0
    %v1597 = vsel %vm660, %v1562, 0
    %v1600 = vsel %vm660, %v1563, 0
    %v1603 = vsel %vm660, %v1564, 0
    %v1606 = vsel %vm660, %v1565, 0
    %v1609 = vsel %vm660, %v1566, 0
    %v1612 = vsel %vm660, %v1567, 0
    %v1615 = vsel %vm660, %v1568, 0
    %1617 = vmatprep.subr.mxu0 0.0
    %1618 = vmatpush1.msra.mxu0 %v1570
    %1619 = vmatprep.subr.mxu0 0.0
    %1620 = vmatpush1.msra.mxu0 %v1572
    %1621 = vmatprep.subr.mxu0 0.0
    %1622 = vmatpush1.msra.mxu0 %v1574
    %1623 = vmatprep.subr.mxu0 0.0
    %1624 = vmatpush1.msra.mxu0 %v1576
    %1625 = vmatprep.subr.mxu0 0.0
    %1626 = vmatpush1.msra.mxu0 %v1578
    %1627 = vmatprep.subr.mxu0 0.0
    %1628 = vmatpush1.msra.mxu0 %v1580
    %1629 = vmatprep.subr.mxu0 0.0
    %1630 = vmatpush1.msra.mxu0 %v1582
    %1631 = vmatprep.subr.mxu0 0.0
    %1632 = vmatpush1.msra.mxu0 %v1584
    %1633 = vmatprep.subr.mxu0 0.0
    %1634 = vmatpush1.msra.mxu0 0.0
    %1635 = vmatprep.subr.mxu0 0.0
    %1636 = vmatpush1.msra.mxu0 0.0
    %1637 = vmatprep.subr.mxu0 0.0
    %1638 = vmatpush1.msra.mxu0 0.0
    %1639 = vmatprep.subr.mxu0 0.0
    %1640 = vmatpush1.msra.mxu0 0.0
    %1641 = vmatprep.subr.mxu0 0.0
    %1642 = vmatpush1.msra.mxu0 0.0
    %1643 = vmatprep.subr.mxu0 0.0
    %1644 = vmatpush1.msra.mxu0 0.0
    %1645 = vmatprep.subr.mxu0 0.0
    %1646 = vmatpush1.msra.mxu0 0.0
    %1647 = vmatprep.subr.mxu0 0.0
    %1648 = vmatpush1.msra.mxu0 0.0
    %1649 = vmatprep.subr.mxu0 0.0
    %1650 = vmatpush1.msra.mxu0 0.0
    %1651 = vmatprep.subr.mxu0 0.0
    %1652 = vmatpush1.msra.mxu0 0.0
    %1653 = vmatprep.subr.mxu0 0.0
    %1654 = vmatpush1.msra.mxu0 0.0
    %1655 = vmatprep.subr.mxu0 0.0
    %1656 = vmatpush1.msra.mxu0 0.0
    %1657 = vmatprep.subr.mxu0 0.0
    %1658 = vmatpush1.msra.mxu0 0.0
    %1659 = vmatprep.subr.mxu0 0.0
    %1660 = vmatpush1.msra.mxu0 0.0
    %1661 = vmatprep.subr.mxu0 0.0
    %1662 = vmatpush1.msra.mxu0 0.0
    %1663 = vmatprep.subr.mxu0 0.0
    %1664 = vmatpush1.msra.mxu0 0.0
    %1665 = vmatprep.subr.mxu0 0.0
    %1666 = vmatpush1.msra.mxu0 0.0
    %1667 = vmatprep.subr.mxu0 0.0
    %1668 = vmatpush1.msra.mxu0 0.0
    %1669 = vmatprep.subr.mxu0 0.0
    %1670 = vmatpush1.msra.mxu0 0.0
    %1671 = vmatprep.subr.mxu0 0.0
    %1672 = vmatpush1.msra.mxu0 0.0
    %1673 = vmatprep.subr.mxu0 0.0
    %1674 = vmatpush1.msra.mxu0 0.0
    %1675 = vmatprep.subr.mxu0 0.0
    %1676 = vmatpush1.msra.mxu0 0.0
    %1677 = vmatprep.subr.mxu0 0.0
    %1678 = vmatpush1.msra.mxu0 0.0
    %1679 = vmatprep.subr.mxu0 0.0
    %1680 = vmatpush1.msra.mxu0 0.0
    %1681 = vmatprep.mubr.f32.mxu0 0.0
    %1682 = vmatmul.mubr.f32.gmra.mrb[0].mxu0 %v1594
    %v1683 = vpop.f32.mrb[0].mxu0
    %v1684 = vadd.f32 0.0, %v1683
    %v1685 = vpop.f32.mrb[0].mxu0
    %1686 = vmatprep.mubr.f32.mxu0 0.0
    %1687 = vmatmul.mubr.f32.gmra.mrb[0].mxu0 %v1597
    %v1688 = vpop.f32.mrb[0].mxu0
    %v1689 = vadd.f32 0.0, %v1688
    %v1690 = vpop.f32.mrb[0].mxu0
    %1691 = vmatprep.mubr.f32.mxu0 0.0
    %1692 = vmatmul.mubr.f32.gmra.mrb[0].mxu0 %v1600
    %v1693 = vpop.f32.mrb[0].mxu0
    %v1694 = vadd.f32 0.0, %v1693
    %v1695 = vpop.f32.mrb[0].mxu0
    %1696 = vmatprep.mubr.f32.mxu0 0.0
    %1697 = vmatmul.mubr.f32.gmra.mrb[0].mxu0 %v1603
    %v1698 = vpop.f32.mrb[0].mxu0
    %v1699 = vadd.f32 0.0, %v1698
    %v1700 = vpop.f32.mrb[0].mxu0
    %1701 = vmatprep.mubr.f32.mxu0 0.0
    %1702 = vmatmul.mubr.f32.gmra.mrb[0].mxu0 %v1606
    %v1703 = vpop.f32.mrb[0].mxu0
    %v1704 = vadd.f32 0.0, %v1703
    %v1705 = vpop.f32.mrb[0].mxu0
    %1706 = vmatprep.mubr.f32.mxu0 0.0
    %1707 = vmatmul.mubr.f32.gmra.mrb[0].mxu0 %v1609
    %v1708 = vpop.f32.mrb[0].mxu0
    %v1709 = vadd.f32 0.0, %v1708
    %v1710 = vpop.f32.mrb[0].mxu0
    %1711 = vmatprep.mubr.f32.mxu0 0.0
    %1712 = vmatmul.mubr.f32.gmra.mrb[0].mxu0 %v1612
    %v1713 = vpop.f32.mrb[0].mxu0
    %v1714 = vadd.f32 0.0, %v1713
    %v1715 = vpop.f32.mrb[0].mxu0
    %1716 = vmatprep.mubr.f32.mxu0 0.0
    %1717 = vmatmul.mubr.f32.gmra.mrb[0].mxu0 %v1615
    %v1718 = vpop.f32.mrb[0].mxu0
    %v1719 = vadd.f32 0.0, %v1718
    %v1720 = vpop.f32.mrb[0].mxu0
    %1721 = vdwg.mxu0
    %1722 = vrot.lane.b32.xlu0 %v460, 104
    %v1723 = vpop.permute.xlu0 %1722
    %1724 = vrot.lane.b32.xlu0 %v465, 104
    %v1725 = vpop.permute.xlu0 %1724
    %1726 = vrot.lane.b32.xlu0 %v470, 104
    %v1727 = vpop.permute.xlu0 %1726
    %1728 = vrot.lane.b32.xlu0 %v475, 104
    %v1729 = vpop.permute.xlu0 %1728
    %1730 = vrot.lane.b32.xlu0 %v480, 104
    %v1731 = vpop.permute.xlu0 %1730
    %1732 = vrot.lane.b32.xlu0 %v485, 104
    %v1733 = vpop.permute.xlu0 %1732
    %1734 = vrot.lane.b32.xlu0 %v490, 104
    %v1735 = vpop.permute.xlu0 %1734
    %1736 = vrot.lane.b32.xlu0 %v495, 104
    %v1737 = vpop.permute.xlu0 %1736
    %1738 = vrot.lane.b32.xlu0 %v460, 72
    %v1739 = vpop.permute.xlu0 %1738
    %1740 = vrot.lane.b32.xlu0 %v465, 72
    %v1741 = vpop.permute.xlu0 %1740
    %1742 = vrot.lane.b32.xlu0 %v470, 72
    %v1743 = vpop.permute.xlu0 %1742
    %1744 = vrot.lane.b32.xlu0 %v475, 72
    %v1745 = vpop.permute.xlu0 %1744
    %1746 = vrot.lane.b32.xlu0 %v480, 72
    %v1747 = vpop.permute.xlu0 %1746
    %1748 = vrot.lane.b32.xlu0 %v485, 72
    %v1749 = vpop.permute.xlu0 %1748
    %1750 = vrot.lane.b32.xlu0 %v490, 72
    %v1751 = vpop.permute.xlu0 %1750
    %1752 = vrot.lane.b32.xlu0 %v495, 72
    %v1753 = vpop.permute.xlu0 %1752
    %v1754 = vsel %vm522, %v1723, 0
    %v1756 = vsel %vm522, %v1725, 0
    %v1758 = vsel %vm522, %v1727, 0
    %v1760 = vsel %vm522, %v1729, 0
    %v1762 = vsel %vm522, %v1731, 0
    %v1764 = vsel %vm522, %v1733, 0
    %v1766 = vsel %vm522, %v1735, 0
    %v1768 = vsel %vm522, %v1737, 0
    %v1770 = vsel %vm522, %v1739, 0
    %v1772 = vsel %vm522, %v1741, 0
    %v1774 = vsel %vm522, %v1743, 0
    %v1776 = vsel %vm522, %v1745, 0
    %v1778 = vsel %vm522, %v1747, 0
    %v1780 = vsel %vm522, %v1749, 0
    %v1782 = vsel %vm522, %v1751, 0
    %v1784 = vsel %vm522, %v1753, 0
    %1786 = vmatprep.subr.mxu0 0.0
    %1787 = vmatpush1.xpose.msra.mxu0 %v1770
    %1788 = vmatprep.subr.mxu0 0.0
    %1789 = vmatpush1.xpose.msra.mxu0 %v1772
    %1790 = vmatprep.subr.mxu0 0.0
    %1791 = vmatpush1.xpose.msra.mxu0 %v1774
    %1792 = vmatprep.subr.mxu0 0.0
    %1793 = vmatpush1.xpose.msra.mxu0 %v1776
    %1794 = vmatprep.subr.mxu0 0.0
    %1795 = vmatpush1.xpose.msra.mxu0 %v1778
    %1796 = vmatprep.subr.mxu0 0.0
    %1797 = vmatpush1.xpose.msra.mxu0 %v1780
    %1798 = vmatprep.subr.mxu0 0.0
    %1799 = vmatpush1.xpose.msra.mxu0 %v1782
    %1800 = vmatprep.subr.mxu0 0.0
    %1801 = vmatpush1.xpose.msra.mxu0 %v1784
    %1802 = vmatprep.subr.mxu0 0.0
    %1803 = vmatpush1.xpose.msra.mxu0 0.0
    %1804 = vmatprep.subr.mxu0 0.0
    %1805 = vmatpush1.xpose.msra.mxu0 0.0
    %1806 = vmatprep.subr.mxu0 0.0
    %1807 = vmatpush1.xpose.msra.mxu0 0.0
    %1808 = vmatprep.subr.mxu0 0.0
    %1809 = vmatpush1.xpose.msra.mxu0 0.0
    %1810 = vmatprep.subr.mxu0 0.0
    %1811 = vmatpush1.xpose.msra.mxu0 0.0
    %1812 = vmatprep.subr.mxu0 0.0
    %1813 = vmatpush1.xpose.msra.mxu0 0.0
    %1814 = vmatprep.subr.mxu0 0.0
    %1815 = vmatpush1.xpose.msra.mxu0 0.0
    %1816 = vmatprep.subr.mxu0 0.0
    %1817 = vmatpush1.xpose.msra.mxu0 0.0
    %1818 = vmatprep.subr.mxu0 0.0
    %1819 = vmatpush1.xpose.msra.mxu0 0.0
    %1820 = vmatprep.subr.mxu0 0.0
    %1821 = vmatpush1.xpose.msra.mxu0 0.0
    %1822 = vmatprep.subr.mxu0 0.0
    %1823 = vmatpush1.xpose.msra.mxu0 0.0
    %1824 = vmatprep.subr.mxu0 0.0
    %1825 = vmatpush1.xpose.msra.mxu0 0.0
    %1826 = vmatprep.subr.mxu0 0.0
    %1827 = vmatpush1.xpose.msra.mxu0 0.0
    %1828 = vmatprep.subr.mxu0 0.0
    %1829 = vmatpush1.xpose.msra.mxu0 0.0
    %1830 = vmatprep.subr.mxu0 0.0
    %1831 = vmatpush1.xpose.msra.mxu0 0.0
    %1832 = vmatprep.subr.mxu0 0.0
    %1833 = vmatpush1.xpose.msra.mxu0 0.0
    %1834 = vmatprep.subr.mxu0 0.0
    %1835 = vmatpush1.xpose.msra.mxu0 0.0
    %1836 = vmatprep.subr.mxu0 0.0
    %1837 = vmatpush1.xpose.msra.mxu0 0.0
    %1838 = vmatprep.subr.mxu0 0.0
    %1839 = vmatpush1.xpose.msra.mxu0 0.0
    %1840 = vmatprep.subr.mxu0 0.0
    %1841 = vmatpush1.xpose.msra.mxu0 0.0
    %1842 = vmatprep.subr.mxu0 0.0
    %1843 = vmatpush1.xpose.msra.mxu0 0.0
    %1844 = vmatprep.subr.mxu0 0.0
    %1845 = vmatpush1.xpose.msra.mxu0 0.0
    %1846 = vmatprep.subr.mxu0 0.0
    %1847 = vmatpush1.xpose.msra.mxu0 0.0
    %1848 = vmatprep.subr.mxu0 0.0
    %1849 = vmatpush1.xpose.msra.mxu0 0.0
    %1850 = vmatprep.mubr.f32.mxu0 0.0
    %1851 = vmatmul.mubr.f32.gmra.mrb[0].mxu0 %v1754
    %v1852 = vpop.f32.mrb[0].mxu0
    %v1853 = vadd.f32 %v101, %v1852
    %v1854 = vpop.f32.mrb[0].mxu0
    %1855 = vmatprep.mubr.f32.mxu0 0.0
    %1856 = vmatmul.mubr.f32.gmra.mrb[0].mxu0 %v1756
    %v1857 = vpop.f32.mrb[0].mxu0
    %v1858 = vadd.f32 %v102, %v1857
    %v1859 = vpop.f32.mrb[0].mxu0
    %1860 = vmatprep.mubr.f32.mxu0 0.0
    %1861 = vmatmul.mubr.f32.gmra.mrb[0].mxu0 %v1758
    %v1862 = vpop.f32.mrb[0].mxu0
    %v1863 = vadd.f32 %v103, %v1862
    %v1864 = vpop.f32.mrb[0].mxu0
    %1865 = vmatprep.mubr.f32.mxu0 0.0
    %1866 = vmatmul.mubr.f32.gmra.mrb[0].mxu0 %v1760
    %v1867 = vpop.f32.mrb[0].mxu0
    %v1868 = vadd.f32 %v104, %v1867
    %v1869 = vpop.f32.mrb[0].mxu0
    %1870 = vmatprep.mubr.f32.mxu0 0.0
    %1871 = vmatmul.mubr.f32.gmra.mrb[0].mxu0 %v1762
    %v1872 = vpop.f32.mrb[0].mxu0
    %v1873 = vadd.f32 %v105, %v1872
    %v1874 = vpop.f32.mrb[0].mxu0
    %1875 = vmatprep.mubr.f32.mxu0 0.0
    %1876 = vmatmul.mubr.f32.gmra.mrb[0].mxu0 %v1764
    %v1877 = vpop.f32.mrb[0].mxu0
    %v1878 = vadd.f32 %v106, %v1877
    %v1879 = vpop.f32.mrb[0].mxu0
    %1880 = vmatprep.mubr.f32.mxu0 0.0
    %1881 = vmatmul.mubr.f32.gmra.mrb[0].mxu0 %v1766
    %v1882 = vpop.f32.mrb[0].mxu0
    %v1883 = vadd.f32 %v107, %v1882
    %v1884 = vpop.f32.mrb[0].mxu0
    %1885 = vmatprep.mubr.f32.mxu0 0.0
    %1886 = vmatmul.mubr.f32.gmra.mrb[0].mxu0 %v1768
    %v1887 = vpop.f32.mrb[0].mxu0
    %v1888 = vadd.f32 %v108, %v1887
    %v1889 = vpop.f32.mrb[0].mxu0
    %1890 = vdwg.mxu0
    %v1891 = vsel %vm660, %v1853, -inf
    %1892 = vmax.xlane.f32.xlu0 %v1891
    %v1893 = vpop.xlane.xlu0 %1892
    %v1894 = vsel %vm660, %v1858, -inf
    %1895 = vmax.xlane.f32.xlu0 %v1894
    %v1896 = vpop.xlane.xlu0 %1895
    %v1897 = vsel %vm660, %v1863, -inf
    %1898 = vmax.xlane.f32.xlu0 %v1897
    %v1899 = vpop.xlane.xlu0 %1898
    %v1900 = vsel %vm660, %v1868, -inf
    %1901 = vmax.xlane.f32.xlu0 %v1900
    %v1902 = vpop.xlane.xlu0 %1901
    %v1903 = vsel %vm660, %v1873, -inf
    %1904 = vmax.xlane.f32.xlu0 %v1903
    %v1905 = vpop.xlane.xlu0 %1904
    %v1906 = vsel %vm660, %v1878, -inf
    %1907 = vmax.xlane.f32.xlu0 %v1906
    %v1908 = vpop.xlane.xlu0 %1907
    %v1909 = vsel %vm660, %v1883, -inf
    %1910 = vmax.xlane.f32.xlu0 %v1909
    %v1911 = vpop.xlane.xlu0 %1910
    %v1912 = vsel %vm660, %v1888, -inf
    %1913 = vmax.xlane.f32.xlu0 %v1912
    %v1914 = vpop.xlane.xlu0 %1913
    %v1915 = vsub.f32 %v1853, %v1893
    %v1916 = vsub.f32 %v1858, %v1896
    %v1917 = vsub.f32 %v1863, %v1899
    %v1918 = vsub.f32 %v1868, %v1902
    %v1919 = vsub.f32 %v1873, %v1905
    %v1920 = vsub.f32 %v1878, %v1908
    %v1921 = vsub.f32 %v1883, %v1911
    %v1922 = vsub.f32 %v1888, %v1914
    %v1923 = vmul.f32 %v1915, 1.442695
    %v1924 = vpow.pop %v1923
    %v1925 = vmul.f32 %v1916, 1.442695
    %v1926 = vpow.pop %v1925
    %v1927 = vmul.f32 %v1917, 1.442695
    %v1928 = vpow.pop %v1927
    %v1929 = vmul.f32 %v1918, 1.442695
    %v1930 = vpow.pop %v1929
    %v1931 = vmul.f32 %v1919, 1.442695
    %v1932 = vpow.pop %v1931
    %v1933 = vmul.f32 %v1920, 1.442695
    %v1934 = vpow.pop %v1933
    %v1935 = vmul.f32 %v1921, 1.442695
    %v1936 = vpow.pop %v1935
    %v1937 = vmul.f32 %v1922, 1.442695
    %v1938 = vpow.pop %v1937
    %v1939 = vsel %vm660, %v1924, 0.0
    %1940 = vadd.xlane.f32.xlu0 %v1939
    %v1941 = vpop.xlane.xlu0 %1940
    %v1942 = vsel %vm660, %v1926, 0.0
    %1943 = vadd.xlane.f32.xlu0 %v1942
    %v1944 = vpop.xlane.xlu0 %1943
    %v1945 = vsel %vm660, %v1928, 0.0
    %1946 = vadd.xlane.f32.xlu0 %v1945
    %v1947 = vpop.xlane.xlu0 %1946
    %v1948 = vsel %vm660, %v1930, 0.0
    %1949 = vadd.xlane.f32.xlu0 %v1948
    %v1950 = vpop.xlane.xlu0 %1949
    %v1951 = vsel %vm660, %v1932, 0.0
    %1952 = vadd.xlane.f32.xlu0 %v1951
    %v1953 = vpop.xlane.xlu0 %1952
    %v1954 = vsel %vm660, %v1934, 0.0
    %1955 = vadd.xlane.f32.xlu0 %v1954
    %v1956 = vpop.xlane.xlu0 %1955
    %v1957 = vsel %vm660, %v1936, 0.0
    %1958 = vadd.xlane.f32.xlu0 %v1957
    %v1959 = vpop.xlane.xlu0 %1958
    %v1960 = vsel %vm660, %v1938, 0.0
    %1961 = vadd.xlane.f32.xlu0 %v1960
    %v1962 = vpop.xlane.xlu0 %1961
    %v1963 = vrcp.pop %v1941
    %v1964 = vrcp.pop %v1944
    %v1965 = vrcp.pop %v1947
    %v1966 = vrcp.pop %v1950
    %v1967 = vrcp.pop %v1953
    %v1968 = vrcp.pop %v1956
    %v1969 = vrcp.pop %v1959
    %v1970 = vrcp.pop %v1962
    %v1971 = vmul.f32 %v1924, %v1963
    %v1972 = vmul.f32 %v1926, %v1964
    %v1973 = vmul.f32 %v1928, %v1965
    %v1974 = vmul.f32 %v1930, %v1966
    %v1975 = vmul.f32 %v1932, %v1967
    %v1976 = vmul.f32 %v1934, %v1968
    %v1977 = vmul.f32 %v1936, %v1969
    %v1978 = vmul.f32 %v1938, %v1970
    %1979 = vrot.lane.b32.xlu0 %v460, 40
    %v1980 = vpop.permute.xlu0 %1979
    %1981 = vrot.lane.b32.xlu0 %v465, 40
    %v1982 = vpop.permute.xlu0 %1981
    %1983 = vrot.lane.b32.xlu0 %v470, 40
    %v1984 = vpop.permute.xlu0 %1983
    %1985 = vrot.lane.b32.xlu0 %v475, 40
    %v1986 = vpop.permute.xlu0 %1985
    %1987 = vrot.lane.b32.xlu0 %v480, 40
    %v1988 = vpop.permute.xlu0 %1987
    %1989 = vrot.lane.b32.xlu0 %v485, 40
    %v1990 = vpop.permute.xlu0 %1989
    %1991 = vrot.lane.b32.xlu0 %v490, 40
    %v1992 = vpop.permute.xlu0 %1991
    %1993 = vrot.lane.b32.xlu0 %v495, 40
    %v1994 = vpop.permute.xlu0 %1993
    %v2004 = vsel %vm660, %v1971, 0
    %v2007 = vsel %vm660, %v1972, 0
    %v2010 = vsel %vm660, %v1973, 0
    %v2013 = vsel %vm660, %v1974, 0
    %v2016 = vsel %vm660, %v1975, 0
    %v2019 = vsel %vm660, %v1976, 0
    %v2022 = vsel %vm660, %v1977, 0
    %v2025 = vsel %vm660, %v1978, 0
    %2027 = vmatprep.subr.mxu0 0.0
    %2028 = vmatpush1.msra.mxu0 %v1980
    %2029 = vmatprep.subr.mxu0 0.0
    %2030 = vmatpush1.msra.mxu0 %v1982
    %2031 = vmatprep.subr.mxu0 0.0
    %2032 = vmatpush1.msra.mxu0 %v1984
    %2033 = vmatprep.subr.mxu0 0.0
    %2034 = vmatpush1.msra.mxu0 %v1986
    %2035 = vmatprep.subr.mxu0 0.0
    %2036 = vmatpush1.msra.mxu0 %v1988
    %2037 = vmatprep.subr.mxu0 0.0
    %2038 = vmatpush1.msra.mxu0 %v1990
    %2039 = vmatprep.subr.mxu0 0.0
    %2040 = vmatpush1.msra.mxu0 %v1992
    %2041 = vmatprep.subr.mxu0 0.0
    %2042 = vmatpush1.msra.mxu0 %v1994
    %2043 = vmatprep.subr.mxu0 0.0
    %2044 = vmatpush1.msra.mxu0 0.0
    %2045 = vmatprep.subr.mxu0 0.0
    %2046 = vmatpush1.msra.mxu0 0.0
    %2047 = vmatprep.subr.mxu0 0.0
    %2048 = vmatpush1.msra.mxu0 0.0
    %2049 = vmatprep.subr.mxu0 0.0
    %2050 = vmatpush1.msra.mxu0 0.0
    %2051 = vmatprep.subr.mxu0 0.0
    %2052 = vmatpush1.msra.mxu0 0.0
    %2053 = vmatprep.subr.mxu0 0.0
    %2054 = vmatpush1.msra.mxu0 0.0
    %2055 = vmatprep.subr.mxu0 0.0
    %2056 = vmatpush1.msra.mxu0 0.0
    %2057 = vmatprep.subr.mxu0 0.0
    %2058 = vmatpush1.msra.mxu0 0.0
    %2059 = vmatprep.subr.mxu0 0.0
    %2060 = vmatpush1.msra.mxu0 0.0
    %2061 = vmatprep.subr.mxu0 0.0
    %2062 = vmatpush1.msra.mxu0 0.0
    %2063 = vmatprep.subr.mxu0 0.0
    %2064 = vmatpush1.msra.mxu0 0.0
    %2065 = vmatprep.subr.mxu0 0.0
    %2066 = vmatpush1.msra.mxu0 0.0
    %2067 = vmatprep.subr.mxu0 0.0
    %2068 = vmatpush1.msra.mxu0 0.0
    %2069 = vmatprep.subr.mxu0 0.0
    %2070 = vmatpush1.msra.mxu0 0.0
    %2071 = vmatprep.subr.mxu0 0.0
    %2072 = vmatpush1.msra.mxu0 0.0
    %2073 = vmatprep.subr.mxu0 0.0
    %2074 = vmatpush1.msra.mxu0 0.0
    %2075 = vmatprep.subr.mxu0 0.0
    %2076 = vmatpush1.msra.mxu0 0.0
    %2077 = vmatprep.subr.mxu0 0.0
    %2078 = vmatpush1.msra.mxu0 0.0
    %2079 = vmatprep.subr.mxu0 0.0
    %2080 = vmatpush1.msra.mxu0 0.0
    %2081 = vmatprep.subr.mxu0 0.0
    %2082 = vmatpush1.msra.mxu0 0.0
    %2083 = vmatprep.subr.mxu0 0.0
    %2084 = vmatpush1.msra.mxu0 0.0
    %2085 = vmatprep.subr.mxu0 0.0
    %2086 = vmatpush1.msra.mxu0 0.0
    %2087 = vmatprep.subr.mxu0 0.0
    %2088 = vmatpush1.msra.mxu0 0.0
    %2089 = vmatprep.subr.mxu0 0.0
    %2090 = vmatpush1.msra.mxu0 0.0
    %2091 = vmatprep.mubr.f32.mxu0 0.0
    %2092 = vmatmul.mubr.f32.gmra.mrb[0].mxu0 %v2004
    %v2093 = vpop.f32.mrb[0].mxu0
    %v2094 = vadd.f32 0.0, %v2093
    %v2095 = vpop.f32.mrb[0].mxu0
    %2096 = vmatprep.mubr.f32.mxu0 0.0
    %2097 = vmatmul.mubr.f32.gmra.mrb[0].mxu0 %v2007
    %v2098 = vpop.f32.mrb[0].mxu0
    %v2099 = vadd.f32 0.0, %v2098
    %v2100 = vpop.f32.mrb[0].mxu0
    %2101 = vmatprep.mubr.f32.mxu0 0.0
    %2102 = vmatmul.mubr.f32.gmra.mrb[0].mxu0 %v2010
    %v2103 = vpop.f32.mrb[0].mxu0
    %v2104 = vadd.f32 0.0, %v2103
    %v2105 = vpop.f32.mrb[0].mxu0
    %2106 = vmatprep.mubr.f32.mxu0 0.0
    %2107 = vmatmul.mubr.f32.gmra.mrb[0].mxu0 %v2013
    %v2108 = vpop.f32.mrb[0].mxu0
    %v2109 = vadd.f32 0.0, %v2108
    %v2110 = vpop.f32.mrb[0].mxu0
    %2111 = vmatprep.mubr.f32.mxu0 0.0
    %2112 = vmatmul.mubr.f32.gmra.mrb[0].mxu0 %v2016
    %v2113 = vpop.f32.mrb[0].mxu0
    %v2114 = vadd.f32 0.0, %v2113
    %v2115 = vpop.f32.mrb[0].mxu0
    %2116 = vmatprep.mubr.f32.mxu0 0.0
    %2117 = vmatmul.mubr.f32.gmra.mrb[0].mxu0 %v2019
    %v2118 = vpop.f32.mrb[0].mxu0
    %v2119 = vadd.f32 0.0, %v2118
    %v2120 = vpop.f32.mrb[0].mxu0
    %2121 = vmatprep.mubr.f32.mxu0 0.0
    %2122 = vmatmul.mubr.f32.gmra.mrb[0].mxu0 %v2022
    %v2123 = vpop.f32.mrb[0].mxu0
    %v2124 = vadd.f32 0.0, %v2123
    %v2125 = vpop.f32.mrb[0].mxu0
    %2126 = vmatprep.mubr.f32.mxu0 0.0
    %2127 = vmatmul.mubr.f32.gmra.mrb[0].mxu0 %v2025
    %v2128 = vpop.f32.mrb[0].mxu0
    %v2129 = vadd.f32 0.0, %v2128
    %v2130 = vpop.f32.mrb[0].mxu0
    %2131 = vdwg.mxu0
    %2140 = vrot.lane.b32.xlu0 %v1274, 8
    %v2141 = vpop.permute.xlu0 %2140
    %2142 = vrot.lane.b32.xlu0 %v1279, 8
    %v2143 = vpop.permute.xlu0 %2142
    %2144 = vrot.lane.b32.xlu0 %v1284, 8
    %v2145 = vpop.permute.xlu0 %2144
    %2146 = vrot.lane.b32.xlu0 %v1289, 8
    %v2147 = vpop.permute.xlu0 %2146
    %2148 = vrot.lane.b32.xlu0 %v1294, 8
    %v2149 = vpop.permute.xlu0 %2148
    %2150 = vrot.lane.b32.xlu0 %v1299, 8
    %v2151 = vpop.permute.xlu0 %2150
    %2152 = vrot.lane.b32.xlu0 %v1304, 8
    %v2153 = vpop.permute.xlu0 %2152
    %2154 = vrot.lane.b32.xlu0 %v1309, 8
    %v2155 = vpop.permute.xlu0 %2154
    %2172 = vrot.lane.b32.xlu0 %v1684, 16
    %v2173 = vpop.permute.xlu0 %2172
    %2174 = vrot.lane.b32.xlu0 %v1689, 16
    %v2175 = vpop.permute.xlu0 %2174
    %2176 = vrot.lane.b32.xlu0 %v1694, 16
    %v2177 = vpop.permute.xlu0 %2176
    %2178 = vrot.lane.b32.xlu0 %v1699, 16
    %v2179 = vpop.permute.xlu0 %2178
    %2180 = vrot.lane.b32.xlu0 %v1704, 16
    %v2181 = vpop.permute.xlu0 %2180
    %2182 = vrot.lane.b32.xlu0 %v1709, 16
    %v2183 = vpop.permute.xlu0 %2182
    %2184 = vrot.lane.b32.xlu0 %v1714, 16
    %v2185 = vpop.permute.xlu0 %2184
    %2186 = vrot.lane.b32.xlu0 %v1719, 16
    %v2187 = vpop.permute.xlu0 %2186
    %2204 = vrot.lane.b32.xlu0 %v2094, 24
    %v2205 = vpop.permute.xlu0 %2204
    %2206 = vrot.lane.b32.xlu0 %v2099, 24
    %v2207 = vpop.permute.xlu0 %2206
    %2208 = vrot.lane.b32.xlu0 %v2104, 24
    %v2209 = vpop.permute.xlu0 %2208
    %2210 = vrot.lane.b32.xlu0 %v2109, 24
    %v2211 = vpop.permute.xlu0 %2210
    %2212 = vrot.lane.b32.xlu0 %v2114, 24
    %v2213 = vpop.permute.xlu0 %2212
    %2214 = vrot.lane.b32.xlu0 %v2119, 24
    %v2215 = vpop.permute.xlu0 %2214
    %2216 = vrot.lane.b32.xlu0 %v2124, 24
    %v2217 = vpop.permute.xlu0 %2216
    %2218 = vrot.lane.b32.xlu0 %v2129, 24
    %v2219 = vpop.permute.xlu0 %2218
    %v2228 = vsel %vm522, %v864, %v2141
    %v2229 = vsel %vm522, %v869, %v2143
    %v2230 = vsel %vm522, %v874, %v2145
    %v2231 = vsel %vm522, %v879, %v2147
    %v2232 = vsel %vm522, %v884, %v2149
    %v2233 = vsel %vm522, %v889, %v2151
    %v2234 = vsel %vm522, %v894, %v2153
    %v2235 = vsel %vm522, %v899, %v2155
    %vm2236 = vcmask 130048
    %v2237 = vsel %vm2236, %v2228, %v2173
    %v2238 = vsel %vm2236, %v2229, %v2175
    %v2239 = vsel %vm2236, %v2230, %v2177
    %v2240 = vsel %vm2236, %v2231, %v2179
    %v2241 = vsel %vm2236, %v2232, %v2181
    %v2242 = vsel %vm2236, %v2233, %v2183
    %v2243 = vsel %vm2236, %v2234, %v2185
    %v2244 = vsel %vm2236, %v2235, %v2187
    %vm2245 = vcmask 195584
    %v2246 = vsel %vm2245, %v2237, %v2205
    %v2247 = vsel %vm2245, %v2238, %v2207
    %v2248 = vsel %vm2245, %v2239, %v2209
    %v2249 = vsel %vm2245, %v2240, %v2211
    %v2250 = vsel %vm2245, %v2241, %v2213
    %v2251 = vsel %vm2245, %v2242, %v2215
    %v2252 = vsel %vm2245, %v2243, %v2217
    %v2253 = vsel %vm2245, %v2244, %v2219
    %v2255 = vsel %vm109, %v355, 0
    %v2258 = vsel %vm109, %v356, 0
    %v2261 = vsel %vm109, %v357, 0
    %v2264 = vsel %vm109, %v358, 0
    %v2267 = vsel %vm109, %v359, 0
    %v2270 = vsel %vm109, %v360, 0
    %v2273 = vsel %vm109, %v361, 0
    %v2276 = vsel %vm109, %v362, 0
    %2278 = vmatprep.subr.mxu0 0.0
    %2279 = vmatpush1.msra.mxu0 %v91
    %2280 = vmatprep.subr.mxu0 0.0
    %2281 = vmatpush1.msra.mxu0 %v92
    %2282 = vmatprep.subr.mxu0 0.0
    %2283 = vmatpush1.msra.mxu0 %v93
    %2284 = vmatprep.subr.mxu0 0.0
    %2285 = vmatpush1.msra.mxu0 %v94
    %2286 = vmatprep.subr.mxu0 0.0
    %2287 = vmatpush1.msra.mxu0 0.0
    %2288 = vmatprep.subr.mxu0 0.0
    %2289 = vmatpush1.msra.mxu0 0.0
    %2290 = vmatprep.subr.mxu0 0.0
    %2291 = vmatpush1.msra.mxu0 0.0
    %2292 = vmatprep.subr.mxu0 0.0
    %2293 = vmatpush1.msra.mxu0 0.0
    %2294 = vmatprep.subr.mxu0 0.0
    %2295 = vmatpush1.msra.mxu0 0.0
    %2296 = vmatprep.subr.mxu0 0.0
    %2297 = vmatpush1.msra.mxu0 0.0
    %2298 = vmatprep.subr.mxu0 0.0
    %2299 = vmatpush1.msra.mxu0 0.0
    %2300 = vmatprep.subr.mxu0 0.0
    %2301 = vmatpush1.msra.mxu0 0.0
    %2302 = vmatprep.subr.mxu0 0.0
    %2303 = vmatpush1.msra.mxu0 0.0
    %2304 = vmatprep.subr.mxu0 0.0
    %2305 = vmatpush1.msra.mxu0 0.0
    %2306 = vmatprep.subr.mxu0 0.0
    %2307 = vmatpush1.msra.mxu0 0.0
    %2308 = vmatprep.subr.mxu0 0.0
    %2309 = vmatpush1.msra.mxu0 0.0
    %2310 = vmatprep.subr.mxu0 0.0
    %2311 = vmatpush1.msra.mxu0 0.0
    %2312 = vmatprep.subr.mxu0 0.0
    %2313 = vmatpush1.msra.mxu0 0.0
    %2314 = vmatprep.subr.mxu0 0.0
    %2315 = vmatpush1.msra.mxu0 0.0
    %2316 = vmatprep.subr.mxu0 0.0
    %2317 = vmatpush1.msra.mxu0 0.0
    %2318 = vmatprep.subr.mxu0 0.0
    %2319 = vmatpush1.msra.mxu0 0.0
    %2320 = vmatprep.subr.mxu0 0.0
    %2321 = vmatpush1.msra.mxu0 0.0
    %2322 = vmatprep.subr.mxu0 0.0
    %2323 = vmatpush1.msra.mxu0 0.0
    %2324 = vmatprep.subr.mxu0 0.0
    %2325 = vmatpush1.msra.mxu0 0.0
    %2326 = vmatprep.subr.mxu0 0.0
    %2327 = vmatpush1.msra.mxu0 0.0
    %2328 = vmatprep.subr.mxu0 0.0
    %2329 = vmatpush1.msra.mxu0 0.0
    %2330 = vmatprep.subr.mxu0 0.0
    %2331 = vmatpush1.msra.mxu0 0.0
    %2332 = vmatprep.subr.mxu0 0.0
    %2333 = vmatpush1.msra.mxu0 0.0
    %2334 = vmatprep.subr.mxu0 0.0
    %2335 = vmatpush1.msra.mxu0 0.0
    %2336 = vmatprep.subr.mxu0 0.0
    %2337 = vmatpush1.msra.mxu0 0.0
    %2338 = vmatprep.subr.mxu0 0.0
    %2339 = vmatpush1.msra.mxu0 0.0
    %2340 = vmatprep.subr.mxu0 0.0
    %2341 = vmatpush1.msra.mxu0 0.0
    %2342 = vmatprep.mubr.f32.mxu0 0.0
    %2343 = vmatmul.mubr.f32.gmra.mrb[0].mxu0 %v2255
    %v2344 = vpop.f32.mrb[0].mxu0
    %v2345 = vadd.f32 %v367, %v2344
    %v2346 = vpop.f32.mrb[0].mxu0
    %2347 = vmatprep.mubr.f32.mxu0 0.0
    %2348 = vmatmul.mubr.f32.gmra.mrb[0].mxu0 %v2258
    %v2349 = vpop.f32.mrb[0].mxu0
    %v2350 = vadd.f32 %v367, %v2349
    %v2351 = vpop.f32.mrb[0].mxu0
    %2352 = vmatprep.mubr.f32.mxu0 0.0
    %2353 = vmatmul.mubr.f32.gmra.mrb[0].mxu0 %v2261
    %v2354 = vpop.f32.mrb[0].mxu0
    %v2355 = vadd.f32 %v367, %v2354
    %v2356 = vpop.f32.mrb[0].mxu0
    %2357 = vmatprep.mubr.f32.mxu0 0.0
    %2358 = vmatmul.mubr.f32.gmra.mrb[0].mxu0 %v2264
    %v2359 = vpop.f32.mrb[0].mxu0
    %v2360 = vadd.f32 %v367, %v2359
    %v2361 = vpop.f32.mrb[0].mxu0
    %2362 = vmatprep.mubr.f32.mxu0 0.0
    %2363 = vmatmul.mubr.f32.gmra.mrb[0].mxu0 %v2267
    %v2364 = vpop.f32.mrb[0].mxu0
    %v2365 = vadd.f32 %v367, %v2364
    %v2366 = vpop.f32.mrb[0].mxu0
    %2367 = vmatprep.mubr.f32.mxu0 0.0
    %2368 = vmatmul.mubr.f32.gmra.mrb[0].mxu0 %v2270
    %v2369 = vpop.f32.mrb[0].mxu0
    %v2370 = vadd.f32 %v367, %v2369
    %v2371 = vpop.f32.mrb[0].mxu0
    %2372 = vmatprep.mubr.f32.mxu0 0.0
    %2373 = vmatmul.mubr.f32.gmra.mrb[0].mxu0 %v2273
    %v2374 = vpop.f32.mrb[0].mxu0
    %v2375 = vadd.f32 %v367, %v2374
    %v2376 = vpop.f32.mrb[0].mxu0
    %2377 = vmatprep.mubr.f32.mxu0 0.0
    %2378 = vmatmul.mubr.f32.gmra.mrb[0].mxu0 %v2276
    %v2379 = vpop.f32.mrb[0].mxu0
    %v2380 = vadd.f32 %v367, %v2379
    %v2381 = vpop.f32.mrb[0].mxu0
    %2382 = vdwg.mxu0
    %2391 = vrot.lane.b32.xlu0 %v2345, 96
    %v2392 = vpop.permute.xlu0 %2391
    %2393 = vrot.lane.b32.xlu0 %v2350, 96
    %v2394 = vpop.permute.xlu0 %2393
    %2395 = vrot.lane.b32.xlu0 %v2355, 96
    %v2396 = vpop.permute.xlu0 %2395
    %2397 = vrot.lane.b32.xlu0 %v2360, 96
    %v2398 = vpop.permute.xlu0 %2397
    %2399 = vrot.lane.b32.xlu0 %v2365, 96
    %v2400 = vpop.permute.xlu0 %2399
    %2401 = vrot.lane.b32.xlu0 %v2370, 96
    %v2402 = vpop.permute.xlu0 %2401
    %2403 = vrot.lane.b32.xlu0 %v2375, 96
    %v2404 = vpop.permute.xlu0 %2403
    %2405 = vrot.lane.b32.xlu0 %v2380, 96
    %v2406 = vpop.permute.xlu0 %2405
    %v2407 = vsel %vm522, %v2345, 0
    %v2409 = vsel %vm522, %v2350, 0
    %v2411 = vsel %vm522, %v2355, 0
    %v2413 = vsel %vm522, %v2360, 0
    %v2415 = vsel %vm522, %v2365, 0
    %v2417 = vsel %vm522, %v2370, 0
    %v2419 = vsel %vm522, %v2375, 0
    %v2421 = vsel %vm522, %v2380, 0
    %v2423 = vsel %vm522, %v2392, 0
    %v2425 = vsel %vm522, %v2394, 0
    %v2427 = vsel %vm522, %v2396, 0
    %v2429 = vsel %vm522, %v2398, 0
    %v2431 = vsel %vm522, %v2400, 0
    %v2433 = vsel %vm522, %v2402, 0
    %v2435 = vsel %vm522, %v2404, 0
    %v2437 = vsel %vm522, %v2406, 0
    %2439 = vmatprep.subr.mxu0 0.0
    %2440 = vmatpush1.xpose.msra.mxu0 %v2423
    %2441 = vmatprep.subr.mxu0 0.0
    %2442 = vmatpush1.xpose.msra.mxu0 %v2425
    %2443 = vmatprep.subr.mxu0 0.0
    %2444 = vmatpush1.xpose.msra.mxu0 %v2427
    %2445 = vmatprep.subr.mxu0 0.0
    %2446 = vmatpush1.xpose.msra.mxu0 %v2429
    %2447 = vmatprep.subr.mxu0 0.0
    %2448 = vmatpush1.xpose.msra.mxu0 %v2431
    %2449 = vmatprep.subr.mxu0 0.0
    %2450 = vmatpush1.xpose.msra.mxu0 %v2433
    %2451 = vmatprep.subr.mxu0 0.0
    %2452 = vmatpush1.xpose.msra.mxu0 %v2435
    %2453 = vmatprep.subr.mxu0 0.0
    %2454 = vmatpush1.xpose.msra.mxu0 %v2437
    %2455 = vmatprep.subr.mxu0 0.0
    %2456 = vmatpush1.xpose.msra.mxu0 0.0
    %2457 = vmatprep.subr.mxu0 0.0
    %2458 = vmatpush1.xpose.msra.mxu0 0.0
    %2459 = vmatprep.subr.mxu0 0.0
    %2460 = vmatpush1.xpose.msra.mxu0 0.0
    %2461 = vmatprep.subr.mxu0 0.0
    %2462 = vmatpush1.xpose.msra.mxu0 0.0
    %2463 = vmatprep.subr.mxu0 0.0
    %2464 = vmatpush1.xpose.msra.mxu0 0.0
    %2465 = vmatprep.subr.mxu0 0.0
    %2466 = vmatpush1.xpose.msra.mxu0 0.0
    %2467 = vmatprep.subr.mxu0 0.0
    %2468 = vmatpush1.xpose.msra.mxu0 0.0
    %2469 = vmatprep.subr.mxu0 0.0
    %2470 = vmatpush1.xpose.msra.mxu0 0.0
    %2471 = vmatprep.subr.mxu0 0.0
    %2472 = vmatpush1.xpose.msra.mxu0 0.0
    %2473 = vmatprep.subr.mxu0 0.0
    %2474 = vmatpush1.xpose.msra.mxu0 0.0
    %2475 = vmatprep.subr.mxu0 0.0
    %2476 = vmatpush1.xpose.msra.mxu0 0.0
    %2477 = vmatprep.subr.mxu0 0.0
    %2478 = vmatpush1.xpose.msra.mxu0 0.0
    %2479 = vmatprep.subr.mxu0 0.0
    %2480 = vmatpush1.xpose.msra.mxu0 0.0
    %2481 = vmatprep.subr.mxu0 0.0
    %2482 = vmatpush1.xpose.msra.mxu0 0.0
    %2483 = vmatprep.subr.mxu0 0.0
    %2484 = vmatpush1.xpose.msra.mxu0 0.0
    %2485 = vmatprep.subr.mxu0 0.0
    %2486 = vmatpush1.xpose.msra.mxu0 0.0
    %2487 = vmatprep.subr.mxu0 0.0
    %2488 = vmatpush1.xpose.msra.mxu0 0.0
    %2489 = vmatprep.subr.mxu0 0.0
    %2490 = vmatpush1.xpose.msra.mxu0 0.0
    %2491 = vmatprep.subr.mxu0 0.0
    %2492 = vmatpush1.xpose.msra.mxu0 0.0
    %2493 = vmatprep.subr.mxu0 0.0
    %2494 = vmatpush1.xpose.msra.mxu0 0.0
    %2495 = vmatprep.subr.mxu0 0.0
    %2496 = vmatpush1.xpose.msra.mxu0 0.0
    %2497 = vmatprep.subr.mxu0 0.0
    %2498 = vmatpush1.xpose.msra.mxu0 0.0
    %2499 = vmatprep.subr.mxu0 0.0
    %2500 = vmatpush1.xpose.msra.mxu0 0.0
    %2501 = vmatprep.subr.mxu0 0.0
    %2502 = vmatpush1.xpose.msra.mxu0 0.0
    %2503 = vmatprep.mubr.f32.mxu0 0.0
    %2504 = vmatmul.mubr.f32.gmra.mrb[0].mxu0 %v2407
    %v2505 = vpop.f32.mrb[0].mxu0
    %v2506 = vadd.f32 %v101, %v2505
    %v2507 = vpop.f32.mrb[0].mxu0
    %2508 = vmatprep.mubr.f32.mxu0 0.0
    %2509 = vmatmul.mubr.f32.gmra.mrb[0].mxu0 %v2409
    %v2510 = vpop.f32.mrb[0].mxu0
    %v2511 = vadd.f32 %v102, %v2510
    %v2512 = vpop.f32.mrb[0].mxu0
    %2513 = vmatprep.mubr.f32.mxu0 0.0
    %2514 = vmatmul.mubr.f32.gmra.mrb[0].mxu0 %v2411
    %v2515 = vpop.f32.mrb[0].mxu0
    %v2516 = vadd.f32 %v103, %v2515
    %v2517 = vpop.f32.mrb[0].mxu0
    %2518 = vmatprep.mubr.f32.mxu0 0.0
    %2519 = vmatmul.mubr.f32.gmra.mrb[0].mxu0 %v2413
    %v2520 = vpop.f32.mrb[0].mxu0
    %v2521 = vadd.f32 %v104, %v2520
    %v2522 = vpop.f32.mrb[0].mxu0
    %2523 = vmatprep.mubr.f32.mxu0 0.0
    %2524 = vmatmul.mubr.f32.gmra.mrb[0].mxu0 %v2415
    %v2525 = vpop.f32.mrb[0].mxu0
    %v2526 = vadd.f32 %v105, %v2525
    %v2527 = vpop.f32.mrb[0].mxu0
    %2528 = vmatprep.mubr.f32.mxu0 0.0
    %2529 = vmatmul.mubr.f32.gmra.mrb[0].mxu0 %v2417
    %v2530 = vpop.f32.mrb[0].mxu0
    %v2531 = vadd.f32 %v106, %v2530
    %v2532 = vpop.f32.mrb[0].mxu0
    %2533 = vmatprep.mubr.f32.mxu0 0.0
    %2534 = vmatmul.mubr.f32.gmra.mrb[0].mxu0 %v2419
    %v2535 = vpop.f32.mrb[0].mxu0
    %v2536 = vadd.f32 %v107, %v2535
    %v2537 = vpop.f32.mrb[0].mxu0
    %2538 = vmatprep.mubr.f32.mxu0 0.0
    %2539 = vmatmul.mubr.f32.gmra.mrb[0].mxu0 %v2421
    %v2540 = vpop.f32.mrb[0].mxu0
    %v2541 = vadd.f32 %v108, %v2540
    %v2542 = vpop.f32.mrb[0].mxu0
    %2543 = vdwg.mxu0
    %v2544 = vsel %vm660, %v2506, -inf
    %2545 = vmax.xlane.f32.xlu0 %v2544
    %v2546 = vpop.xlane.xlu0 %2545
    %v2547 = vsel %vm660, %v2511, -inf
    %2548 = vmax.xlane.f32.xlu0 %v2547
    %v2549 = vpop.xlane.xlu0 %2548
    %v2550 = vsel %vm660, %v2516, -inf
    %2551 = vmax.xlane.f32.xlu0 %v2550
    %v2552 = vpop.xlane.xlu0 %2551
    %v2553 = vsel %vm660, %v2521, -inf
    %2554 = vmax.xlane.f32.xlu0 %v2553
    %v2555 = vpop.xlane.xlu0 %2554
    %v2556 = vsel %vm660, %v2526, -inf
    %2557 = vmax.xlane.f32.xlu0 %v2556
    %v2558 = vpop.xlane.xlu0 %2557
    %v2559 = vsel %vm660, %v2531, -inf
    %2560 = vmax.xlane.f32.xlu0 %v2559
    %v2561 = vpop.xlane.xlu0 %2560
    %v2562 = vsel %vm660, %v2536, -inf
    %2563 = vmax.xlane.f32.xlu0 %v2562
    %v2564 = vpop.xlane.xlu0 %2563
    %v2565 = vsel %vm660, %v2541, -inf
    %2566 = vmax.xlane.f32.xlu0 %v2565
    %v2567 = vpop.xlane.xlu0 %2566
    %v2568 = vsub.f32 %v2506, %v2546
    %v2569 = vsub.f32 %v2511, %v2549
    %v2570 = vsub.f32 %v2516, %v2552
    %v2571 = vsub.f32 %v2521, %v2555
    %v2572 = vsub.f32 %v2526, %v2558
    %v2573 = vsub.f32 %v2531, %v2561
    %v2574 = vsub.f32 %v2536, %v2564
    %v2575 = vsub.f32 %v2541, %v2567
    %v2576 = vmul.f32 %v2568, 1.442695
    %v2577 = vpow.pop %v2576
    %v2578 = vmul.f32 %v2569, 1.442695
    %v2579 = vpow.pop %v2578
    %v2580 = vmul.f32 %v2570, 1.442695
    %v2581 = vpow.pop %v2580
    %v2582 = vmul.f32 %v2571, 1.442695
    %v2583 = vpow.pop %v2582
    %v2584 = vmul.f32 %v2572, 1.442695
    %v2585 = vpow.pop %v2584
    %v2586 = vmul.f32 %v2573, 1.442695
    %v2587 = vpow.pop %v2586
    %v2588 = vmul.f32 %v2574, 1.442695
    %v2589 = vpow.pop %v2588
    %v2590 = vmul.f32 %v2575, 1.442695
    %v2591 = vpow.pop %v2590
    %v2592 = vsel %vm660, %v2577, 0.0
    %2593 = vadd.xlane.f32.xlu0 %v2592
    %v2594 = vpop.xlane.xlu0 %2593
    %v2595 = vsel %vm660, %v2579, 0.0
    %2596 = vadd.xlane.f32.xlu0 %v2595
    %v2597 = vpop.xlane.xlu0 %2596
    %v2598 = vsel %vm660, %v2581, 0.0
    %2599 = vadd.xlane.f32.xlu0 %v2598
    %v2600 = vpop.xlane.xlu0 %2599
    %v2601 = vsel %vm660, %v2583, 0.0
    %2602 = vadd.xlane.f32.xlu0 %v2601
    %v2603 = vpop.xlane.xlu0 %2602
    %v2604 = vsel %vm660, %v2585, 0.0
    %2605 = vadd.xlane.f32.xlu0 %v2604
    %v2606 = vpop.xlane.xlu0 %2605
    %v2607 = vsel %vm660, %v2587, 0.0
    %2608 = vadd.xlane.f32.xlu0 %v2607
    %v2609 = vpop.xlane.xlu0 %2608
    %v2610 = vsel %vm660, %v2589, 0.0
    %2611 = vadd.xlane.f32.xlu0 %v2610
    %v2612 = vpop.xlane.xlu0 %2611
    %v2613 = vsel %vm660, %v2591, 0.0
    %2614 = vadd.xlane.f32.xlu0 %v2613
    %v2615 = vpop.xlane.xlu0 %2614
    %v2616 = vrcp.pop %v2594
    %v2617 = vrcp.pop %v2597
    %v2618 = vrcp.pop %v2600
    %v2619 = vrcp.pop %v2603
    %v2620 = vrcp.pop %v2606
    %v2621 = vrcp.pop %v2609
    %v2622 = vrcp.pop %v2612
    %v2623 = vrcp.pop %v2615
    %v2624 = vmul.f32 %v2577, %v2616
    %v2625 = vmul.f32 %v2579, %v2617
    %v2626 = vmul.f32 %v2581, %v2618
    %v2627 = vmul.f32 %v2583, %v2619
    %v2628 = vmul.f32 %v2585, %v2620
    %v2629 = vmul.f32 %v2587, %v2621
    %v2630 = vmul.f32 %v2589, %v2622
    %v2631 = vmul.f32 %v2591, %v2623
    %2632 = vrot.lane.b32.xlu0 %v2345, 64
    %v2633 = vpop.permute.xlu0 %2632
    %2634 = vrot.lane.b32.xlu0 %v2350, 64
    %v2635 = vpop.permute.xlu0 %2634
    %2636 = vrot.lane.b32.xlu0 %v2355, 64
    %v2637 = vpop.permute.xlu0 %2636
    %2638 = vrot.lane.b32.xlu0 %v2360, 64
    %v2639 = vpop.permute.xlu0 %2638
    %2640 = vrot.lane.b32.xlu0 %v2365, 64
    %v2641 = vpop.permute.xlu0 %2640
    %2642 = vrot.lane.b32.xlu0 %v2370, 64
    %v2643 = vpop.permute.xlu0 %2642
    %2644 = vrot.lane.b32.xlu0 %v2375, 64
    %v2645 = vpop.permute.xlu0 %2644
    %2646 = vrot.lane.b32.xlu0 %v2380, 64
    %v2647 = vpop.permute.xlu0 %2646
    %v2657 = vsel %vm660, %v2624, 0
    %v2660 = vsel %vm660, %v2625, 0
    %v2663 = vsel %vm660, %v2626, 0
    %v2666 = vsel %vm660, %v2627, 0
    %v2669 = vsel %vm660, %v2628, 0
    %v2672 = vsel %vm660, %v2629, 0
    %v2675 = vsel %vm660, %v2630, 0
    %v2678 = vsel %vm660, %v2631, 0
    %2680 = vmatprep.subr.mxu0 0.0
    %2681 = vmatpush1.msra.mxu0 %v2633
    %2682 = vmatprep.subr.mxu0 0.0
    %2683 = vmatpush1.msra.mxu0 %v2635
    %2684 = vmatprep.subr.mxu0 0.0
    %2685 = vmatpush1.msra.mxu0 %v2637
    %2686 = vmatprep.subr.mxu0 0.0
    %2687 = vmatpush1.msra.mxu0 %v2639
    %2688 = vmatprep.subr.mxu0 0.0
    %2689 = vmatpush1.msra.mxu0 %v2641
    %2690 = vmatprep.subr.mxu0 0.0
    %2691 = vmatpush1.msra.mxu0 %v2643
    %2692 = vmatprep.subr.mxu0 0.0
    %2693 = vmatpush1.msra.mxu0 %v2645
    %2694 = vmatprep.subr.mxu0 0.0
    %2695 = vmatpush1.msra.mxu0 %v2647
    %2696 = vmatprep.subr.mxu0 0.0
    %2697 = vmatpush1.msra.mxu0 0.0
    %2698 = vmatprep.subr.mxu0 0.0
    %2699 = vmatpush1.msra.mxu0 0.0
    %2700 = vmatprep.subr.mxu0 0.0
    %2701 = vmatpush1.msra.mxu0 0.0
    %2702 = vmatprep.subr.mxu0 0.0
    %2703 = vmatpush1.msra.mxu0 0.0
    %2704 = vmatprep.subr.mxu0 0.0
    %2705 = vmatpush1.msra.mxu0 0.0
    %2706 = vmatprep.subr.mxu0 0.0
    %2707 = vmatpush1.msra.mxu0 0.0
    %2708 = vmatprep.subr.mxu0 0.0
    %2709 = vmatpush1.msra.mxu0 0.0
    %2710 = vmatprep.subr.mxu0 0.0
    %2711 = vmatpush1.msra.mxu0 0.0
    %2712 = vmatprep.subr.mxu0 0.0
    %2713 = vmatpush1.msra.mxu0 0.0
    %2714 = vmatprep.subr.mxu0 0.0
    %2715 = vmatpush1.msra.mxu0 0.0
    %2716 = vmatprep.subr.mxu0 0.0
    %2717 = vmatpush1.msra.mxu0 0.0
    %2718 = vmatprep.subr.mxu0 0.0
    %2719 = vmatpush1.msra.mxu0 0.0
    %2720 = vmatprep.subr.mxu0 0.0
    %2721 = vmatpush1.msra.mxu0 0.0
    %2722 = vmatprep.subr.mxu0 0.0
    %2723 = vmatpush1.msra.mxu0 0.0
    %2724 = vmatprep.subr.mxu0 0.0
    %2725 = vmatpush1.msra.mxu0 0.0
    %2726 = vmatprep.subr.mxu0 0.0
    %2727 = vmatpush1.msra.mxu0 0.0
    %2728 = vmatprep.subr.mxu0 0.0
    %2729 = vmatpush1.msra.mxu0 0.0
    %2730 = vmatprep.subr.mxu0 0.0
    %2731 = vmatpush1.msra.mxu0 0.0
    %2732 = vmatprep.subr.mxu0 0.0
    %2733 = vmatpush1.msra.mxu0 0.0
    %2734 = vmatprep.subr.mxu0 0.0
    %2735 = vmatpush1.msra.mxu0 0.0
    %2736 = vmatprep.subr.mxu0 0.0
    %2737 = vmatpush1.msra.mxu0 0.0
    %2738 = vmatprep.subr.mxu0 0.0
    %2739 = vmatpush1.msra.mxu0 0.0
    %2740 = vmatprep.subr.mxu0 0.0
    %2741 = vmatpush1.msra.mxu0 0.0
    %2742 = vmatprep.subr.mxu0 0.0
    %2743 = vmatpush1.msra.mxu0 0.0
    %2744 = vmatprep.mubr.f32.mxu0 0.0
    %2745 = vmatmul.mubr.f32.gmra.mrb[0].mxu0 %v2657
    %v2746 = vpop.f32.mrb[0].mxu0
    %v2747 = vadd.f32 0.0, %v2746
    %v2748 = vpop.f32.mrb[0].mxu0
    %2749 = vmatprep.mubr.f32.mxu0 0.0
    %2750 = vmatmul.mubr.f32.gmra.mrb[0].mxu0 %v2660
    %v2751 = vpop.f32.mrb[0].mxu0
    %v2752 = vadd.f32 0.0, %v2751
    %v2753 = vpop.f32.mrb[0].mxu0
    %2754 = vmatprep.mubr.f32.mxu0 0.0
    %2755 = vmatmul.mubr.f32.gmra.mrb[0].mxu0 %v2663
    %v2756 = vpop.f32.mrb[0].mxu0
    %v2757 = vadd.f32 0.0, %v2756
    %v2758 = vpop.f32.mrb[0].mxu0
    %2759 = vmatprep.mubr.f32.mxu0 0.0
    %2760 = vmatmul.mubr.f32.gmra.mrb[0].mxu0 %v2666
    %v2761 = vpop.f32.mrb[0].mxu0
    %v2762 = vadd.f32 0.0, %v2761
    %v2763 = vpop.f32.mrb[0].mxu0
    %2764 = vmatprep.mubr.f32.mxu0 0.0
    %2765 = vmatmul.mubr.f32.gmra.mrb[0].mxu0 %v2669
    %v2766 = vpop.f32.mrb[0].mxu0
    %v2767 = vadd.f32 0.0, %v2766
    %v2768 = vpop.f32.mrb[0].mxu0
    %2769 = vmatprep.mubr.f32.mxu0 0.0
    %2770 = vmatmul.mubr.f32.gmra.mrb[0].mxu0 %v2672
    %v2771 = vpop.f32.mrb[0].mxu0
    %v2772 = vadd.f32 0.0, %v2771
    %v2773 = vpop.f32.mrb[0].mxu0
    %2774 = vmatprep.mubr.f32.mxu0 0.0
    %2775 = vmatmul.mubr.f32.gmra.mrb[0].mxu0 %v2675
    %v2776 = vpop.f32.mrb[0].mxu0
    %v2777 = vadd.f32 0.0, %v2776
    %v2778 = vpop.f32.mrb[0].mxu0
    %2779 = vmatprep.mubr.f32.mxu0 0.0
    %2780 = vmatmul.mubr.f32.gmra.mrb[0].mxu0 %v2678
    %v2781 = vpop.f32.mrb[0].mxu0
    %v2782 = vadd.f32 0.0, %v2781
    %v2783 = vpop.f32.mrb[0].mxu0
    %2784 = vdwg.mxu0
    %2785 = vrot.lane.b32.xlu0 %v2345, 120
    %v2786 = vpop.permute.xlu0 %2785
    %2787 = vrot.lane.b32.xlu0 %v2350, 120
    %v2788 = vpop.permute.xlu0 %2787
    %2789 = vrot.lane.b32.xlu0 %v2355, 120
    %v2790 = vpop.permute.xlu0 %2789
    %2791 = vrot.lane.b32.xlu0 %v2360, 120
    %v2792 = vpop.permute.xlu0 %2791
    %2793 = vrot.lane.b32.xlu0 %v2365, 120
    %v2794 = vpop.permute.xlu0 %2793
    %2795 = vrot.lane.b32.xlu0 %v2370, 120
    %v2796 = vpop.permute.xlu0 %2795
    %2797 = vrot.lane.b32.xlu0 %v2375, 120
    %v2798 = vpop.permute.xlu0 %2797
    %2799 = vrot.lane.b32.xlu0 %v2380, 120
    %v2800 = vpop.permute.xlu0 %2799
    %2801 = vrot.lane.b32.xlu0 %v2345, 88
    %v2802 = vpop.permute.xlu0 %2801
    %2803 = vrot.lane.b32.xlu0 %v2350, 88
    %v2804 = vpop.permute.xlu0 %2803
    %2805 = vrot.lane.b32.xlu0 %v2355, 88
    %v2806 = vpop.permute.xlu0 %2805
    %2807 = vrot.lane.b32.xlu0 %v2360, 88
    %v2808 = vpop.permute.xlu0 %2807
    %2809 = vrot.lane.b32.xlu0 %v2365, 88
    %v2810 = vpop.permute.xlu0 %2809
    %2811 = vrot.lane.b32.xlu0 %v2370, 88
    %v2812 = vpop.permute.xlu0 %2811
    %2813 = vrot.lane.b32.xlu0 %v2375, 88
    %v2814 = vpop.permute.xlu0 %2813
    %2815 = vrot.lane.b32.xlu0 %v2380, 88
    %v2816 = vpop.permute.xlu0 %2815
    %v2817 = vsel %vm522, %v2786, 0
    %v2819 = vsel %vm522, %v2788, 0
    %v2821 = vsel %vm522, %v2790, 0
    %v2823 = vsel %vm522, %v2792, 0
    %v2825 = vsel %vm522, %v2794, 0
    %v2827 = vsel %vm522, %v2796, 0
    %v2829 = vsel %vm522, %v2798, 0
    %v2831 = vsel %vm522, %v2800, 0
    %v2833 = vsel %vm522, %v2802, 0
    %v2835 = vsel %vm522, %v2804, 0
    %v2837 = vsel %vm522, %v2806, 0
    %v2839 = vsel %vm522, %v2808, 0
    %v2841 = vsel %vm522, %v2810, 0
    %v2843 = vsel %vm522, %v2812, 0
    %v2845 = vsel %vm522, %v2814, 0
    %v2847 = vsel %vm522, %v2816, 0
    %2849 = vmatprep.subr.mxu0 0.0
    %2850 = vmatpush1.xpose.msra.mxu0 %v2833
    %2851 = vmatprep.subr.mxu0 0.0
    %2852 = vmatpush1.xpose.msra.mxu0 %v2835
    %2853 = vmatprep.subr.mxu0 0.0
    %2854 = vmatpush1.xpose.msra.mxu0 %v2837
    %2855 = vmatprep.subr.mxu0 0.0
    %2856 = vmatpush1.xpose.msra.mxu0 %v2839
    %2857 = vmatprep.subr.mxu0 0.0
    %2858 = vmatpush1.xpose.msra.mxu0 %v2841
    %2859 = vmatprep.subr.mxu0 0.0
    %2860 = vmatpush1.xpose.msra.mxu0 %v2843
    %2861 = vmatprep.subr.mxu0 0.0
    %2862 = vmatpush1.xpose.msra.mxu0 %v2845
    %2863 = vmatprep.subr.mxu0 0.0
    %2864 = vmatpush1.xpose.msra.mxu0 %v2847
    %2865 = vmatprep.subr.mxu0 0.0
    %2866 = vmatpush1.xpose.msra.mxu0 0.0
    %2867 = vmatprep.subr.mxu0 0.0
    %2868 = vmatpush1.xpose.msra.mxu0 0.0
    %2869 = vmatprep.subr.mxu0 0.0
    %2870 = vmatpush1.xpose.msra.mxu0 0.0
    %2871 = vmatprep.subr.mxu0 0.0
    %2872 = vmatpush1.xpose.msra.mxu0 0.0
    %2873 = vmatprep.subr.mxu0 0.0
    %2874 = vmatpush1.xpose.msra.mxu0 0.0
    %2875 = vmatprep.subr.mxu0 0.0
    %2876 = vmatpush1.xpose.msra.mxu0 0.0
    %2877 = vmatprep.subr.mxu0 0.0
    %2878 = vmatpush1.xpose.msra.mxu0 0.0
    %2879 = vmatprep.subr.mxu0 0.0
    %2880 = vmatpush1.xpose.msra.mxu0 0.0
    %2881 = vmatprep.subr.mxu0 0.0
    %2882 = vmatpush1.xpose.msra.mxu0 0.0
    %2883 = vmatprep.subr.mxu0 0.0
    %2884 = vmatpush1.xpose.msra.mxu0 0.0
    %2885 = vmatprep.subr.mxu0 0.0
    %2886 = vmatpush1.xpose.msra.mxu0 0.0
    %2887 = vmatprep.subr.mxu0 0.0
    %2888 = vmatpush1.xpose.msra.mxu0 0.0
    %2889 = vmatprep.subr.mxu0 0.0
    %2890 = vmatpush1.xpose.msra.mxu0 0.0
    %2891 = vmatprep.subr.mxu0 0.0
    %2892 = vmatpush1.xpose.msra.mxu0 0.0
    %2893 = vmatprep.subr.mxu0 0.0
    %2894 = vmatpush1.xpose.msra.mxu0 0.0
    %2895 = vmatprep.subr.mxu0 0.0
    %2896 = vmatpush1.xpose.msra.mxu0 0.0
    %2897 = vmatprep.subr.mxu0 0.0
    %2898 = vmatpush1.xpose.msra.mxu0 0.0
    %2899 = vmatprep.subr.mxu0 0.0
    %2900 = vmatpush1.xpose.msra.mxu0 0.0
    %2901 = vmatprep.subr.mxu0 0.0
    %2902 = vmatpush1.xpose.msra.mxu0 0.0
    %2903 = vmatprep.subr.mxu0 0.0
    %2904 = vmatpush1.xpose.msra.mxu0 0.0
    %2905 = vmatprep.subr.mxu0 0.0
    %2906 = vmatpush1.xpose.msra.mxu0 0.0
    %2907 = vmatprep.subr.mxu0 0.0
    %2908 = vmatpush1.xpose.msra.mxu0 0.0
    %2909 = vmatprep.subr.mxu0 0.0
    %2910 = vmatpush1.xpose.msra.mxu0 0.0
    %2911 = vmatprep.subr.mxu0 0.0
    %2912 = vmatpush1.xpose.msra.mxu0 0.0
    %2913 = vmatprep.mubr.f32.mxu0 0.0
    %2914 = vmatmul.mubr.f32.gmra.mrb[0].mxu0 %v2817
    %v2915 = vpop.f32.mrb[0].mxu0
    %v2916 = vadd.f32 %v101, %v2915
    %v2917 = vpop.f32.mrb[0].mxu0
    %2918 = vmatprep.mubr.f32.mxu0 0.0
    %2919 = vmatmul.mubr.f32.gmra.mrb[0].mxu0 %v2819
    %v2920 = vpop.f32.mrb[0].mxu0
    %v2921 = vadd.f32 %v102, %v2920
    %v2922 = vpop.f32.mrb[0].mxu0
    %2923 = vmatprep.mubr.f32.mxu0 0.0
    %2924 = vmatmul.mubr.f32.gmra.mrb[0].mxu0 %v2821
    %v2925 = vpop.f32.mrb[0].mxu0
    %v2926 = vadd.f32 %v103, %v2925
    %v2927 = vpop.f32.mrb[0].mxu0
    %2928 = vmatprep.mubr.f32.mxu0 0.0
    %2929 = vmatmul.mubr.f32.gmra.mrb[0].mxu0 %v2823
    %v2930 = vpop.f32.mrb[0].mxu0
    %v2931 = vadd.f32 %v104, %v2930
    %v2932 = vpop.f32.mrb[0].mxu0
    %2933 = vmatprep.mubr.f32.mxu0 0.0
    %2934 = vmatmul.mubr.f32.gmra.mrb[0].mxu0 %v2825
    %v2935 = vpop.f32.mrb[0].mxu0
    %v2936 = vadd.f32 %v105, %v2935
    %v2937 = vpop.f32.mrb[0].mxu0
    %2938 = vmatprep.mubr.f32.mxu0 0.0
    %2939 = vmatmul.mubr.f32.gmra.mrb[0].mxu0 %v2827
    %v2940 = vpop.f32.mrb[0].mxu0
    %v2941 = vadd.f32 %v106, %v2940
    %v2942 = vpop.f32.mrb[0].mxu0
    %2943 = vmatprep.mubr.f32.mxu0 0.0
    %2944 = vmatmul.mubr.f32.gmra.mrb[0].mxu0 %v2829
    %v2945 = vpop.f32.mrb[0].mxu0
    %v2946 = vadd.f32 %v107, %v2945
    %v2947 = vpop.f32.mrb[0].mxu0
    %2948 = vmatprep.mubr.f32.mxu0 0.0
    %2949 = vmatmul.mubr.f32.gmra.mrb[0].mxu0 %v2831
    %v2950 = vpop.f32.mrb[0].mxu0
    %v2951 = vadd.f32 %v108, %v2950
    %v2952 = vpop.f32.mrb[0].mxu0
    %2953 = vdwg.mxu0
    %v2954 = vsel %vm660, %v2916, -inf
    %2955 = vmax.xlane.f32.xlu0 %v2954
    %v2956 = vpop.xlane.xlu0 %2955
    %v2957 = vsel %vm660, %v2921, -inf
    %2958 = vmax.xlane.f32.xlu0 %v2957
    %v2959 = vpop.xlane.xlu0 %2958
    %v2960 = vsel %vm660, %v2926, -inf
    %2961 = vmax.xlane.f32.xlu0 %v2960
    %v2962 = vpop.xlane.xlu0 %2961
    %v2963 = vsel %vm660, %v2931, -inf
    %2964 = vmax.xlane.f32.xlu0 %v2963
    %v2965 = vpop.xlane.xlu0 %2964
    %v2966 = vsel %vm660, %v2936, -inf
    %2967 = vmax.xlane.f32.xlu0 %v2966
    %v2968 = vpop.xlane.xlu0 %2967
    %v2969 = vsel %vm660, %v2941, -inf
    %2970 = vmax.xlane.f32.xlu0 %v2969
    %v2971 = vpop.xlane.xlu0 %2970
    %v2972 = vsel %vm660, %v2946, -inf
    %2973 = vmax.xlane.f32.xlu0 %v2972
    %v2974 = vpop.xlane.xlu0 %2973
    %v2975 = vsel %vm660, %v2951, -inf
    %2976 = vmax.xlane.f32.xlu0 %v2975
    %v2977 = vpop.xlane.xlu0 %2976
    %v2978 = vsub.f32 %v2916, %v2956
    %v2979 = vsub.f32 %v2921, %v2959
    %v2980 = vsub.f32 %v2926, %v2962
    %v2981 = vsub.f32 %v2931, %v2965
    %v2982 = vsub.f32 %v2936, %v2968
    %v2983 = vsub.f32 %v2941, %v2971
    %v2984 = vsub.f32 %v2946, %v2974
    %v2985 = vsub.f32 %v2951, %v2977
    %v2986 = vmul.f32 %v2978, 1.442695
    %v2987 = vpow.pop %v2986
    %v2988 = vmul.f32 %v2979, 1.442695
    %v2989 = vpow.pop %v2988
    %v2990 = vmul.f32 %v2980, 1.442695
    %v2991 = vpow.pop %v2990
    %v2992 = vmul.f32 %v2981, 1.442695
    %v2993 = vpow.pop %v2992
    %v2994 = vmul.f32 %v2982, 1.442695
    %v2995 = vpow.pop %v2994
    %v2996 = vmul.f32 %v2983, 1.442695
    %v2997 = vpow.pop %v2996
    %v2998 = vmul.f32 %v2984, 1.442695
    %v2999 = vpow.pop %v2998
    %v3000 = vmul.f32 %v2985, 1.442695
    %v3001 = vpow.pop %v3000
    %v3002 = vsel %vm660, %v2987, 0.0
    %3003 = vadd.xlane.f32.xlu0 %v3002
    %v3004 = vpop.xlane.xlu0 %3003
    %v3005 = vsel %vm660, %v2989, 0.0
    %3006 = vadd.xlane.f32.xlu0 %v3005
    %v3007 = vpop.xlane.xlu0 %3006
    %v3008 = vsel %vm660, %v2991, 0.0
    %3009 = vadd.xlane.f32.xlu0 %v3008
    %v3010 = vpop.xlane.xlu0 %3009
    %v3011 = vsel %vm660, %v2993, 0.0
    %3012 = vadd.xlane.f32.xlu0 %v3011
    %v3013 = vpop.xlane.xlu0 %3012
    %v3014 = vsel %vm660, %v2995, 0.0
    %3015 = vadd.xlane.f32.xlu0 %v3014
    %v3016 = vpop.xlane.xlu0 %3015
    %v3017 = vsel %vm660, %v2997, 0.0
    %3018 = vadd.xlane.f32.xlu0 %v3017
    %v3019 = vpop.xlane.xlu0 %3018
    %v3020 = vsel %vm660, %v2999, 0.0
    %3021 = vadd.xlane.f32.xlu0 %v3020
    %v3022 = vpop.xlane.xlu0 %3021
    %v3023 = vsel %vm660, %v3001, 0.0
    %3024 = vadd.xlane.f32.xlu0 %v3023
    %v3025 = vpop.xlane.xlu0 %3024
    %v3026 = vrcp.pop %v3004
    %v3027 = vrcp.pop %v3007
    %v3028 = vrcp.pop %v3010
    %v3029 = vrcp.pop %v3013
    %v3030 = vrcp.pop %v3016
    %v3031 = vrcp.pop %v3019
    %v3032 = vrcp.pop %v3022
    %v3033 = vrcp.pop %v3025
    %v3034 = vmul.f32 %v2987, %v3026
    %v3035 = vmul.f32 %v2989, %v3027
    %v3036 = vmul.f32 %v2991, %v3028
    %v3037 = vmul.f32 %v2993, %v3029
    %v3038 = vmul.f32 %v2995, %v3030
    %v3039 = vmul.f32 %v2997, %v3031
    %v3040 = vmul.f32 %v2999, %v3032
    %v3041 = vmul.f32 %v3001, %v3033
    %3042 = vrot.lane.b32.xlu0 %v2345, 56
    %v3043 = vpop.permute.xlu0 %3042
    %3044 = vrot.lane.b32.xlu0 %v2350, 56
    %v3045 = vpop.permute.xlu0 %3044
    %3046 = vrot.lane.b32.xlu0 %v2355, 56
    %v3047 = vpop.permute.xlu0 %3046
    %3048 = vrot.lane.b32.xlu0 %v2360, 56
    %v3049 = vpop.permute.xlu0 %3048
    %3050 = vrot.lane.b32.xlu0 %v2365, 56
    %v3051 = vpop.permute.xlu0 %3050
    %3052 = vrot.lane.b32.xlu0 %v2370, 56
    %v3053 = vpop.permute.xlu0 %3052
    %3054 = vrot.lane.b32.xlu0 %v2375, 56
    %v3055 = vpop.permute.xlu0 %3054
    %3056 = vrot.lane.b32.xlu0 %v2380, 56
    %v3057 = vpop.permute.xlu0 %3056
    %v3067 = vsel %vm660, %v3034, 0
    %v3070 = vsel %vm660, %v3035, 0
    %v3073 = vsel %vm660, %v3036, 0
    %v3076 = vsel %vm660, %v3037, 0
    %v3079 = vsel %vm660, %v3038, 0
    %v3082 = vsel %vm660, %v3039, 0
    %v3085 = vsel %vm660, %v3040, 0
    %v3088 = vsel %vm660, %v3041, 0
    %3090 = vmatprep.subr.mxu0 0.0
    %3091 = vmatpush1.msra.mxu0 %v3043
    %3092 = vmatprep.subr.mxu0 0.0
    %3093 = vmatpush1.msra.mxu0 %v3045
    %3094 = vmatprep.subr.mxu0 0.0
    %3095 = vmatpush1.msra.mxu0 %v3047
    %3096 = vmatprep.subr.mxu0 0.0
    %3097 = vmatpush1.msra.mxu0 %v3049
    %3098 = vmatprep.subr.mxu0 0.0
    %3099 = vmatpush1.msra.mxu0 %v3051
    %3100 = vmatprep.subr.mxu0 0.0
    %3101 = vmatpush1.msra.mxu0 %v3053
    %3102 = vmatprep.subr.mxu0 0.0
    %3103 = vmatpush1.msra.mxu0 %v3055
    %3104 = vmatprep.subr.mxu0 0.0
    %3105 = vmatpush1.msra.mxu0 %v3057
    %3106 = vmatprep.subr.mxu0 0.0
    %3107 = vmatpush1.msra.mxu0 0.0
    %3108 = vmatprep.subr.mxu0 0.0
    %3109 = vmatpush1.msra.mxu0 0.0
    %3110 = vmatprep.subr.mxu0 0.0
    %3111 = vmatpush1.msra.mxu0 0.0
    %3112 = vmatprep.subr.mxu0 0.0
    %3113 = vmatpush1.msra.mxu0 0.0
    %3114 = vmatprep.subr.mxu0 0.0
    %3115 = vmatpush1.msra.mxu0 0.0
    %3116 = vmatprep.subr.mxu0 0.0
    %3117 = vmatpush1.msra.mxu0 0.0
    %3118 = vmatprep.subr.mxu0 0.0
    %3119 = vmatpush1.msra.mxu0 0.0
    %3120 = vmatprep.subr.mxu0 0.0
    %3121 = vmatpush1.msra.mxu0 0.0
    %3122 = vmatprep.subr.mxu0 0.0
    %3123 = vmatpush1.msra.mxu0 0.0
    %3124 = vmatprep.subr.mxu0 0.0
    %3125 = vmatpush1.msra.mxu0 0.0
    %3126 = vmatprep.subr.mxu0 0.0
    %3127 = vmatpush1.msra.mxu0 0.0
    %3128 = vmatprep.subr.mxu0 0.0
    %3129 = vmatpush1.msra.mxu0 0.0
    %3130 = vmatprep.subr.mxu0 0.0
    %3131 = vmatpush1.msra.mxu0 0.0
    %3132 = vmatprep.subr.mxu0 0.0
    %3133 = vmatpush1.msra.mxu0 0.0
    %3134 = vmatprep.subr.mxu0 0.0
    %3135 = vmatpush1.msra.mxu0 0.0
    %3136 = vmatprep.subr.mxu0 0.0
    %3137 = vmatpush1.msra.mxu0 0.0
    %3138 = vmatprep.subr.mxu0 0.0
    %3139 = vmatpush1.msra.mxu0 0.0
    %3140 = vmatprep.subr.mxu0 0.0
    %3141 = vmatpush1.msra.mxu0 0.0
    %3142 = vmatprep.subr.mxu0 0.0
    %3143 = vmatpush1.msra.mxu0 0.0
    %3144 = vmatprep.subr.mxu0 0.0
    %3145 = vmatpush1.msra.mxu0 0.0
    %3146 = vmatprep.subr.mxu0 0.0
    %3147 = vmatpush1.msra.mxu0 0.0
    %3148 = vmatprep.subr.mxu0 0.0
    %3149 = vmatpush1.msra.mxu0 0.0
    %3150 = vmatprep.subr.mxu0 0.0
    %3151 = vmatpush1.msra.mxu0 0.0
    %3152 = vmatprep.subr.mxu0 0.0
    %3153 = vmatpush1.msra.mxu0 0.0
    %3154 = vmatprep.mubr.f32.mxu0 0.0
    %3155 = vmatmul.mubr.f32.gmra.mrb[0].mxu0 %v3067
    %v3156 = vpop.f32.mrb[0].mxu0
    %v3157 = vadd.f32 0.0, %v3156
    %v3158 = vpop.f32.mrb[0].mxu0
    %3159 = vmatprep.mubr.f32.mxu0 0.0
    %3160 = vmatmul.mubr.f32.gmra.mrb[0].mxu0 %v3070
    %v3161 = vpop.f32.mrb[0].mxu0
    %v3162 = vadd.f32 0.0, %v3161
    %v3163 = vpop.f32.mrb[0].mxu0
    %3164 = vmatprep.mubr.f32.mxu0 0.0
    %3165 = vmatmul.mubr.f32.gmra.mrb[0].mxu0 %v3073
    %v3166 = vpop.f32.mrb[0].mxu0
    %v3167 = vadd.f32 0.0, %v3166
    %v3168 = vpop.f32.mrb[0].mxu0
    %3169 = vmatprep.mubr.f32.mxu0 0.0
    %3170 = vmatmul.mubr.f32.gmra.mrb[0].mxu0 %v3076
    %v3171 = vpop.f32.mrb[0].mxu0
    %v3172 = vadd.f32 0.0, %v3171
    %v3173 = vpop.f32.mrb[0].mxu0
    %3174 = vmatprep.mubr.f32.mxu0 0.0
    %3175 = vmatmul.mubr.f32.gmra.mrb[0].mxu0 %v3079
    %v3176 = vpop.f32.mrb[0].mxu0
    %v3177 = vadd.f32 0.0, %v3176
    %v3178 = vpop.f32.mrb[0].mxu0
    %3179 = vmatprep.mubr.f32.mxu0 0.0
    %3180 = vmatmul.mubr.f32.gmra.mrb[0].mxu0 %v3082
    %v3181 = vpop.f32.mrb[0].mxu0
    %v3182 = vadd.f32 0.0, %v3181
    %v3183 = vpop.f32.mrb[0].mxu0
    %3184 = vmatprep.mubr.f32.mxu0 0.0
    %3185 = vmatmul.mubr.f32.gmra.mrb[0].mxu0 %v3085
    %v3186 = vpop.f32.mrb[0].mxu0
    %v3187 = vadd.f32 0.0, %v3186
    %v3188 = vpop.f32.mrb[0].mxu0
    %3189 = vmatprep.mubr.f32.mxu0 0.0
    %3190 = vmatmul.mubr.f32.gmra.mrb[0].mxu0 %v3088
    %v3191 = vpop.f32.mrb[0].mxu0
    %v3192 = vadd.f32 0.0, %v3191
    %v3193 = vpop.f32.mrb[0].mxu0
    %3194 = vdwg.mxu0
    %3195 = vrot.lane.b32.xlu0 %v2345, 112
    %v3196 = vpop.permute.xlu0 %3195
    %3197 = vrot.lane.b32.xlu0 %v2350, 112
    %v3198 = vpop.permute.xlu0 %3197
    %3199 = vrot.lane.b32.xlu0 %v2355, 112
    %v3200 = vpop.permute.xlu0 %3199
    %3201 = vrot.lane.b32.xlu0 %v2360, 112
    %v3202 = vpop.permute.xlu0 %3201
    %3203 = vrot.lane.b32.xlu0 %v2365, 112
    %v3204 = vpop.permute.xlu0 %3203
    %3205 = vrot.lane.b32.xlu0 %v2370, 112
    %v3206 = vpop.permute.xlu0 %3205
    %3207 = vrot.lane.b32.xlu0 %v2375, 112
    %v3208 = vpop.permute.xlu0 %3207
    %3209 = vrot.lane.b32.xlu0 %v2380, 112
    %v3210 = vpop.permute.xlu0 %3209
    %3211 = vrot.lane.b32.xlu0 %v2345, 80
    %v3212 = vpop.permute.xlu0 %3211
    %3213 = vrot.lane.b32.xlu0 %v2350, 80
    %v3214 = vpop.permute.xlu0 %3213
    %3215 = vrot.lane.b32.xlu0 %v2355, 80
    %v3216 = vpop.permute.xlu0 %3215
    %3217 = vrot.lane.b32.xlu0 %v2360, 80
    %v3218 = vpop.permute.xlu0 %3217
    %3219 = vrot.lane.b32.xlu0 %v2365, 80
    %v3220 = vpop.permute.xlu0 %3219
    %3221 = vrot.lane.b32.xlu0 %v2370, 80
    %v3222 = vpop.permute.xlu0 %3221
    %3223 = vrot.lane.b32.xlu0 %v2375, 80
    %v3224 = vpop.permute.xlu0 %3223
    %3225 = vrot.lane.b32.xlu0 %v2380, 80
    %v3226 = vpop.permute.xlu0 %3225
    %v3227 = vsel %vm522, %v3196, 0
    %v3229 = vsel %vm522, %v3198, 0
    %v3231 = vsel %vm522, %v3200, 0
    %v3233 = vsel %vm522, %v3202, 0
    %v3235 = vsel %vm522, %v3204, 0
    %v3237 = vsel %vm522, %v3206, 0
    %v3239 = vsel %vm522, %v3208, 0
    %v3241 = vsel %vm522, %v3210, 0
    %v3243 = vsel %vm522, %v3212, 0
    %v3245 = vsel %vm522, %v3214, 0
    %v3247 = vsel %vm522, %v3216, 0
    %v3249 = vsel %vm522, %v3218, 0
    %v3251 = vsel %vm522, %v3220, 0
    %v3253 = vsel %vm522, %v3222, 0
    %v3255 = vsel %vm522, %v3224, 0
    %v3257 = vsel %vm522, %v3226, 0
    %3259 = vmatprep.subr.mxu0 0.0
    %3260 = vmatpush1.xpose.msra.mxu0 %v3243
    %3261 = vmatprep.subr.mxu0 0.0
    %3262 = vmatpush1.xpose.msra.mxu0 %v3245
    %3263 = vmatprep.subr.mxu0 0.0
    %3264 = vmatpush1.xpose.msra.mxu0 %v3247
    %3265 = vmatprep.subr.mxu0 0.0
    %3266 = vmatpush1.xpose.msra.mxu0 %v3249
    %3267 = vmatprep.subr.mxu0 0.0
    %3268 = vmatpush1.xpose.msra.mxu0 %v3251
    %3269 = vmatprep.subr.mxu0 0.0
    %3270 = vmatpush1.xpose.msra.mxu0 %v3253
    %3271 = vmatprep.subr.mxu0 0.0
    %3272 = vmatpush1.xpose.msra.mxu0 %v3255
    %3273 = vmatprep.subr.mxu0 0.0
    %3274 = vmatpush1.xpose.msra.mxu0 %v3257
    %3275 = vmatprep.subr.mxu0 0.0
    %3276 = vmatpush1.xpose.msra.mxu0 0.0
    %3277 = vmatprep.subr.mxu0 0.0
    %3278 = vmatpush1.xpose.msra.mxu0 0.0
    %3279 = vmatprep.subr.mxu0 0.0
    %3280 = vmatpush1.xpose.msra.mxu0 0.0
    %3281 = vmatprep.subr.mxu0 0.0
    %3282 = vmatpush1.xpose.msra.mxu0 0.0
    %3283 = vmatprep.subr.mxu0 0.0
    %3284 = vmatpush1.xpose.msra.mxu0 0.0
    %3285 = vmatprep.subr.mxu0 0.0
    %3286 = vmatpush1.xpose.msra.mxu0 0.0
    %3287 = vmatprep.subr.mxu0 0.0
    %3288 = vmatpush1.xpose.msra.mxu0 0.0
    %3289 = vmatprep.subr.mxu0 0.0
    %3290 = vmatpush1.xpose.msra.mxu0 0.0
    %3291 = vmatprep.subr.mxu0 0.0
    %3292 = vmatpush1.xpose.msra.mxu0 0.0
    %3293 = vmatprep.subr.mxu0 0.0
    %3294 = vmatpush1.xpose.msra.mxu0 0.0
    %3295 = vmatprep.subr.mxu0 0.0
    %3296 = vmatpush1.xpose.msra.mxu0 0.0
    %3297 = vmatprep.subr.mxu0 0.0
    %3298 = vmatpush1.xpose.msra.mxu0 0.0
    %3299 = vmatprep.subr.mxu0 0.0
    %3300 = vmatpush1.xpose.msra.mxu0 0.0
    %3301 = vmatprep.subr.mxu0 0.0
    %3302 = vmatpush1.xpose.msra.mxu0 0.0
    %3303 = vmatprep.subr.mxu0 0.0
    %3304 = vmatpush1.xpose.msra.mxu0 0.0
    %3305 = vmatprep.subr.mxu0 0.0
    %3306 = vmatpush1.xpose.msra.mxu0 0.0
    %3307 = vmatprep.subr.mxu0 0.0
    %3308 = vmatpush1.xpose.msra.mxu0 0.0
    %3309 = vmatprep.subr.mxu0 0.0
    %3310 = vmatpush1.xpose.msra.mxu0 0.0
    %3311 = vmatprep.subr.mxu0 0.0
    %3312 = vmatpush1.xpose.msra.mxu0 0.0
    %3313 = vmatprep.subr.mxu0 0.0
    %3314 = vmatpush1.xpose.msra.mxu0 0.0
    %3315 = vmatprep.subr.mxu0 0.0
    %3316 = vmatpush1.xpose.msra.mxu0 0.0
    %3317 = vmatprep.subr.mxu0 0.0
    %3318 = vmatpush1.xpose.msra.mxu0 0.0
    %3319 = vmatprep.subr.mxu0 0.0
    %3320 = vmatpush1.xpose.msra.mxu0 0.0
    %3321 = vmatprep.subr.mxu0 0.0
    %3322 = vmatpush1.xpose.msra.mxu0 0.0
    %3323 = vmatprep.mubr.f32.mxu0 0.0
    %3324 = vmatmul.mubr.f32.gmra.mrb[0].mxu0 %v3227
    %v3325 = vpop.f32.mrb[0].mxu0
    %v3326 = vadd.f32 %v101, %v3325
    %v3327 = vpop.f32.mrb[0].mxu0
    %3328 = vmatprep.mubr.f32.mxu0 0.0
    %3329 = vmatmul.mubr.f32.gmra.mrb[0].mxu0 %v3229
    %v3330 = vpop.f32.mrb[0].mxu0
    %v3331 = vadd.f32 %v102, %v3330
    %v3332 = vpop.f32.mrb[0].mxu0
    %3333 = vmatprep.mubr.f32.mxu0 0.0
    %3334 = vmatmul.mubr.f32.gmra.mrb[0].mxu0 %v3231
    %v3335 = vpop.f32.mrb[0].mxu0
    %v3336 = vadd.f32 %v103, %v3335
    %v3337 = vpop.f32.mrb[0].mxu0
    %3338 = vmatprep.mubr.f32.mxu0 0.0
    %3339 = vmatmul.mubr.f32.gmra.mrb[0].mxu0 %v3233
    %v3340 = vpop.f32.mrb[0].mxu0
    %v3341 = vadd.f32 %v104, %v3340
    %v3342 = vpop.f32.mrb[0].mxu0
    %3343 = vmatprep.mubr.f32.mxu0 0.0
    %3344 = vmatmul.mubr.f32.gmra.mrb[0].mxu0 %v3235
    %v3345 = vpop.f32.mrb[0].mxu0
    %v3346 = vadd.f32 %v105, %v3345
    %v3347 = vpop.f32.mrb[0].mxu0
    %3348 = vmatprep.mubr.f32.mxu0 0.0
    %3349 = vmatmul.mubr.f32.gmra.mrb[0].mxu0 %v3237
    %v3350 = vpop.f32.mrb[0].mxu0
    %v3351 = vadd.f32 %v106, %v3350
    %v3352 = vpop.f32.mrb[0].mxu0
    %3353 = vmatprep.mubr.f32.mxu0 0.0
    %3354 = vmatmul.mubr.f32.gmra.mrb[0].mxu0 %v3239
    %v3355 = vpop.f32.mrb[0].mxu0
    %v3356 = vadd.f32 %v107, %v3355
    %v3357 = vpop.f32.mrb[0].mxu0
    %3358 = vmatprep.mubr.f32.mxu0 0.0
    %3359 = vmatmul.mubr.f32.gmra.mrb[0].mxu0 %v3241
    %v3360 = vpop.f32.mrb[0].mxu0
    %v3361 = vadd.f32 %v108, %v3360
    %v3362 = vpop.f32.mrb[0].mxu0
    %3363 = vdwg.mxu0
    %v3364 = vsel %vm660, %v3326, -inf
    %3365 = vmax.xlane.f32.xlu0 %v3364
    %v3366 = vpop.xlane.xlu0 %3365
    %v3367 = vsel %vm660, %v3331, -inf
    %3368 = vmax.xlane.f32.xlu0 %v3367
    %v3369 = vpop.xlane.xlu0 %3368
    %v3370 = vsel %vm660, %v3336, -inf
    %3371 = vmax.xlane.f32.xlu0 %v3370
    %v3372 = vpop.xlane.xlu0 %3371
    %v3373 = vsel %vm660, %v3341, -inf
    %3374 = vmax.xlane.f32.xlu0 %v3373
    %v3375 = vpop.xlane.xlu0 %3374
    %v3376 = vsel %vm660, %v3346, -inf
    %3377 = vmax.xlane.f32.xlu0 %v3376
    %v3378 = vpop.xlane.xlu0 %3377
    %v3379 = vsel %vm660, %v3351, -inf
    %3380 = vmax.xlane.f32.xlu0 %v3379
    %v3381 = vpop.xlane.xlu0 %3380
    %v3382 = vsel %vm660, %v3356, -inf
    %3383 = vmax.xlane.f32.xlu0 %v3382
    %v3384 = vpop.xlane.xlu0 %3383
    %v3385 = vsel %vm660, %v3361, -inf
    %3386 = vmax.xlane.f32.xlu0 %v3385
    %v3387 = vpop.xlane.xlu0 %3386
    %v3388 = vsub.f32 %v3326, %v3366
    %v3389 = vsub.f32 %v3331, %v3369
    %v3390 = vsub.f32 %v3336, %v3372
    %v3391 = vsub.f32 %v3341, %v3375
    %v3392 = vsub.f32 %v3346, %v3378
    %v3393 = vsub.f32 %v3351, %v3381
    %v3394 = vsub.f32 %v3356, %v3384
    %v3395 = vsub.f32 %v3361, %v3387
    %v3396 = vmul.f32 %v3388, 1.442695
    %v3397 = vpow.pop %v3396
    %v3398 = vmul.f32 %v3389, 1.442695
    %v3399 = vpow.pop %v3398
    %v3400 = vmul.f32 %v3390, 1.442695
    %v3401 = vpow.pop %v3400
    %v3402 = vmul.f32 %v3391, 1.442695
    %v3403 = vpow.pop %v3402
    %v3404 = vmul.f32 %v3392, 1.442695
    %v3405 = vpow.pop %v3404
    %v3406 = vmul.f32 %v3393, 1.442695
    %v3407 = vpow.pop %v3406
    %v3408 = vmul.f32 %v3394, 1.442695
    %v3409 = vpow.pop %v3408
    %v3410 = vmul.f32 %v3395, 1.442695
    %v3411 = vpow.pop %v3410
    %v3412 = vsel %vm660, %v3397, 0.0
    %3413 = vadd.xlane.f32.xlu0 %v3412
    %v3414 = vpop.xlane.xlu0 %3413
    %v3415 = vsel %vm660, %v3399, 0.0
    %3416 = vadd.xlane.f32.xlu0 %v3415
    %v3417 = vpop.xlane.xlu0 %3416
    %v3418 = vsel %vm660, %v3401, 0.0
    %3419 = vadd.xlane.f32.xlu0 %v3418
    %v3420 = vpop.xlane.xlu0 %3419
    %v3421 = vsel %vm660, %v3403, 0.0
    %3422 = vadd.xlane.f32.xlu0 %v3421
    %v3423 = vpop.xlane.xlu0 %3422
    %v3424 = vsel %vm660, %v3405, 0.0
    %3425 = vadd.xlane.f32.xlu0 %v3424
    %v3426 = vpop.xlane.xlu0 %3425
    %v3427 = vsel %vm660, %v3407, 0.0
    %3428 = vadd.xlane.f32.xlu0 %v3427
    %v3429 = vpop.xlane.xlu0 %3428
    %v3430 = vsel %vm660, %v3409, 0.0
    %3431 = vadd.xlane.f32.xlu0 %v3430
    %v3432 = vpop.xlane.xlu0 %3431
    %v3433 = vsel %vm660, %v3411, 0.0
    %3434 = vadd.xlane.f32.xlu0 %v3433
    %v3435 = vpop.xlane.xlu0 %3434
    %v3436 = vrcp.pop %v3414
    %v3437 = vrcp.pop %v3417
    %v3438 = vrcp.pop %v3420
    %v3439 = vrcp.pop %v3423
    %v3440 = vrcp.pop %v3426
    %v3441 = vrcp.pop %v3429
    %v3442 = vrcp.pop %v3432
    %v3443 = vrcp.pop %v3435
    %v3444 = vmul.f32 %v3397, %v3436
    %v3445 = vmul.f32 %v3399, %v3437
    %v3446 = vmul.f32 %v3401, %v3438
    %v3447 = vmul.f32 %v3403, %v3439
    %v3448 = vmul.f32 %v3405, %v3440
    %v3449 = vmul.f32 %v3407, %v3441
    %v3450 = vmul.f32 %v3409, %v3442
    %v3451 = vmul.f32 %v3411, %v3443
    %3452 = vrot.lane.b32.xlu0 %v2345, 48
    %v3453 = vpop.permute.xlu0 %3452
    %3454 = vrot.lane.b32.xlu0 %v2350, 48
    %v3455 = vpop.permute.xlu0 %3454
    %3456 = vrot.lane.b32.xlu0 %v2355, 48
    %v3457 = vpop.permute.xlu0 %3456
    %3458 = vrot.lane.b32.xlu0 %v2360, 48
    %v3459 = vpop.permute.xlu0 %3458
    %3460 = vrot.lane.b32.xlu0 %v2365, 48
    %v3461 = vpop.permute.xlu0 %3460
    %3462 = vrot.lane.b32.xlu0 %v2370, 48
    %v3463 = vpop.permute.xlu0 %3462
    %3464 = vrot.lane.b32.xlu0 %v2375, 48
    %v3465 = vpop.permute.xlu0 %3464
    %3466 = vrot.lane.b32.xlu0 %v2380, 48
    %v3467 = vpop.permute.xlu0 %3466
    %v3477 = vsel %vm660, %v3444, 0
    %v3480 = vsel %vm660, %v3445, 0
    %v3483 = vsel %vm660, %v3446, 0
    %v3486 = vsel %vm660, %v3447, 0
    %v3489 = vsel %vm660, %v3448, 0
    %v3492 = vsel %vm660, %v3449, 0
    %v3495 = vsel %vm660, %v3450, 0
    %v3498 = vsel %vm660, %v3451, 0
    %3500 = vmatprep.subr.mxu0 0.0
    %3501 = vmatpush1.msra.mxu0 %v3453
    %3502 = vmatprep.subr.mxu0 0.0
    %3503 = vmatpush1.msra.mxu0 %v3455
    %3504 = vmatprep.subr.mxu0 0.0
    %3505 = vmatpush1.msra.mxu0 %v3457
    %3506 = vmatprep.subr.mxu0 0.0
    %3507 = vmatpush1.msra.mxu0 %v3459
    %3508 = vmatprep.subr.mxu0 0.0
    %3509 = vmatpush1.msra.mxu0 %v3461
    %3510 = vmatprep.subr.mxu0 0.0
    %3511 = vmatpush1.msra.mxu0 %v3463
    %3512 = vmatprep.subr.mxu0 0.0
    %3513 = vmatpush1.msra.mxu0 %v3465
    %3514 = vmatprep.subr.mxu0 0.0
    %3515 = vmatpush1.msra.mxu0 %v3467
    %3516 = vmatprep.subr.mxu0 0.0
    %3517 = vmatpush1.msra.mxu0 0.0
    %3518 = vmatprep.subr.mxu0 0.0
    %3519 = vmatpush1.msra.mxu0 0.0
    %3520 = vmatprep.subr.mxu0 0.0
    %3521 = vmatpush1.msra.mxu0 0.0
    %3522 = vmatprep.subr.mxu0 0.0
    %3523 = vmatpush1.msra.mxu0 0.0
    %3524 = vmatprep.subr.mxu0 0.0
    %3525 = vmatpush1.msra.mxu0 0.0
    %3526 = vmatprep.subr.mxu0 0.0
    %3527 = vmatpush1.msra.mxu0 0.0
    %3528 = vmatprep.subr.mxu0 0.0
    %3529 = vmatpush1.msra.mxu0 0.0
    %3530 = vmatprep.subr.mxu0 0.0
    %3531 = vmatpush1.msra.mxu0 0.0
    %3532 = vmatprep.subr.mxu0 0.0
    %3533 = vmatpush1.msra.mxu0 0.0
    %3534 = vmatprep.subr.mxu0 0.0
    %3535 = vmatpush1.msra.mxu0 0.0
    %3536 = vmatprep.subr.mxu0 0.0
    %3537 = vmatpush1.msra.mxu0 0.0
    %3538 = vmatprep.subr.mxu0 0.0
    %3539 = vmatpush1.msra.mxu0 0.0
    %3540 = vmatprep.subr.mxu0 0.0
    %3541 = vmatpush1.msra.mxu0 0.0
    %3542 = vmatprep.subr.mxu0 0.0
    %3543 = vmatpush1.msra.mxu0 0.0
    %3544 = vmatprep.subr.mxu0 0.0
    %3545 = vmatpush1.msra.mxu0 0.0
    %3546 = vmatprep.subr.mxu0 0.0
    %3547 = vmatpush1.msra.mxu0 0.0
    %3548 = vmatprep.subr.mxu0 0.0
    %3549 = vmatpush1.msra.mxu0 0.0
    %3550 = vmatprep.subr.mxu0 0.0
    %3551 = vmatpush1.msra.mxu0 0.0
    %3552 = vmatprep.subr.mxu0 0.0
    %3553 = vmatpush1.msra.mxu0 0.0
    %3554 = vmatprep.subr.mxu0 0.0
    %3555 = vmatpush1.msra.mxu0 0.0
    %3556 = vmatprep.subr.mxu0 0.0
    %3557 = vmatpush1.msra.mxu0 0.0
    %3558 = vmatprep.subr.mxu0 0.0
    %3559 = vmatpush1.msra.mxu0 0.0
    %3560 = vmatprep.subr.mxu0 0.0
    %3561 = vmatpush1.msra.mxu0 0.0
    %3562 = vmatprep.subr.mxu0 0.0
    %3563 = vmatpush1.msra.mxu0 0.0
    %3564 = vmatprep.mubr.f32.mxu0 0.0
    %3565 = vmatmul.mubr.f32.gmra.mrb[0].mxu0 %v3477
    %v3566 = vpop.f32.mrb[0].mxu0
    %v3567 = vadd.f32 0.0, %v3566
    %v3568 = vpop.f32.mrb[0].mxu0
    %3569 = vmatprep.mubr.f32.mxu0 0.0
    %3570 = vmatmul.mubr.f32.gmra.mrb[0].mxu0 %v3480
    %v3571 = vpop.f32.mrb[0].mxu0
    %v3572 = vadd.f32 0.0, %v3571
    %v3573 = vpop.f32.mrb[0].mxu0
    %3574 = vmatprep.mubr.f32.mxu0 0.0
    %3575 = vmatmul.mubr.f32.gmra.mrb[0].mxu0 %v3483
    %v3576 = vpop.f32.mrb[0].mxu0
    %v3577 = vadd.f32 0.0, %v3576
    %v3578 = vpop.f32.mrb[0].mxu0
    %3579 = vmatprep.mubr.f32.mxu0 0.0
    %3580 = vmatmul.mubr.f32.gmra.mrb[0].mxu0 %v3486
    %v3581 = vpop.f32.mrb[0].mxu0
    %v3582 = vadd.f32 0.0, %v3581
    %v3583 = vpop.f32.mrb[0].mxu0
    %3584 = vmatprep.mubr.f32.mxu0 0.0
    %3585 = vmatmul.mubr.f32.gmra.mrb[0].mxu0 %v3489
    %v3586 = vpop.f32.mrb[0].mxu0
    %v3587 = vadd.f32 0.0, %v3586
    %v3588 = vpop.f32.mrb[0].mxu0
    %3589 = vmatprep.mubr.f32.mxu0 0.0
    %3590 = vmatmul.mubr.f32.gmra.mrb[0].mxu0 %v3492
    %v3591 = vpop.f32.mrb[0].mxu0
    %v3592 = vadd.f32 0.0, %v3591
    %v3593 = vpop.f32.mrb[0].mxu0
    %3594 = vmatprep.mubr.f32.mxu0 0.0
    %3595 = vmatmul.mubr.f32.gmra.mrb[0].mxu0 %v3495
    %v3596 = vpop.f32.mrb[0].mxu0
    %v3597 = vadd.f32 0.0, %v3596
    %v3598 = vpop.f32.mrb[0].mxu0
    %3599 = vmatprep.mubr.f32.mxu0 0.0
    %3600 = vmatmul.mubr.f32.gmra.mrb[0].mxu0 %v3498
    %v3601 = vpop.f32.mrb[0].mxu0
    %v3602 = vadd.f32 0.0, %v3601
    %v3603 = vpop.f32.mrb[0].mxu0
    %3604 = vdwg.mxu0
    %3605 = vrot.lane.b32.xlu0 %v2345, 104
    %v3606 = vpop.permute.xlu0 %3605
    %3607 = vrot.lane.b32.xlu0 %v2350, 104
    %v3608 = vpop.permute.xlu0 %3607
    %3609 = vrot.lane.b32.xlu0 %v2355, 104
    %v3610 = vpop.permute.xlu0 %3609
    %3611 = vrot.lane.b32.xlu0 %v2360, 104
    %v3612 = vpop.permute.xlu0 %3611
    %3613 = vrot.lane.b32.xlu0 %v2365, 104
    %v3614 = vpop.permute.xlu0 %3613
    %3615 = vrot.lane.b32.xlu0 %v2370, 104
    %v3616 = vpop.permute.xlu0 %3615
    %3617 = vrot.lane.b32.xlu0 %v2375, 104
    %v3618 = vpop.permute.xlu0 %3617
    %3619 = vrot.lane.b32.xlu0 %v2380, 104
    %v3620 = vpop.permute.xlu0 %3619
    %3621 = vrot.lane.b32.xlu0 %v2345, 72
    %v3622 = vpop.permute.xlu0 %3621
    %3623 = vrot.lane.b32.xlu0 %v2350, 72
    %v3624 = vpop.permute.xlu0 %3623
    %3625 = vrot.lane.b32.xlu0 %v2355, 72
    %v3626 = vpop.permute.xlu0 %3625
    %3627 = vrot.lane.b32.xlu0 %v2360, 72
    %v3628 = vpop.permute.xlu0 %3627
    %3629 = vrot.lane.b32.xlu0 %v2365, 72
    %v3630 = vpop.permute.xlu0 %3629
    %3631 = vrot.lane.b32.xlu0 %v2370, 72
    %v3632 = vpop.permute.xlu0 %3631
    %3633 = vrot.lane.b32.xlu0 %v2375, 72
    %v3634 = vpop.permute.xlu0 %3633
    %3635 = vrot.lane.b32.xlu0 %v2380, 72
    %v3636 = vpop.permute.xlu0 %3635
    %v3637 = vsel %vm522, %v3606, 0
    %v3639 = vsel %vm522, %v3608, 0
    %v3641 = vsel %vm522, %v3610, 0
    %v3643 = vsel %vm522, %v3612, 0
    %v3645 = vsel %vm522, %v3614, 0
    %v3647 = vsel %vm522, %v3616, 0
    %v3649 = vsel %vm522, %v3618, 0
    %v3651 = vsel %vm522, %v3620, 0
    %v3653 = vsel %vm522, %v3622, 0
    %v3655 = vsel %vm522, %v3624, 0
    %v3657 = vsel %vm522, %v3626, 0
    %v3659 = vsel %vm522, %v3628, 0
    %v3661 = vsel %vm522, %v3630, 0
    %v3663 = vsel %vm522, %v3632, 0
    %v3665 = vsel %vm522, %v3634, 0
    %v3667 = vsel %vm522, %v3636, 0
    %3669 = vmatprep.subr.mxu0 0.0
    %3670 = vmatpush1.xpose.msra.mxu0 %v3653
    %3671 = vmatprep.subr.mxu0 0.0
    %3672 = vmatpush1.xpose.msra.mxu0 %v3655
    %3673 = vmatprep.subr.mxu0 0.0
    %3674 = vmatpush1.xpose.msra.mxu0 %v3657
    %3675 = vmatprep.subr.mxu0 0.0
    %3676 = vmatpush1.xpose.msra.mxu0 %v3659
    %3677 = vmatprep.subr.mxu0 0.0
    %3678 = vmatpush1.xpose.msra.mxu0 %v3661
    %3679 = vmatprep.subr.mxu0 0.0
    %3680 = vmatpush1.xpose.msra.mxu0 %v3663
    %3681 = vmatprep.subr.mxu0 0.0
    %3682 = vmatpush1.xpose.msra.mxu0 %v3665
    %3683 = vmatprep.subr.mxu0 0.0
    %3684 = vmatpush1.xpose.msra.mxu0 %v3667
    %3685 = vmatprep.subr.mxu0 0.0
    %3686 = vmatpush1.xpose.msra.mxu0 0.0
    %3687 = vmatprep.subr.mxu0 0.0
    %3688 = vmatpush1.xpose.msra.mxu0 0.0
    %3689 = vmatprep.subr.mxu0 0.0
    %3690 = vmatpush1.xpose.msra.mxu0 0.0
    %3691 = vmatprep.subr.mxu0 0.0
    %3692 = vmatpush1.xpose.msra.mxu0 0.0
    %3693 = vmatprep.subr.mxu0 0.0
    %3694 = vmatpush1.xpose.msra.mxu0 0.0
    %3695 = vmatprep.subr.mxu0 0.0
    %3696 = vmatpush1.xpose.msra.mxu0 0.0
    %3697 = vmatprep.subr.mxu0 0.0
    %3698 = vmatpush1.xpose.msra.mxu0 0.0
    %3699 = vmatprep.subr.mxu0 0.0
    %3700 = vmatpush1.xpose.msra.mxu0 0.0
    %3701 = vmatprep.subr.mxu0 0.0
    %3702 = vmatpush1.xpose.msra.mxu0 0.0
    %3703 = vmatprep.subr.mxu0 0.0
    %3704 = vmatpush1.xpose.msra.mxu0 0.0
    %3705 = vmatprep.subr.mxu0 0.0
    %3706 = vmatpush1.xpose.msra.mxu0 0.0
    %3707 = vmatprep.subr.mxu0 0.0
    %3708 = vmatpush1.xpose.msra.mxu0 0.0
    %3709 = vmatprep.subr.mxu0 0.0
    %3710 = vmatpush1.xpose.msra.mxu0 0.0
    %3711 = vmatprep.subr.mxu0 0.0
    %3712 = vmatpush1.xpose.msra.mxu0 0.0
    %3713 = vmatprep.subr.mxu0 0.0
    %3714 = vmatpush1.xpose.msra.mxu0 0.0
    %3715 = vmatprep.subr.mxu0 0.0
    %3716 = vmatpush1.xpose.msra.mxu0 0.0
    %3717 = vmatprep.subr.mxu0 0.0
    %3718 = vmatpush1.xpose.msra.mxu0 0.0
    %3719 = vmatprep.subr.mxu0 0.0
    %3720 = vmatpush1.xpose.msra.mxu0 0.0
    %3721 = vmatprep.subr.mxu0 0.0
    %3722 = vmatpush1.xpose.msra.mxu0 0.0
    %3723 = vmatprep.subr.mxu0 0.0
    %3724 = vmatpush1.xpose.msra.mxu0 0.0
    %3725 = vmatprep.subr.mxu0 0.0
    %3726 = vmatpush1.xpose.msra.mxu0 0.0
    %3727 = vmatprep.subr.mxu0 0.0
    %3728 = vmatpush1.xpose.msra.mxu0 0.0
    %3729 = vmatprep.subr.mxu0 0.0
    %3730 = vmatpush1.xpose.msra.mxu0 0.0
    %3731 = vmatprep.subr.mxu0 0.0
    %3732 = vmatpush1.xpose.msra.mxu0 0.0
    %3733 = vmatprep.mubr.f32.mxu0 0.0
    %3734 = vmatmul.mubr.f32.gmra.mrb[0].mxu0 %v3637
    %v3735 = vpop.f32.mrb[0].mxu0
    %v3736 = vadd.f32 %v101, %v3735
    %v3737 = vpop.f32.mrb[0].mxu0
    %3738 = vmatprep.mubr.f32.mxu0 0.0
    %3739 = vmatmul.mubr.f32.gmra.mrb[0].mxu0 %v3639
    %v3740 = vpop.f32.mrb[0].mxu0
    %v3741 = vadd.f32 %v102, %v3740
    %v3742 = vpop.f32.mrb[0].mxu0
    %3743 = vmatprep.mubr.f32.mxu0 0.0
    %3744 = vmatmul.mubr.f32.gmra.mrb[0].mxu0 %v3641
    %v3745 = vpop.f32.mrb[0].mxu0
    %v3746 = vadd.f32 %v103, %v3745
    %v3747 = vpop.f32.mrb[0].mxu0
    %3748 = vmatprep.mubr.f32.mxu0 0.0
    %3749 = vmatmul.mubr.f32.gmra.mrb[0].mxu0 %v3643
    %v3750 = vpop.f32.mrb[0].mxu0
    %v3751 = vadd.f32 %v104, %v3750
    %v3752 = vpop.f32.mrb[0].mxu0
    %3753 = vmatprep.mubr.f32.mxu0 0.0
    %3754 = vmatmul.mubr.f32.gmra.mrb[0].mxu0 %v3645
    %v3755 = vpop.f32.mrb[0].mxu0
    %v3756 = vadd.f32 %v105, %v3755
    %v3757 = vpop.f32.mrb[0].mxu0
    %3758 = vmatprep.mubr.f32.mxu0 0.0
    %3759 = vmatmul.mubr.f32.gmra.mrb[0].mxu0 %v3647
    %v3760 = vpop.f32.mrb[0].mxu0
    %v3761 = vadd.f32 %v106, %v3760
    %v3762 = vpop.f32.mrb[0].mxu0
    %3763 = vmatprep.mubr.f32.mxu0 0.0
    %3764 = vmatmul.mubr.f32.gmra.mrb[0].mxu0 %v3649
    %v3765 = vpop.f32.mrb[0].mxu0
    %v3766 = vadd.f32 %v107, %v3765
    %v3767 = vpop.f32.mrb[0].mxu0
    %3768 = vmatprep.mubr.f32.mxu0 0.0
    %3769 = vmatmul.mubr.f32.gmra.mrb[0].mxu0 %v3651
    %v3770 = vpop.f32.mrb[0].mxu0
    %v3771 = vadd.f32 %v108, %v3770
    %v3772 = vpop.f32.mrb[0].mxu0
    %3773 = vdwg.mxu0
    %v3774 = vsel %vm660, %v3736, -inf
    %3775 = vmax.xlane.f32.xlu0 %v3774
    %v3776 = vpop.xlane.xlu0 %3775
    %v3777 = vsel %vm660, %v3741, -inf
    %3778 = vmax.xlane.f32.xlu0 %v3777
    %v3779 = vpop.xlane.xlu0 %3778
    %v3780 = vsel %vm660, %v3746, -inf
    %3781 = vmax.xlane.f32.xlu0 %v3780
    %v3782 = vpop.xlane.xlu0 %3781
    %v3783 = vsel %vm660, %v3751, -inf
    %3784 = vmax.xlane.f32.xlu0 %v3783
    %v3785 = vpop.xlane.xlu0 %3784
    %v3786 = vsel %vm660, %v3756, -inf
    %3787 = vmax.xlane.f32.xlu0 %v3786
    %v3788 = vpop.xlane.xlu0 %3787
    %v3789 = vsel %vm660, %v3761, -inf
    %3790 = vmax.xlane.f32.xlu0 %v3789
    %v3791 = vpop.xlane.xlu0 %3790
    %v3792 = vsel %vm660, %v3766, -inf
    %3793 = vmax.xlane.f32.xlu0 %v3792
    %v3794 = vpop.xlane.xlu0 %3793
    %v3795 = vsel %vm660, %v3771, -inf
    %3796 = vmax.xlane.f32.xlu0 %v3795
    %v3797 = vpop.xlane.xlu0 %3796
    %v3798 = vsub.f32 %v3736, %v3776
    %v3799 = vsub.f32 %v3741, %v3779
    %v3800 = vsub.f32 %v3746, %v3782
    %v3801 = vsub.f32 %v3751, %v3785
    %v3802 = vsub.f32 %v3756, %v3788
    %v3803 = vsub.f32 %v3761, %v3791
    %v3804 = vsub.f32 %v3766, %v3794
    %v3805 = vsub.f32 %v3771, %v3797
    %v3806 = vmul.f32 %v3798, 1.442695
    %v3807 = vpow.pop %v3806
    %v3808 = vmul.f32 %v3799, 1.442695
    %v3809 = vpow.pop %v3808
    %v3810 = vmul.f32 %v3800, 1.442695
    %v3811 = vpow.pop %v3810
    %v3812 = vmul.f32 %v3801, 1.442695
    %v3813 = vpow.pop %v3812
    %v3814 = vmul.f32 %v3802, 1.442695
    %v3815 = vpow.pop %v3814
    %v3816 = vmul.f32 %v3803, 1.442695
    %v3817 = vpow.pop %v3816
    %v3818 = vmul.f32 %v3804, 1.442695
    %v3819 = vpow.pop %v3818
    %v3820 = vmul.f32 %v3805, 1.442695
    %v3821 = vpow.pop %v3820
    %v3822 = vsel %vm660, %v3807, 0.0
    %3823 = vadd.xlane.f32.xlu0 %v3822
    %v3824 = vpop.xlane.xlu0 %3823
    %v3825 = vsel %vm660, %v3809, 0.0
    %3826 = vadd.xlane.f32.xlu0 %v3825
    %v3827 = vpop.xlane.xlu0 %3826
    %v3828 = vsel %vm660, %v3811, 0.0
    %3829 = vadd.xlane.f32.xlu0 %v3828
    %v3830 = vpop.xlane.xlu0 %3829
    %v3831 = vsel %vm660, %v3813, 0.0
    %3832 = vadd.xlane.f32.xlu0 %v3831
    %v3833 = vpop.xlane.xlu0 %3832
    %v3834 = vsel %vm660, %v3815, 0.0
    %3835 = vadd.xlane.f32.xlu0 %v3834
    %v3836 = vpop.xlane.xlu0 %3835
    %v3837 = vsel %vm660, %v3817, 0.0
    %3838 = vadd.xlane.f32.xlu0 %v3837
    %v3839 = vpop.xlane.xlu0 %3838
    %v3840 = vsel %vm660, %v3819, 0.0
    %3841 = vadd.xlane.f32.xlu0 %v3840
    %v3842 = vpop.xlane.xlu0 %3841
    %v3843 = vsel %vm660, %v3821, 0.0
    %3844 = vadd.xlane.f32.xlu0 %v3843
    %v3845 = vpop.xlane.xlu0 %3844
    %v3846 = vrcp.pop %v3824
    %v3847 = vrcp.pop %v3827
    %v3848 = vrcp.pop %v3830
    %v3849 = vrcp.pop %v3833
    %v3850 = vrcp.pop %v3836
    %v3851 = vrcp.pop %v3839
    %v3852 = vrcp.pop %v3842
    %v3853 = vrcp.pop %v3845
    %v3854 = vmul.f32 %v3807, %v3846
    %v3855 = vmul.f32 %v3809, %v3847
    %v3856 = vmul.f32 %v3811, %v3848
    %v3857 = vmul.f32 %v3813, %v3849
    %v3858 = vmul.f32 %v3815, %v3850
    %v3859 = vmul.f32 %v3817, %v3851
    %v3860 = vmul.f32 %v3819, %v3852
    %v3861 = vmul.f32 %v3821, %v3853
    %3862 = vrot.lane.b32.xlu0 %v2345, 40
    %v3863 = vpop.permute.xlu0 %3862
    %3864 = vrot.lane.b32.xlu0 %v2350, 40
    %v3865 = vpop.permute.xlu0 %3864
    %3866 = vrot.lane.b32.xlu0 %v2355, 40
    %v3867 = vpop.permute.xlu0 %3866
    %3868 = vrot.lane.b32.xlu0 %v2360, 40
    %v3869 = vpop.permute.xlu0 %3868
    %3870 = vrot.lane.b32.xlu0 %v2365, 40
    %v3871 = vpop.permute.xlu0 %3870
    %3872 = vrot.lane.b32.xlu0 %v2370, 40
    %v3873 = vpop.permute.xlu0 %3872
    %3874 = vrot.lane.b32.xlu0 %v2375, 40
    %v3875 = vpop.permute.xlu0 %3874
    %3876 = vrot.lane.b32.xlu0 %v2380, 40
    %v3877 = vpop.permute.xlu0 %3876
    %v3887 = vsel %vm660, %v3854, 0
    %v3890 = vsel %vm660, %v3855, 0
    %v3893 = vsel %vm660, %v3856, 0
    %v3896 = vsel %vm660, %v3857, 0
    %v3899 = vsel %vm660, %v3858, 0
    %v3902 = vsel %vm660, %v3859, 0
    %v3905 = vsel %vm660, %v3860, 0
    %v3908 = vsel %vm660, %v3861, 0
    %3910 = vmatprep.subr.mxu0 0.0
    %3911 = vmatpush1.msra.mxu0 %v3863
    %3912 = vmatprep.subr.mxu0 0.0
    %3913 = vmatpush1.msra.mxu0 %v3865
    %3914 = vmatprep.subr.mxu0 0.0
    %3915 = vmatpush1.msra.mxu0 %v3867
    %3916 = vmatprep.subr.mxu0 0.0
    %3917 = vmatpush1.msra.mxu0 %v3869
    %3918 = vmatprep.subr.mxu0 0.0
    %3919 = vmatpush1.msra.mxu0 %v3871
    %3920 = vmatprep.subr.mxu0 0.0
    %3921 = vmatpush1.msra.mxu0 %v3873
    %3922 = vmatprep.subr.mxu0 0.0
    %3923 = vmatpush1.msra.mxu0 %v3875
    %3924 = vmatprep.subr.mxu0 0.0
    %3925 = vmatpush1.msra.mxu0 %v3877
    %3926 = vmatprep.subr.mxu0 0.0
    %3927 = vmatpush1.msra.mxu0 0.0
    %3928 = vmatprep.subr.mxu0 0.0
    %3929 = vmatpush1.msra.mxu0 0.0
    %3930 = vmatprep.subr.mxu0 0.0
    %3931 = vmatpush1.msra.mxu0 0.0
    %3932 = vmatprep.subr.mxu0 0.0
    %3933 = vmatpush1.msra.mxu0 0.0
    %3934 = vmatprep.subr.mxu0 0.0
    %3935 = vmatpush1.msra.mxu0 0.0
    %3936 = vmatprep.subr.mxu0 0.0
    %3937 = vmatpush1.msra.mxu0 0.0
    %3938 = vmatprep.subr.mxu0 0.0
    %3939 = vmatpush1.msra.mxu0 0.0
    %3940 = vmatprep.subr.mxu0 0.0
    %3941 = vmatpush1.msra.mxu0 0.0
    %3942 = vmatprep.subr.mxu0 0.0
    %3943 = vmatpush1.msra.mxu0 0.0
    %3944 = vmatprep.subr.mxu0 0.0
    %3945 = vmatpush1.msra.mxu0 0.0
    %3946 = vmatprep.subr.mxu0 0.0
    %3947 = vmatpush1.msra.mxu0 0.0
    %3948 = vmatprep.subr.mxu0 0.0
    %3949 = vmatpush1.msra.mxu0 0.0
    %3950 = vmatprep.subr.mxu0 0.0
    %3951 = vmatpush1.msra.mxu0 0.0
    %3952 = vmatprep.subr.mxu0 0.0
    %3953 = vmatpush1.msra.mxu0 0.0
    %3954 = vmatprep.subr.mxu0 0.0
    %3955 = vmatpush1.msra.mxu0 0.0
    %3956 = vmatprep.subr.mxu0 0.0
    %3957 = vmatpush1.msra.mxu0 0.0
    %3958 = vmatprep.subr.mxu0 0.0
    %3959 = vmatpush1.msra.mxu0 0.0
    %3960 = vmatprep.subr.mxu0 0.0
    %3961 = vmatpush1.msra.mxu0 0.0
    %3962 = vmatprep.subr.mxu0 0.0
    %3963 = vmatpush1.msra.mxu0 0.0
    %3964 = vmatprep.subr.mxu0 0.0
    %3965 = vmatpush1.msra.mxu0 0.0
    %3966 = vmatprep.subr.mxu0 0.0
    %3967 = vmatpush1.msra.mxu0 0.0
    %3968 = vmatprep.subr.mxu0 0.0
    %3969 = vmatpush1.msra.mxu0 0.0
    %3970 = vmatprep.subr.mxu0 0.0
    %3971 = vmatpush1.msra.mxu0 0.0
    %3972 = vmatprep.subr.mxu0 0.0
    %3973 = vmatpush1.msra.mxu0 0.0
    %3974 = vmatprep.mubr.f32.mxu0 0.0
    %3975 = vmatmul.mubr.f32.gmra.mrb[0].mxu0 %v3887
    %v3976 = vpop.f32.mrb[0].mxu0
    %v3977 = vadd.f32 0.0, %v3976
    %v3978 = vpop.f32.mrb[0].mxu0
    %3979 = vmatprep.mubr.f32.mxu0 0.0
    %3980 = vmatmul.mubr.f32.gmra.mrb[0].mxu0 %v3890
    %v3981 = vpop.f32.mrb[0].mxu0
    %v3982 = vadd.f32 0.0, %v3981
    %v3983 = vpop.f32.mrb[0].mxu0
    %3984 = vmatprep.mubr.f32.mxu0 0.0
    %3985 = vmatmul.mubr.f32.gmra.mrb[0].mxu0 %v3893
    %v3986 = vpop.f32.mrb[0].mxu0
    %v3987 = vadd.f32 0.0, %v3986
    %v3988 = vpop.f32.mrb[0].mxu0
    %3989 = vmatprep.mubr.f32.mxu0 0.0
    %3990 = vmatmul.mubr.f32.gmra.mrb[0].mxu0 %v3896
    %v3991 = vpop.f32.mrb[0].mxu0
    %v3992 = vadd.f32 0.0, %v3991
    %v3993 = vpop.f32.mrb[0].mxu0
    %3994 = vmatprep.mubr.f32.mxu0 0.0
    %3995 = vmatmul.mubr.f32.gmra.mrb[0].mxu0 %v3899
    %v3996 = vpop.f32.mrb[0].mxu0
    %v3997 = vadd.f32 0.0, %v3996
    %v3998 = vpop.f32.mrb[0].mxu0
    %3999 = vmatprep.mubr.f32.mxu0 0.0
    %4000 = vmatmul.mubr.f32.gmra.mrb[0].mxu0 %v3902
    %v4001 = vpop.f32.mrb[0].mxu0
    %v4002 = vadd.f32 0.0, %v4001
    %v4003 = vpop.f32.mrb[0].mxu0
    %4004 = vmatprep.mubr.f32.mxu0 0.0
    %4005 = vmatmul.mubr.f32.gmra.mrb[0].mxu0 %v3905
    %v4006 = vpop.f32.mrb[0].mxu0
    %v4007 = vadd.f32 0.0, %v4006
    %v4008 = vpop.f32.mrb[0].mxu0
    %4009 = vmatprep.mubr.f32.mxu0 0.0
    %4010 = vmatmul.mubr.f32.gmra.mrb[0].mxu0 %v3908
    %v4011 = vpop.f32.mrb[0].mxu0
    %v4012 = vadd.f32 0.0, %v4011
    %v4013 = vpop.f32.mrb[0].mxu0
    %4014 = vdwg.mxu0
    %4023 = vrot.lane.b32.xlu0 %v3157, 8
    %v4024 = vpop.permute.xlu0 %4023
    %4025 = vrot.lane.b32.xlu0 %v3162, 8
    %v4026 = vpop.permute.xlu0 %4025
    %4027 = vrot.lane.b32.xlu0 %v3167, 8
    %v4028 = vpop.permute.xlu0 %4027
    %4029 = vrot.lane.b32.xlu0 %v3172, 8
    %v4030 = vpop.permute.xlu0 %4029
    %4031 = vrot.lane.b32.xlu0 %v3177, 8
    %v4032 = vpop.permute.xlu0 %4031
    %4033 = vrot.lane.b32.xlu0 %v3182, 8
    %v4034 = vpop.permute.xlu0 %4033
    %4035 = vrot.lane.b32.xlu0 %v3187, 8
    %v4036 = vpop.permute.xlu0 %4035
    %4037 = vrot.lane.b32.xlu0 %v3192, 8
    %v4038 = vpop.permute.xlu0 %4037
    %4055 = vrot.lane.b32.xlu0 %v3567, 16
    %v4056 = vpop.permute.xlu0 %4055
    %4057 = vrot.lane.b32.xlu0 %v3572, 16
    %v4058 = vpop.permute.xlu0 %4057
    %4059 = vrot.lane.b32.xlu0 %v3577, 16
    %v4060 = vpop.permute.xlu0 %4059
    %4061 = vrot.lane.b32.xlu0 %v3582, 16
    %v4062 = vpop.permute.xlu0 %4061
    %4063 = vrot.lane.b32.xlu0 %v3587, 16
    %v4064 = vpop.permute.xlu0 %4063
    %4065 = vrot.lane.b32.xlu0 %v3592, 16
    %v4066 = vpop.permute.xlu0 %4065
    %4067 = vrot.lane.b32.xlu0 %v3597, 16
    %v4068 = vpop.permute.xlu0 %4067
    %4069 = vrot.lane.b32.xlu0 %v3602, 16
    %v4070 = vpop.permute.xlu0 %4069
    %4087 = vrot.lane.b32.xlu0 %v3977, 24
    %v4088 = vpop.permute.xlu0 %4087
    %4089 = vrot.lane.b32.xlu0 %v3982, 24
    %v4090 = vpop.permute.xlu0 %4089
    %4091 = vrot.lane.b32.xlu0 %v3987, 24
    %v4092 = vpop.permute.xlu0 %4091
    %4093 = vrot.lane.b32.xlu0 %v3992, 24
    %v4094 = vpop.permute.xlu0 %4093
    %4095 = vrot.lane.b32.xlu0 %v3997, 24
    %v4096 = vpop.permute.xlu0 %4095
    %4097 = vrot.lane.b32.xlu0 %v4002, 24
    %v4098 = vpop.permute.xlu0 %4097
    %4099 = vrot.lane.b32.xlu0 %v4007, 24
    %v4100 = vpop.permute.xlu0 %4099
    %4101 = vrot.lane.b32.xlu0 %v4012, 24
    %v4102 = vpop.permute.xlu0 %4101
    %v4111 = vsel %vm522, %v2747, %v4024
    %v4112 = vsel %vm522, %v2752, %v4026
    %v4113 = vsel %vm522, %v2757, %v4028
    %v4114 = vsel %vm522, %v2762, %v4030
    %v4115 = vsel %vm522, %v2767, %v4032
    %v4116 = vsel %vm522, %v2772, %v4034
    %v4117 = vsel %vm522, %v2777, %v4036
    %v4118 = vsel %vm522, %v2782, %v4038
    %v4119 = vsel %vm2236, %v4111, %v4056
    %v4120 = vsel %vm2236, %v4112, %v4058
    %v4121 = vsel %vm2236, %v4113, %v4060
    %v4122 = vsel %vm2236, %v4114, %v4062
    %v4123 = vsel %vm2236, %v4115, %v4064
    %v4124 = vsel %vm2236, %v4116, %v4066
    %v4125 = vsel %vm2236, %v4117, %v4068
    %v4126 = vsel %vm2236, %v4118, %v4070
    %v4127 = vsel %vm2245, %v4119, %v4088
    %v4128 = vsel %vm2245, %v4120, %v4090
    %v4129 = vsel %vm2245, %v4121, %v4092
    %v4130 = vsel %vm2245, %v4122, %v4094
    %v4131 = vsel %vm2245, %v4123, %v4096
    %v4132 = vsel %vm2245, %v4124, %v4098
    %v4133 = vsel %vm2245, %v4125, %v4100
    %v4134 = vsel %vm2245, %v4126, %v4102
    %v4136 = vsel %vm109, %v2246, 0
    %v4139 = vsel %vm109, %v2247, 0
    %v4142 = vsel %vm109, %v2248, 0
    %v4145 = vsel %vm109, %v2249, 0
    %v4148 = vsel %vm109, %v2250, 0
    %v4151 = vsel %vm109, %v2251, 0
    %v4154 = vsel %vm109, %v2252, 0
    %v4157 = vsel %vm109, %v2253, 0
    %v4160 = vsel %vm109, %v4127, 0
    %v4163 = vsel %vm109, %v4128, 0
    %v4166 = vsel %vm109, %v4129, 0
    %v4169 = vsel %vm109, %v4130, 0
    %v4172 = vsel %vm109, %v4131, 0
    %v4175 = vsel %vm109, %v4132, 0
    %v4178 = vsel %vm109, %v4133, 0
    %v4181 = vsel %vm109, %v4134, 0
    %4183 = vmatprep.subr.mxu0 0.0
    %4184 = vmatpush1.msra.mxu0 %v96
    %4185 = vmatprep.subr.mxu0 0.0
    %4186 = vmatpush1.msra.mxu0 %v97
    %4187 = vmatprep.subr.mxu0 0.0
    %4188 = vmatpush1.msra.mxu0 %v98
    %4189 = vmatprep.subr.mxu0 0.0
    %4190 = vmatpush1.msra.mxu0 %v99
    %4191 = vmatprep.subr.mxu0 0.0
    %4192 = vmatpush1.msra.mxu0 0.0
    %4193 = vmatprep.subr.mxu0 0.0
    %4194 = vmatpush1.msra.mxu0 0.0
    %4195 = vmatprep.subr.mxu0 0.0
    %4196 = vmatpush1.msra.mxu0 0.0
    %4197 = vmatprep.subr.mxu0 0.0
    %4198 = vmatpush1.msra.mxu0 0.0
    %4199 = vmatprep.subr.mxu0 0.0
    %4200 = vmatpush1.msra.mxu0 0.0
    %4201 = vmatprep.subr.mxu0 0.0
    %4202 = vmatpush1.msra.mxu0 0.0
    %4203 = vmatprep.subr.mxu0 0.0
    %4204 = vmatpush1.msra.mxu0 0.0
    %4205 = vmatprep.subr.mxu0 0.0
    %4206 = vmatpush1.msra.mxu0 0.0
    %4207 = vmatprep.subr.mxu0 0.0
    %4208 = vmatpush1.msra.mxu0 0.0
    %4209 = vmatprep.subr.mxu0 0.0
    %4210 = vmatpush1.msra.mxu0 0.0
    %4211 = vmatprep.subr.mxu0 0.0
    %4212 = vmatpush1.msra.mxu0 0.0
    %4213 = vmatprep.subr.mxu0 0.0
    %4214 = vmatpush1.msra.mxu0 0.0
    %4215 = vmatprep.subr.mxu0 0.0
    %4216 = vmatpush1.msra.mxu0 0.0
    %4217 = vmatprep.subr.mxu0 0.0
    %4218 = vmatpush1.msra.mxu0 0.0
    %4219 = vmatprep.subr.mxu0 0.0
    %4220 = vmatpush1.msra.mxu0 0.0
    %4221 = vmatprep.subr.mxu0 0.0
    %4222 = vmatpush1.msra.mxu0 0.0
    %4223 = vmatprep.subr.mxu0 0.0
    %4224 = vmatpush1.msra.mxu0 0.0
    %4225 = vmatprep.subr.mxu0 0.0
    %4226 = vmatpush1.msra.mxu0 0.0
    %4227 = vmatprep.subr.mxu0 0.0
    %4228 = vmatpush1.msra.mxu0 0.0
    %4229 = vmatprep.subr.mxu0 0.0
    %4230 = vmatpush1.msra.mxu0 0.0
    %4231 = vmatprep.subr.mxu0 0.0
    %4232 = vmatpush1.msra.mxu0 0.0
    %4233 = vmatprep.subr.mxu0 0.0
    %4234 = vmatpush1.msra.mxu0 0.0
    %4235 = vmatprep.subr.mxu0 0.0
    %4236 = vmatpush1.msra.mxu0 0.0
    %4237 = vmatprep.subr.mxu0 0.0
    %4238 = vmatpush1.msra.mxu0 0.0
    %4239 = vmatprep.subr.mxu0 0.0
    %4240 = vmatpush1.msra.mxu0 0.0
    %4241 = vmatprep.subr.mxu0 0.0
    %4242 = vmatpush1.msra.mxu0 0.0
    %4243 = vmatprep.subr.mxu0 0.0
    %4244 = vmatpush1.msra.mxu0 0.0
    %4245 = vmatprep.subr.mxu0 0.0
    %4246 = vmatpush1.msra.mxu0 0.0
    %4247 = vmatprep.mubr.f32.mxu0 0.0
    %4248 = vmatmul.mubr.f32.gmra.mrb[0].mxu0 %v4136
    %v4249 = vpop.f32.mrb[0].mxu0
    %v4250 = vadd.f32 0.0, %v4249
    %v4251 = vpop.f32.mrb[0].mxu0
    %4252 = vmatprep.mubr.f32.mxu0 0.0
    %4253 = vmatmul.mubr.f32.gmra.mrb[0].mxu0 %v4139
    %v4254 = vpop.f32.mrb[0].mxu0
    %v4255 = vadd.f32 0.0, %v4254
    %v4256 = vpop.f32.mrb[0].mxu0
    %4257 = vmatprep.mubr.f32.mxu0 0.0
    %4258 = vmatmul.mubr.f32.gmra.mrb[0].mxu0 %v4142
    %v4259 = vpop.f32.mrb[0].mxu0
    %v4260 = vadd.f32 0.0, %v4259
    %v4261 = vpop.f32.mrb[0].mxu0
    %4262 = vmatprep.mubr.f32.mxu0 0.0
    %4263 = vmatmul.mubr.f32.gmra.mrb[0].mxu0 %v4145
    %v4264 = vpop.f32.mrb[0].mxu0
    %v4265 = vadd.f32 0.0, %v4264
    %v4266 = vpop.f32.mrb[0].mxu0
    %4267 = vmatprep.mubr.f32.mxu0 0.0
    %4268 = vmatmul.mubr.f32.gmra.mrb[0].mxu0 %v4148
    %v4269 = vpop.f32.mrb[0].mxu0
    %v4270 = vadd.f32 0.0, %v4269
    %v4271 = vpop.f32.mrb[0].mxu0
    %4272 = vmatprep.mubr.f32.mxu0 0.0
    %4273 = vmatmul.mubr.f32.gmra.mrb[0].mxu0 %v4151
    %v4274 = vpop.f32.mrb[0].mxu0
    %v4275 = vadd.f32 0.0, %v4274
    %v4276 = vpop.f32.mrb[0].mxu0
    %4277 = vmatprep.mubr.f32.mxu0 0.0
    %4278 = vmatmul.mubr.f32.gmra.mrb[0].mxu0 %v4154
    %v4279 = vpop.f32.mrb[0].mxu0
    %v4280 = vadd.f32 0.0, %v4279
    %v4281 = vpop.f32.mrb[0].mxu0
    %4282 = vmatprep.mubr.f32.mxu0 0.0
    %4283 = vmatmul.mubr.f32.gmra.mrb[0].mxu0 %v4157
    %v4284 = vpop.f32.mrb[0].mxu0
    %v4285 = vadd.f32 0.0, %v4284
    %v4286 = vpop.f32.mrb[0].mxu0
    %4287 = vmatprep.mubr.f32.mxu0 0.0
    %4288 = vmatmul.mubr.f32.gmra.mrb[0].mxu0 %v4160
    %v4289 = vpop.f32.mrb[0].mxu0
    %v4290 = vadd.f32 0.0, %v4289
    %v4291 = vpop.f32.mrb[0].mxu0
    %4292 = vmatprep.mubr.f32.mxu0 0.0
    %4293 = vmatmul.mubr.f32.gmra.mrb[0].mxu0 %v4163
    %v4294 = vpop.f32.mrb[0].mxu0
    %v4295 = vadd.f32 0.0, %v4294
    %v4296 = vpop.f32.mrb[0].mxu0
    %4297 = vmatprep.mubr.f32.mxu0 0.0
    %4298 = vmatmul.mubr.f32.gmra.mrb[0].mxu0 %v4166
    %v4299 = vpop.f32.mrb[0].mxu0
    %v4300 = vadd.f32 0.0, %v4299
    %v4301 = vpop.f32.mrb[0].mxu0
    %4302 = vmatprep.mubr.f32.mxu0 0.0
    %4303 = vmatmul.mubr.f32.gmra.mrb[0].mxu0 %v4169
    %v4304 = vpop.f32.mrb[0].mxu0
    %v4305 = vadd.f32 0.0, %v4304
    %v4306 = vpop.f32.mrb[0].mxu0
    %4307 = vmatprep.mubr.f32.mxu0 0.0
    %4308 = vmatmul.mubr.f32.gmra.mrb[0].mxu0 %v4172
    %v4309 = vpop.f32.mrb[0].mxu0
    %v4310 = vadd.f32 0.0, %v4309
    %v4311 = vpop.f32.mrb[0].mxu0
    %4312 = vmatprep.mubr.f32.mxu0 0.0
    %4313 = vmatmul.mubr.f32.gmra.mrb[0].mxu0 %v4175
    %v4314 = vpop.f32.mrb[0].mxu0
    %v4315 = vadd.f32 0.0, %v4314
    %v4316 = vpop.f32.mrb[0].mxu0
    %4317 = vmatprep.mubr.f32.mxu0 0.0
    %4318 = vmatmul.mubr.f32.gmra.mrb[0].mxu0 %v4178
    %v4319 = vpop.f32.mrb[0].mxu0
    %v4320 = vadd.f32 0.0, %v4319
    %v4321 = vpop.f32.mrb[0].mxu0
    %4322 = vmatprep.mubr.f32.mxu0 0.0
    %4323 = vmatmul.mubr.f32.gmra.mrb[0].mxu0 %v4181
    %v4324 = vpop.f32.mrb[0].mxu0
    %v4325 = vadd.f32 0.0, %v4324
    %v4326 = vpop.f32.mrb[0].mxu0
    %4327 = vdwg.mxu0
    %v4328 = vadd.f32 %v75, %v4250
    %v4329 = vadd.f32 %v76, %v4255
    %v4330 = vadd.f32 %v77, %v4260
    %v4331 = vadd.f32 %v78, %v4265
    %v4332 = vadd.f32 %v79, %v4270
    %v4333 = vadd.f32 %v80, %v4275
    %v4334 = vadd.f32 %v81, %v4280
    %v4335 = vadd.f32 %v82, %v4285
    %v4336 = vadd.f32 %v83, %v4290
    %v4337 = vadd.f32 %v84, %v4295
    %v4338 = vadd.f32 %v85, %v4300
    %v4339 = vadd.f32 %v86, %v4305
    %v4340 = vadd.f32 %v87, %v4310
    %v4341 = vadd.f32 %v88, %v4315
    %v4342 = vadd.f32 %v89, %v4320
    %v4343 = vadd.f32 %v90, %v4325
    %v4345 = vlaneseq
    %v4346 = vshrl.u32 %v4345, 7
    %v4347 = vsub.s32 0, %v4346
    %v4348 = vrot.slane %v100, %v4347
    %v4350 = vadd.f32 %v4328, %v4348
    %v4351 = vadd.f32 %v4329, %v4348
    %v4352 = vadd.f32 %v4330, %v4348
    %v4353 = vadd.f32 %v4331, %v4348
    %v4354 = vadd.f32 %v4332, %v4348
    %v4355 = vadd.f32 %v4333, %v4348
    %v4356 = vadd.f32 %v4334, %v4348
    %v4357 = vadd.f32 %v4335, %v4348
    %v4358 = vadd.f32 %v4336, %v4348
    %v4359 = vadd.f32 %v4337, %v4348
    %v4360 = vadd.f32 %v4338, %v4348
    %v4361 = vadd.f32 %v4339, %v4348
    %v4362 = vadd.f32 %v4340, %v4348
    %v4363 = vadd.f32 %v4341, %v4348
    %v4364 = vadd.f32 %v4342, %v4348
    %v4365 = vadd.f32 %v4343, %v4348
    %v4366 = vsel %vm109, %v4350, 0.0
    %4367 = vadd.xlane.f32.xlu0 %v4366
    %v4368 = vpop.xlane.xlu0 %4367
    %v4369 = vsel %vm109, %v4351, 0.0
    %4370 = vadd.xlane.f32.xlu0 %v4369
    %v4371 = vpop.xlane.xlu0 %4370
    %v4372 = vsel %vm109, %v4352, 0.0
    %4373 = vadd.xlane.f32.xlu0 %v4372
    %v4374 = vpop.xlane.xlu0 %4373
    %v4375 = vsel %vm109, %v4353, 0.0
    %4376 = vadd.xlane.f32.xlu0 %v4375
    %v4377 = vpop.xlane.xlu0 %4376
    %v4378 = vsel %vm109, %v4354, 0.0
    %4379 = vadd.xlane.f32.xlu0 %v4378
    %v4380 = vpop.xlane.xlu0 %4379
    %v4381 = vsel %vm109, %v4355, 0.0
    %4382 = vadd.xlane.f32.xlu0 %v4381
    %v4383 = vpop.xlane.xlu0 %4382
    %v4384 = vsel %vm109, %v4356, 0.0
    %4385 = vadd.xlane.f32.xlu0 %v4384
    %v4386 = vpop.xlane.xlu0 %4385
    %v4387 = vsel %vm109, %v4357, 0.0
    %4388 = vadd.xlane.f32.xlu0 %v4387
    %v4389 = vpop.xlane.xlu0 %4388
    %v4390 = vsel %vm109, %v4358, 0.0
    %4391 = vadd.xlane.f32.xlu0 %v4390
    %v4392 = vpop.xlane.xlu0 %4391
    %v4393 = vsel %vm109, %v4359, 0.0
    %4394 = vadd.xlane.f32.xlu0 %v4393
    %v4395 = vpop.xlane.xlu0 %4394
    %v4396 = vsel %vm109, %v4360, 0.0
    %4397 = vadd.xlane.f32.xlu0 %v4396
    %v4398 = vpop.xlane.xlu0 %4397
    %v4399 = vsel %vm109, %v4361, 0.0
    %4400 = vadd.xlane.f32.xlu0 %v4399
    %v4401 = vpop.xlane.xlu0 %4400
    %v4402 = vsel %vm109, %v4362, 0.0
    %4403 = vadd.xlane.f32.xlu0 %v4402
    %v4404 = vpop.xlane.xlu0 %4403
    %v4405 = vsel %vm109, %v4363, 0.0
    %4406 = vadd.xlane.f32.xlu0 %v4405
    %v4407 = vpop.xlane.xlu0 %4406
    %v4408 = vsel %vm109, %v4364, 0.0
    %4409 = vadd.xlane.f32.xlu0 %v4408
    %v4410 = vpop.xlane.xlu0 %4409
    %v4411 = vsel %vm109, %v4365, 0.0
    %4412 = vadd.xlane.f32.xlu0 %v4411
    %v4413 = vpop.xlane.xlu0 %4412
    %v4414 = vmul.f32 %v4368, %v158
    %v4415 = vmul.f32 %v4371, %v158
    %v4416 = vmul.f32 %v4374, %v158
    %v4417 = vmul.f32 %v4377, %v158
    %v4418 = vmul.f32 %v4380, %v158
    %v4419 = vmul.f32 %v4383, %v158
    %v4420 = vmul.f32 %v4386, %v158
    %v4421 = vmul.f32 %v4389, %v158
    %v4422 = vmul.f32 %v4392, %v158
    %v4423 = vmul.f32 %v4395, %v158
    %v4424 = vmul.f32 %v4398, %v158
    %v4425 = vmul.f32 %v4401, %v158
    %v4426 = vmul.f32 %v4404, %v158
    %v4427 = vmul.f32 %v4407, %v158
    %v4428 = vmul.f32 %v4410, %v158
    %v4429 = vmul.f32 %v4413, %v158
    %v4430 = vsub.f32 %v4350, %v4414
    %v4431 = vsub.f32 %v4351, %v4415
    %v4432 = vsub.f32 %v4352, %v4416
    %v4433 = vsub.f32 %v4353, %v4417
    %v4434 = vsub.f32 %v4354, %v4418
    %v4435 = vsub.f32 %v4355, %v4419
    %v4436 = vsub.f32 %v4356, %v4420
    %v4437 = vsub.f32 %v4357, %v4421
    %v4438 = vsub.f32 %v4358, %v4422
    %v4439 = vsub.f32 %v4359, %v4423
    %v4440 = vsub.f32 %v4360, %v4424
    %v4441 = vsub.f32 %v4361, %v4425
    %v4442 = vsub.f32 %v4362, %v4426
    %v4443 = vsub.f32 %v4363, %v4427
    %v4444 = vsub.f32 %v4364, %v4428
    %v4445 = vsub.f32 %v4365, %v4429
    %v4446 = vmul.f32 %v4430, %v4430
    %v4447 = vmul.f32 %v4431, %v4431
    %v4448 = vmul.f32 %v4432, %v4432
    %v4449 = vmul.f32 %v4433, %v4433
    %v4450 = vmul.f32 %v4434, %v4434
    %v4451 = vmul.f32 %v4435, %v4435
    %v4452 = vmul.f32 %v4436, %v4436
    %v4453 = vmul.f32 %v4437, %v4437
    %v4454 = vmul.f32 %v4438, %v4438
    %v4455 = vmul.f32 %v4439, %v4439
    %v4456 = vmul.f32 %v4440, %v4440
    %v4457 = vmul.f32 %v4441, %v4441
    %v4458 = vmul.f32 %v4442, %v4442
    %v4459 = vmul.f32 %v4443, %v4443
    %v4460 = vmul.f32 %v4444, %v4444
    %v4461 = vmul.f32 %v4445, %v4445
    %v4462 = vsel %vm109, %v4446, 0.0
    %4463 = vadd.xlane.f32.xlu0 %v4462
    %v4464 = vpop.xlane.xlu0 %4463
    %v4465 = vsel %vm109, %v4447, 0.0
    %4466 = vadd.xlane.f32.xlu0 %v4465
    %v4467 = vpop.xlane.xlu0 %4466
    %v4468 = vsel %vm109, %v4448, 0.0
    %4469 = vadd.xlane.f32.xlu0 %v4468
    %v4470 = vpop.xlane.xlu0 %4469
    %v4471 = vsel %vm109, %v4449, 0.0
    %4472 = vadd.xlane.f32.xlu0 %v4471
    %v4473 = vpop.xlane.xlu0 %4472
    %v4474 = vsel %vm109, %v4450, 0.0
    %4475 = vadd.xlane.f32.xlu0 %v4474
    %v4476 = vpop.xlane.xlu0 %4475
    %v4477 = vsel %vm109, %v4451, 0.0
    %4478 = vadd.xlane.f32.xlu0 %v4477
    %v4479 = vpop.xlane.xlu0 %4478
    %v4480 = vsel %vm109, %v4452, 0.0
    %4481 = vadd.xlane.f32.xlu0 %v4480
    %v4482 = vpop.xlane.xlu0 %4481
    %v4483 = vsel %vm109, %v4453, 0.0
    %4484 = vadd.xlane.f32.xlu0 %v4483
    %v4485 = vpop.xlane.xlu0 %4484
    %v4486 = vsel %vm109, %v4454, 0.0
    %4487 = vadd.xlane.f32.xlu0 %v4486
    %v4488 = vpop.xlane.xlu0 %4487
    %v4489 = vsel %vm109, %v4455, 0.0
    %4490 = vadd.xlane.f32.xlu0 %v4489
    %v4491 = vpop.xlane.xlu0 %4490
    %v4492 = vsel %vm109, %v4456, 0.0
    %4493 = vadd.xlane.f32.xlu0 %v4492
    %v4494 = vpop.xlane.xlu0 %4493
    %v4495 = vsel %vm109, %v4457, 0.0
    %4496 = vadd.xlane.f32.xlu0 %v4495
    %v4497 = vpop.xlane.xlu0 %4496
    %v4498 = vsel %vm109, %v4458, 0.0
    %4499 = vadd.xlane.f32.xlu0 %v4498
    %v4500 = vpop.xlane.xlu0 %4499
    %v4501 = vsel %vm109, %v4459, 0.0
    %4502 = vadd.xlane.f32.xlu0 %v4501
    %v4503 = vpop.xlane.xlu0 %4502
    %v4504 = vsel %vm109, %v4460, 0.0
    %4505 = vadd.xlane.f32.xlu0 %v4504
    %v4506 = vpop.xlane.xlu0 %4505
    %v4507 = vsel %vm109, %v4461, 0.0
    %4508 = vadd.xlane.f32.xlu0 %v4507
    %v4509 = vpop.xlane.xlu0 %4508
    %v4510 = vmul.f32 %v4464, %v158
    %v4511 = vmul.f32 %v4467, %v158
    %v4512 = vmul.f32 %v4470, %v158
    %v4513 = vmul.f32 %v4473, %v158
    %v4514 = vmul.f32 %v4476, %v158
    %v4515 = vmul.f32 %v4479, %v158
    %v4516 = vmul.f32 %v4482, %v158
    %v4517 = vmul.f32 %v4485, %v158
    %v4518 = vmul.f32 %v4488, %v158
    %v4519 = vmul.f32 %v4491, %v158
    %v4520 = vmul.f32 %v4494, %v158
    %v4521 = vmul.f32 %v4497, %v158
    %v4522 = vmul.f32 %v4500, %v158
    %v4523 = vmul.f32 %v4503, %v158
    %v4524 = vmul.f32 %v4506, %v158
    %v4525 = vmul.f32 %v4509, %v158
    %v4526 = vadd.f32 %v4510, 1e-05
    %v4527 = vadd.f32 %v4511, 1e-05
    %v4528 = vadd.f32 %v4512, 1e-05
    %v4529 = vadd.f32 %v4513, 1e-05
    %v4530 = vadd.f32 %v4514, 1e-05
    %v4531 = vadd.f32 %v4515, 1e-05
    %v4532 = vadd.f32 %v4516, 1e-05
    %v4533 = vadd.f32 %v4517, 1e-05
    %v4534 = vadd.f32 %v4518, 1e-05
    %v4535 = vadd.f32 %v4519, 1e-05
    %v4536 = vadd.f32 %v4520, 1e-05
    %v4537 = vadd.f32 %v4521, 1e-05
    %v4538 = vadd.f32 %v4522, 1e-05
    %v4539 = vadd.f32 %v4523, 1e-05
    %v4540 = vadd.f32 %v4524, 1e-05
    %v4541 = vadd.f32 %v4525, 1e-05
    %v4542 = vrsqrt.pop %v4526
    %v4543 = vrsqrt.pop %v4527
    %v4544 = vrsqrt.pop %v4528
    %v4545 = vrsqrt.pop %v4529
    %v4546 = vrsqrt.pop %v4530
    %v4547 = vrsqrt.pop %v4531
    %v4548 = vrsqrt.pop %v4532
    %v4549 = vrsqrt.pop %v4533
    %v4550 = vrsqrt.pop %v4534
    %v4551 = vrsqrt.pop %v4535
    %v4552 = vrsqrt.pop %v4536
    %v4553 = vrsqrt.pop %v4537
    %v4554 = vrsqrt.pop %v4538
    %v4555 = vrsqrt.pop %v4539
    %v4556 = vrsqrt.pop %v4540
    %v4557 = vrsqrt.pop %v4541
    %v4558 = vmul.f32 %v4430, %v4542
    %v4559 = vmul.f32 %v4431, %v4543
    %v4560 = vmul.f32 %v4432, %v4544
    %v4561 = vmul.f32 %v4433, %v4545
    %v4562 = vmul.f32 %v4434, %v4546
    %v4563 = vmul.f32 %v4435, %v4547
    %v4564 = vmul.f32 %v4436, %v4548
    %v4565 = vmul.f32 %v4437, %v4549
    %v4566 = vmul.f32 %v4438, %v4550
    %v4567 = vmul.f32 %v4439, %v4551
    %v4568 = vmul.f32 %v4440, %v4552
    %v4569 = vmul.f32 %v4441, %v4553
    %v4570 = vmul.f32 %v4442, %v4554
    %v4571 = vmul.f32 %v4443, %v4555
    %v4572 = vmul.f32 %v4444, %v4556
    %v4573 = vmul.f32 %v4445, %v4557
    %v4574 = vmul.f32 %v4558, %v323
    %v4575 = vmul.f32 %v4559, %v323
    %v4576 = vmul.f32 %v4560, %v323
    %v4577 = vmul.f32 %v4561, %v323
    %v4578 = vmul.f32 %v4562, %v323
    %v4579 = vmul.f32 %v4563, %v323
    %v4580 = vmul.f32 %v4564, %v323
    %v4581 = vmul.f32 %v4565, %v323
    %v4582 = vmul.f32 %v4566, %v323
    %v4583 = vmul.f32 %v4567, %v323
    %v4584 = vmul.f32 %v4568, %v323
    %v4585 = vmul.f32 %v4569, %v323
    %v4586 = vmul.f32 %v4570, %v323
    %v4587 = vmul.f32 %v4571, %v323
    %v4588 = vmul.f32 %v4572, %v323
    %v4589 = vmul.f32 %v4573, %v323
    %v4590 = vadd.f32 %v4574, %v345
    %v4591 = vadd.f32 %v4575, %v345
    %v4592 = vadd.f32 %v4576, %v345
    %v4593 = vadd.f32 %v4577, %v345
    %v4594 = vadd.f32 %v4578, %v345
    %v4595 = vadd.f32 %v4579, %v345
    %v4596 = vadd.f32 %v4580, %v345
    %v4597 = vadd.f32 %v4581, %v345
    %v4598 = vadd.f32 %v4582, %v345
    %v4599 = vadd.f32 %v4583, %v345
    %v4600 = vadd.f32 %v4584, %v345
    %v4601 = vadd.f32 %v4585, %v345
    %v4602 = vadd.f32 %v4586, %v345
    %v4603 = vadd.f32 %v4587, %v345
    %v4604 = vadd.f32 %v4588, %v345
    %v4605 = vadd.f32 %v4589, %v345
    %v4606 = vld [vmem:[#allocation2] sm:$0xff]
    %v4607 = vld [vmem:[#allocation2 + $0x8] sm:$0xff]
    %v4608 = vld [vmem:[#allocation2 + $0x10] sm:$0xff]
    %v4609 = vld [vmem:[#allocation2 + $0x18] sm:$0xff]
    %v4610 = vld [vmem:[%s15] sm:$0x1]
    %v4612 = vlaneseq
    %v4613 = vshrl.u32 %v4612, 7
    %v4614 = vsub.s32 0, %v4613
    %v4615 = vrot.slane %v4610, %v4614
    %v4618 = vsel %vm109, %v4590, 0
    %v4621 = vsel %vm109, %v4591, 0
    %v4624 = vsel %vm109, %v4592, 0
    %v4627 = vsel %vm109, %v4593, 0
    %v4630 = vsel %vm109, %v4594, 0
    %v4633 = vsel %vm109, %v4595, 0
    %v4636 = vsel %vm109, %v4596, 0
    %v4639 = vsel %vm109, %v4597, 0
    %v4642 = vsel %vm109, %v4598, 0
    %v4645 = vsel %vm109, %v4599, 0
    %v4648 = vsel %vm109, %v4600, 0
    %v4651 = vsel %vm109, %v4601, 0
    %v4654 = vsel %vm109, %v4602, 0
    %v4657 = vsel %vm109, %v4603, 0
    %v4660 = vsel %vm109, %v4604, 0
    %v4663 = vsel %vm109, %v4605, 0
    %4665 = vmatprep.subr.mxu0 0.0
    %4666 = vmatpush1.msra.mxu0 %v4606
    %4667 = vmatprep.subr.mxu0 0.0
    %4668 = vmatpush1.msra.mxu0 %v4607
    %4669 = vmatprep.subr.mxu0 0.0
    %4670 = vmatpush1.msra.mxu0 %v4608
    %4671 = vmatprep.subr.mxu0 0.0
    %4672 = vmatpush1.msra.mxu0 %v4609
    %4673 = vmatprep.subr.mxu0 0.0
    %4674 = vmatpush1.msra.mxu0 0.0
    %4675 = vmatprep.subr.mxu0 0.0
    %4676 = vmatpush1.msra.mxu0 0.0
    %4677 = vmatprep.subr.mxu0 0.0
    %4678 = vmatpush1.msra.mxu0 0.0
    %4679 = vmatprep.subr.mxu0 0.0
    %4680 = vmatpush1.msra.mxu0 0.0
    %4681 = vmatprep.subr.mxu0 0.0
    %4682 = vmatpush1.msra.mxu0 0.0
    %4683 = vmatprep.subr.mxu0 0.0
    %4684 = vmatpush1.msra.mxu0 0.0
    %4685 = vmatprep.subr.mxu0 0.0
    %4686 = vmatpush1.msra.mxu0 0.0
    %4687 = vmatprep.subr.mxu0 0.0
    %4688 = vmatpush1.msra.mxu0 0.0
    %4689 = vmatprep.subr.mxu0 0.0
    %4690 = vmatpush1.msra.mxu0 0.0
    %4691 = vmatprep.subr.mxu0 0.0
    %4692 = vmatpush1.msra.mxu0 0.0
    %4693 = vmatprep.subr.mxu0 0.0
    %4694 = vmatpush1.msra.mxu0 0.0
    %4695 = vmatprep.subr.mxu0 0.0
    %4696 = vmatpush1.msra.mxu0 0.0
    %4697 = vmatprep.subr.mxu0 0.0
    %4698 = vmatpush1.msra.mxu0 0.0
    %4699 = vmatprep.subr.mxu0 0.0
    %4700 = vmatpush1.msra.mxu0 0.0
    %4701 = vmatprep.subr.mxu0 0.0
    %4702 = vmatpush1.msra.mxu0 0.0
    %4703 = vmatprep.subr.mxu0 0.0
    %4704 = vmatpush1.msra.mxu0 0.0
    %4705 = vmatprep.subr.mxu0 0.0
    %4706 = vmatpush1.msra.mxu0 0.0
    %4707 = vmatprep.subr.mxu0 0.0
    %4708 = vmatpush1.msra.mxu0 0.0
    %4709 = vmatprep.subr.mxu0 0.0
    %4710 = vmatpush1.msra.mxu0 0.0
    %4711 = vmatprep.subr.mxu0 0.0
    %4712 = vmatpush1.msra.mxu0 0.0
    %4713 = vmatprep.subr.mxu0 0.0
    %4714 = vmatpush1.msra.mxu0 0.0
    %4715 = vmatprep.subr.mxu0 0.0
    %4716 = vmatpush1.msra.mxu0 0.0
    %4717 = vmatprep.subr.mxu0 0.0
    %4718 = vmatpush1.msra.mxu0 0.0
    %4719 = vmatprep.subr.mxu0 0.0
    %4720 = vmatpush1.msra.mxu0 0.0
    %4721 = vmatprep.subr.mxu0 0.0
    %4722 = vmatpush1.msra.mxu0 0.0
    %4723 = vmatprep.subr.mxu0 0.0
    %4724 = vmatpush1.msra.mxu0 0.0
    %4725 = vmatprep.subr.mxu0 0.0
    %4726 = vmatpush1.msra.mxu0 0.0
    %4727 = vmatprep.subr.mxu0 0.0
    %4728 = vmatpush1.msra.mxu0 0.0
    %4729 = vmatprep.mubr.f32.mxu0 0.0
    %4730 = vmatmul.mubr.f32.gmra.mrb[0].mxu0 %v4618
    %v4731 = vpop.f32.mrb[0].mxu0
    %v4732 = vadd.f32 %v4615, %v4731
    %v4733 = vpop.f32.mrb[0].mxu0
    %4734 = vmatprep.mubr.f32.mxu0 0.0
    %4735 = vmatmul.mubr.f32.gmra.mrb[0].mxu0 %v4621
    %v4736 = vpop.f32.mrb[0].mxu0
    %v4737 = vadd.f32 %v4615, %v4736
    %v4738 = vpop.f32.mrb[0].mxu0
    %4739 = vmatprep.mubr.f32.mxu0 0.0
    %4740 = vmatmul.mubr.f32.gmra.mrb[0].mxu0 %v4624
    %v4741 = vpop.f32.mrb[0].mxu0
    %v4742 = vadd.f32 %v4615, %v4741
    %v4743 = vpop.f32.mrb[0].mxu0
    %4744 = vmatprep.mubr.f32.mxu0 0.0
    %4745 = vmatmul.mubr.f32.gmra.mrb[0].mxu0 %v4627
    %v4746 = vpop.f32.mrb[0].mxu0
    %v4747 = vadd.f32 %v4615, %v4746
    %v4748 = vpop.f32.mrb[0].mxu0
    %4749 = vmatprep.mubr.f32.mxu0 0.0
    %4750 = vmatmul.mubr.f32.gmra.mrb[0].mxu0 %v4630
    %v4751 = vpop.f32.mrb[0].mxu0
    %v4752 = vadd.f32 %v4615, %v4751
    %v4753 = vpop.f32.mrb[0].mxu0
    %4754 = vmatprep.mubr.f32.mxu0 0.0
    %4755 = vmatmul.mubr.f32.gmra.mrb[0].mxu0 %v4633
    %v4756 = vpop.f32.mrb[0].mxu0
    %v4757 = vadd.f32 %v4615, %v4756
    %v4758 = vpop.f32.mrb[0].mxu0
    %4759 = vmatprep.mubr.f32.mxu0 0.0
    %4760 = vmatmul.mubr.f32.gmra.mrb[0].mxu0 %v4636
    %v4761 = vpop.f32.mrb[0].mxu0
    %v4762 = vadd.f32 %v4615, %v4761
    %v4763 = vpop.f32.mrb[0].mxu0
    %4764 = vmatprep.mubr.f32.mxu0 0.0
    %4765 = vmatmul.mubr.f32.gmra.mrb[0].mxu0 %v4639
    %v4766 = vpop.f32.mrb[0].mxu0
    %v4767 = vadd.f32 %v4615, %v4766
    %v4768 = vpop.f32.mrb[0].mxu0
    %4769 = vmatprep.mubr.f32.mxu0 0.0
    %4770 = vmatmul.mubr.f32.gmra.mrb[0].mxu0 %v4642
    %v4771 = vpop.f32.mrb[0].mxu0
    %v4772 = vadd.f32 %v4615, %v4771
    %v4773 = vpop.f32.mrb[0].mxu0
    %4774 = vmatprep.mubr.f32.mxu0 0.0
    %4775 = vmatmul.mubr.f32.gmra.mrb[0].mxu0 %v4645
    %v4776 = vpop.f32.mrb[0].mxu0
    %v4777 = vadd.f32 %v4615, %v4776
    %v4778 = vpop.f32.mrb[0].mxu0
    %4779 = vmatprep.mubr.f32.mxu0 0.0
    %4780 = vmatmul.mubr.f32.gmra.mrb[0].mxu0 %v4648
    %v4781 = vpop.f32.mrb[0].mxu0
    %v4782 = vadd.f32 %v4615, %v4781
    %v4783 = vpop.f32.mrb[0].mxu0
    %4784 = vmatprep.mubr.f32.mxu0 0.0
    %4785 = vmatmul.mubr.f32.gmra.mrb[0].mxu0 %v4651
    %v4786 = vpop.f32.mrb[0].mxu0
    %v4787 = vadd.f32 %v4615, %v4786
    %v4788 = vpop.f32.mrb[0].mxu0
    %4789 = vmatprep.mubr.f32.mxu0 0.0
    %4790 = vmatmul.mubr.f32.gmra.mrb[0].mxu0 %v4654
    %v4791 = vpop.f32.mrb[0].mxu0
    %v4792 = vadd.f32 %v4615, %v4791
    %v4793 = vpop.f32.mrb[0].mxu0
    %4794 = vmatprep.mubr.f32.mxu0 0.0
    %4795 = vmatmul.mubr.f32.gmra.mrb[0].mxu0 %v4657
    %v4796 = vpop.f32.mrb[0].mxu0
    %v4797 = vadd.f32 %v4615, %v4796
    %v4798 = vpop.f32.mrb[0].mxu0
    %4799 = vmatprep.mubr.f32.mxu0 0.0
    %4800 = vmatmul.mubr.f32.gmra.mrb[0].mxu0 %v4660
    %v4801 = vpop.f32.mrb[0].mxu0
    %v4802 = vadd.f32 %v4615, %v4801
    %v4803 = vpop.f32.mrb[0].mxu0
    %4804 = vmatprep.mubr.f32.mxu0 0.0
    %4805 = vmatmul.mubr.f32.gmra.mrb[0].mxu0 %v4663
    %v4806 = vpop.f32.mrb[0].mxu0
    %v4807 = vadd.f32 %v4615, %v4806
    %v4808 = vpop.f32.mrb[0].mxu0
    %4809 = vdwg.mxu0
    %v4810 = vmul.f32 %v4732, 0.5
    %v4811 = vmul.f32 %v4737, 0.5
    %v4812 = vmul.f32 %v4742, 0.5
    %v4813 = vmul.f32 %v4747, 0.5
    %v4814 = vmul.f32 %v4752, 0.5
    %v4815 = vmul.f32 %v4757, 0.5
    %v4816 = vmul.f32 %v4762, 0.5
    %v4817 = vmul.f32 %v4767, 0.5
    %v4818 = vmul.f32 %v4772, 0.5
    %v4819 = vmul.f32 %v4777, 0.5
    %v4820 = vmul.f32 %v4782, 0.5
    %v4821 = vmul.f32 %v4787, 0.5
    %v4822 = vmul.f32 %v4792, 0.5
    %v4823 = vmul.f32 %v4797, 0.5
    %v4824 = vmul.f32 %v4802, 0.5
    %v4825 = vmul.f32 %v4807, 0.5
    %v4826 = vmul.f32 %v4732, 0.70710677
    %v4827 = vmul.f32 %v4737, 0.70710677
    %v4828 = vmul.f32 %v4742, 0.70710677
    %v4829 = vmul.f32 %v4747, 0.70710677
    %v4830 = vmul.f32 %v4752, 0.70710677
    %v4831 = vmul.f32 %v4757, 0.70710677
    %v4832 = vmul.f32 %v4762, 0.70710677
    %v4833 = vmul.f32 %v4767, 0.70710677
    %v4834 = vmul.f32 %v4772, 0.70710677
    %v4835 = vmul.f32 %v4777, 0.70710677
    %v4836 = vmul.f32 %v4782, 0.70710677
    %v4837 = vmul.f32 %v4787, 0.70710677
    %v4838 = vmul.f32 %v4792, 0.70710677
    %v4839 = vmul.f32 %v4797, 0.70710677
    %v4840 = vmul.f32 %v4802, 0.70710677
    %v4841 = vmul.f32 %v4807, 0.70710677
    %v4842 = verf.f32.pop %v4826
    %v4843 = verf.f32.pop %v4827
    %v4844 = verf.f32.pop %v4828
    %v4845 = verf.f32.pop %v4829
    %v4846 = verf.f32.pop %v4830
    %v4847 = verf.f32.pop %v4831
    %v4848 = verf.f32.pop %v4832
    %v4849 = verf.f32.pop %v4833
    %v4850 = verf.f32.pop %v4834
    %v4851 = verf.f32.pop %v4835
    %v4852 = verf.f32.pop %v4836
    %v4853 = verf.f32.pop %v4837
    %v4854 = verf.f32.pop %v4838
    %v4855 = verf.f32.pop %v4839
    %v4856 = verf.f32.pop %v4840
    %v4857 = verf.f32.pop %v4841
    %v4858 = vadd.f32 %v4842, 1.0
    %v4859 = vadd.f32 %v4843, 1.0
    %v4860 = vadd.f32 %v4844, 1.0
    %v4861 = vadd.f32 %v4845, 1.0
    %v4862 = vadd.f32 %v4846, 1.0
    %v4863 = vadd.f32 %v4847, 1.0
    %v4864 = vadd.f32 %v4848, 1.0
    %v4865 = vadd.f32 %v4849, 1.0
    %v4866 = vadd.f32 %v4850, 1.0
    %v4867 = vadd.f32 %v4851, 1.0
    %v4868 = vadd.f32 %v4852, 1.0
    %v4869 = vadd.f32 %v4853, 1.0
    %v4870 = vadd.f32 %v4854, 1.0
    %v4871 = vadd.f32 %v4855, 1.0
    %v4872 = vadd.f32 %v4856, 1.0
    %v4873 = vadd.f32 %v4857, 1.0
    %v4874 = vmul.f32 %v4810, %v4858
    %v4875 = vmul.f32 %v4811, %v4859
    %v4876 = vmul.f32 %v4812, %v4860
    %v4877 = vmul.f32 %v4813, %v4861
    %v4878 = vmul.f32 %v4814, %v4862
    %v4879 = vmul.f32 %v4815, %v4863
    %v4880 = vmul.f32 %v4816, %v4864
    %v4881 = vmul.f32 %v4817, %v4865
    %v4882 = vmul.f32 %v4818, %v4866
    %v4883 = vmul.f32 %v4819, %v4867
    %v4884 = vmul.f32 %v4820, %v4868
    %v4885 = vmul.f32 %v4821, %v4869
    %v4886 = vmul.f32 %v4822, %v4870
    %v4887 = vmul.f32 %v4823, %v4871
    %v4888 = vmul.f32 %v4824, %v4872
    %v4889 = vmul.f32 %v4825, %v4873
    %v4890 = vld [vmem:[%s16] sm:$0xff]
    %v4891 = vld [vmem:[%s16 + $0x8] sm:$0xff]
    %v4892 = vld [vmem:[%s16 + $0x10] sm:$0xff]
    %v4893 = vld [vmem:[%s16 + $0x18] sm:$0xff]
    %v4894 = vld [vmem:[%s16 + $0x20] sm:$0xff]
    %v4895 = vld [vmem:[%s16 + $0x28] sm:$0xff]
    %v4896 = vld [vmem:[%s16 + $0x30] sm:$0xff]
    %v4897 = vld [vmem:[%s16 + $0x38] sm:$0xff]
    %v4898 = vld [vmem:[%s16 + $0x40] sm:$0xff]
    %v4899 = vld [vmem:[%s16 + $0x48] sm:$0xff]
    %v4900 = vld [vmem:[%s16 + $0x50] sm:$0xff]
    %v4901 = vld [vmem:[%s16 + $0x58] sm:$0xff]
    %v4902 = vld [vmem:[%s16 + $0x60] sm:$0xff]
    %v4903 = vld [vmem:[%s16 + $0x68] sm:$0xff]
    %v4904 = vld [vmem:[%s16 + $0x70] sm:$0xff]
    %v4905 = vld [vmem:[%s16 + $0x78] sm:$0xff]
    %4906 = vmatprep.subr.mxu0 0.0
    %4907 = vmatpush1.msra.mxu0 %v4890
    %4908 = vmatprep.subr.mxu0 0.0
    %4909 = vmatpush1.msra.mxu0 %v4891
    %4910 = vmatprep.subr.mxu0 0.0
    %4911 = vmatpush1.msra.mxu0 %v4892
    %4912 = vmatprep.subr.mxu0 0.0
    %4913 = vmatpush1.msra.mxu0 %v4893
    %4914 = vmatprep.subr.mxu0 0.0
    %4915 = vmatpush1.msra.mxu0 %v4894
    %4916 = vmatprep.subr.mxu0 0.0
    %4917 = vmatpush1.msra.mxu0 %v4895
    %4918 = vmatprep.subr.mxu0 0.0
    %4919 = vmatpush1.msra.mxu0 %v4896
    %4920 = vmatprep.subr.mxu0 0.0
    %4921 = vmatpush1.msra.mxu0 %v4897
    %4922 = vmatprep.subr.mxu0 0.0
    %4923 = vmatpush1.msra.mxu0 %v4898
    %4924 = vmatprep.subr.mxu0 0.0
    %4925 = vmatpush1.msra.mxu0 %v4899
    %4926 = vmatprep.subr.mxu0 0.0
    %4927 = vmatpush1.msra.mxu0 %v4900
    %4928 = vmatprep.subr.mxu0 0.0
    %4929 = vmatpush1.msra.mxu0 %v4901
    %4930 = vmatprep.subr.mxu0 0.0
    %4931 = vmatpush1.msra.mxu0 %v4902
    %4932 = vmatprep.subr.mxu0 0.0
    %4933 = vmatpush1.msra.mxu0 %v4903
    %4934 = vmatprep.subr.mxu0 0.0
    %4935 = vmatpush1.msra.mxu0 %v4904
    %4936 = vmatprep.subr.mxu0 0.0
    %4937 = vmatpush1.msra.mxu0 %v4905
    %4938 = vmatprep.subr.mxu0 0.0
    %4939 = vmatpush1.msra.mxu0 0.0
    %4940 = vmatprep.subr.mxu0 0.0
    %4941 = vmatpush1.msra.mxu0 0.0
    %4942 = vmatprep.subr.mxu0 0.0
    %4943 = vmatpush1.msra.mxu0 0.0
    %4944 = vmatprep.subr.mxu0 0.0
    %4945 = vmatpush1.msra.mxu0 0.0
    %4946 = vmatprep.subr.mxu0 0.0
    %4947 = vmatpush1.msra.mxu0 0.0
    %4948 = vmatprep.subr.mxu0 0.0
    %4949 = vmatpush1.msra.mxu0 0.0
    %4950 = vmatprep.subr.mxu0 0.0
    %4951 = vmatpush1.msra.mxu0 0.0
    %4952 = vmatprep.subr.mxu0 0.0
    %4953 = vmatpush1.msra.mxu0 0.0
    %4954 = vmatprep.subr.mxu0 0.0
    %4955 = vmatpush1.msra.mxu0 0.0
    %4956 = vmatprep.subr.mxu0 0.0
    %4957 = vmatpush1.msra.mxu0 0.0
    %4958 = vmatprep.subr.mxu0 0.0
    %4959 = vmatpush1.msra.mxu0 0.0
    %4960 = vmatprep.subr.mxu0 0.0
    %4961 = vmatpush1.msra.mxu0 0.0
    %4962 = vmatprep.subr.mxu0 0.0
    %4963 = vmatpush1.msra.mxu0 0.0
    %4964 = vmatprep.subr.mxu0 0.0
    %4965 = vmatpush1.msra.mxu0 0.0
    %4966 = vmatprep.subr.mxu0 0.0
    %4967 = vmatpush1.msra.mxu0 0.0
    %4968 = vmatprep.subr.mxu0 0.0
    %4969 = vmatpush1.msra.mxu0 0.0
    %4970 = vmatprep.mubr.f32.mxu0 0.0
    %4971 = vmatmul.mubr.f32.gmra.mrb[0].mxu0 %v4874
    %v4972 = vpop.f32.mrb[0].mxu0
    %v4973 = vadd.f32 0.0, %v4972
    %v4974 = vpop.f32.mrb[0].mxu0
    %4975 = vmatprep.mubr.f32.mxu0 0.0
    %4976 = vmatmul.mubr.f32.gmra.mrb[0].mxu0 %v4875
    %v4977 = vpop.f32.mrb[0].mxu0
    %v4978 = vadd.f32 0.0, %v4977
    %v4979 = vpop.f32.mrb[0].mxu0
    %4980 = vmatprep.mubr.f32.mxu0 0.0
    %4981 = vmatmul.mubr.f32.gmra.mrb[0].mxu0 %v4876
    %v4982 = vpop.f32.mrb[0].mxu0
    %v4983 = vadd.f32 0.0, %v4982
    %v4984 = vpop.f32.mrb[0].mxu0
    %4985 = vmatprep.mubr.f32.mxu0 0.0
    %4986 = vmatmul.mubr.f32.gmra.mrb[0].mxu0 %v4877
    %v4987 = vpop.f32.mrb[0].mxu0
    %v4988 = vadd.f32 0.0, %v4987
    %v4989 = vpop.f32.mrb[0].mxu0
    %4990 = vmatprep.mubr.f32.mxu0 0.0
    %4991 = vmatmul.mubr.f32.gmra.mrb[0].mxu0 %v4878
    %v4992 = vpop.f32.mrb[0].mxu0
    %v4993 = vadd.f32 0.0, %v4992
    %v4994 = vpop.f32.mrb[0].mxu0
    %4995 = vmatprep.mubr.f32.mxu0 0.0
    %4996 = vmatmul.mubr.f32.gmra.mrb[0].mxu0 %v4879
    %v4997 = vpop.f32.mrb[0].mxu0
    %v4998 = vadd.f32 0.0, %v4997
    %v4999 = vpop.f32.mrb[0].mxu0
    %5000 = vmatprep.mubr.f32.mxu0 0.0
    %5001 = vmatmul.mubr.f32.gmra.mrb[0].mxu0 %v4880
    %v5002 = vpop.f32.mrb[0].mxu0
    %v5003 = vadd.f32 0.0, %v5002
    %v5004 = vpop.f32.mrb[0].mxu0
    %5005 = vmatprep.mubr.f32.mxu0 0.0
    %5006 = vmatmul.mubr.f32.gmra.mrb[0].mxu0 %v4881
    %v5007 = vpop.f32.mrb[0].mxu0
    %v5008 = vadd.f32 0.0, %v5007
    %v5009 = vpop.f32.mrb[0].mxu0
    %5010 = vmatprep.mubr.f32.mxu0 0.0
    %5011 = vmatmul.mubr.f32.gmra.mrb[0].mxu0 %v4882
    %v5012 = vpop.f32.mrb[0].mxu0
    %v5013 = vadd.f32 0.0, %v5012
    %v5014 = vpop.f32.mrb[0].mxu0
    %5015 = vmatprep.mubr.f32.mxu0 0.0
    %5016 = vmatmul.mubr.f32.gmra.mrb[0].mxu0 %v4883
    %v5017 = vpop.f32.mrb[0].mxu0
    %v5018 = vadd.f32 0.0, %v5017
    %v5019 = vpop.f32.mrb[0].mxu0
    %5020 = vmatprep.mubr.f32.mxu0 0.0
    %5021 = vmatmul.mubr.f32.gmra.mrb[0].mxu0 %v4884
    %v5022 = vpop.f32.mrb[0].mxu0
    %v5023 = vadd.f32 0.0, %v5022
    %v5024 = vpop.f32.mrb[0].mxu0
    %5025 = vmatprep.mubr.f32.mxu0 0.0
    %5026 = vmatmul.mubr.f32.gmra.mrb[0].mxu0 %v4885
    %v5027 = vpop.f32.mrb[0].mxu0
    %v5028 = vadd.f32 0.0, %v5027
    %v5029 = vpop.f32.mrb[0].mxu0
    %5030 = vmatprep.mubr.f32.mxu0 0.0
    %5031 = vmatmul.mubr.f32.gmra.mrb[0].mxu0 %v4886
    %v5032 = vpop.f32.mrb[0].mxu0
    %v5033 = vadd.f32 0.0, %v5032
    %v5034 = vpop.f32.mrb[0].mxu0
    %5035 = vmatprep.mubr.f32.mxu0 0.0
    %5036 = vmatmul.mubr.f32.gmra.mrb[0].mxu0 %v4887
    %v5037 = vpop.f32.mrb[0].mxu0
    %v5038 = vadd.f32 0.0, %v5037
    %v5039 = vpop.f32.mrb[0].mxu0
    %5040 = vmatprep.mubr.f32.mxu0 0.0
    %5041 = vmatmul.mubr.f32.gmra.mrb[0].mxu0 %v4888
    %v5042 = vpop.f32.mrb[0].mxu0
    %v5043 = vadd.f32 0.0, %v5042
    %v5044 = vpop.f32.mrb[0].mxu0
    %5045 = vmatprep.mubr.f32.mxu0 0.0
    %5046 = vmatmul.mubr.f32.gmra.mrb[0].mxu0 %v4889
    %v5047 = vpop.f32.mrb[0].mxu0
    %v5048 = vadd.f32 0.0, %v5047
    %v5049 = vpop.f32.mrb[0].mxu0
    %5050 = vdwg.mxu0
    %v5051 = vadd.f32 %v4350, %v4973
    %v5052 = vadd.f32 %v4351, %v4978
    %v5053 = vadd.f32 %v4352, %v4983
    %v5054 = vadd.f32 %v4353, %v4988
    %v5055 = vadd.f32 %v4354, %v4993
    %v5056 = vadd.f32 %v4355, %v4998
    %v5057 = vadd.f32 %v4356, %v5003
    %v5058 = vadd.f32 %v4357, %v5008
    %v5059 = vadd.f32 %v4358, %v5013
    %v5060 = vadd.f32 %v4359, %v5018
    %v5061 = vadd.f32 %v4360, %v5023
    %v5062 = vadd.f32 %v4361, %v5028
    %v5063 = vadd.f32 %v4362, %v5033
    %v5064 = vadd.f32 %v4363, %v5038
    %v5065 = vadd.f32 %v4364, %v5043
    %v5066 = vadd.f32 %v4365, %v5048
    %v5067 = vld [vmem:[%s17] sm:$0x1]
    %v5069 = vlaneseq
    %v5070 = vshrl.u32 %v5069, 7
    %v5071 = vsub.s32 0, %v5070
    %v5072 = vrot.slane %v5067, %v5071
    %v5074 = vadd.f32 %v5051, %v5072
    %v5075 = vadd.f32 %v5052, %v5072
    %v5076 = vadd.f32 %v5053, %v5072
    %v5077 = vadd.f32 %v5054, %v5072
    %v5078 = vadd.f32 %v5055, %v5072
    %v5079 = vadd.f32 %v5056, %v5072
    %v5080 = vadd.f32 %v5057, %v5072
    %v5081 = vadd.f32 %v5058, %v5072
    %v5082 = vadd.f32 %v5059, %v5072
    %v5083 = vadd.f32 %v5060, %v5072
    %v5084 = vadd.f32 %v5061, %v5072
    %v5085 = vadd.f32 %v5062, %v5072
    %v5086 = vadd.f32 %v5063, %v5072
    %v5087 = vadd.f32 %v5064, %v5072
    %v5088 = vadd.f32 %v5065, %v5072
    %v5089 = vadd.f32 %v5066, %v5072
    %v5090 = vld [vmem:[%s8] sm:$0xff]
    %v5091 = vld [vmem:[%s8 + $0x8] sm:$0xff]
    %v5092 = vld [vmem:[%s8 + $0x10] sm:$0xff]
    %v5093 = vld [vmem:[%s8 + $0x18] sm:$0xff]
    %v5094 = vld [vmem:[%s9] sm:$0x1]
    %v5095 = vld [vmem:[%s10] sm:$0xff]
    %v5096 = vld [vmem:[%s10 + $0x8] sm:$0xff]
    %v5097 = vld [vmem:[%s10 + $0x10] sm:$0xff]
    %v5098 = vld [vmem:[%s10 + $0x18] sm:$0xff]
    %v5099 = vld [vmem:[%s11] sm:$0x1]
    %v5100 = vld [vmem:[%s12] sm:$0xff]
    %v5101 = vld [vmem:[%s12 + $0x8] sm:$0xff]
    %v5102 = vld [vmem:[%s12 + $0x10] sm:$0xff]
    %v5103 = vld [vmem:[%s12 + $0x18] sm:$0xff]
    %v5104 = vld [vmem:[%s12 + $0x20] sm:$0xff]
    %v5105 = vld [vmem:[%s12 + $0x28] sm:$0xff]
    %v5106 = vld [vmem:[%s12 + $0x30] sm:$0xff]
    %v5107 = vld [vmem:[%s12 + $0x38] sm:$0xff]
    %v5108 = vsel %vm109, %v5074, 0.0
    %5109 = vadd.xlane.f32.xlu0 %v5108
    %v5110 = vpop.xlane.xlu0 %5109
    %v5111 = vsel %vm109, %v5075, 0.0
    %5112 = vadd.xlane.f32.xlu0 %v5111
    %v5113 = vpop.xlane.xlu0 %5112
    %v5114 = vsel %vm109, %v5076, 0.0
    %5115 = vadd.xlane.f32.xlu0 %v5114
    %v5116 = vpop.xlane.xlu0 %5115
    %v5117 = vsel %vm109, %v5077, 0.0
    %5118 = vadd.xlane.f32.xlu0 %v5117
    %v5119 = vpop.xlane.xlu0 %5118
    %v5120 = vsel %vm109, %v5078, 0.0
    %5121 = vadd.xlane.f32.xlu0 %v5120
    %v5122 = vpop.xlane.xlu0 %5121
    %v5123 = vsel %vm109, %v5079, 0.0
    %5124 = vadd.xlane.f32.xlu0 %v5123
    %v5125 = vpop.xlane.xlu0 %5124
    %v5126 = vsel %vm109, %v5080, 0.0
    %5127 = vadd.xlane.f32.xlu0 %v5126
    %v5128 = vpop.xlane.xlu0 %5127
    %v5129 = vsel %vm109, %v5081, 0.0
    %5130 = vadd.xlane.f32.xlu0 %v5129
    %v5131 = vpop.xlane.xlu0 %5130
    %v5132 = vsel %vm109, %v5082, 0.0
    %5133 = vadd.xlane.f32.xlu0 %v5132
    %v5134 = vpop.xlane.xlu0 %5133
    %v5135 = vsel %vm109, %v5083, 0.0
    %5136 = vadd.xlane.f32.xlu0 %v5135
    %v5137 = vpop.xlane.xlu0 %5136
    %v5138 = vsel %vm109, %v5084, 0.0
    %5139 = vadd.xlane.f32.xlu0 %v5138
    %v5140 = vpop.xlane.xlu0 %5139
    %v5141 = vsel %vm109, %v5085, 0.0
    %5142 = vadd.xlane.f32.xlu0 %v5141
    %v5143 = vpop.xlane.xlu0 %5142
    %v5144 = vsel %vm109, %v5086, 0.0
    %5145 = vadd.xlane.f32.xlu0 %v5144
    %v5146 = vpop.xlane.xlu0 %5145
    %v5147 = vsel %vm109, %v5087, 0.0
    %5148 = vadd.xlane.f32.xlu0 %v5147
    %v5149 = vpop.xlane.xlu0 %5148
    %v5150 = vsel %vm109, %v5088, 0.0
    %5151 = vadd.xlane.f32.xlu0 %v5150
    %v5152 = vpop.xlane.xlu0 %5151
    %v5153 = vsel %vm109, %v5089, 0.0
    %5154 = vadd.xlane.f32.xlu0 %v5153
    %v5155 = vpop.xlane.xlu0 %5154
    %v5156 = vmul.f32 %v5110, %v158
    %v5157 = vmul.f32 %v5113, %v158
    %v5158 = vmul.f32 %v5116, %v158
    %v5159 = vmul.f32 %v5119, %v158
    %v5160 = vmul.f32 %v5122, %v158
    %v5161 = vmul.f32 %v5125, %v158
    %v5162 = vmul.f32 %v5128, %v158
    %v5163 = vmul.f32 %v5131, %v158
    %v5164 = vmul.f32 %v5134, %v158
    %v5165 = vmul.f32 %v5137, %v158
    %v5166 = vmul.f32 %v5140, %v158
    %v5167 = vmul.f32 %v5143, %v158
    %v5168 = vmul.f32 %v5146, %v158
    %v5169 = vmul.f32 %v5149, %v158
    %v5170 = vmul.f32 %v5152, %v158
    %v5171 = vmul.f32 %v5155, %v158
    %v5172 = vsub.f32 %v5074, %v5156
    %v5173 = vsub.f32 %v5075, %v5157
    %v5174 = vsub.f32 %v5076, %v5158
    %v5175 = vsub.f32 %v5077, %v5159
    %v5176 = vsub.f32 %v5078, %v5160
    %v5177 = vsub.f32 %v5079, %v5161
    %v5178 = vsub.f32 %v5080, %v5162
    %v5179 = vsub.f32 %v5081, %v5163
    %v5180 = vsub.f32 %v5082, %v5164
    %v5181 = vsub.f32 %v5083, %v5165
    %v5182 = vsub.f32 %v5084, %v5166
    %v5183 = vsub.f32 %v5085, %v5167
    %v5184 = vsub.f32 %v5086, %v5168
    %v5185 = vsub.f32 %v5087, %v5169
    %v5186 = vsub.f32 %v5088, %v5170
    %v5187 = vsub.f32 %v5089, %v5171
    %v5188 = vmul.f32 %v5172, %v5172
    %v5189 = vmul.f32 %v5173, %v5173
    %v5190 = vmul.f32 %v5174, %v5174
    %v5191 = vmul.f32 %v5175, %v5175
    %v5192 = vmul.f32 %v5176, %v5176
    %v5193 = vmul.f32 %v5177, %v5177
    %v5194 = vmul.f32 %v5178, %v5178
    %v5195 = vmul.f32 %v5179, %v5179
    %v5196 = vmul.f32 %v5180, %v5180
    %v5197 = vmul.f32 %v5181, %v5181
    %v5198 = vmul.f32 %v5182, %v5182
    %v5199 = vmul.f32 %v5183, %v5183
    %v5200 = vmul.f32 %v5184, %v5184
    %v5201 = vmul.f32 %v5185, %v5185
    %v5202 = vmul.f32 %v5186, %v5186
    %v5203 = vmul.f32 %v5187, %v5187
    %v5204 = vsel %vm109, %v5188, 0.0
    %5205 = vadd.xlane.f32.xlu0 %v5204
    %v5206 = vpop.xlane.xlu0 %5205
    %v5207 = vsel %vm109, %v5189, 0.0
    %5208 = vadd.xlane.f32.xlu0 %v5207
    %v5209 = vpop.xlane.xlu0 %5208
    %v5210 = vsel %vm109, %v5190, 0.0
    %5211 = vadd.xlane.f32.xlu0 %v5210
    %v5212 = vpop.xlane.xlu0 %5211
    %v5213 = vsel %vm109, %v5191, 0.0
    %5214 = vadd.xlane.f32.xlu0 %v5213
    %v5215 = vpop.xlane.xlu0 %5214
    %v5216 = vsel %vm109, %v5192, 0.0
    %5217 = vadd.xlane.f32.xlu0 %v5216
    %v5218 = vpop.xlane.xlu0 %5217
    %v5219 = vsel %vm109, %v5193, 0.0
    %5220 = vadd.xlane.f32.xlu0 %v5219
    %v5221 = vpop.xlane.xlu0 %5220
    %v5222 = vsel %vm109, %v5194, 0.0
    %5223 = vadd.xlane.f32.xlu0 %v5222
    %v5224 = vpop.xlane.xlu0 %5223
    %v5225 = vsel %vm109, %v5195, 0.0
    %5226 = vadd.xlane.f32.xlu0 %v5225
    %v5227 = vpop.xlane.xlu0 %5226
    %v5228 = vsel %vm109, %v5196, 0.0
    %5229 = vadd.xlane.f32.xlu0 %v5228
    %v5230 = vpop.xlane.xlu0 %5229
    %v5231 = vsel %vm109, %v5197, 0.0
    %5232 = vadd.xlane.f32.xlu0 %v5231
    %v5233 = vpop.xlane.xlu0 %5232
    %v5234 = vsel %vm109, %v5198, 0.0
    %5235 = vadd.xlane.f32.xlu0 %v5234
    %v5236 = vpop.xlane.xlu0 %5235
    %v5237 = vsel %vm109, %v5199, 0.0
    %5238 = vadd.xlane.f32.xlu0 %v5237
    %v5239 = vpop.xlane.xlu0 %5238
    %v5240 = vsel %vm109, %v5200, 0.0
    %5241 = vadd.xlane.f32.xlu0 %v5240
    %v5242 = vpop.xlane.xlu0 %5241
    %v5243 = vsel %vm109, %v5201, 0.0
    %5244 = vadd.xlane.f32.xlu0 %v5243
    %v5245 = vpop.xlane.xlu0 %5244
    %v5246 = vsel %vm109, %v5202, 0.0
    %5247 = vadd.xlane.f32.xlu0 %v5246
    %v5248 = vpop.xlane.xlu0 %5247
    %v5249 = vsel %vm109, %v5203, 0.0
    %5250 = vadd.xlane.f32.xlu0 %v5249
    %v5251 = vpop.xlane.xlu0 %5250
    %v5252 = vmul.f32 %v5206, %v158
    %v5253 = vmul.f32 %v5209, %v158
    %v5254 = vmul.f32 %v5212, %v158
    %v5255 = vmul.f32 %v5215, %v158
    %v5256 = vmul.f32 %v5218, %v158
    %v5257 = vmul.f32 %v5221, %v158
    %v5258 = vmul.f32 %v5224, %v158
    %v5259 = vmul.f32 %v5227, %v158
    %v5260 = vmul.f32 %v5230, %v158
    %v5261 = vmul.f32 %v5233, %v158
    %v5262 = vmul.f32 %v5236, %v158
    %v5263 = vmul.f32 %v5239, %v158
    %v5264 = vmul.f32 %v5242, %v158
    %v5265 = vmul.f32 %v5245, %v158
    %v5266 = vmul.f32 %v5248, %v158
    %v5267 = vmul.f32 %v5251, %v158
    %v5268 = vadd.f32 %v5252, 1e-05
    %v5269 = vadd.f32 %v5253, 1e-05
    %v5270 = vadd.f32 %v5254, 1e-05
    %v5271 = vadd.f32 %v5255, 1e-05
    %v5272 = vadd.f32 %v5256, 1e-05
    %v5273 = vadd.f32 %v5257, 1e-05
    %v5274 = vadd.f32 %v5258, 1e-05
    %v5275 = vadd.f32 %v5259, 1e-05
    %v5276 = vadd.f32 %v5260, 1e-05
    %v5277 = vadd.f32 %v5261, 1e-05
    %v5278 = vadd.f32 %v5262, 1e-05
    %v5279 = vadd.f32 %v5263, 1e-05
    %v5280 = vadd.f32 %v5264, 1e-05
    %v5281 = vadd.f32 %v5265, 1e-05
    %v5282 = vadd.f32 %v5266, 1e-05
    %v5283 = vadd.f32 %v5267, 1e-05
    %v5284 = vrsqrt.pop %v5268
    %v5285 = vrsqrt.pop %v5269
    %v5286 = vrsqrt.pop %v5270
    %v5287 = vrsqrt.pop %v5271
    %v5288 = vrsqrt.pop %v5272
    %v5289 = vrsqrt.pop %v5273
    %v5290 = vrsqrt.pop %v5274
    %v5291 = vrsqrt.pop %v5275
    %v5292 = vrsqrt.pop %v5276
    %v5293 = vrsqrt.pop %v5277
    %v5294 = vrsqrt.pop %v5278
    %v5295 = vrsqrt.pop %v5279
    %v5296 = vrsqrt.pop %v5280
    %v5297 = vrsqrt.pop %v5281
    %v5298 = vrsqrt.pop %v5282
    %v5299 = vrsqrt.pop %v5283
    %v5300 = vmul.f32 %v5172, %v5284
    %v5301 = vmul.f32 %v5173, %v5285
    %v5302 = vmul.f32 %v5174, %v5286
    %v5303 = vmul.f32 %v5175, %v5287
    %v5304 = vmul.f32 %v5176, %v5288
    %v5305 = vmul.f32 %v5177, %v5289
    %v5306 = vmul.f32 %v5178, %v5290
    %v5307 = vmul.f32 %v5179, %v5291
    %v5308 = vmul.f32 %v5180, %v5292
    %v5309 = vmul.f32 %v5181, %v5293
    %v5310 = vmul.f32 %v5182, %v5294
    %v5311 = vmul.f32 %v5183, %v5295
    %v5312 = vmul.f32 %v5184, %v5296
    %v5313 = vmul.f32 %v5185, %v5297
    %v5314 = vmul.f32 %v5186, %v5298
    %v5315 = vmul.f32 %v5187, %v5299
    %v5316 = vmul.f32 %v5300, %v323
    %v5317 = vmul.f32 %v5301, %v323
    %v5318 = vmul.f32 %v5302, %v323
    %v5319 = vmul.f32 %v5303, %v323
    %v5320 = vmul.f32 %v5304, %v323
    %v5321 = vmul.f32 %v5305, %v323
    %v5322 = vmul.f32 %v5306, %v323
    %v5323 = vmul.f32 %v5307, %v323
    %v5324 = vmul.f32 %v5308, %v323
    %v5325 = vmul.f32 %v5309, %v323
    %v5326 = vmul.f32 %v5310, %v323
    %v5327 = vmul.f32 %v5311, %v323
    %v5328 = vmul.f32 %v5312, %v323
    %v5329 = vmul.f32 %v5313, %v323
    %v5330 = vmul.f32 %v5314, %v323
    %v5331 = vmul.f32 %v5315, %v323
    %v5332 = vadd.f32 %v5316, %v345
    %v5333 = vadd.f32 %v5317, %v345
    %v5334 = vadd.f32 %v5318, %v345
    %v5335 = vadd.f32 %v5319, %v345
    %v5336 = vadd.f32 %v5320, %v345
    %v5337 = vadd.f32 %v5321, %v345
    %v5338 = vadd.f32 %v5322, %v345
    %v5339 = vadd.f32 %v5323, %v345
    %v5340 = vadd.f32 %v5324, %v345
    %v5341 = vadd.f32 %v5325, %v345
    %v5342 = vadd.f32 %v5326, %v345
    %v5343 = vadd.f32 %v5327, %v345
    %v5344 = vadd.f32 %v5328, %v345
    %v5345 = vadd.f32 %v5329, %v345
    %v5346 = vadd.f32 %v5330, %v345
    %v5347 = vadd.f32 %v5331, %v345
    %v5348 = vld [vmem:[%s13] sm:$0xff]
    %v5349 = vld [vmem:[%s13 + $0x8] sm:$0xff]
    %v5350 = vld [vmem:[%s13 + $0x10] sm:$0xff]
    %v5351 = vld [vmem:[%s13 + $0x18] sm:$0xff]
    %v5352 = vld [vmem:[%s13 + $0x20] sm:$0xff]
    %v5353 = vld [vmem:[%s13 + $0x28] sm:$0xff]
    %v5354 = vld [vmem:[%s13 + $0x30] sm:$0xff]
    %v5355 = vld [vmem:[%s13 + $0x38] sm:$0xff]
    %v5357 = vsel %vm660, %v5348, 0
    %v5360 = vsel %vm660, %v5349, 0
    %v5363 = vsel %vm660, %v5350, 0
    %v5366 = vsel %vm660, %v5351, 0
    %v5369 = vsel %vm660, %v5352, 0
    %v5372 = vsel %vm660, %v5353, 0
    %v5375 = vsel %vm660, %v5354, 0
    %v5378 = vsel %vm660, %v5355, 0
    %5380 = vmatprep.subr.mxu0 0.0
    %5381 = vmatpush1.msra.mxu0 %v5332
    %5382 = vmatprep.subr.mxu0 0.0
    %5383 = vmatpush1.msra.mxu0 %v5333
    %5384 = vmatprep.subr.mxu0 0.0
    %5385 = vmatpush1.msra.mxu0 %v5334
    %5386 = vmatprep.subr.mxu0 0.0
    %5387 = vmatpush1.msra.mxu0 %v5335
    %5388 = vmatprep.subr.mxu0 0.0
    %5389 = vmatpush1.msra.mxu0 %v5336
    %5390 = vmatprep.subr.mxu0 0.0
    %5391 = vmatpush1.msra.mxu0 %v5337
    %5392 = vmatprep.subr.mxu0 0.0
    %5393 = vmatpush1.msra.mxu0 %v5338
    %5394 = vmatprep.subr.mxu0 0.0
    %5395 = vmatpush1.msra.mxu0 %v5339
    %5396 = vmatprep.subr.mxu0 0.0
    %5397 = vmatpush1.msra.mxu0 0.0
    %5398 = vmatprep.subr.mxu0 0.0
    %5399 = vmatpush1.msra.mxu0 0.0
    %5400 = vmatprep.subr.mxu0 0.0
    %5401 = vmatpush1.msra.mxu0 0.0
    %5402 = vmatprep.subr.mxu0 0.0
    %5403 = vmatpush1.msra.mxu0 0.0
    %5404 = vmatprep.subr.mxu0 0.0
    %5405 = vmatpush1.msra.mxu0 0.0
    %5406 = vmatprep.subr.mxu0 0.0
    %5407 = vmatpush1.msra.mxu0 0.0
    %5408 = vmatprep.subr.mxu0 0.0
    %5409 = vmatpush1.msra.mxu0 0.0
    %5410 = vmatprep.subr.mxu0 0.0
    %5411 = vmatpush1.msra.mxu0 0.0
    %5412 = vmatprep.subr.mxu0 0.0
    %5413 = vmatpush1.msra.mxu0 0.0
    %5414 = vmatprep.subr.mxu0 0.0
    %5415 = vmatpush1.msra.mxu0 0.0
    %5416 = vmatprep.subr.mxu0 0.0
    %5417 = vmatpush1.msra.mxu0 0.0
    %5418 = vmatprep.subr.mxu0 0.0
    %5419 = vmatpush1.msra.mxu0 0.0
    %5420 = vmatprep.subr.mxu0 0.0
    %5421 = vmatpush1.msra.mxu0 0.0
    %5422 = vmatprep.subr.mxu0 0.0
    %5423 = vmatpush1.msra.mxu0 0.0
    %5424 = vmatprep.subr.mxu0 0.0
    %5425 = vmatpush1.msra.mxu0 0.0
    %5426 = vmatprep.subr.mxu0 0.0
    %5427 = vmatpush1.msra.mxu0 0.0
    %5428 = vmatprep.subr.mxu0 0.0
    %5429 = vmatpush1.msra.mxu0 0.0
    %5430 = vmatprep.subr.mxu0 0.0
    %5431 = vmatpush1.msra.mxu0 0.0
    %5432 = vmatprep.subr.mxu0 0.0
    %5433 = vmatpush1.msra.mxu0 0.0
    %5434 = vmatprep.subr.mxu0 0.0
    %5435 = vmatpush1.msra.mxu0 0.0
    %5436 = vmatprep.subr.mxu0 0.0
    %5437 = vmatpush1.msra.mxu0 0.0
    %5438 = vmatprep.subr.mxu0 0.0
    %5439 = vmatpush1.msra.mxu0 0.0
    %5440 = vmatprep.subr.mxu0 0.0
    %5441 = vmatpush1.msra.mxu0 0.0
    %5442 = vmatprep.subr.mxu0 0.0
    %5443 = vmatpush1.msra.mxu0 0.0
    %5444 = vmatprep.mubr.f32.mxu0 0.0
    %5445 = vmatmul.mubr.f32.gmra.mrb[0].mxu0 %v5357
    %v5446 = vpop.f32.mrb[0].mxu0
    %v5447 = vadd.f32 0.0, %v5446
    %v5448 = vpop.f32.mrb[0].mxu0
    %5449 = vmatprep.mubr.f32.mxu0 0.0
    %5450 = vmatmul.mubr.f32.gmra.mrb[0].mxu0 %v5360
    %v5451 = vpop.f32.mrb[0].mxu0
    %v5452 = vadd.f32 0.0, %v5451
    %v5453 = vpop.f32.mrb[0].mxu0
    %5454 = vmatprep.mubr.f32.mxu0 0.0
    %5455 = vmatmul.mubr.f32.gmra.mrb[0].mxu0 %v5363
    %v5456 = vpop.f32.mrb[0].mxu0
    %v5457 = vadd.f32 0.0, %v5456
    %v5458 = vpop.f32.mrb[0].mxu0
    %5459 = vmatprep.mubr.f32.mxu0 0.0
    %5460 = vmatmul.mubr.f32.gmra.mrb[0].mxu0 %v5366
    %v5461 = vpop.f32.mrb[0].mxu0
    %v5462 = vadd.f32 0.0, %v5461
    %v5463 = vpop.f32.mrb[0].mxu0
    %5464 = vmatprep.mubr.f32.mxu0 0.0
    %5465 = vmatmul.mubr.f32.gmra.mrb[0].mxu0 %v5369
    %v5466 = vpop.f32.mrb[0].mxu0
    %v5467 = vadd.f32 0.0, %v5466
    %v5468 = vpop.f32.mrb[0].mxu0
    %5469 = vmatprep.mubr.f32.mxu0 0.0
    %5470 = vmatmul.mubr.f32.gmra.mrb[0].mxu0 %v5372
    %v5471 = vpop.f32.mrb[0].mxu0
    %v5472 = vadd.f32 0.0, %v5471
    %v5473 = vpop.f32.mrb[0].mxu0
    %5474 = vmatprep.mubr.f32.mxu0 0.0
    %5475 = vmatmul.mubr.f32.gmra.mrb[0].mxu0 %v5375
    %v5476 = vpop.f32.mrb[0].mxu0
    %v5477 = vadd.f32 0.0, %v5476
    %v5478 = vpop.f32.mrb[0].mxu0
    %5479 = vmatprep.mubr.f32.mxu0 0.0
    %5480 = vmatmul.mubr.f32.gmra.mrb[0].mxu0 %v5378
    %v5481 = vpop.f32.mrb[0].mxu0
    %v5482 = vadd.f32 0.0, %v5481
    %v5483 = vpop.f32.mrb[0].mxu0
    %5484 = vdwg.mxu0
    %v5486 = vlaneseq
    %v5487 = vshrl.u32 %v5486, 7
    %v5488 = vsub.s32 0, %v5487
    %v5489 = vrot.slane %v5094, %v5488
    %v5492 = vsel %vm109, %v5447, 0
    %v5495 = vsel %vm109, %v5452, 0
    %v5498 = vsel %vm109, %v5457, 0
    %v5501 = vsel %vm109, %v5462, 0
    %v5504 = vsel %vm109, %v5467, 0
    %v5507 = vsel %vm109, %v5472, 0
    %v5510 = vsel %vm109, %v5477, 0
    %v5513 = vsel %vm109, %v5482, 0
    %5515 = vmatprep.subr.mxu0 0.0
    %5516 = vmatpush1.msra.mxu0 %v5090
    %5517 = vmatprep.subr.mxu0 0.0
    %5518 = vmatpush1.msra.mxu0 %v5091
    %5519 = vmatprep.subr.mxu0 0.0
    %5520 = vmatpush1.msra.mxu0 %v5092
    %5521 = vmatprep.subr.mxu0 0.0
    %5522 = vmatpush1.msra.mxu0 %v5093
    %5523 = vmatprep.subr.mxu0 0.0
    %5524 = vmatpush1.msra.mxu0 0.0
    %5525 = vmatprep.subr.mxu0 0.0
    %5526 = vmatpush1.msra.mxu0 0.0
    %5527 = vmatprep.subr.mxu0 0.0
    %5528 = vmatpush1.msra.mxu0 0.0
    %5529 = vmatprep.subr.mxu0 0.0
    %5530 = vmatpush1.msra.mxu0 0.0
    %5531 = vmatprep.subr.mxu0 0.0
    %5532 = vmatpush1.msra.mxu0 0.0
    %5533 = vmatprep.subr.mxu0 0.0
    %5534 = vmatpush1.msra.mxu0 0.0
    %5535 = vmatprep.subr.mxu0 0.0
    %5536 = vmatpush1.msra.mxu0 0.0
    %5537 = vmatprep.subr.mxu0 0.0
    %5538 = vmatpush1.msra.mxu0 0.0
    %5539 = vmatprep.subr.mxu0 0.0
    %5540 = vmatpush1.msra.mxu0 0.0
    %5541 = vmatprep.subr.mxu0 0.0
    %5542 = vmatpush1.msra.mxu0 0.0
    %5543 = vmatprep.subr.mxu0 0.0
    %5544 = vmatpush1.msra.mxu0 0.0
    %5545 = vmatprep.subr.mxu0 0.0
    %5546 = vmatpush1.msra.mxu0 0.0
    %5547 = vmatprep.subr.mxu0 0.0
    %5548 = vmatpush1.msra.mxu0 0.0
    %5549 = vmatprep.subr.mxu0 0.0
    %5550 = vmatpush1.msra.mxu0 0.0
    %5551 = vmatprep.subr.mxu0 0.0
    %5552 = vmatpush1.msra.mxu0 0.0
    %5553 = vmatprep.subr.mxu0 0.0
    %5554 = vmatpush1.msra.mxu0 0.0
    %5555 = vmatprep.subr.mxu0 0.0
    %5556 = vmatpush1.msra.mxu0 0.0
    %5557 = vmatprep.subr.mxu0 0.0
    %5558 = vmatpush1.msra.mxu0 0.0
    %5559 = vmatprep.subr.mxu0 0.0
    %5560 = vmatpush1.msra.mxu0 0.0
    %5561 = vmatprep.subr.mxu0 0.0
    %5562 = vmatpush1.msra.mxu0 0.0
    %5563 = vmatprep.subr.mxu0 0.0
    %5564 = vmatpush1.msra.mxu0 0.0
    %5565 = vmatprep.subr.mxu0 0.0
    %5566 = vmatpush1.msra.mxu0 0.0
    %5567 = vmatprep.subr.mxu0 0.0
    %5568 = vmatpush1.msra.mxu0 0.0
    %5569 = vmatprep.subr.mxu0 0.0
    %5570 = vmatpush1.msra.mxu0 0.0
    %5571 = vmatprep.subr.mxu0 0.0
    %5572 = vmatpush1.msra.mxu0 0.0
    %5573 = vmatprep.subr.mxu0 0.0
    %5574 = vmatpush1.msra.mxu0 0.0
    %5575 = vmatprep.subr.mxu0 0.0
    %5576 = vmatpush1.msra.mxu0 0.0
    %5577 = vmatprep.subr.mxu0 0.0
    %5578 = vmatpush1.msra.mxu0 0.0
    %5579 = vmatprep.mubr.f32.mxu0 0.0
    %5580 = vmatmul.mubr.f32.gmra.mrb[0].mxu0 %v5492
    %v5581 = vpop.f32.mrb[0].mxu0
    %v5582 = vadd.f32 %v5489, %v5581
    %v5583 = vpop.f32.mrb[0].mxu0
    %5584 = vmatprep.mubr.f32.mxu0 0.0
    %5585 = vmatmul.mubr.f32.gmra.mrb[0].mxu0 %v5495
    %v5586 = vpop.f32.mrb[0].mxu0
    %v5587 = vadd.f32 %v5489, %v5586
    %v5588 = vpop.f32.mrb[0].mxu0
    %5589 = vmatprep.mubr.f32.mxu0 0.0
    %5590 = vmatmul.mubr.f32.gmra.mrb[0].mxu0 %v5498
    %v5591 = vpop.f32.mrb[0].mxu0
    %v5592 = vadd.f32 %v5489, %v5591
    %v5593 = vpop.f32.mrb[0].mxu0
    %5594 = vmatprep.mubr.f32.mxu0 0.0
    %5595 = vmatmul.mubr.f32.gmra.mrb[0].mxu0 %v5501
    %v5596 = vpop.f32.mrb[0].mxu0
    %v5597 = vadd.f32 %v5489, %v5596
    %v5598 = vpop.f32.mrb[0].mxu0
    %5599 = vmatprep.mubr.f32.mxu0 0.0
    %5600 = vmatmul.mubr.f32.gmra.mrb[0].mxu0 %v5504
    %v5601 = vpop.f32.mrb[0].mxu0
    %v5602 = vadd.f32 %v5489, %v5601
    %v5603 = vpop.f32.mrb[0].mxu0
    %5604 = vmatprep.mubr.f32.mxu0 0.0
    %5605 = vmatmul.mubr.f32.gmra.mrb[0].mxu0 %v5507
    %v5606 = vpop.f32.mrb[0].mxu0
    %v5607 = vadd.f32 %v5489, %v5606
    %v5608 = vpop.f32.mrb[0].mxu0
    %5609 = vmatprep.mubr.f32.mxu0 0.0
    %5610 = vmatmul.mubr.f32.gmra.mrb[0].mxu0 %v5510
    %v5611 = vpop.f32.mrb[0].mxu0
    %v5612 = vadd.f32 %v5489, %v5611
    %v5613 = vpop.f32.mrb[0].mxu0
    %5614 = vmatprep.mubr.f32.mxu0 0.0
    %5615 = vmatmul.mubr.f32.gmra.mrb[0].mxu0 %v5513
    %v5616 = vpop.f32.mrb[0].mxu0
    %v5617 = vadd.f32 %v5489, %v5616
    %v5618 = vpop.f32.mrb[0].mxu0
    %5619 = vdwg.mxu0
    %5628 = vrot.lane.b32.xlu0 %v5582, 96
    %v5629 = vpop.permute.xlu0 %5628
    %5630 = vrot.lane.b32.xlu0 %v5587, 96
    %v5631 = vpop.permute.xlu0 %5630
    %5632 = vrot.lane.b32.xlu0 %v5592, 96
    %v5633 = vpop.permute.xlu0 %5632
    %5634 = vrot.lane.b32.xlu0 %v5597, 96
    %v5635 = vpop.permute.xlu0 %5634
    %5636 = vrot.lane.b32.xlu0 %v5602, 96
    %v5637 = vpop.permute.xlu0 %5636
    %5638 = vrot.lane.b32.xlu0 %v5607, 96
    %v5639 = vpop.permute.xlu0 %5638
    %5640 = vrot.lane.b32.xlu0 %v5612, 96
    %v5641 = vpop.permute.xlu0 %5640
    %5642 = vrot.lane.b32.xlu0 %v5617, 96
    %v5643 = vpop.permute.xlu0 %5642
    %v5644 = vsel %vm522, %v5582, 0
    %v5646 = vsel %vm522, %v5587, 0
    %v5648 = vsel %vm522, %v5592, 0
    %v5650 = vsel %vm522, %v5597, 0
    %v5652 = vsel %vm522, %v5602, 0
    %v5654 = vsel %vm522, %v5607, 0
    %v5656 = vsel %vm522, %v5612, 0
    %v5658 = vsel %vm522, %v5617, 0
    %v5660 = vsel %vm522, %v5629, 0
    %v5662 = vsel %vm522, %v5631, 0
    %v5664 = vsel %vm522, %v5633, 0
    %v5666 = vsel %vm522, %v5635, 0
    %v5668 = vsel %vm522, %v5637, 0
    %v5670 = vsel %vm522, %v5639, 0
    %v5672 = vsel %vm522, %v5641, 0
    %v5674 = vsel %vm522, %v5643, 0
    %5676 = vmatprep.subr.mxu0 0.0
    %5677 = vmatpush1.xpose.msra.mxu0 %v5660
    %5678 = vmatprep.subr.mxu0 0.0
    %5679 = vmatpush1.xpose.msra.mxu0 %v5662
    %5680 = vmatprep.subr.mxu0 0.0
    %5681 = vmatpush1.xpose.msra.mxu0 %v5664
    %5682 = vmatprep.subr.mxu0 0.0
    %5683 = vmatpush1.xpose.msra.mxu0 %v5666
    %5684 = vmatprep.subr.mxu0 0.0
    %5685 = vmatpush1.xpose.msra.mxu0 %v5668
    %5686 = vmatprep.subr.mxu0 0.0
    %5687 = vmatpush1.xpose.msra.mxu0 %v5670
    %5688 = vmatprep.subr.mxu0 0.0
    %5689 = vmatpush1.xpose.msra.mxu0 %v5672
    %5690 = vmatprep.subr.mxu0 0.0
    %5691 = vmatpush1.xpose.msra.mxu0 %v5674
    %5692 = vmatprep.subr.mxu0 0.0
    %5693 = vmatpush1.xpose.msra.mxu0 0.0
    %5694 = vmatprep.subr.mxu0 0.0
    %5695 = vmatpush1.xpose.msra.mxu0 0.0
    %5696 = vmatprep.subr.mxu0 0.0
    %5697 = vmatpush1.xpose.msra.mxu0 0.0
    %5698 = vmatprep.subr.mxu0 0.0
    %5699 = vmatpush1.xpose.msra.mxu0 0.0
    %5700 = vmatprep.subr.mxu0 0.0
    %5701 = vmatpush1.xpose.msra.mxu0 0.0
    %5702 = vmatprep.subr.mxu0 0.0
    %5703 = vmatpush1.xpose.msra.mxu0 0.0
    %5704 = vmatprep.subr.mxu0 0.0
    %5705 = vmatpush1.xpose.msra.mxu0 0.0
    %5706 = vmatprep.subr.mxu0 0.0
    %5707 = vmatpush1.xpose.msra.mxu0 0.0
    %5708 = vmatprep.subr.mxu0 0.0
    %5709 = vmatpush1.xpose.msra.mxu0 0.0
    %5710 = vmatprep.subr.mxu0 0.0
    %5711 = vmatpush1.xpose.msra.mxu0 0.0
    %5712 = vmatprep.subr.mxu0 0.0
    %5713 = vmatpush1.xpose.msra.mxu0 0.0
    %5714 = vmatprep.subr.mxu0 0.0
    %5715 = vmatpush1.xpose.msra.mxu0 0.0
    %5716 = vmatprep.subr.mxu0 0.0
    %5717 = vmatpush1.xpose.msra.mxu0 0.0
    %5718 = vmatprep.subr.mxu0 0.0
    %5719 = vmatpush1.xpose.msra.mxu0 0.0
    %5720 = vmatprep.subr.mxu0 0.0
    %5721 = vmatpush1.xpose.msra.mxu0 0.0
    %5722 = vmatprep.subr.mxu0 0.0
    %5723 = vmatpush1.xpose.msra.mxu0 0.0
    %5724 = vmatprep.subr.mxu0 0.0
    %5725 = vmatpush1.xpose.msra.mxu0 0.0
    %5726 = vmatprep.subr.mxu0 0.0
    %5727 = vmatpush1.xpose.msra.mxu0 0.0
    %5728 = vmatprep.subr.mxu0 0.0
    %5729 = vmatpush1.xpose.msra.mxu0 0.0
    %5730 = vmatprep.subr.mxu0 0.0
    %5731 = vmatpush1.xpose.msra.mxu0 0.0
    %5732 = vmatprep.subr.mxu0 0.0
    %5733 = vmatpush1.xpose.msra.mxu0 0.0
    %5734 = vmatprep.subr.mxu0 0.0
    %5735 = vmatpush1.xpose.msra.mxu0 0.0
    %5736 = vmatprep.subr.mxu0 0.0
    %5737 = vmatpush1.xpose.msra.mxu0 0.0
    %5738 = vmatprep.subr.mxu0 0.0
    %5739 = vmatpush1.xpose.msra.mxu0 0.0
    %5740 = vmatprep.mubr.f32.mxu0 0.0
    %5741 = vmatmul.mubr.f32.gmra.mrb[0].mxu0 %v5644
    %v5742 = vpop.f32.mrb[0].mxu0
    %v5743 = vadd.f32 %v5100, %v5742
    %v5744 = vpop.f32.mrb[0].mxu0
    %5745 = vmatprep.mubr.f32.mxu0 0.0
    %5746 = vmatmul.mubr.f32.gmra.mrb[0].mxu0 %v5646
    %v5747 = vpop.f32.mrb[0].mxu0
    %v5748 = vadd.f32 %v5101, %v5747
    %v5749 = vpop.f32.mrb[0].mxu0
    %5750 = vmatprep.mubr.f32.mxu0 0.0
    %5751 = vmatmul.mubr.f32.gmra.mrb[0].mxu0 %v5648
    %v5752 = vpop.f32.mrb[0].mxu0
    %v5753 = vadd.f32 %v5102, %v5752
    %v5754 = vpop.f32.mrb[0].mxu0
    %5755 = vmatprep.mubr.f32.mxu0 0.0
    %5756 = vmatmul.mubr.f32.gmra.mrb[0].mxu0 %v5650
    %v5757 = vpop.f32.mrb[0].mxu0
    %v5758 = vadd.f32 %v5103, %v5757
    %v5759 = vpop.f32.mrb[0].mxu0
    %5760 = vmatprep.mubr.f32.mxu0 0.0
    %5761 = vmatmul.mubr.f32.gmra.mrb[0].mxu0 %v5652
    %v5762 = vpop.f32.mrb[0].mxu0
    %v5763 = vadd.f32 %v5104, %v5762
    %v5764 = vpop.f32.mrb[0].mxu0
    %5765 = vmatprep.mubr.f32.mxu0 0.0
    %5766 = vmatmul.mubr.f32.gmra.mrb[0].mxu0 %v5654
    %v5767 = vpop.f32.mrb[0].mxu0
    %v5768 = vadd.f32 %v5105, %v5767
    %v5769 = vpop.f32.mrb[0].mxu0
    %5770 = vmatprep.mubr.f32.mxu0 0.0
    %5771 = vmatmul.mubr.f32.gmra.mrb[0].mxu0 %v5656
    %v5772 = vpop.f32.mrb[0].mxu0
    %v5773 = vadd.f32 %v5106, %v5772
    %v5774 = vpop.f32.mrb[0].mxu0
    %5775 = vmatprep.mubr.f32.mxu0 0.0
    %5776 = vmatmul.mubr.f32.gmra.mrb[0].mxu0 %v5658
    %v5777 = vpop.f32.mrb[0].mxu0
    %v5778 = vadd.f32 %v5107, %v5777
    %v5779 = vpop.f32.mrb[0].mxu0
    %5780 = vdwg.mxu0
    %v5781 = vsel %vm660, %v5743, -inf
    %5782 = vmax.xlane.f32.xlu0 %v5781
    %v5783 = vpop.xlane.xlu0 %5782
    %v5784 = vsel %vm660, %v5748, -inf
    %5785 = vmax.xlane.f32.xlu0 %v5784
    %v5786 = vpop.xlane.xlu0 %5785
    %v5787 = vsel %vm660, %v5753, -inf
    %5788 = vmax.xlane.f32.xlu0 %v5787
    %v5789 = vpop.xlane.xlu0 %5788
    %v5790 = vsel %vm660, %v5758, -inf
    %5791 = vmax.xlane.f32.xlu0 %v5790
    %v5792 = vpop.xlane.xlu0 %5791
    %v5793 = vsel %vm660, %v5763, -inf
    %5794 = vmax.xlane.f32.xlu0 %v5793
    %v5795 = vpop.xlane.xlu0 %5794
    %v5796 = vsel %vm660, %v5768, -inf
    %5797 = vmax.xlane.f32.xlu0 %v5796
    %v5798 = vpop.xlane.xlu0 %5797
    %v5799 = vsel %vm660, %v5773, -inf
    %5800 = vmax.xlane.f32.xlu0 %v5799
    %v5801 = vpop.xlane.xlu0 %5800
    %v5802 = vsel %vm660, %v5778, -inf
    %5803 = vmax.xlane.f32.xlu0 %v5802
    %v5804 = vpop.xlane.xlu0 %5803
    %v5805 = vsub.f32 %v5743, %v5783
    %v5806 = vsub.f32 %v5748, %v5786
    %v5807 = vsub.f32 %v5753, %v5789
    %v5808 = vsub.f32 %v5758, %v5792
    %v5809 = vsub.f32 %v5763, %v5795
    %v5810 = vsub.f32 %v5768, %v5798
    %v5811 = vsub.f32 %v5773, %v5801
    %v5812 = vsub.f32 %v5778, %v5804
    %v5813 = vmul.f32 %v5805, 1.442695
    %v5814 = vpow.pop %v5813
    %v5815 = vmul.f32 %v5806, 1.442695
    %v5816 = vpow.pop %v5815
    %v5817 = vmul.f32 %v5807, 1.442695
    %v5818 = vpow.pop %v5817
    %v5819 = vmul.f32 %v5808, 1.442695
    %v5820 = vpow.pop %v5819
    %v5821 = vmul.f32 %v5809, 1.442695
    %v5822 = vpow.pop %v5821
    %v5823 = vmul.f32 %v5810, 1.442695
    %v5824 = vpow.pop %v5823
    %v5825 = vmul.f32 %v5811, 1.442695
    %v5826 = vpow.pop %v5825
    %v5827 = vmul.f32 %v5812, 1.442695
    %v5828 = vpow.pop %v5827
    %v5829 = vsel %vm660, %v5814, 0.0
    %5830 = vadd.xlane.f32.xlu0 %v5829
    %v5831 = vpop.xlane.xlu0 %5830
    %v5832 = vsel %vm660, %v5816, 0.0
    %5833 = vadd.xlane.f32.xlu0 %v5832
    %v5834 = vpop.xlane.xlu0 %5833
    %v5835 = vsel %vm660, %v5818, 0.0
    %5836 = vadd.xlane.f32.xlu0 %v5835
    %v5837 = vpop.xlane.xlu0 %5836
    %v5838 = vsel %vm660, %v5820, 0.0
    %5839 = vadd.xlane.f32.xlu0 %v5838
    %v5840 = vpop.xlane.xlu0 %5839
    %v5841 = vsel %vm660, %v5822, 0.0
    %5842 = vadd.xlane.f32.xlu0 %v5841
    %v5843 = vpop.xlane.xlu0 %5842
    %v5844 = vsel %vm660, %v5824, 0.0
    %5845 = vadd.xlane.f32.xlu0 %v5844
    %v5846 = vpop.xlane.xlu0 %5845
    %v5847 = vsel %vm660, %v5826, 0.0
    %5848 = vadd.xlane.f32.xlu0 %v5847
    %v5849 = vpop.xlane.xlu0 %5848
    %v5850 = vsel %vm660, %v5828, 0.0
    %5851 = vadd.xlane.f32.xlu0 %v5850
    %v5852 = vpop.xlane.xlu0 %5851
    %v5853 = vrcp.pop %v5831
    %v5854 = vrcp.pop %v5834
    %v5855 = vrcp.pop %v5837
    %v5856 = vrcp.pop %v5840
    %v5857 = vrcp.pop %v5843
    %v5858 = vrcp.pop %v5846
    %v5859 = vrcp.pop %v5849
    %v5860 = vrcp.pop %v5852
    %v5861 = vmul.f32 %v5814, %v5853
    %v5862 = vmul.f32 %v5816, %v5854
    %v5863 = vmul.f32 %v5818, %v5855
    %v5864 = vmul.f32 %v5820, %v5856
    %v5865 = vmul.f32 %v5822, %v5857
    %v5866 = vmul.f32 %v5824, %v5858
    %v5867 = vmul.f32 %v5826, %v5859
    %v5868 = vmul.f32 %v5828, %v5860
    %5869 = vrot.lane.b32.xlu0 %v5582, 64
    %v5870 = vpop.permute.xlu0 %5869
    %5871 = vrot.lane.b32.xlu0 %v5587, 64
    %v5872 = vpop.permute.xlu0 %5871
    %5873 = vrot.lane.b32.xlu0 %v5592, 64
    %v5874 = vpop.permute.xlu0 %5873
    %5875 = vrot.lane.b32.xlu0 %v5597, 64
    %v5876 = vpop.permute.xlu0 %5875
    %5877 = vrot.lane.b32.xlu0 %v5602, 64
    %v5878 = vpop.permute.xlu0 %5877
    %5879 = vrot.lane.b32.xlu0 %v5607, 64
    %v5880 = vpop.permute.xlu0 %5879
    %5881 = vrot.lane.b32.xlu0 %v5612, 64
    %v5882 = vpop.permute.xlu0 %5881
    %5883 = vrot.lane.b32.xlu0 %v5617, 64
    %v5884 = vpop.permute.xlu0 %5883
    %v5894 = vsel %vm660, %v5861, 0
    %v5897 = vsel %vm660, %v5862, 0
    %v5900 = vsel %vm660, %v5863, 0
    %v5903 = vsel %vm660, %v5864, 0
    %v5906 = vsel %vm660, %v5865, 0
    %v5909 = vsel %vm660, %v5866, 0
    %v5912 = vsel %vm660, %v5867, 0
    %v5915 = vsel %vm660, %v5868, 0
    %5917 = vmatprep.subr.mxu0 0.0
    %5918 = vmatpush1.msra.mxu0 %v5870
    %5919 = vmatprep.subr.mxu0 0.0
    %5920 = vmatpush1.msra.mxu0 %v5872
    %5921 = vmatprep.subr.mxu0 0.0
    %5922 = vmatpush1.msra.mxu0 %v5874
    %5923 = vmatprep.subr.mxu0 0.0
    %5924 = vmatpush1.msra.mxu0 %v5876
    %5925 = vmatprep.subr.mxu0 0.0
    %5926 = vmatpush1.msra.mxu0 %v5878
    %5927 = vmatprep.subr.mxu0 0.0
    %5928 = vmatpush1.msra.mxu0 %v5880
    %5929 = vmatprep.subr.mxu0 0.0
    %5930 = vmatpush1.msra.mxu0 %v5882
    %5931 = vmatprep.subr.mxu0 0.0
    %5932 = vmatpush1.msra.mxu0 %v5884
    %5933 = vmatprep.subr.mxu0 0.0
    %5934 = vmatpush1.msra.mxu0 0.0
    %5935 = vmatprep.subr.mxu0 0.0
    %5936 = vmatpush1.msra.mxu0 0.0
    %5937 = vmatprep.subr.mxu0 0.0
    %5938 = vmatpush1.msra.mxu0 0.0
    %5939 = vmatprep.subr.mxu0 0.0
    %5940 = vmatpush1.msra.mxu0 0.0
    %5941 = vmatprep.subr.mxu0 0.0
    %5942 = vmatpush1.msra.mxu0 0.0
    %5943 = vmatprep.subr.mxu0 0.0
    %5944 = vmatpush1.msra.mxu0 0.0
    %5945 = vmatprep.subr.mxu0 0.0
    %5946 = vmatpush1.msra.mxu0 0.0
    %5947 = vmatprep.subr.mxu0 0.0
    %5948 = vmatpush1.msra.mxu0 0.0
    %5949 = vmatprep.subr.mxu0 0.0
    %5950 = vmatpush1.msra.mxu0 0.0
    %5951 = vmatprep.subr.mxu0 0.0
    %5952 = vmatpush1.msra.mxu0 0.0
    %5953 = vmatprep.subr.mxu0 0.0
    %5954 = vmatpush1.msra.mxu0 0.0
    %5955 = vmatprep.subr.mxu0 0.0
    %5956 = vmatpush1.msra.mxu0 0.0
    %5957 = vmatprep.subr.mxu0 0.0
    %5958 = vmatpush1.msra.mxu0 0.0
    %5959 = vmatprep.subr.mxu0 0.0
    %5960 = vmatpush1.msra.mxu0 0.0
    %5961 = vmatprep.subr.mxu0 0.0
    %5962 = vmatpush1.msra.mxu0 0.0
    %5963 = vmatprep.subr.mxu0 0.0
    %5964 = vmatpush1.msra.mxu0 0.0
    %5965 = vmatprep.subr.mxu0 0.0
    %5966 = vmatpush1.msra.mxu0 0.0
    %5967 = vmatprep.subr.mxu0 0.0
    %5968 = vmatpush1.msra.mxu0 0.0
    %5969 = vmatprep.subr.mxu0 0.0
    %5970 = vmatpush1.msra.mxu0 0.0
    %5971 = vmatprep.subr.mxu0 0.0
    %5972 = vmatpush1.msra.mxu0 0.0
    %5973 = vmatprep.subr.mxu0 0.0
    %5974 = vmatpush1.msra.mxu0 0.0
    %5975 = vmatprep.subr.mxu0 0.0
    %5976 = vmatpush1.msra.mxu0 0.0
    %5977 = vmatprep.subr.mxu0 0.0
    %5978 = vmatpush1.msra.mxu0 0.0
    %5979 = vmatprep.subr.mxu0 0.0
    %5980 = vmatpush1.msra.mxu0 0.0
    %5981 = vmatprep.mubr.f32.mxu0 0.0
    %5982 = vmatmul.mubr.f32.gmra.mrb[0].mxu0 %v5894
    %v5983 = vpop.f32.mrb[0].mxu0
    %v5984 = vadd.f32 0.0, %v5983
    %v5985 = vpop.f32.mrb[0].mxu0
    %5986 = vmatprep.mubr.f32.mxu0 0.0
    %5987 = vmatmul.mubr.f32.gmra.mrb[0].mxu0 %v5897
    %v5988 = vpop.f32.mrb[0].mxu0
    %v5989 = vadd.f32 0.0, %v5988
    %v5990 = vpop.f32.mrb[0].mxu0
    %5991 = vmatprep.mubr.f32.mxu0 0.0
    %5992 = vmatmul.mubr.f32.gmra.mrb[0].mxu0 %v5900
    %v5993 = vpop.f32.mrb[0].mxu0
    %v5994 = vadd.f32 0.0, %v5993
    %v5995 = vpop.f32.mrb[0].mxu0
    %5996 = vmatprep.mubr.f32.mxu0 0.0
    %5997 = vmatmul.mubr.f32.gmra.mrb[0].mxu0 %v5903
    %v5998 = vpop.f32.mrb[0].mxu0
    %v5999 = vadd.f32 0.0, %v5998
    %v6000 = vpop.f32.mrb[0].mxu0
    %6001 = vmatprep.mubr.f32.mxu0 0.0
    %6002 = vmatmul.mubr.f32.gmra.mrb[0].mxu0 %v5906
    %v6003 = vpop.f32.mrb[0].mxu0
    %v6004 = vadd.f32 0.0, %v6003
    %v6005 = vpop.f32.mrb[0].mxu0
    %6006 = vmatprep.mubr.f32.mxu0 0.0
    %6007 = vmatmul.mubr.f32.gmra.mrb[0].mxu0 %v5909
    %v6008 = vpop.f32.mrb[0].mxu0
    %v6009 = vadd.f32 0.0, %v6008
    %v6010 = vpop.f32.mrb[0].mxu0
    %6011 = vmatprep.mubr.f32.mxu0 0.0
    %6012 = vmatmul.mubr.f32.gmra.mrb[0].mxu0 %v5912
    %v6013 = vpop.f32.mrb[0].mxu0
    %v6014 = vadd.f32 0.0, %v6013
    %v6015 = vpop.f32.mrb[0].mxu0
    %6016 = vmatprep.mubr.f32.mxu0 0.0
    %6017 = vmatmul.mubr.f32.gmra.mrb[0].mxu0 %v5915
    %v6018 = vpop.f32.mrb[0].mxu0
    %v6019 = vadd.f32 0.0, %v6018
    %v6020 = vpop.f32.mrb[0].mxu0
    %6021 = vdwg.mxu0
    %6022 = vrot.lane.b32.xlu0 %v5582, 120
    %v6023 = vpop.permute.xlu0 %6022
    %6024 = vrot.lane.b32.xlu0 %v5587, 120
    %v6025 = vpop.permute.xlu0 %6024
    %6026 = vrot.lane.b32.xlu0 %v5592, 120
    %v6027 = vpop.permute.xlu0 %6026
    %6028 = vrot.lane.b32.xlu0 %v5597, 120
    %v6029 = vpop.permute.xlu0 %6028
    %6030 = vrot.lane.b32.xlu0 %v5602, 120
    %v6031 = vpop.permute.xlu0 %6030
    %6032 = vrot.lane.b32.xlu0 %v5607, 120
    %v6033 = vpop.permute.xlu0 %6032
    %6034 = vrot.lane.b32.xlu0 %v5612, 120
    %v6035 = vpop.permute.xlu0 %6034
    %6036 = vrot.lane.b32.xlu0 %v5617, 120
    %v6037 = vpop.permute.xlu0 %6036
    %6038 = vrot.lane.b32.xlu0 %v5582, 88
    %v6039 = vpop.permute.xlu0 %6038
    %6040 = vrot.lane.b32.xlu0 %v5587, 88
    %v6041 = vpop.permute.xlu0 %6040
    %6042 = vrot.lane.b32.xlu0 %v5592, 88
    %v6043 = vpop.permute.xlu0 %6042
    %6044 = vrot.lane.b32.xlu0 %v5597, 88
    %v6045 = vpop.permute.xlu0 %6044
    %6046 = vrot.lane.b32.xlu0 %v5602, 88
    %v6047 = vpop.permute.xlu0 %6046
    %6048 = vrot.lane.b32.xlu0 %v5607, 88
    %v6049 = vpop.permute.xlu0 %6048
    %6050 = vrot.lane.b32.xlu0 %v5612, 88
    %v6051 = vpop.permute.xlu0 %6050
    %6052 = vrot.lane.b32.xlu0 %v5617, 88
    %v6053 = vpop.permute.xlu0 %6052
    %v6054 = vsel %vm522, %v6023, 0
    %v6056 = vsel %vm522, %v6025, 0
    %v6058 = vsel %vm522, %v6027, 0
    %v6060 = vsel %vm522, %v6029, 0
    %v6062 = vsel %vm522, %v6031, 0
    %v6064 = vsel %vm522, %v6033, 0
    %v6066 = vsel %vm522, %v6035, 0
    %v6068 = vsel %vm522, %v6037, 0
    %v6070 = vsel %vm522, %v6039, 0
    %v6072 = vsel %vm522, %v6041, 0
    %v6074 = vsel %vm522, %v6043, 0
    %v6076 = vsel %vm522, %v6045, 0
    %v6078 = vsel %vm522, %v6047, 0
    %v6080 = vsel %vm522, %v6049, 0
    %v6082 = vsel %vm522, %v6051, 0
    %v6084 = vsel %vm522, %v6053, 0
    %6086 = vmatprep.subr.mxu0 0.0
    %6087 = vmatpush1.xpose.msra.mxu0 %v6070
    %6088 = vmatprep.subr.mxu0 0.0
    %6089 = vmatpush1.xpose.msra.mxu0 %v6072
    %6090 = vmatprep.subr.mxu0 0.0
    %6091 = vmatpush1.xpose.msra.mxu0 %v6074
    %6092 = vmatprep.subr.mxu0 0.0
    %6093 = vmatpush1.xpose.msra.mxu0 %v6076
    %6094 = vmatprep.subr.mxu0 0.0
    %6095 = vmatpush1.xpose.msra.mxu0 %v6078
    %6096 = vmatprep.subr.mxu0 0.0
    %6097 = vmatpush1.xpose.msra.mxu0 %v6080
    %6098 = vmatprep.subr.mxu0 0.0
    %6099 = vmatpush1.xpose.msra.mxu0 %v6082
    %6100 = vmatprep.subr.mxu0 0.0
    %6101 = vmatpush1.xpose.msra.mxu0 %v6084
    %6102 = vmatprep.subr.mxu0 0.0
    %6103 = vmatpush1.xpose.msra.mxu0 0.0
    %6104 = vmatprep.subr.mxu0 0.0
    %6105 = vmatpush1.xpose.msra.mxu0 0.0
    %6106 = vmatprep.subr.mxu0 0.0
    %6107 = vmatpush1.xpose.msra.mxu0 0.0
    %6108 = vmatprep.subr.mxu0 0.0
    %6109 = vmatpush1.xpose.msra.mxu0 0.0
    %6110 = vmatprep.subr.mxu0 0.0
    %6111 = vmatpush1.xpose.msra.mxu0 0.0
    %6112 = vmatprep.subr.mxu0 0.0
    %6113 = vmatpush1.xpose.msra.mxu0 0.0
    %6114 = vmatprep.subr.mxu0 0.0
    %6115 = vmatpush1.xpose.msra.mxu0 0.0
    %6116 = vmatprep.subr.mxu0 0.0
    %6117 = vmatpush1.xpose.msra.mxu0 0.0
    %6118 = vmatprep.subr.mxu0 0.0
    %6119 = vmatpush1.xpose.msra.mxu0 0.0
    %6120 = vmatprep.subr.mxu0 0.0
    %6121 = vmatpush1.xpose.msra.mxu0 0.0
    %6122 = vmatprep.subr.mxu0 0.0
    %6123 = vmatpush1.xpose.msra.mxu0 0.0
    %6124 = vmatprep.subr.mxu0 0.0
    %6125 = vmatpush1.xpose.msra.mxu0 0.0
    %6126 = vmatprep.subr.mxu0 0.0
    %6127 = vmatpush1.xpose.msra.mxu0 0.0
    %6128 = vmatprep.subr.mxu0 0.0
    %6129 = vmatpush1.xpose.msra.mxu0 0.0
    %6130 = vmatprep.subr.mxu0 0.0
    %6131 = vmatpush1.xpose.msra.mxu0 0.0
    %6132 = vmatprep.subr.mxu0 0.0
    %6133 = vmatpush1.xpose.msra.mxu0 0.0
    %6134 = vmatprep.subr.mxu0 0.0
    %6135 = vmatpush1.xpose.msra.mxu0 0.0
    %6136 = vmatprep.subr.mxu0 0.0
    %6137 = vmatpush1.xpose.msra.mxu0 0.0
    %6138 = vmatprep.subr.mxu0 0.0
    %6139 = vmatpush1.xpose.msra.mxu0 0.0
    %6140 = vmatprep.subr.mxu0 0.0
    %6141 = vmatpush1.xpose.msra.mxu0 0.0
    %6142 = vmatprep.subr.mxu0 0.0
    %6143 = vmatpush1.xpose.msra.mxu0 0.0
    %6144 = vmatprep.subr.mxu0 0.0
    %6145 = vmatpush1.xpose.msra.mxu0 0.0
    %6146 = vmatprep.subr.mxu0 0.0
    %6147 = vmatpush1.xpose.msra.mxu0 0.0
    %6148 = vmatprep.subr.mxu0 0.0
    %6149 = vmatpush1.xpose.msra.mxu0 0.0
    %6150 = vmatprep.mubr.f32.mxu0 0.0
    %6151 = vmatmul.mubr.f32.gmra.mrb[0].mxu0 %v6054
    %v6152 = vpop.f32.mrb[0].mxu0
    %v6153 = vadd.f32 %v5100, %v6152
    %v6154 = vpop.f32.mrb[0].mxu0
    %6155 = vmatprep.mubr.f32.mxu0 0.0
    %6156 = vmatmul.mubr.f32.gmra.mrb[0].mxu0 %v6056
    %v6157 = vpop.f32.mrb[0].mxu0
    %v6158 = vadd.f32 %v5101, %v6157
    %v6159 = vpop.f32.mrb[0].mxu0
    %6160 = vmatprep.mubr.f32.mxu0 0.0
    %6161 = vmatmul.mubr.f32.gmra.mrb[0].mxu0 %v6058
    %v6162 = vpop.f32.mrb[0].mxu0
    %v6163 = vadd.f32 %v5102, %v6162
    %v6164 = vpop.f32.mrb[0].mxu0
    %6165 = vmatprep.mubr.f32.mxu0 0.0
    %6166 = vmatmul.mubr.f32.gmra.mrb[0].mxu0 %v6060
    %v6167 = vpop.f32.mrb[0].mxu0
    %v6168 = vadd.f32 %v5103, %v6167
    %v6169 = vpop.f32.mrb[0].mxu0
    %6170 = vmatprep.mubr.f32.mxu0 0.0
    %6171 = vmatmul.mubr.f32.gmra.mrb[0].mxu0 %v6062
    %v6172 = vpop.f32.mrb[0].mxu0
    %v6173 = vadd.f32 %v5104, %v6172
    %v6174 = vpop.f32.mrb[0].mxu0
    %6175 = vmatprep.mubr.f32.mxu0 0.0
    %6176 = vmatmul.mubr.f32.gmra.mrb[0].mxu0 %v6064
    %v6177 = vpop.f32.mrb[0].mxu0
    %v6178 = vadd.f32 %v5105, %v6177
    %v6179 = vpop.f32.mrb[0].mxu0
    %6180 = vmatprep.mubr.f32.mxu0 0.0
    %6181 = vmatmul.mubr.f32.gmra.mrb[0].mxu0 %v6066
    %v6182 = vpop.f32.mrb[0].mxu0
    %v6183 = vadd.f32 %v5106, %v6182
    %v6184 = vpop.f32.mrb[0].mxu0
    %6185 = vmatprep.mubr.f32.mxu0 0.0
    %6186 = vmatmul.mubr.f32.gmra.mrb[0].mxu0 %v6068
    %v6187 = vpop.f32.mrb[0].mxu0
    %v6188 = vadd.f32 %v5107, %v6187
    %v6189 = vpop.f32.mrb[0].mxu0
    %6190 = vdwg.mxu0
    %v6191 = vsel %vm660, %v6153, -inf
    %6192 = vmax.xlane.f32.xlu0 %v6191
    %v6193 = vpop.xlane.xlu0 %6192
    %v6194 = vsel %vm660, %v6158, -inf
    %6195 = vmax.xlane.f32.xlu0 %v6194
    %v6196 = vpop.xlane.xlu0 %6195
    %v6197 = vsel %vm660, %v6163, -inf
    %6198 = vmax.xlane.f32.xlu0 %v6197
    %v6199 = vpop.xlane.xlu0 %6198
    %v6200 = vsel %vm660, %v6168, -inf
    %6201 = vmax.xlane.f32.xlu0 %v6200
    %v6202 = vpop.xlane.xlu0 %6201
    %v6203 = vsel %vm660, %v6173, -inf
    %6204 = vmax.xlane.f32.xlu0 %v6203
    %v6205 = vpop.xlane.xlu0 %6204
    %v6206 = vsel %vm660, %v6178, -inf
    %6207 = vmax.xlane.f32.xlu0 %v6206
    %v6208 = vpop.xlane.xlu0 %6207
    %v6209 = vsel %vm660, %v6183, -inf
    %6210 = vmax.xlane.f32.xlu0 %v6209
    %v6211 = vpop.xlane.xlu0 %6210
    %v6212 = vsel %vm660, %v6188, -inf
    %6213 = vmax.xlane.f32.xlu0 %v6212
    %v6214 = vpop.xlane.xlu0 %6213
    %v6215 = vsub.f32 %v6153, %v6193
    %v6216 = vsub.f32 %v6158, %v6196
    %v6217 = vsub.f32 %v6163, %v6199
    %v6218 = vsub.f32 %v6168, %v6202
    %v6219 = vsub.f32 %v6173, %v6205
    %v6220 = vsub.f32 %v6178, %v6208
    %v6221 = vsub.f32 %v6183, %v6211
    %v6222 = vsub.f32 %v6188, %v6214
    %v6223 = vmul.f32 %v6215, 1.442695
    %v6224 = vpow.pop %v6223
    %v6225 = vmul.f32 %v6216, 1.442695
    %v6226 = vpow.pop %v6225
    %v6227 = vmul.f32 %v6217, 1.442695
    %v6228 = vpow.pop %v6227
    %v6229 = vmul.f32 %v6218, 1.442695
    %v6230 = vpow.pop %v6229
    %v6231 = vmul.f32 %v6219, 1.442695
    %v6232 = vpow.pop %v6231
    %v6233 = vmul.f32 %v6220, 1.442695
    %v6234 = vpow.pop %v6233
    %v6235 = vmul.f32 %v6221, 1.442695
    %v6236 = vpow.pop %v6235
    %v6237 = vmul.f32 %v6222, 1.442695
    %v6238 = vpow.pop %v6237
    %v6239 = vsel %vm660, %v6224, 0.0
    %6240 = vadd.xlane.f32.xlu0 %v6239
    %v6241 = vpop.xlane.xlu0 %6240
    %v6242 = vsel %vm660, %v6226, 0.0
    %6243 = vadd.xlane.f32.xlu0 %v6242
    %v6244 = vpop.xlane.xlu0 %6243
    %v6245 = vsel %vm660, %v6228, 0.0
    %6246 = vadd.xlane.f32.xlu0 %v6245
    %v6247 = vpop.xlane.xlu0 %6246
    %v6248 = vsel %vm660, %v6230, 0.0
    %6249 = vadd.xlane.f32.xlu0 %v6248
    %v6250 = vpop.xlane.xlu0 %6249
    %v6251 = vsel %vm660, %v6232, 0.0
    %6252 = vadd.xlane.f32.xlu0 %v6251
    %v6253 = vpop.xlane.xlu0 %6252
    %v6254 = vsel %vm660, %v6234, 0.0
    %6255 = vadd.xlane.f32.xlu0 %v6254
    %v6256 = vpop.xlane.xlu0 %6255
    %v6257 = vsel %vm660, %v6236, 0.0
    %6258 = vadd.xlane.f32.xlu0 %v6257
    %v6259 = vpop.xlane.xlu0 %6258
    %v6260 = vsel %vm660, %v6238, 0.0
    %6261 = vadd.xlane.f32.xlu0 %v6260
    %v6262 = vpop.xlane.xlu0 %6261
    %v6263 = vrcp.pop %v6241
    %v6264 = vrcp.pop %v6244
    %v6265 = vrcp.pop %v6247
    %v6266 = vrcp.pop %v6250
    %v6267 = vrcp.pop %v6253
    %v6268 = vrcp.pop %v6256
    %v6269 = vrcp.pop %v6259
    %v6270 = vrcp.pop %v6262
    %v6271 = vmul.f32 %v6224, %v6263
    %v6272 = vmul.f32 %v6226, %v6264
    %v6273 = vmul.f32 %v6228, %v6265
    %v6274 = vmul.f32 %v6230, %v6266
    %v6275 = vmul.f32 %v6232, %v6267
    %v6276 = vmul.f32 %v6234, %v6268
    %v6277 = vmul.f32 %v6236, %v6269
    %v6278 = vmul.f32 %v6238, %v6270
    %6279 = vrot.lane.b32.xlu0 %v5582, 56
    %v6280 = vpop.permute.xlu0 %6279
    %6281 = vrot.lane.b32.xlu0 %v5587, 56
    %v6282 = vpop.permute.xlu0 %6281
    %6283 = vrot.lane.b32.xlu0 %v5592, 56
    %v6284 = vpop.permute.xlu0 %6283
    %6285 = vrot.lane.b32.xlu0 %v5597, 56
    %v6286 = vpop.permute.xlu0 %6285
    %6287 = vrot.lane.b32.xlu0 %v5602, 56
    %v6288 = vpop.permute.xlu0 %6287
    %6289 = vrot.lane.b32.xlu0 %v5607, 56
    %v6290 = vpop.permute.xlu0 %6289
    %6291 = vrot.lane.b32.xlu0 %v5612, 56
    %v6292 = vpop.permute.xlu0 %6291
    %6293 = vrot.lane.b32.xlu0 %v5617, 56
    %v6294 = vpop.permute.xlu0 %6293
    %v6304 = vsel %vm660, %v6271, 0
    %v6307 = vsel %vm660, %v6272, 0
    %v6310 = vsel %vm660, %v6273, 0
    %v6313 = vsel %vm660, %v6274, 0
    %v6316 = vsel %vm660, %v6275, 0
    %v6319 = vsel %vm660, %v6276, 0
    %v6322 = vsel %vm660, %v6277, 0
    %v6325 = vsel %vm660, %v6278, 0
    %6327 = vmatprep.subr.mxu0 0.0
    %6328 = vmatpush1.msra.mxu0 %v6280
    %6329 = vmatprep.subr.mxu0 0.0
    %6330 = vmatpush1.msra.mxu0 %v6282
    %6331 = vmatprep.subr.mxu0 0.0
    %6332 = vmatpush1.msra.mxu0 %v6284
    %6333 = vmatprep.subr.mxu0 0.0
    %6334 = vmatpush1.msra.mxu0 %v6286
    %6335 = vmatprep.subr.mxu0 0.0
    %6336 = vmatpush1.msra.mxu0 %v6288
    %6337 = vmatprep.subr.mxu0 0.0
    %6338 = vmatpush1.msra.mxu0 %v6290
    %6339 = vmatprep.subr.mxu0 0.0
    %6340 = vmatpush1.msra.mxu0 %v6292
    %6341 = vmatprep.subr.mxu0 0.0
    %6342 = vmatpush1.msra.mxu0 %v6294
    %6343 = vmatprep.subr.mxu0 0.0
    %6344 = vmatpush1.msra.mxu0 0.0
    %6345 = vmatprep.subr.mxu0 0.0
    %6346 = vmatpush1.msra.mxu0 0.0
    %6347 = vmatprep.subr.mxu0 0.0
    %6348 = vmatpush1.msra.mxu0 0.0
    %6349 = vmatprep.subr.mxu0 0.0
    %6350 = vmatpush1.msra.mxu0 0.0
    %6351 = vmatprep.subr.mxu0 0.0
    %6352 = vmatpush1.msra.mxu0 0.0
    %6353 = vmatprep.subr.mxu0 0.0
    %6354 = vmatpush1.msra.mxu0 0.0
    %6355 = vmatprep.subr.mxu0 0.0
    %6356 = vmatpush1.msra.mxu0 0.0
    %6357 = vmatprep.subr.mxu0 0.0
    %6358 = vmatpush1.msra.mxu0 0.0
    %6359 = vmatprep.subr.mxu0 0.0
    %6360 = vmatpush1.msra.mxu0 0.0
    %6361 = vmatprep.subr.mxu0 0.0
    %6362 = vmatpush1.msra.mxu0 0.0
    %6363 = vmatprep.subr.mxu0 0.0
    %6364 = vmatpush1.msra.mxu0 0.0
    %6365 = vmatprep.subr.mxu0 0.0
    %6366 = vmatpush1.msra.mxu0 0.0
    %6367 = vmatprep.subr.mxu0 0.0
    %6368 = vmatpush1.msra.mxu0 0.0
    %6369 = vmatprep.subr.mxu0 0.0
    %6370 = vmatpush1.msra.mxu0 0.0
    %6371 = vmatprep.subr.mxu0 0.0
    %6372 = vmatpush1.msra.mxu0 0.0
    %6373 = vmatprep.subr.mxu0 0.0
    %6374 = vmatpush1.msra.mxu0 0.0
    %6375 = vmatprep.subr.mxu0 0.0
    %6376 = vmatpush1.msra.mxu0 0.0
    %6377 = vmatprep.subr.mxu0 0.0
    %6378 = vmatpush1.msra.mxu0 0.0
    %6379 = vmatprep.subr.mxu0 0.0
    %6380 = vmatpush1.msra.mxu0 0.0
    %6381 = vmatprep.subr.mxu0 0.0
    %6382 = vmatpush1.msra.mxu0 0.0
    %6383 = vmatprep.subr.mxu0 0.0
    %6384 = vmatpush1.msra.mxu0 0.0
    %6385 = vmatprep.subr.mxu0 0.0
    %6386 = vmatpush1.msra.mxu0 0.0
    %6387 = vmatprep.subr.mxu0 0.0
    %6388 = vmatpush1.msra.mxu0 0.0
    %6389 = vmatprep.subr.mxu0 0.0
    %6390 = vmatpush1.msra.mxu0 0.0
    %6391 = vmatprep.mubr.f32.mxu0 0.0
    %6392 = vmatmul.mubr.f32.gmra.mrb[0].mxu0 %v6304
    %v6393 = vpop.f32.mrb[0].mxu0
    %v6394 = vadd.f32 0.0, %v6393
    %v6395 = vpop.f32.mrb[0].mxu0
    %6396 = vmatprep.mubr.f32.mxu0 0.0
    %6397 = vmatmul.mubr.f32.gmra.mrb[0].mxu0 %v6307
    %v6398 = vpop.f32.mrb[0].mxu0
    %v6399 = vadd.f32 0.0, %v6398
    %v6400 = vpop.f32.mrb[0].mxu0
    %6401 = vmatprep.mubr.f32.mxu0 0.0
    %6402 = vmatmul.mubr.f32.gmra.mrb[0].mxu0 %v6310
    %v6403 = vpop.f32.mrb[0].mxu0
    %v6404 = vadd.f32 0.0, %v6403
    %v6405 = vpop.f32.mrb[0].mxu0
    %6406 = vmatprep.mubr.f32.mxu0 0.0
    %6407 = vmatmul.mubr.f32.gmra.mrb[0].mxu0 %v6313
    %v6408 = vpop.f32.mrb[0].mxu0
    %v6409 = vadd.f32 0.0, %v6408
    %v6410 = vpop.f32.mrb[0].mxu0
    %6411 = vmatprep.mubr.f32.mxu0 0.0
    %6412 = vmatmul.mubr.f32.gmra.mrb[0].mxu0 %v6316
    %v6413 = vpop.f32.mrb[0].mxu0
    %v6414 = vadd.f32 0.0, %v6413
    %v6415 = vpop.f32.mrb[0].mxu0
    %6416 = vmatprep.mubr.f32.mxu0 0.0
    %6417 = vmatmul.mubr.f32.gmra.mrb[0].mxu0 %v6319
    %v6418 = vpop.f32.mrb[0].mxu0
    %v6419 = vadd.f32 0.0, %v6418
    %v6420 = vpop.f32.mrb[0].mxu0
    %6421 = vmatprep.mubr.f32.mxu0 0.0
    %6422 = vmatmul.mubr.f32.gmra.mrb[0].mxu0 %v6322
    %v6423 = vpop.f32.mrb[0].mxu0
    %v6424 = vadd.f32 0.0, %v6423
    %v6425 = vpop.f32.mrb[0].mxu0
    %6426 = vmatprep.mubr.f32.mxu0 0.0
    %6427 = vmatmul.mubr.f32.gmra.mrb[0].mxu0 %v6325
    %v6428 = vpop.f32.mrb[0].mxu0
    %v6429 = vadd.f32 0.0, %v6428
    %v6430 = vpop.f32.mrb[0].mxu0
    %6431 = vdwg.mxu0
    %6432 = vrot.lane.b32.xlu0 %v5582, 112
    %v6433 = vpop.permute.xlu0 %6432
    %6434 = vrot.lane.b32.xlu0 %v5587, 112
    %v6435 = vpop.permute.xlu0 %6434
    %6436 = vrot.lane.b32.xlu0 %v5592, 112
    %v6437 = vpop.permute.xlu0 %6436
    %6438 = vrot.lane.b32.xlu0 %v5597, 112
    %v6439 = vpop.permute.xlu0 %6438
    %6440 = vrot.lane.b32.xlu0 %v5602, 112
    %v6441 = vpop.permute.xlu0 %6440
    %6442 = vrot.lane.b32.xlu0 %v5607, 112
    %v6443 = vpop.permute.xlu0 %6442
    %6444 = vrot.lane.b32.xlu0 %v5612, 112
    %v6445 = vpop.permute.xlu0 %6444
    %6446 = vrot.lane.b32.xlu0 %v5617, 112
    %v6447 = vpop.permute.xlu0 %6446
    %6448 = vrot.lane.b32.xlu0 %v5582, 80
    %v6449 = vpop.permute.xlu0 %6448
    %6450 = vrot.lane.b32.xlu0 %v5587, 80
    %v6451 = vpop.permute.xlu0 %6450
    %6452 = vrot.lane.b32.xlu0 %v5592, 80
    %v6453 = vpop.permute.xlu0 %6452
    %6454 = vrot.lane.b32.xlu0 %v5597, 80
    %v6455 = vpop.permute.xlu0 %6454
    %6456 = vrot.lane.b32.xlu0 %v5602, 80
    %v6457 = vpop.permute.xlu0 %6456
    %6458 = vrot.lane.b32.xlu0 %v5607, 80
    %v6459 = vpop.permute.xlu0 %6458
    %6460 = vrot.lane.b32.xlu0 %v5612, 80
    %v6461 = vpop.permute.xlu0 %6460
    %6462 = vrot.lane.b32.xlu0 %v5617, 80
    %v6463 = vpop.permute.xlu0 %6462
    %v6464 = vsel %vm522, %v6433, 0
    %v6466 = vsel %vm522, %v6435, 0
    %v6468 = vsel %vm522, %v6437, 0
    %v6470 = vsel %vm522, %v6439, 0
    %v6472 = vsel %vm522, %v6441, 0
    %v6474 = vsel %vm522, %v6443, 0
    %v6476 = vsel %vm522, %v6445, 0
    %v6478 = vsel %vm522, %v6447, 0
    %v6480 = vsel %vm522, %v6449, 0
    %v6482 = vsel %vm522, %v6451, 0
    %v6484 = vsel %vm522, %v6453, 0
    %v6486 = vsel %vm522, %v6455, 0
    %v6488 = vsel %vm522, %v6457, 0
    %v6490 = vsel %vm522, %v6459, 0
    %v6492 = vsel %vm522, %v6461, 0
    %v6494 = vsel %vm522, %v6463, 0
    %6496 = vmatprep.subr.mxu0 0.0
    %6497 = vmatpush1.xpose.msra.mxu0 %v6480
    %6498 = vmatprep.subr.mxu0 0.0
    %6499 = vmatpush1.xpose.msra.mxu0 %v6482
    %6500 = vmatprep.subr.mxu0 0.0
    %6501 = vmatpush1.xpose.msra.mxu0 %v6484
    %6502 = vmatprep.subr.mxu0 0.0
    %6503 = vmatpush1.xpose.msra.mxu0 %v6486
    %6504 = vmatprep.subr.mxu0 0.0
    %6505 = vmatpush1.xpose.msra.mxu0 %v6488
    %6506 = vmatprep.subr.mxu0 0.0
    %6507 = vmatpush1.xpose.msra.mxu0 %v6490
    %6508 = vmatprep.subr.mxu0 0.0
    %6509 = vmatpush1.xpose.msra.mxu0 %v6492
    %6510 = vmatprep.subr.mxu0 0.0
    %6511 = vmatpush1.xpose.msra.mxu0 %v6494
    %6512 = vmatprep.subr.mxu0 0.0
    %6513 = vmatpush1.xpose.msra.mxu0 0.0
    %6514 = vmatprep.subr.mxu0 0.0
    %6515 = vmatpush1.xpose.msra.mxu0 0.0
    %6516 = vmatprep.subr.mxu0 0.0
    %6517 = vmatpush1.xpose.msra.mxu0 0.0
    %6518 = vmatprep.subr.mxu0 0.0
    %6519 = vmatpush1.xpose.msra.mxu0 0.0
    %6520 = vmatprep.subr.mxu0 0.0
    %6521 = vmatpush1.xpose.msra.mxu0 0.0
    %6522 = vmatprep.subr.mxu0 0.0
    %6523 = vmatpush1.xpose.msra.mxu0 0.0
    %6524 = vmatprep.subr.mxu0 0.0
    %6525 = vmatpush1.xpose.msra.mxu0 0.0
    %6526 = vmatprep.subr.mxu0 0.0
    %6527 = vmatpush1.xpose.msra.mxu0 0.0
    %6528 = vmatprep.subr.mxu0 0.0
    %6529 = vmatpush1.xpose.msra.mxu0 0.0
    %6530 = vmatprep.subr.mxu0 0.0
    %6531 = vmatpush1.xpose.msra.mxu0 0.0
    %6532 = vmatprep.subr.mxu0 0.0
    %6533 = vmatpush1.xpose.msra.mxu0 0.0
    %6534 = vmatprep.subr.mxu0 0.0
    %6535 = vmatpush1.xpose.msra.mxu0 0.0
    %6536 = vmatprep.subr.mxu0 0.0
    %6537 = vmatpush1.xpose.msra.mxu0 0.0
    %6538 = vmatprep.subr.mxu0 0.0
    %6539 = vmatpush1.xpose.msra.mxu0 0.0
    %6540 = vmatprep.subr.mxu0 0.0
    %6541 = vmatpush1.xpose.msra.mxu0 0.0
    %6542 = vmatprep.subr.mxu0 0.0
    %6543 = vmatpush1.xpose.msra.mxu0 0.0
    %6544 = vmatprep.subr.mxu0 0.0
    %6545 = vmatpush1.xpose.msra.mxu0 0.0
    %6546 = vmatprep.subr.mxu0 0.0
    %6547 = vmatpush1.xpose.msra.mxu0 0.0
    %6548 = vmatprep.subr.mxu0 0.0
    %6549 = vmatpush1.xpose.msra.mxu0 0.0
    %6550 = vmatprep.subr.mxu0 0.0
    %6551 = vmatpush1.xpose.msra.mxu0 0.0
    %6552 = vmatprep.subr.mxu0 0.0
    %6553 = vmatpush1.xpose.msra.mxu0 0.0
    %6554 = vmatprep.subr.mxu0 0.0
    %6555 = vmatpush1.xpose.msra.mxu0 0.0
    %6556 = vmatprep.subr.mxu0 0.0
    %6557 = vmatpush1.xpose.msra.mxu0 0.0
    %6558 = vmatprep.subr.mxu0 0.0
    %6559 = vmatpush1.xpose.msra.mxu0 0.0
    %6560 = vmatprep.mubr.f32.mxu0 0.0
    %6561 = vmatmul.mubr.f32.gmra.mrb[0].mxu0 %v6464
    %v6562 = vpop.f32.mrb[0].mxu0
    %v6563 = vadd.f32 %v5100, %v6562
    %v6564 = vpop.f32.mrb[0].mxu0
    %6565 = vmatprep.mubr.f32.mxu0 0.0
    %6566 = vmatmul.mubr.f32.gmra.mrb[0].mxu0 %v6466
    %v6567 = vpop.f32.mrb[0].mxu0
    %v6568 = vadd.f32 %v5101, %v6567
    %v6569 = vpop.f32.mrb[0].mxu0
    %6570 = vmatprep.mubr.f32.mxu0 0.0
    %6571 = vmatmul.mubr.f32.gmra.mrb[0].mxu0 %v6468
    %v6572 = vpop.f32.mrb[0].mxu0
    %v6573 = vadd.f32 %v5102, %v6572
    %v6574 = vpop.f32.mrb[0].mxu0
    %6575 = vmatprep.mubr.f32.mxu0 0.0
    %6576 = vmatmul.mubr.f32.gmra.mrb[0].mxu0 %v6470
    %v6577 = vpop.f32.mrb[0].mxu0
    %v6578 = vadd.f32 %v5103, %v6577
    %v6579 = vpop.f32.mrb[0].mxu0
    %6580 = vmatprep.mubr.f32.mxu0 0.0
    %6581 = vmatmul.mubr.f32.gmra.mrb[0].mxu0 %v6472
    %v6582 = vpop.f32.mrb[0].mxu0
    %v6583 = vadd.f32 %v5104, %v6582
    %v6584 = vpop.f32.mrb[0].mxu0
    %6585 = vmatprep.mubr.f32.mxu0 0.0
    %6586 = vmatmul.mubr.f32.gmra.mrb[0].mxu0 %v6474
    %v6587 = vpop.f32.mrb[0].mxu0
    %v6588 = vadd.f32 %v5105, %v6587
    %v6589 = vpop.f32.mrb[0].mxu0
    %6590 = vmatprep.mubr.f32.mxu0 0.0
    %6591 = vmatmul.mubr.f32.gmra.mrb[0].mxu0 %v6476
    %v6592 = vpop.f32.mrb[0].mxu0
    %v6593 = vadd.f32 %v5106, %v6592
    %v6594 = vpop.f32.mrb[0].mxu0
    %6595 = vmatprep.mubr.f32.mxu0 0.0
    %6596 = vmatmul.mubr.f32.gmra.mrb[0].mxu0 %v6478
    %v6597 = vpop.f32.mrb[0].mxu0
    %v6598 = vadd.f32 %v5107, %v6597
    %v6599 = vpop.f32.mrb[0].mxu0
    %6600 = vdwg.mxu0
    %v6601 = vsel %vm660, %v6563, -inf
    %6602 = vmax.xlane.f32.xlu0 %v6601
    %v6603 = vpop.xlane.xlu0 %6602
    %v6604 = vsel %vm660, %v6568, -inf
    %6605 = vmax.xlane.f32.xlu0 %v6604
    %v6606 = vpop.xlane.xlu0 %6605
    %v6607 = vsel %vm660, %v6573, -inf
    %6608 = vmax.xlane.f32.xlu0 %v6607
    %v6609 = vpop.xlane.xlu0 %6608
    %v6610 = vsel %vm660, %v6578, -inf
    %6611 = vmax.xlane.f32.xlu0 %v6610
    %v6612 = vpop.xlane.xlu0 %6611
    %v6613 = vsel %vm660, %v6583, -inf
    %6614 = vmax.xlane.f32.xlu0 %v6613
    %v6615 = vpop.xlane.xlu0 %6614
    %v6616 = vsel %vm660, %v6588, -inf
    %6617 = vmax.xlane.f32.xlu0 %v6616
    %v6618 = vpop.xlane.xlu0 %6617
    %v6619 = vsel %vm660, %v6593, -inf
    %6620 = vmax.xlane.f32.xlu0 %v6619
    %v6621 = vpop.xlane.xlu0 %6620
    %v6622 = vsel %vm660, %v6598, -inf
    %6623 = vmax.xlane.f32.xlu0 %v6622
    %v6624 = vpop.xlane.xlu0 %6623
    %v6625 = vsub.f32 %v6563, %v6603
    %v6626 = vsub.f32 %v6568, %v6606
    %v6627 = vsub.f32 %v6573, %v6609
    %v6628 = vsub.f32 %v6578, %v6612
    %v6629 = vsub.f32 %v6583, %v6615
    %v6630 = vsub.f32 %v6588, %v6618
    %v6631 = vsub.f32 %v6593, %v6621
    %v6632 = vsub.f32 %v6598, %v6624
    %v6633 = vmul.f32 %v6625, 1.442695
    %v6634 = vpow.pop %v6633
    %v6635 = vmul.f32 %v6626, 1.442695
    %v6636 = vpow.pop %v6635
    %v6637 = vmul.f32 %v6627, 1.442695
    %v6638 = vpow.pop %v6637
    %v6639 = vmul.f32 %v6628, 1.442695
    %v6640 = vpow.pop %v6639
    %v6641 = vmul.f32 %v6629, 1.442695
    %v6642 = vpow.pop %v6641
    %v6643 = vmul.f32 %v6630, 1.442695
    %v6644 = vpow.pop %v6643
    %v6645 = vmul.f32 %v6631, 1.442695
    %v6646 = vpow.pop %v6645
    %v6647 = vmul.f32 %v6632, 1.442695
    %v6648 = vpow.pop %v6647
    %v6649 = vsel %vm660, %v6634, 0.0
    %6650 = vadd.xlane.f32.xlu0 %v6649
    %v6651 = vpop.xlane.xlu0 %6650
    %v6652 = vsel %vm660, %v6636, 0.0
    %6653 = vadd.xlane.f32.xlu0 %v6652
    %v6654 = vpop.xlane.xlu0 %6653
    %v6655 = vsel %vm660, %v6638, 0.0
    %6656 = vadd.xlane.f32.xlu0 %v6655
    %v6657 = vpop.xlane.xlu0 %6656
    %v6658 = vsel %vm660, %v6640, 0.0
    %6659 = vadd.xlane.f32.xlu0 %v6658
    %v6660 = vpop.xlane.xlu0 %6659
    %v6661 = vsel %vm660, %v6642, 0.0
    %6662 = vadd.xlane.f32.xlu0 %v6661
    %v6663 = vpop.xlane.xlu0 %6662
    %v6664 = vsel %vm660, %v6644, 0.0
    %6665 = vadd.xlane.f32.xlu0 %v6664
    %v6666 = vpop.xlane.xlu0 %6665
    %v6667 = vsel %vm660, %v6646, 0.0
    %6668 = vadd.xlane.f32.xlu0 %v6667
    %v6669 = vpop.xlane.xlu0 %6668
    %v6670 = vsel %vm660, %v6648, 0.0
    %6671 = vadd.xlane.f32.xlu0 %v6670
    %v6672 = vpop.xlane.xlu0 %6671
    %v6673 = vrcp.pop %v6651
    %v6674 = vrcp.pop %v6654
    %v6675 = vrcp.pop %v6657
    %v6676 = vrcp.pop %v6660
    %v6677 = vrcp.pop %v6663
    %v6678 = vrcp.pop %v6666
    %v6679 = vrcp.pop %v6669
    %v6680 = vrcp.pop %v6672
    %v6681 = vmul.f32 %v6634, %v6673
    %v6682 = vmul.f32 %v6636, %v6674
    %v6683 = vmul.f32 %v6638, %v6675
    %v6684 = vmul.f32 %v6640, %v6676
    %v6685 = vmul.f32 %v6642, %v6677
    %v6686 = vmul.f32 %v6644, %v6678
    %v6687 = vmul.f32 %v6646, %v6679
    %v6688 = vmul.f32 %v6648, %v6680
    %6689 = vrot.lane.b32.xlu0 %v5582, 48
    %v6690 = vpop.permute.xlu0 %6689
    %6691 = vrot.lane.b32.xlu0 %v5587, 48
    %v6692 = vpop.permute.xlu0 %6691
    %6693 = vrot.lane.b32.xlu0 %v5592, 48
    %v6694 = vpop.permute.xlu0 %6693
    %6695 = vrot.lane.b32.xlu0 %v5597, 48
    %v6696 = vpop.permute.xlu0 %6695
    %6697 = vrot.lane.b32.xlu0 %v5602, 48
    %v6698 = vpop.permute.xlu0 %6697
    %6699 = vrot.lane.b32.xlu0 %v5607, 48
    %v6700 = vpop.permute.xlu0 %6699
    %6701 = vrot.lane.b32.xlu0 %v5612, 48
    %v6702 = vpop.permute.xlu0 %6701
    %6703 = vrot.lane.b32.xlu0 %v5617, 48
    %v6704 = vpop.permute.xlu0 %6703
    %v6714 = vsel %vm660, %v6681, 0
    %v6717 = vsel %vm660, %v6682, 0
    %v6720 = vsel %vm660, %v6683, 0
    %v6723 = vsel %vm660, %v6684, 0
    %v6726 = vsel %vm660, %v6685, 0
    %v6729 = vsel %vm660, %v6686, 0
    %v6732 = vsel %vm660, %v6687, 0
    %v6735 = vsel %vm660, %v6688, 0
    %6737 = vmatprep.subr.mxu0 0.0
    %6738 = vmatpush1.msra.mxu0 %v6690
    %6739 = vmatprep.subr.mxu0 0.0
    %6740 = vmatpush1.msra.mxu0 %v6692
    %6741 = vmatprep.subr.mxu0 0.0
    %6742 = vmatpush1.msra.mxu0 %v6694
    %6743 = vmatprep.subr.mxu0 0.0
    %6744 = vmatpush1.msra.mxu0 %v6696
    %6745 = vmatprep.subr.mxu0 0.0
    %6746 = vmatpush1.msra.mxu0 %v6698
    %6747 = vmatprep.subr.mxu0 0.0
    %6748 = vmatpush1.msra.mxu0 %v6700
    %6749 = vmatprep.subr.mxu0 0.0
    %6750 = vmatpush1.msra.mxu0 %v6702
    %6751 = vmatprep.subr.mxu0 0.0
    %6752 = vmatpush1.msra.mxu0 %v6704
    %6753 = vmatprep.subr.mxu0 0.0
    %6754 = vmatpush1.msra.mxu0 0.0
    %6755 = vmatprep.subr.mxu0 0.0
    %6756 = vmatpush1.msra.mxu0 0.0
    %6757 = vmatprep.subr.mxu0 0.0
    %6758 = vmatpush1.msra.mxu0 0.0
    %6759 = vmatprep.subr.mxu0 0.0
    %6760 = vmatpush1.msra.mxu0 0.0
    %6761 = vmatprep.subr.mxu0 0.0
    %6762 = vmatpush1.msra.mxu0 0.0
    %6763 = vmatprep.subr.mxu0 0.0
    %6764 = vmatpush1.msra.mxu0 0.0
    %6765 = vmatprep.subr.mxu0 0.0
    %6766 = vmatpush1.msra.mxu0 0.0
    %6767 = vmatprep.subr.mxu0 0.0
    %6768 = vmatpush1.msra.mxu0 0.0
    %6769 = vmatprep.subr.mxu0 0.0
    %6770 = vmatpush1.msra.mxu0 0.0
    %6771 = vmatprep.subr.mxu0 0.0
    %6772 = vmatpush1.msra.mxu0 0.0
    %6773 = vmatprep.subr.mxu0 0.0
    %6774 = vmatpush1.msra.mxu0 0.0
    %6775 = vmatprep.subr.mxu0 0.0
    %6776 = vmatpush1.msra.mxu0 0.0
    %6777 = vmatprep.subr.mxu0 0.0
    %6778 = vmatpush1.msra.mxu0 0.0
    %6779 = vmatprep.subr.mxu0 0.0
    %6780 = vmatpush1.msra.mxu0 0.0
    %6781 = vmatprep.subr.mxu0 0.0
    %6782 = vmatpush1.msra.mxu0 0.0
    %6783 = vmatprep.subr.mxu0 0.0
    %6784 = vmatpush1.msra.mxu0 0.0
    %6785 = vmatprep.subr.mxu0 0.0
    %6786 = vmatpush1.msra.mxu0 0.0
    %6787 = vmatprep.subr.mxu0 0.0
    %6788 = vmatpush1.msra.mxu0 0.0
    %6789 = vmatprep.subr.mxu0 0.0
    %6790 = vmatpush1.msra.mxu0 0.0
    %6791 = vmatprep.subr.mxu0 0.0
    %6792 = vmatpush1.msra.mxu0 0.0
    %6793 = vmatprep.subr.mxu0 0.0
    %6794 = vmatpush1.msra.mxu0 0.0
    %6795 = vmatprep.subr.mxu0 0.0
    %6796 = vmatpush1.msra.mxu0 0.0
    %6797 = vmatprep.subr.mxu0 0.0
    %6798 = vmatpush1.msra.mxu0 0.0
    %6799 = vmatprep.subr.mxu0 0.0
    %6800 = vmatpush1.msra.mxu0 0.0
    %6801 = vmatprep.mubr.f32.mxu0 0.0
    %6802 = vmatmul.mubr.f32.gmra.mrb[0].mxu0 %v6714
    %v6803 = vpop.f32.mrb[0].mxu0
    %v6804 = vadd.f32 0.0, %v6803
    %v6805 = vpop.f32.mrb[0].mxu0
    %6806 = vmatprep.mubr.f32.mxu0 0.0
    %6807 = vmatmul.mubr.f32.gmra.mrb[0].mxu0 %v6717
    %v6808 = vpop.f32.mrb[0].mxu0
    %v6809 = vadd.f32 0.0, %v6808
    %v6810 = vpop.f32.mrb[0].mxu0
    %6811 = vmatprep.mubr.f32.mxu0 0.0
    %6812 = vmatmul.mubr.f32.gmra.mrb[0].mxu0 %v6720
    %v6813 = vpop.f32.mrb[0].mxu0
    %v6814 = vadd.f32 0.0, %v6813
    %v6815 = vpop.f32.mrb[0].mxu0
    %6816 = vmatprep.mubr.f32.mxu0 0.0
    %6817 = vmatmul.mubr.f32.gmra.mrb[0].mxu0 %v6723
    %v6818 = vpop.f32.mrb[0].mxu0
    %v6819 = vadd.f32 0.0, %v6818
    %v6820 = vpop.f32.mrb[0].mxu0
    %6821 = vmatprep.mubr.f32.mxu0 0.0
    %6822 = vmatmul.mubr.f32.gmra.mrb[0].mxu0 %v6726
    %v6823 = vpop.f32.mrb[0].mxu0
    %v6824 = vadd.f32 0.0, %v6823
    %v6825 = vpop.f32.mrb[0].mxu0
    %6826 = vmatprep.mubr.f32.mxu0 0.0
    %6827 = vmatmul.mubr.f32.gmra.mrb[0].mxu0 %v6729
    %v6828 = vpop.f32.mrb[0].mxu0
    %v6829 = vadd.f32 0.0, %v6828
    %v6830 = vpop.f32.mrb[0].mxu0
    %6831 = vmatprep.mubr.f32.mxu0 0.0
    %6832 = vmatmul.mubr.f32.gmra.mrb[0].mxu0 %v6732
    %v6833 = vpop.f32.mrb[0].mxu0
    %v6834 = vadd.f32 0.0, %v6833
    %v6835 = vpop.f32.mrb[0].mxu0
    %6836 = vmatprep.mubr.f32.mxu0 0.0
    %6837 = vmatmul.mubr.f32.gmra.mrb[0].mxu0 %v6735
    %v6838 = vpop.f32.mrb[0].mxu0
    %v6839 = vadd.f32 0.0, %v6838
    %v6840 = vpop.f32.mrb[0].mxu0
    %6841 = vdwg.mxu0
    %6842 = vrot.lane.b32.xlu0 %v5582, 104
    %v6843 = vpop.permute.xlu0 %6842
    %6844 = vrot.lane.b32.xlu0 %v5587, 104
    %v6845 = vpop.permute.xlu0 %6844
    %6846 = vrot.lane.b32.xlu0 %v5592, 104
    %v6847 = vpop.permute.xlu0 %6846
    %6848 = vrot.lane.b32.xlu0 %v5597, 104
    %v6849 = vpop.permute.xlu0 %6848
    %6850 = vrot.lane.b32.xlu0 %v5602, 104
    %v6851 = vpop.permute.xlu0 %6850
    %6852 = vrot.lane.b32.xlu0 %v5607, 104
    %v6853 = vpop.permute.xlu0 %6852
    %6854 = vrot.lane.b32.xlu0 %v5612, 104
    %v6855 = vpop.permute.xlu0 %6854
    %6856 = vrot.lane.b32.xlu0 %v5617, 104
    %v6857 = vpop.permute.xlu0 %6856
    %6858 = vrot.lane.b32.xlu0 %v5582, 72
    %v6859 = vpop.permute.xlu0 %6858
    %6860 = vrot.lane.b32.xlu0 %v5587, 72
    %v6861 = vpop.permute.xlu0 %6860
    %6862 = vrot.lane.b32.xlu0 %v5592, 72
    %v6863 = vpop.permute.xlu0 %6862
    %6864 = vrot.lane.b32.xlu0 %v5597, 72
    %v6865 = vpop.permute.xlu0 %6864
    %6866 = vrot.lane.b32.xlu0 %v5602, 72
    %v6867 = vpop.permute.xlu0 %6866
    %6868 = vrot.lane.b32.xlu0 %v5607, 72
    %v6869 = vpop.permute.xlu0 %6868
    %6870 = vrot.lane.b32.xlu0 %v5612, 72
    %v6871 = vpop.permute.xlu0 %6870
    %6872 = vrot.lane.b32.xlu0 %v5617, 72
    %v6873 = vpop.permute.xlu0 %6872
    %v6874 = vsel %vm522, %v6843, 0
    %v6876 = vsel %vm522, %v6845, 0
    %v6878 = vsel %vm522, %v6847, 0
    %v6880 = vsel %vm522, %v6849, 0
    %v6882 = vsel %vm522, %v6851, 0
    %v6884 = vsel %vm522, %v6853, 0
    %v6886 = vsel %vm522, %v6855, 0
    %v6888 = vsel %vm522, %v6857, 0
    %v6890 = vsel %vm522, %v6859, 0
    %v6892 = vsel %vm522, %v6861, 0
    %v6894 = vsel %vm522, %v6863, 0
    %v6896 = vsel %vm522, %v6865, 0
    %v6898 = vsel %vm522, %v6867, 0
    %v6900 = vsel %vm522, %v6869, 0
    %v6902 = vsel %vm522, %v6871, 0
    %v6904 = vsel %vm522, %v6873, 0
    %6906 = vmatprep.subr.mxu0 0.0
    %6907 = vmatpush1.xpose.msra.mxu0 %v6890
    %6908 = vmatprep.subr.mxu0 0.0
    %6909 = vmatpush1.xpose.msra.mxu0 %v6892
    %6910 = vmatprep.subr.mxu0 0.0
    %6911 = vmatpush1.xpose.msra.mxu0 %v6894
    %6912 = vmatprep.subr.mxu0 0.0
    %6913 = vmatpush1.xpose.msra.mxu0 %v6896
    %6914 = vmatprep.subr.mxu0 0.0
    %6915 = vmatpush1.xpose.msra.mxu0 %v6898
    %6916 = vmatprep.subr.mxu0 0.0
    %6917 = vmatpush1.xpose.msra.mxu0 %v6900
    %6918 = vmatprep.subr.mxu0 0.0
    %6919 = vmatpush1.xpose.msra.mxu0 %v6902
    %6920 = vmatprep.subr.mxu0 0.0
    %6921 = vmatpush1.xpose.msra.mxu0 %v6904
    %6922 = vmatprep.subr.mxu0 0.0
    %6923 = vmatpush1.xpose.msra.mxu0 0.0
    %6924 = vmatprep.subr.mxu0 0.0
    %6925 = vmatpush1.xpose.msra.mxu0 0.0
    %6926 = vmatprep.subr.mxu0 0.0
    %6927 = vmatpush1.xpose.msra.mxu0 0.0
    %6928 = vmatprep.subr.mxu0 0.0
    %6929 = vmatpush1.xpose.msra.mxu0 0.0
    %6930 = vmatprep.subr.mxu0 0.0
    %6931 = vmatpush1.xpose.msra.mxu0 0.0
    %6932 = vmatprep.subr.mxu0 0.0
    %6933 = vmatpush1.xpose.msra.mxu0 0.0
    %6934 = vmatprep.subr.mxu0 0.0
    %6935 = vmatpush1.xpose.msra.mxu0 0.0
    %6936 = vmatprep.subr.mxu0 0.0
    %6937 = vmatpush1.xpose.msra.mxu0 0.0
    %6938 = vmatprep.subr.mxu0 0.0
    %6939 = vmatpush1.xpose.msra.mxu0 0.0
    %6940 = vmatprep.subr.mxu0 0.0
    %6941 = vmatpush1.xpose.msra.mxu0 0.0
    %6942 = vmatprep.subr.mxu0 0.0
    %6943 = vmatpush1.xpose.msra.mxu0 0.0
    %6944 = vmatprep.subr.mxu0 0.0
    %6945 = vmatpush1.xpose.msra.mxu0 0.0
    %6946 = vmatprep.subr.mxu0 0.0
    %6947 = vmatpush1.xpose.msra.mxu0 0.0
    %6948 = vmatprep.subr.mxu0 0.0
    %6949 = vmatpush1.xpose.msra.mxu0 0.0
    %6950 = vmatprep.subr.mxu0 0.0
    %6951 = vmatpush1.xpose.msra.mxu0 0.0
    %6952 = vmatprep.subr.mxu0 0.0
    %6953 = vmatpush1.xpose.msra.mxu0 0.0
    %6954 = vmatprep.subr.mxu0 0.0
    %6955 = vmatpush1.xpose.msra.mxu0 0.0
    %6956 = vmatprep.subr.mxu0 0.0
    %6957 = vmatpush1.xpose.msra.mxu0 0.0
    %6958 = vmatprep.subr.mxu0 0.0
    %6959 = vmatpush1.xpose.msra.mxu0 0.0
    %6960 = vmatprep.subr.mxu0 0.0
    %6961 = vmatpush1.xpose.msra.mxu0 0.0
    %6962 = vmatprep.subr.mxu0 0.0
    %6963 = vmatpush1.xpose.msra.mxu0 0.0
    %6964 = vmatprep.subr.mxu0 0.0
    %6965 = vmatpush1.xpose.msra.mxu0 0.0
    %6966 = vmatprep.subr.mxu0 0.0
    %6967 = vmatpush1.xpose.msra.mxu0 0.0
    %6968 = vmatprep.subr.mxu0 0.0
    %6969 = vmatpush1.xpose.msra.mxu0 0.0
    %6970 = vmatprep.mubr.f32.mxu0 0.0
    %6971 = vmatmul.mubr.f32.gmra.mrb[0].mxu0 %v6874
    %v6972 = vpop.f32.mrb[0].mxu0
    %v6973 = vadd.f32 %v5100, %v6972
    %v6974 = vpop.f32.mrb[0].mxu0
    %6975 = vmatprep.mubr.f32.mxu0 0.0
    %6976 = vmatmul.mubr.f32.gmra.mrb[0].mxu0 %v6876
    %v6977 = vpop.f32.mrb[0].mxu0
    %v6978 = vadd.f32 %v5101, %v6977
    %v6979 = vpop.f32.mrb[0].mxu0
    %6980 = vmatprep.mubr.f32.mxu0 0.0
    %6981 = vmatmul.mubr.f32.gmra.mrb[0].mxu0 %v6878
    %v6982 = vpop.f32.mrb[0].mxu0
    %v6983 = vadd.f32 %v5102, %v6982
    %v6984 = vpop.f32.mrb[0].mxu0
    %6985 = vmatprep.mubr.f32.mxu0 0.0
    %6986 = vmatmul.mubr.f32.gmra.mrb[0].mxu0 %v6880
    %v6987 = vpop.f32.mrb[0].mxu0
    %v6988 = vadd.f32 %v5103, %v6987
    %v6989 = vpop.f32.mrb[0].mxu0
    %6990 = vmatprep.mubr.f32.mxu0 0.0
    %6991 = vmatmul.mubr.f32.gmra.mrb[0].mxu0 %v6882
    %v6992 = vpop.f32.mrb[0].mxu0
    %v6993 = vadd.f32 %v5104, %v6992
    %v6994 = vpop.f32.mrb[0].mxu0
    %6995 = vmatprep.mubr.f32.mxu0 0.0
    %6996 = vmatmul.mubr.f32.gmra.mrb[0].mxu0 %v6884
    %v6997 = vpop.f32.mrb[0].mxu0
    %v6998 = vadd.f32 %v5105, %v6997
    %v6999 = vpop.f32.mrb[0].mxu0
    %7000 = vmatprep.mubr.f32.mxu0 0.0
    %7001 = vmatmul.mubr.f32.gmra.mrb[0].mxu0 %v6886
    %v7002 = vpop.f32.mrb[0].mxu0
    %v7003 = vadd.f32 %v5106, %v7002
    %v7004 = vpop.f32.mrb[0].mxu0
    %7005 = vmatprep.mubr.f32.mxu0 0.0
    %7006 = vmatmul.mubr.f32.gmra.mrb[0].mxu0 %v6888
    %v7007 = vpop.f32.mrb[0].mxu0
    %v7008 = vadd.f32 %v5107, %v7007
    %v7009 = vpop.f32.mrb[0].mxu0
    %7010 = vdwg.mxu0
    %v7011 = vsel %vm660, %v6973, -inf
    %7012 = vmax.xlane.f32.xlu0 %v7011
    %v7013 = vpop.xlane.xlu0 %7012
    %v7014 = vsel %vm660, %v6978, -inf
    %7015 = vmax.xlane.f32.xlu0 %v7014
    %v7016 = vpop.xlane.xlu0 %7015
    %v7017 = vsel %vm660, %v6983, -inf
    %7018 = vmax.xlane.f32.xlu0 %v7017
    %v7019 = vpop.xlane.xlu0 %7018
    %v7020 = vsel %vm660, %v6988, -inf
    %7021 = vmax.xlane.f32.xlu0 %v7020
    %v7022 = vpop.xlane.xlu0 %7021
    %v7023 = vsel %vm660, %v6993, -inf
    %7024 = vmax.xlane.f32.xlu0 %v7023
    %v7025 = vpop.xlane.xlu0 %7024
    %v7026 = vsel %vm660, %v6998, -inf
    %7027 = vmax.xlane.f32.xlu0 %v7026
    %v7028 = vpop.xlane.xlu0 %7027
    %v7029 = vsel %vm660, %v7003, -inf
    %7030 = vmax.xlane.f32.xlu0 %v7029
    %v7031 = vpop.xlane.xlu0 %7030
    %v7032 = vsel %vm660, %v7008, -inf
    %7033 = vmax.xlane.f32.xlu0 %v7032
    %v7034 = vpop.xlane.xlu0 %7033
    %v7035 = vsub.f32 %v6973, %v7013
    %v7036 = vsub.f32 %v6978, %v7016
    %v7037 = vsub.f32 %v6983, %v7019
    %v7038 = vsub.f32 %v6988, %v7022
    %v7039 = vsub.f32 %v6993, %v7025
    %v7040 = vsub.f32 %v6998, %v7028
    %v7041 = vsub.f32 %v7003, %v7031
    %v7042 = vsub.f32 %v7008, %v7034
    %v7043 = vmul.f32 %v7035, 1.442695
    %v7044 = vpow.pop %v7043
    %v7045 = vmul.f32 %v7036, 1.442695
    %v7046 = vpow.pop %v7045
    %v7047 = vmul.f32 %v7037, 1.442695
    %v7048 = vpow.pop %v7047
    %v7049 = vmul.f32 %v7038, 1.442695
    %v7050 = vpow.pop %v7049
    %v7051 = vmul.f32 %v7039, 1.442695
    %v7052 = vpow.pop %v7051
    %v7053 = vmul.f32 %v7040, 1.442695
    %v7054 = vpow.pop %v7053
    %v7055 = vmul.f32 %v7041, 1.442695
    %v7056 = vpow.pop %v7055
    %v7057 = vmul.f32 %v7042, 1.442695
    %v7058 = vpow.pop %v7057
    %v7059 = vsel %vm660, %v7044, 0.0
    %7060 = vadd.xlane.f32.xlu0 %v7059
    %v7061 = vpop.xlane.xlu0 %7060
    %v7062 = vsel %vm660, %v7046, 0.0
    %7063 = vadd.xlane.f32.xlu0 %v7062
    %v7064 = vpop.xlane.xlu0 %7063
    %v7065 = vsel %vm660, %v7048, 0.0
    %7066 = vadd.xlane.f32.xlu0 %v7065
    %v7067 = vpop.xlane.xlu0 %7066
    %v7068 = vsel %vm660, %v7050, 0.0
    %7069 = vadd.xlane.f32.xlu0 %v7068
    %v7070 = vpop.xlane.xlu0 %7069
    %v7071 = vsel %vm660, %v7052, 0.0
    %7072 = vadd.xlane.f32.xlu0 %v7071
    %v7073 = vpop.xlane.xlu0 %7072
    %v7074 = vsel %vm660, %v7054, 0.0
    %7075 = vadd.xlane.f32.xlu0 %v7074
    %v7076 = vpop.xlane.xlu0 %7075
    %v7077 = vsel %vm660, %v7056, 0.0
    %7078 = vadd.xlane.f32.xlu0 %v7077
    %v7079 = vpop.xlane.xlu0 %7078
    %v7080 = vsel %vm660, %v7058, 0.0
    %7081 = vadd.xlane.f32.xlu0 %v7080
    %v7082 = vpop.xlane.xlu0 %7081
    %v7083 = vrcp.pop %v7061
    %v7084 = vrcp.pop %v7064
    %v7085 = vrcp.pop %v7067
    %v7086 = vrcp.pop %v7070
    %v7087 = vrcp.pop %v7073
    %v7088 = vrcp.pop %v7076
    %v7089 = vrcp.pop %v7079
    %v7090 = vrcp.pop %v7082
    %v7091 = vmul.f32 %v7044, %v7083
    %v7092 = vmul.f32 %v7046, %v7084
    %v7093 = vmul.f32 %v7048, %v7085
    %v7094 = vmul.f32 %v7050, %v7086
    %v7095 = vmul.f32 %v7052, %v7087
    %v7096 = vmul.f32 %v7054, %v7088
    %v7097 = vmul.f32 %v7056, %v7089
    %v7098 = vmul.f32 %v7058, %v7090
    %7099 = vrot.lane.b32.xlu0 %v5582, 40
    %v7100 = vpop.permute.xlu0 %7099
    %7101 = vrot.lane.b32.xlu0 %v5587, 40
    %v7102 = vpop.permute.xlu0 %7101
    %7103 = vrot.lane.b32.xlu0 %v5592, 40
    %v7104 = vpop.permute.xlu0 %7103
    %7105 = vrot.lane.b32.xlu0 %v5597, 40
    %v7106 = vpop.permute.xlu0 %7105
    %7107 = vrot.lane.b32.xlu0 %v5602, 40
    %v7108 = vpop.permute.xlu0 %7107
    %7109 = vrot.lane.b32.xlu0 %v5607, 40
    %v7110 = vpop.permute.xlu0 %7109
    %7111 = vrot.lane.b32.xlu0 %v5612, 40
    %v7112 = vpop.permute.xlu0 %7111
    %7113 = vrot.lane.b32.xlu0 %v5617, 40
    %v7114 = vpop.permute.xlu0 %7113
    %v7124 = vsel %vm660, %v7091, 0
    %v7127 = vsel %vm660, %v7092, 0
    %v7130 = vsel %vm660, %v7093, 0
    %v7133 = vsel %vm660, %v7094, 0
    %v7136 = vsel %vm660, %v7095, 0
    %v7139 = vsel %vm660, %v7096, 0
    %v7142 = vsel %vm660, %v7097, 0
    %v7145 = vsel %vm660, %v7098, 0
    %7147 = vmatprep.subr.mxu0 0.0
    %7148 = vmatpush1.msra.mxu0 %v7100
    %7149 = vmatprep.subr.mxu0 0.0
    %7150 = vmatpush1.msra.mxu0 %v7102
    %7151 = vmatprep.subr.mxu0 0.0
    %7152 = vmatpush1.msra.mxu0 %v7104
    %7153 = vmatprep.subr.mxu0 0.0
    %7154 = vmatpush1.msra.mxu0 %v7106
    %7155 = vmatprep.subr.mxu0 0.0
    %7156 = vmatpush1.msra.mxu0 %v7108
    %7157 = vmatprep.subr.mxu0 0.0
    %7158 = vmatpush1.msra.mxu0 %v7110
    %7159 = vmatprep.subr.mxu0 0.0
    %7160 = vmatpush1.msra.mxu0 %v7112
    %7161 = vmatprep.subr.mxu0 0.0
    %7162 = vmatpush1.msra.mxu0 %v7114
    %7163 = vmatprep.subr.mxu0 0.0
    %7164 = vmatpush1.msra.mxu0 0.0
    %7165 = vmatprep.subr.mxu0 0.0
    %7166 = vmatpush1.msra.mxu0 0.0
    %7167 = vmatprep.subr.mxu0 0.0
    %7168 = vmatpush1.msra.mxu0 0.0
    %7169 = vmatprep.subr.mxu0 0.0
    %7170 = vmatpush1.msra.mxu0 0.0
    %7171 = vmatprep.subr.mxu0 0.0
    %7172 = vmatpush1.msra.mxu0 0.0
    %7173 = vmatprep.subr.mxu0 0.0
    %7174 = vmatpush1.msra.mxu0 0.0
    %7175 = vmatprep.subr.mxu0 0.0
    %7176 = vmatpush1.msra.mxu0 0.0
    %7177 = vmatprep.subr.mxu0 0.0
    %7178 = vmatpush1.msra.mxu0 0.0
    %7179 = vmatprep.subr.mxu0 0.0
    %7180 = vmatpush1.msra.mxu0 0.0
    %7181 = vmatprep.subr.mxu0 0.0
    %7182 = vmatpush1.msra.mxu0 0.0
    %7183 = vmatprep.subr.mxu0 0.0
    %7184 = vmatpush1.msra.mxu0 0.0
    %7185 = vmatprep.subr.mxu0 0.0
    %7186 = vmatpush1.msra.mxu0 0.0
    %7187 = vmatprep.subr.mxu0 0.0
    %7188 = vmatpush1.msra.mxu0 0.0
    %7189 = vmatprep.subr.mxu0 0.0
    %7190 = vmatpush1.msra.mxu0 0.0
    %7191 = vmatprep.subr.mxu0 0.0
    %7192 = vmatpush1.msra.mxu0 0.0
    %7193 = vmatprep.subr.mxu0 0.0
    %7194 = vmatpush1.msra.mxu0 0.0
    %7195 = vmatprep.subr.mxu0 0.0
    %7196 = vmatpush1.msra.mxu0 0.0
    %7197 = vmatprep.subr.mxu0 0.0
    %7198 = vmatpush1.msra.mxu0 0.0
    %7199 = vmatprep.subr.mxu0 0.0
    %7200 = vmatpush1.msra.mxu0 0.0
    %7201 = vmatprep.subr.mxu0 0.0
    %7202 = vmatpush1.msra.mxu0 0.0
    %7203 = vmatprep.subr.mxu0 0.0
    %7204 = vmatpush1.msra.mxu0 0.0
    %7205 = vmatprep.subr.mxu0 0.0
    %7206 = vmatpush1.msra.mxu0 0.0
    %7207 = vmatprep.subr.mxu0 0.0
    %7208 = vmatpush1.msra.mxu0 0.0
    %7209 = vmatprep.subr.mxu0 0.0
    %7210 = vmatpush1.msra.mxu0 0.0
    %7211 = vmatprep.mubr.f32.mxu0 0.0
    %7212 = vmatmul.mubr.f32.gmra.mrb[0].mxu0 %v7124
    %v7213 = vpop.f32.mrb[0].mxu0
    %v7214 = vadd.f32 0.0, %v7213
    %v7215 = vpop.f32.mrb[0].mxu0
    %7216 = vmatprep.mubr.f32.mxu0 0.0
    %7217 = vmatmul.mubr.f32.gmra.mrb[0].mxu0 %v7127
    %v7218 = vpop.f32.mrb[0].mxu0
    %v7219 = vadd.f32 0.0, %v7218
    %v7220 = vpop.f32.mrb[0].mxu0
    %7221 = vmatprep.mubr.f32.mxu0 0.0
    %7222 = vmatmul.mubr.f32.gmra.mrb[0].mxu0 %v7130
    %v7223 = vpop.f32.mrb[0].mxu0
    %v7224 = vadd.f32 0.0, %v7223
    %v7225 = vpop.f32.mrb[0].mxu0
    %7226 = vmatprep.mubr.f32.mxu0 0.0
    %7227 = vmatmul.mubr.f32.gmra.mrb[0].mxu0 %v7133
    %v7228 = vpop.f32.mrb[0].mxu0
    %v7229 = vadd.f32 0.0, %v7228
    %v7230 = vpop.f32.mrb[0].mxu0
    %7231 = vmatprep.mubr.f32.mxu0 0.0
    %7232 = vmatmul.mubr.f32.gmra.mrb[0].mxu0 %v7136
    %v7233 = vpop.f32.mrb[0].mxu0
    %v7234 = vadd.f32 0.0, %v7233
    %v7235 = vpop.f32.mrb[0].mxu0
    %7236 = vmatprep.mubr.f32.mxu0 0.0
    %7237 = vmatmul.mubr.f32.gmra.mrb[0].mxu0 %v7139
    %v7238 = vpop.f32.mrb[0].mxu0
    %v7239 = vadd.f32 0.0, %v7238
    %v7240 = vpop.f32.mrb[0].mxu0
    %7241 = vmatprep.mubr.f32.mxu0 0.0
    %7242 = vmatmul.mubr.f32.gmra.mrb[0].mxu0 %v7142
    %v7243 = vpop.f32.mrb[0].mxu0
    %v7244 = vadd.f32 0.0, %v7243
    %v7245 = vpop.f32.mrb[0].mxu0
    %7246 = vmatprep.mubr.f32.mxu0 0.0
    %7247 = vmatmul.mubr.f32.gmra.mrb[0].mxu0 %v7145
    %v7248 = vpop.f32.mrb[0].mxu0
    %v7249 = vadd.f32 0.0, %v7248
    %v7250 = vpop.f32.mrb[0].mxu0
    %7251 = vdwg.mxu0
    %7260 = vrot.lane.b32.xlu0 %v6394, 8
    %v7261 = vpop.permute.xlu0 %7260
    %7262 = vrot.lane.b32.xlu0 %v6399, 8
    %v7263 = vpop.permute.xlu0 %7262
    %7264 = vrot.lane.b32.xlu0 %v6404, 8
    %v7265 = vpop.permute.xlu0 %7264
    %7266 = vrot.lane.b32.xlu0 %v6409, 8
    %v7267 = vpop.permute.xlu0 %7266
    %7268 = vrot.lane.b32.xlu0 %v6414, 8
    %v7269 = vpop.permute.xlu0 %7268
    %7270 = vrot.lane.b32.xlu0 %v6419, 8
    %v7271 = vpop.permute.xlu0 %7270
    %7272 = vrot.lane.b32.xlu0 %v6424, 8
    %v7273 = vpop.permute.xlu0 %7272
    %7274 = vrot.lane.b32.xlu0 %v6429, 8
    %v7275 = vpop.permute.xlu0 %7274
    %7292 = vrot.lane.b32.xlu0 %v6804, 16
    %v7293 = vpop.permute.xlu0 %7292
    %7294 = vrot.lane.b32.xlu0 %v6809, 16
    %v7295 = vpop.permute.xlu0 %7294
    %7296 = vrot.lane.b32.xlu0 %v6814, 16
    %v7297 = vpop.permute.xlu0 %7296
    %7298 = vrot.lane.b32.xlu0 %v6819, 16
    %v7299 = vpop.permute.xlu0 %7298
    %7300 = vrot.lane.b32.xlu0 %v6824, 16
    %v7301 = vpop.permute.xlu0 %7300
    %7302 = vrot.lane.b32.xlu0 %v6829, 16
    %v7303 = vpop.permute.xlu0 %7302
    %7304 = vrot.lane.b32.xlu0 %v6834, 16
    %v7305 = vpop.permute.xlu0 %7304
    %7306 = vrot.lane.b32.xlu0 %v6839, 16
    %v7307 = vpop.permute.xlu0 %7306
    %7324 = vrot.lane.b32.xlu0 %v7214, 24
    %v7325 = vpop.permute.xlu0 %7324
    %7326 = vrot.lane.b32.xlu0 %v7219, 24
    %v7327 = vpop.permute.xlu0 %7326
    %7328 = vrot.lane.b32.xlu0 %v7224, 24
    %v7329 = vpop.permute.xlu0 %7328
    %7330 = vrot.lane.b32.xlu0 %v7229, 24
    %v7331 = vpop.permute.xlu0 %7330
    %7332 = vrot.lane.b32.xlu0 %v7234, 24
    %v7333 = vpop.permute.xlu0 %7332
    %7334 = vrot.lane.b32.xlu0 %v7239, 24
    %v7335 = vpop.permute.xlu0 %7334
    %7336 = vrot.lane.b32.xlu0 %v7244, 24
    %v7337 = vpop.permute.xlu0 %7336
    %7338 = vrot.lane.b32.xlu0 %v7249, 24
    %v7339 = vpop.permute.xlu0 %7338
    %v7348 = vsel %vm522, %v5984, %v7261
    %v7349 = vsel %vm522, %v5989, %v7263
    %v7350 = vsel %vm522, %v5994, %v7265
    %v7351 = vsel %vm522, %v5999, %v7267
    %v7352 = vsel %vm522, %v6004, %v7269
    %v7353 = vsel %vm522, %v6009, %v7271
    %v7354 = vsel %vm522, %v6014, %v7273
    %v7355 = vsel %vm522, %v6019, %v7275
    %v7356 = vsel %vm2236, %v7348, %v7293
    %v7357 = vsel %vm2236, %v7349, %v7295
    %v7358 = vsel %vm2236, %v7350, %v7297
    %v7359 = vsel %vm2236, %v7351, %v7299
    %v7360 = vsel %vm2236, %v7352, %v7301
    %v7361 = vsel %vm2236, %v7353, %v7303
    %v7362 = vsel %vm2236, %v7354, %v7305
    %v7363 = vsel %vm2236, %v7355, %v7307
    %v7364 = vsel %vm2245, %v7356, %v7325
    %v7365 = vsel %vm2245, %v7357, %v7327
    %v7366 = vsel %vm2245, %v7358, %v7329
    %v7367 = vsel %vm2245, %v7359, %v7331
    %v7368 = vsel %vm2245, %v7360, %v7333
    %v7369 = vsel %vm2245, %v7361, %v7335
    %v7370 = vsel %vm2245, %v7362, %v7337
    %v7371 = vsel %vm2245, %v7363, %v7339
    %v7372 = vld [vmem:[%s13] sm:$0xff]
    %v7373 = vld [vmem:[%s13 + $0x8] sm:$0xff]
    %v7374 = vld [vmem:[%s13 + $0x10] sm:$0xff]
    %v7375 = vld [vmem:[%s13 + $0x18] sm:$0xff]
    %v7376 = vld [vmem:[%s13 + $0x20] sm:$0xff]
    %v7377 = vld [vmem:[%s13 + $0x28] sm:$0xff]
    %v7378 = vld [vmem:[%s13 + $0x30] sm:$0xff]
    %v7379 = vld [vmem:[%s13 + $0x38] sm:$0xff]
    %v7381 = vsel %vm660, %v7372, 0
    %v7384 = vsel %vm660, %v7373, 0
    %v7387 = vsel %vm660, %v7374, 0
    %v7390 = vsel %vm660, %v7375, 0
    %v7393 = vsel %vm660, %v7376, 0
    %v7396 = vsel %vm660, %v7377, 0
    %v7399 = vsel %vm660, %v7378, 0
    %v7402 = vsel %vm660, %v7379, 0
    %7404 = vmatprep.subr.mxu0 0.0
    %7405 = vmatpush1.msra.mxu0 %v5340
    %7406 = vmatprep.subr.mxu0 0.0
    %7407 = vmatpush1.msra.mxu0 %v5341
    %7408 = vmatprep.subr.mxu0 0.0
    %7409 = vmatpush1.msra.mxu0 %v5342
    %7410 = vmatprep.subr.mxu0 0.0
    %7411 = vmatpush1.msra.mxu0 %v5343
    %7412 = vmatprep.subr.mxu0 0.0
    %7413 = vmatpush1.msra.mxu0 %v5344
    %7414 = vmatprep.subr.mxu0 0.0
    %7415 = vmatpush1.msra.mxu0 %v5345
    %7416 = vmatprep.subr.mxu0 0.0
    %7417 = vmatpush1.msra.mxu0 %v5346
    %7418 = vmatprep.subr.mxu0 0.0
    %7419 = vmatpush1.msra.mxu0 %v5347
    %7420 = vmatprep.subr.mxu0 0.0
    %7421 = vmatpush1.msra.mxu0 0.0
    %7422 = vmatprep.subr.mxu0 0.0
    %7423 = vmatpush1.msra.mxu0 0.0
    %7424 = vmatprep.subr.mxu0 0.0
    %7425 = vmatpush1.msra.mxu0 0.0
    %7426 = vmatprep.subr.mxu0 0.0
    %7427 = vmatpush1.msra.mxu0 0.0
    %7428 = vmatprep.subr.mxu0 0.0
    %7429 = vmatpush1.msra.mxu0 0.0
    %7430 = vmatprep.subr.mxu0 0.0
    %7431 = vmatpush1.msra.mxu0 0.0
    %7432 = vmatprep.subr.mxu0 0.0
    %7433 = vmatpush1.msra.mxu0 0.0
    %7434 = vmatprep.subr.mxu0 0.0
    %7435 = vmatpush1.msra.mxu0 0.0
    %7436 = vmatprep.subr.mxu0 0.0
    %7437 = vmatpush1.msra.mxu0 0.0
    %7438 = vmatprep.subr.mxu0 0.0
    %7439 = vmatpush1.msra.mxu0 0.0
    %7440 = vmatprep.subr.mxu0 0.0
    %7441 = vmatpush1.msra.mxu0 0.0
    %7442 = vmatprep.subr.mxu0 0.0
    %7443 = vmatpush1.msra.mxu0 0.0
    %7444 = vmatprep.subr.mxu0 0.0
    %7445 = vmatpush1.msra.mxu0 0.0
    %7446 = vmatprep.subr.mxu0 0.0
    %7447 = vmatpush1.msra.mxu0 0.0
    %7448 = vmatprep.subr.mxu0 0.0
    %7449 = vmatpush1.msra.mxu0 0.0
    %7450 = vmatprep.subr.mxu0 0.0
    %7451 = vmatpush1.msra.mxu0 0.0
    %7452 = vmatprep.subr.mxu0 0.0
    %7453 = vmatpush1.msra.mxu0 0.0
    %7454 = vmatprep.subr.mxu0 0.0
    %7455 = vmatpush1.msra.mxu0 0.0
    %7456 = vmatprep.subr.mxu0 0.0
    %7457 = vmatpush1.msra.mxu0 0.0
    %7458 = vmatprep.subr.mxu0 0.0
    %7459 = vmatpush1.msra.mxu0 0.0
    %7460 = vmatprep.subr.mxu0 0.0
    %7461 = vmatpush1.msra.mxu0 0.0
    %7462 = vmatprep.subr.mxu0 0.0
    %7463 = vmatpush1.msra.mxu0 0.0
    %7464 = vmatprep.subr.mxu0 0.0
    %7465 = vmatpush1.msra.mxu0 0.0
    %7466 = vmatprep.subr.mxu0 0.0
    %7467 = vmatpush1.msra.mxu0 0.0
    %7468 = vmatprep.mubr.f32.mxu0 0.0
    %7469 = vmatmul.mubr.f32.gmra.mrb[0].mxu0 %v7381
    %v7470 = vpop.f32.mrb[0].mxu0
    %v7471 = vadd.f32 0.0, %v7470
    %v7472 = vpop.f32.mrb[0].mxu0
    %7473 = vmatprep.mubr.f32.mxu0 0.0
    %7474 = vmatmul.mubr.f32.gmra.mrb[0].mxu0 %v7384
    %v7475 = vpop.f32.mrb[0].mxu0
    %v7476 = vadd.f32 0.0, %v7475
    %v7477 = vpop.f32.mrb[0].mxu0
    %7478 = vmatprep.mubr.f32.mxu0 0.0
    %7479 = vmatmul.mubr.f32.gmra.mrb[0].mxu0 %v7387
    %v7480 = vpop.f32.mrb[0].mxu0
    %v7481 = vadd.f32 0.0, %v7480
    %v7482 = vpop.f32.mrb[0].mxu0
    %7483 = vmatprep.mubr.f32.mxu0 0.0
    %7484 = vmatmul.mubr.f32.gmra.mrb[0].mxu0 %v7390
    %v7485 = vpop.f32.mrb[0].mxu0
    %v7486 = vadd.f32 0.0, %v7485
    %v7487 = vpop.f32.mrb[0].mxu0
    %7488 = vmatprep.mubr.f32.mxu0 0.0
    %7489 = vmatmul.mubr.f32.gmra.mrb[0].mxu0 %v7393
    %v7490 = vpop.f32.mrb[0].mxu0
    %v7491 = vadd.f32 0.0, %v7490
    %v7492 = vpop.f32.mrb[0].mxu0
    %7493 = vmatprep.mubr.f32.mxu0 0.0
    %7494 = vmatmul.mubr.f32.gmra.mrb[0].mxu0 %v7396
    %v7495 = vpop.f32.mrb[0].mxu0
    %v7496 = vadd.f32 0.0, %v7495
    %v7497 = vpop.f32.mrb[0].mxu0
    %7498 = vmatprep.mubr.f32.mxu0 0.0
    %7499 = vmatmul.mubr.f32.gmra.mrb[0].mxu0 %v7399
    %v7500 = vpop.f32.mrb[0].mxu0
    %v7501 = vadd.f32 0.0, %v7500
    %v7502 = vpop.f32.mrb[0].mxu0
    %7503 = vmatprep.mubr.f32.mxu0 0.0
    %7504 = vmatmul.mubr.f32.gmra.mrb[0].mxu0 %v7402
    %v7505 = vpop.f32.mrb[0].mxu0
    %v7506 = vadd.f32 0.0, %v7505
    %v7507 = vpop.f32.mrb[0].mxu0
    %7508 = vdwg.mxu0
    %v7510 = vsel %vm109, %v7471, 0
    %v7513 = vsel %vm109, %v7476, 0
    %v7516 = vsel %vm109, %v7481, 0
    %v7519 = vsel %vm109, %v7486, 0
    %v7522 = vsel %vm109, %v7491, 0
    %v7525 = vsel %vm109, %v7496, 0
    %v7528 = vsel %vm109, %v7501, 0
    %v7531 = vsel %vm109, %v7506, 0
    %7533 = vmatprep.subr.mxu0 0.0
    %7534 = vmatpush1.msra.mxu0 %v5090
    %7535 = vmatprep.subr.mxu0 0.0
    %7536 = vmatpush1.msra.mxu0 %v5091
    %7537 = vmatprep.subr.mxu0 0.0
    %7538 = vmatpush1.msra.mxu0 %v5092
    %7539 = vmatprep.subr.mxu0 0.0
    %7540 = vmatpush1.msra.mxu0 %v5093
    %7541 = vmatprep.subr.mxu0 0.0
    %7542 = vmatpush1.msra.mxu0 0.0
    %7543 = vmatprep.subr.mxu0 0.0
    %7544 = vmatpush1.msra.mxu0 0.0
    %7545 = vmatprep.subr.mxu0 0.0
    %7546 = vmatpush1.msra.mxu0 0.0
    %7547 = vmatprep.subr.mxu0 0.0
    %7548 = vmatpush1.msra.mxu0 0.0
    %7549 = vmatprep.subr.mxu0 0.0
    %7550 = vmatpush1.msra.mxu0 0.0
    %7551 = vmatprep.subr.mxu0 0.0
    %7552 = vmatpush1.msra.mxu0 0.0
    %7553 = vmatprep.subr.mxu0 0.0
    %7554 = vmatpush1.msra.mxu0 0.0
    %7555 = vmatprep.subr.mxu0 0.0
    %7556 = vmatpush1.msra.mxu0 0.0
    %7557 = vmatprep.subr.mxu0 0.0
    %7558 = vmatpush1.msra.mxu0 0.0
    %7559 = vmatprep.subr.mxu0 0.0
    %7560 = vmatpush1.msra.mxu0 0.0
    %7561 = vmatprep.subr.mxu0 0.0
    %7562 = vmatpush1.msra.mxu0 0.0
    %7563 = vmatprep.subr.mxu0 0.0
    %7564 = vmatpush1.msra.mxu0 0.0
    %7565 = vmatprep.subr.mxu0 0.0
    %7566 = vmatpush1.msra.mxu0 0.0
    %7567 = vmatprep.subr.mxu0 0.0
    %7568 = vmatpush1.msra.mxu0 0.0
    %7569 = vmatprep.subr.mxu0 0.0
    %7570 = vmatpush1.msra.mxu0 0.0
    %7571 = vmatprep.subr.mxu0 0.0
    %7572 = vmatpush1.msra.mxu0 0.0
    %7573 = vmatprep.subr.mxu0 0.0
    %7574 = vmatpush1.msra.mxu0 0.0
    %7575 = vmatprep.subr.mxu0 0.0
    %7576 = vmatpush1.msra.mxu0 0.0
    %7577 = vmatprep.subr.mxu0 0.0
    %7578 = vmatpush1.msra.mxu0 0.0
    %7579 = vmatprep.subr.mxu0 0.0
    %7580 = vmatpush1.msra.mxu0 0.0
    %7581 = vmatprep.subr.mxu0 0.0
    %7582 = vmatpush1.msra.mxu0 0.0
    %7583 = vmatprep.subr.mxu0 0.0
    %7584 = vmatpush1.msra.mxu0 0.0
    %7585 = vmatprep.subr.mxu0 0.0
    %7586 = vmatpush1.msra.mxu0 0.0
    %7587 = vmatprep.subr.mxu0 0.0
    %7588 = vmatpush1.msra.mxu0 0.0
    %7589 = vmatprep.subr.mxu0 0.0
    %7590 = vmatpush1.msra.mxu0 0.0
    %7591 = vmatprep.subr.mxu0 0.0
    %7592 = vmatpush1.msra.mxu0 0.0
    %7593 = vmatprep.subr.mxu0 0.0
    %7594 = vmatpush1.msra.mxu0 0.0
    %7595 = vmatprep.subr.mxu0 0.0
    %7596 = vmatpush1.msra.mxu0 0.0
    %7597 = vmatprep.mubr.f32.mxu0 0.0
    %7598 = vmatmul.mubr.f32.gmra.mrb[0].mxu0 %v7510
    %v7599 = vpop.f32.mrb[0].mxu0
    %v7600 = vadd.f32 %v5489, %v7599
    %v7601 = vpop.f32.mrb[0].mxu0
    %7602 = vmatprep.mubr.f32.mxu0 0.0
    %7603 = vmatmul.mubr.f32.gmra.mrb[0].mxu0 %v7513
    %v7604 = vpop.f32.mrb[0].mxu0
    %v7605 = vadd.f32 %v5489, %v7604
    %v7606 = vpop.f32.mrb[0].mxu0
    %7607 = vmatprep.mubr.f32.mxu0 0.0
    %7608 = vmatmul.mubr.f32.gmra.mrb[0].mxu0 %v7516
    %v7609 = vpop.f32.mrb[0].mxu0
    %v7610 = vadd.f32 %v5489, %v7609
    %v7611 = vpop.f32.mrb[0].mxu0
    %7612 = vmatprep.mubr.f32.mxu0 0.0
    %7613 = vmatmul.mubr.f32.gmra.mrb[0].mxu0 %v7519
    %v7614 = vpop.f32.mrb[0].mxu0
    %v7615 = vadd.f32 %v5489, %v7614
    %v7616 = vpop.f32.mrb[0].mxu0
    %7617 = vmatprep.mubr.f32.mxu0 0.0
    %7618 = vmatmul.mubr.f32.gmra.mrb[0].mxu0 %v7522
    %v7619 = vpop.f32.mrb[0].mxu0
    %v7620 = vadd.f32 %v5489, %v7619
    %v7621 = vpop.f32.mrb[0].mxu0
    %7622 = vmatprep.mubr.f32.mxu0 0.0
    %7623 = vmatmul.mubr.f32.gmra.mrb[0].mxu0 %v7525
    %v7624 = vpop.f32.mrb[0].mxu0
    %v7625 = vadd.f32 %v5489, %v7624
    %v7626 = vpop.f32.mrb[0].mxu0
    %7627 = vmatprep.mubr.f32.mxu0 0.0
    %7628 = vmatmul.mubr.f32.gmra.mrb[0].mxu0 %v7528
    %v7629 = vpop.f32.mrb[0].mxu0
    %v7630 = vadd.f32 %v5489, %v7629
    %v7631 = vpop.f32.mrb[0].mxu0
    %7632 = vmatprep.mubr.f32.mxu0 0.0
    %7633 = vmatmul.mubr.f32.gmra.mrb[0].mxu0 %v7531
    %v7634 = vpop.f32.mrb[0].mxu0
    %v7635 = vadd.f32 %v5489, %v7634
    %v7636 = vpop.f32.mrb[0].mxu0
    %7637 = vdwg.mxu0
    %7646 = vrot.lane.b32.xlu0 %v7600, 96
    %v7647 = vpop.permute.xlu0 %7646
    %7648 = vrot.lane.b32.xlu0 %v7605, 96
    %v7649 = vpop.permute.xlu0 %7648
    %7650 = vrot.lane.b32.xlu0 %v7610, 96
    %v7651 = vpop.permute.xlu0 %7650
    %7652 = vrot.lane.b32.xlu0 %v7615, 96
    %v7653 = vpop.permute.xlu0 %7652
    %7654 = vrot.lane.b32.xlu0 %v7620, 96
    %v7655 = vpop.permute.xlu0 %7654
    %7656 = vrot.lane.b32.xlu0 %v7625, 96
    %v7657 = vpop.permute.xlu0 %7656
    %7658 = vrot.lane.b32.xlu0 %v7630, 96
    %v7659 = vpop.permute.xlu0 %7658
    %7660 = vrot.lane.b32.xlu0 %v7635, 96
    %v7661 = vpop.permute.xlu0 %7660
    %v7662 = vsel %vm522, %v7600, 0
    %v7664 = vsel %vm522, %v7605, 0
    %v7666 = vsel %vm522, %v7610, 0
    %v7668 = vsel %vm522, %v7615, 0
    %v7670 = vsel %vm522, %v7620, 0
    %v7672 = vsel %vm522, %v7625, 0
    %v7674 = vsel %vm522, %v7630, 0
    %v7676 = vsel %vm522, %v7635, 0
    %v7678 = vsel %vm522, %v7647, 0
    %v7680 = vsel %vm522, %v7649, 0
    %v7682 = vsel %vm522, %v7651, 0
    %v7684 = vsel %vm522, %v7653, 0
    %v7686 = vsel %vm522, %v7655, 0
    %v7688 = vsel %vm522, %v7657, 0
    %v7690 = vsel %vm522, %v7659, 0
    %v7692 = vsel %vm522, %v7661, 0
    %7694 = vmatprep.subr.mxu0 0.0
    %7695 = vmatpush1.xpose.msra.mxu0 %v7678
    %7696 = vmatprep.subr.mxu0 0.0
    %7697 = vmatpush1.xpose.msra.mxu0 %v7680
    %7698 = vmatprep.subr.mxu0 0.0
    %7699 = vmatpush1.xpose.msra.mxu0 %v7682
    %7700 = vmatprep.subr.mxu0 0.0
    %7701 = vmatpush1.xpose.msra.mxu0 %v7684
    %7702 = vmatprep.subr.mxu0 0.0
    %7703 = vmatpush1.xpose.msra.mxu0 %v7686
    %7704 = vmatprep.subr.mxu0 0.0
    %7705 = vmatpush1.xpose.msra.mxu0 %v7688
    %7706 = vmatprep.subr.mxu0 0.0
    %7707 = vmatpush1.xpose.msra.mxu0 %v7690
    %7708 = vmatprep.subr.mxu0 0.0
    %7709 = vmatpush1.xpose.msra.mxu0 %v7692
    %7710 = vmatprep.subr.mxu0 0.0
    %7711 = vmatpush1.xpose.msra.mxu0 0.0
    %7712 = vmatprep.subr.mxu0 0.0
    %7713 = vmatpush1.xpose.msra.mxu0 0.0
    %7714 = vmatprep.subr.mxu0 0.0
    %7715 = vmatpush1.xpose.msra.mxu0 0.0
    %7716 = vmatprep.subr.mxu0 0.0
    %7717 = vmatpush1.xpose.msra.mxu0 0.0
    %7718 = vmatprep.subr.mxu0 0.0
    %7719 = vmatpush1.xpose.msra.mxu0 0.0
    %7720 = vmatprep.subr.mxu0 0.0
    %7721 = vmatpush1.xpose.msra.mxu0 0.0
    %7722 = vmatprep.subr.mxu0 0.0
    %7723 = vmatpush1.xpose.msra.mxu0 0.0
    %7724 = vmatprep.subr.mxu0 0.0
    %7725 = vmatpush1.xpose.msra.mxu0 0.0
    %7726 = vmatprep.subr.mxu0 0.0
    %7727 = vmatpush1.xpose.msra.mxu0 0.0
    %7728 = vmatprep.subr.mxu0 0.0
    %7729 = vmatpush1.xpose.msra.mxu0 0.0
    %7730 = vmatprep.subr.mxu0 0.0
    %7731 = vmatpush1.xpose.msra.mxu0 0.0
    %7732 = vmatprep.subr.mxu0 0.0
    %7733 = vmatpush1.xpose.msra.mxu0 0.0
    %7734 = vmatprep.subr.mxu0 0.0
    %7735 = vmatpush1.xpose.msra.mxu0 0.0
    %7736 = vmatprep.subr.mxu0 0.0
    %7737 = vmatpush1.xpose.msra.mxu0 0.0
    %7738 = vmatprep.subr.mxu0 0.0
    %7739 = vmatpush1.xpose.msra.mxu0 0.0
    %7740 = vmatprep.subr.mxu0 0.0
    %7741 = vmatpush1.xpose.msra.mxu0 0.0
    %7742 = vmatprep.subr.mxu0 0.0
    %7743 = vmatpush1.xpose.msra.mxu0 0.0
    %7744 = vmatprep.subr.mxu0 0.0
    %7745 = vmatpush1.xpose.msra.mxu0 0.0
    %7746 = vmatprep.subr.mxu0 0.0
    %7747 = vmatpush1.xpose.msra.mxu0 0.0
    %7748 = vmatprep.subr.mxu0 0.0
    %7749 = vmatpush1.xpose.msra.mxu0 0.0
    %7750 = vmatprep.subr.mxu0 0.0
    %7751 = vmatpush1.xpose.msra.mxu0 0.0
    %7752 = vmatprep.subr.mxu0 0.0
    %7753 = vmatpush1.xpose.msra.mxu0 0.0
    %7754 = vmatprep.subr.mxu0 0.0
    %7755 = vmatpush1.xpose.msra.mxu0 0.0
    %7756 = vmatprep.subr.mxu0 0.0
    %7757 = vmatpush1.xpose.msra.mxu0 0.0
    %7758 = vmatprep.mubr.f32.mxu0 0.0
    %7759 = vmatmul.mubr.f32.gmra.mrb[0].mxu0 %v7662
    %v7760 = vpop.f32.mrb[0].mxu0
    %v7761 = vadd.f32 %v5100, %v7760
    %v7762 = vpop.f32.mrb[0].mxu0
    %7763 = vmatprep.mubr.f32.mxu0 0.0
    %7764 = vmatmul.mubr.f32.gmra.mrb[0].mxu0 %v7664
    %v7765 = vpop.f32.mrb[0].mxu0
    %v7766 = vadd.f32 %v5101, %v7765
    %v7767 = vpop.f32.mrb[0].mxu0
    %7768 = vmatprep.mubr.f32.mxu0 0.0
    %7769 = vmatmul.mubr.f32.gmra.mrb[0].mxu0 %v7666
    %v7770 = vpop.f32.mrb[0].mxu0
    %v7771 = vadd.f32 %v5102, %v7770
    %v7772 = vpop.f32.mrb[0].mxu0
    %7773 = vmatprep.mubr.f32.mxu0 0.0
    %7774 = vmatmul.mubr.f32.gmra.mrb[0].mxu0 %v7668
    %v7775 = vpop.f32.mrb[0].mxu0
    %v7776 = vadd.f32 %v5103, %v7775
    %v7777 = vpop.f32.mrb[0].mxu0
    %7778 = vmatprep.mubr.f32.mxu0 0.0
    %7779 = vmatmul.mubr.f32.gmra.mrb[0].mxu0 %v7670
    %v7780 = vpop.f32.mrb[0].mxu0
    %v7781 = vadd.f32 %v5104, %v7780
    %v7782 = vpop.f32.mrb[0].mxu0
    %7783 = vmatprep.mubr.f32.mxu0 0.0
    %7784 = vmatmul.mubr.f32.gmra.mrb[0].mxu0 %v7672
    %v7785 = vpop.f32.mrb[0].mxu0
    %v7786 = vadd.f32 %v5105, %v7785
    %v7787 = vpop.f32.mrb[0].mxu0
    %7788 = vmatprep.mubr.f32.mxu0 0.0
    %7789 = vmatmul.mubr.f32.gmra.mrb[0].mxu0 %v7674
    %v7790 = vpop.f32.mrb[0].mxu0
    %v7791 = vadd.f32 %v5106, %v7790
    %v7792 = vpop.f32.mrb[0].mxu0
    %7793 = vmatprep.mubr.f32.mxu0 0.0
    %7794 = vmatmul.mubr.f32.gmra.mrb[0].mxu0 %v7676
    %v7795 = vpop.f32.mrb[0].mxu0
    %v7796 = vadd.f32 %v5107, %v7795
    %v7797 = vpop.f32.mrb[0].mxu0
    %7798 = vdwg.mxu0
    %v7799 = vsel %vm660, %v7761, -inf
    %7800 = vmax.xlane.f32.xlu0 %v7799
    %v7801 = vpop.xlane.xlu0 %7800
    %v7802 = vsel %vm660, %v7766, -inf
    %7803 = vmax.xlane.f32.xlu0 %v7802
    %v7804 = vpop.xlane.xlu0 %7803
    %v7805 = vsel %vm660, %v7771, -inf
    %7806 = vmax.xlane.f32.xlu0 %v7805
    %v7807 = vpop.xlane.xlu0 %7806
    %v7808 = vsel %vm660, %v7776, -inf
    %7809 = vmax.xlane.f32.xlu0 %v7808
    %v7810 = vpop.xlane.xlu0 %7809
    %v7811 = vsel %vm660, %v7781, -inf
    %7812 = vmax.xlane.f32.xlu0 %v7811
    %v7813 = vpop.xlane.xlu0 %7812
    %v7814 = vsel %vm660, %v7786, -inf
    %7815 = vmax.xlane.f32.xlu0 %v7814
    %v7816 = vpop.xlane.xlu0 %7815
    %v7817 = vsel %vm660, %v7791, -inf
    %7818 = vmax.xlane.f32.xlu0 %v7817
    %v7819 = vpop.xlane.xlu0 %7818
    %v7820 = vsel %vm660, %v7796, -inf
    %7821 = vmax.xlane.f32.xlu0 %v7820
    %v7822 = vpop.xlane.xlu0 %7821
    %v7823 = vsub.f32 %v7761, %v7801
    %v7824 = vsub.f32 %v7766, %v7804
    %v7825 = vsub.f32 %v7771, %v7807
    %v7826 = vsub.f32 %v7776, %v7810
    %v7827 = vsub.f32 %v7781, %v7813
    %v7828 = vsub.f32 %v7786, %v7816
    %v7829 = vsub.f32 %v7791, %v7819
    %v7830 = vsub.f32 %v7796, %v7822
    %v7831 = vmul.f32 %v7823, 1.442695
    %v7832 = vpow.pop %v7831
    %v7833 = vmul.f32 %v7824, 1.442695
    %v7834 = vpow.pop %v7833
    %v7835 = vmul.f32 %v7825, 1.442695
    %v7836 = vpow.pop %v7835
    %v7837 = vmul.f32 %v7826, 1.442695
    %v7838 = vpow.pop %v7837
    %v7839 = vmul.f32 %v7827, 1.442695
    %v7840 = vpow.pop %v7839
    %v7841 = vmul.f32 %v7828, 1.442695
    %v7842 = vpow.pop %v7841
    %v7843 = vmul.f32 %v7829, 1.442695
    %v7844 = vpow.pop %v7843
    %v7845 = vmul.f32 %v7830, 1.442695
    %v7846 = vpow.pop %v7845
    %v7847 = vsel %vm660, %v7832, 0.0
    %7848 = vadd.xlane.f32.xlu0 %v7847
    %v7849 = vpop.xlane.xlu0 %7848
    %v7850 = vsel %vm660, %v7834, 0.0
    %7851 = vadd.xlane.f32.xlu0 %v7850
    %v7852 = vpop.xlane.xlu0 %7851
    %v7853 = vsel %vm660, %v7836, 0.0
    %7854 = vadd.xlane.f32.xlu0 %v7853
    %v7855 = vpop.xlane.xlu0 %7854
    %v7856 = vsel %vm660, %v7838, 0.0
    %7857 = vadd.xlane.f32.xlu0 %v7856
    %v7858 = vpop.xlane.xlu0 %7857
    %v7859 = vsel %vm660, %v7840, 0.0
    %7860 = vadd.xlane.f32.xlu0 %v7859
    %v7861 = vpop.xlane.xlu0 %7860
    %v7862 = vsel %vm660, %v7842, 0.0
    %7863 = vadd.xlane.f32.xlu0 %v7862
    %v7864 = vpop.xlane.xlu0 %7863
    %v7865 = vsel %vm660, %v7844, 0.0
    %7866 = vadd.xlane.f32.xlu0 %v7865
    %v7867 = vpop.xlane.xlu0 %7866
    %v7868 = vsel %vm660, %v7846, 0.0
    %7869 = vadd.xlane.f32.xlu0 %v7868
    %v7870 = vpop.xlane.xlu0 %7869
    %v7871 = vrcp.pop %v7849
    %v7872 = vrcp.pop %v7852
    %v7873 = vrcp.pop %v7855
    %v7874 = vrcp.pop %v7858
    %v7875 = vrcp.pop %v7861
    %v7876 = vrcp.pop %v7864
    %v7877 = vrcp.pop %v7867
    %v7878 = vrcp.pop %v7870
    %v7879 = vmul.f32 %v7832, %v7871
    %v7880 = vmul.f32 %v7834, %v7872
    %v7881 = vmul.f32 %v7836, %v7873
    %v7882 = vmul.f32 %v7838, %v7874
    %v7883 = vmul.f32 %v7840, %v7875
    %v7884 = vmul.f32 %v7842, %v7876
    %v7885 = vmul.f32 %v7844, %v7877
    %v7886 = vmul.f32 %v7846, %v7878
    %7887 = vrot.lane.b32.xlu0 %v7600, 64
    %v7888 = vpop.permute.xlu0 %7887
    %7889 = vrot.lane.b32.xlu0 %v7605, 64
    %v7890 = vpop.permute.xlu0 %7889
    %7891 = vrot.lane.b32.xlu0 %v7610, 64
    %v7892 = vpop.permute.xlu0 %7891
    %7893 = vrot.lane.b32.xlu0 %v7615, 64
    %v7894 = vpop.permute.xlu0 %7893
    %7895 = vrot.lane.b32.xlu0 %v7620, 64
    %v7896 = vpop.permute.xlu0 %7895
    %7897 = vrot.lane.b32.xlu0 %v7625, 64
    %v7898 = vpop.permute.xlu0 %7897
    %7899 = vrot.lane.b32.xlu0 %v7630, 64
    %v7900 = vpop.permute.xlu0 %7899
    %7901 = vrot.lane.b32.xlu0 %v7635, 64
    %v7902 = vpop.permute.xlu0 %7901
    %v7912 = vsel %vm660, %v7879, 0
    %v7915 = vsel %vm660, %v7880, 0
    %v7918 = vsel %vm660, %v7881, 0
    %v7921 = vsel %vm660, %v7882, 0
    %v7924 = vsel %vm660, %v7883, 0
    %v7927 = vsel %vm660, %v7884, 0
    %v7930 = vsel %vm660, %v7885, 0
    %v7933 = vsel %vm660, %v7886, 0
    %7935 = vmatprep.subr.mxu0 0.0
    %7936 = vmatpush1.msra.mxu0 %v7888
    %7937 = vmatprep.subr.mxu0 0.0
    %7938 = vmatpush1.msra.mxu0 %v7890
    %7939 = vmatprep.subr.mxu0 0.0
    %7940 = vmatpush1.msra.mxu0 %v7892
    %7941 = vmatprep.subr.mxu0 0.0
    %7942 = vmatpush1.msra.mxu0 %v7894
    %7943 = vmatprep.subr.mxu0 0.0
    %7944 = vmatpush1.msra.mxu0 %v7896
    %7945 = vmatprep.subr.mxu0 0.0
    %7946 = vmatpush1.msra.mxu0 %v7898
    %7947 = vmatprep.subr.mxu0 0.0
    %7948 = vmatpush1.msra.mxu0 %v7900
    %7949 = vmatprep.subr.mxu0 0.0
    %7950 = vmatpush1.msra.mxu0 %v7902
    %7951 = vmatprep.subr.mxu0 0.0
    %7952 = vmatpush1.msra.mxu0 0.0
    %7953 = vmatprep.subr.mxu0 0.0
    %7954 = vmatpush1.msra.mxu0 0.0
    %7955 = vmatprep.subr.mxu0 0.0
    %7956 = vmatpush1.msra.mxu0 0.0
    %7957 = vmatprep.subr.mxu0 0.0
    %7958 = vmatpush1.msra.mxu0 0.0
    %7959 = vmatprep.subr.mxu0 0.0
    %7960 = vmatpush1.msra.mxu0 0.0
    %7961 = vmatprep.subr.mxu0 0.0
    %7962 = vmatpush1.msra.mxu0 0.0
    %7963 = vmatprep.subr.mxu0 0.0
    %7964 = vmatpush1.msra.mxu0 0.0
    %7965 = vmatprep.subr.mxu0 0.0
    %7966 = vmatpush1.msra.mxu0 0.0
    %7967 = vmatprep.subr.mxu0 0.0
    %7968 = vmatpush1.msra.mxu0 0.0
    %7969 = vmatprep.subr.mxu0 0.0
    %7970 = vmatpush1.msra.mxu0 0.0
    %7971 = vmatprep.subr.mxu0 0.0
    %7972 = vmatpush1.msra.mxu0 0.0
    %7973 = vmatprep.subr.mxu0 0.0
    %7974 = vmatpush1.msra.mxu0 0.0
    %7975 = vmatprep.subr.mxu0 0.0
    %7976 = vmatpush1.msra.mxu0 0.0
    %7977 = vmatprep.subr.mxu0 0.0
    %7978 = vmatpush1.msra.mxu0 0.0
    %7979 = vmatprep.subr.mxu0 0.0
    %7980 = vmatpush1.msra.mxu0 0.0
    %7981 = vmatprep.subr.mxu0 0.0
    %7982 = vmatpush1.msra.mxu0 0.0
    %7983 = vmatprep.subr.mxu0 0.0
    %7984 = vmatpush1.msra.mxu0 0.0
    %7985 = vmatprep.subr.mxu0 0.0
    %7986 = vmatpush1.msra.mxu0 0.0
    %7987 = vmatprep.subr.mxu0 0.0
    %7988 = vmatpush1.msra.mxu0 0.0
    %7989 = vmatprep.subr.mxu0 0.0
    %7990 = vmatpush1.msra.mxu0 0.0
    %7991 = vmatprep.subr.mxu0 0.0
    %7992 = vmatpush1.msra.mxu0 0.0
    %7993 = vmatprep.subr.mxu0 0.0
    %7994 = vmatpush1.msra.mxu0 0.0
    %7995 = vmatprep.subr.mxu0 0.0
    %7996 = vmatpush1.msra.mxu0 0.0
    %7997 = vmatprep.subr.mxu0 0.0
    %7998 = vmatpush1.msra.mxu0 0.0
    %7999 = vmatprep.mubr.f32.mxu0 0.0
    %8000 = vmatmul.mubr.f32.gmra.mrb[0].mxu0 %v7912
    %v8001 = vpop.f32.mrb[0].mxu0
    %v8002 = vadd.f32 0.0, %v8001
    %v8003 = vpop.f32.mrb[0].mxu0
    %8004 = vmatprep.mubr.f32.mxu0 0.0
    %8005 = vmatmul.mubr.f32.gmra.mrb[0].mxu0 %v7915
    %v8006 = vpop.f32.mrb[0].mxu0
    %v8007 = vadd.f32 0.0, %v8006
    %v8008 = vpop.f32.mrb[0].mxu0
    %8009 = vmatprep.mubr.f32.mxu0 0.0
    %8010 = vmatmul.mubr.f32.gmra.mrb[0].mxu0 %v7918
    %v8011 = vpop.f32.mrb[0].mxu0
    %v8012 = vadd.f32 0.0, %v8011
    %v8013 = vpop.f32.mrb[0].mxu0
    %8014 = vmatprep.mubr.f32.mxu0 0.0
    %8015 = vmatmul.mubr.f32.gmra.mrb[0].mxu0 %v7921
    %v8016 = vpop.f32.mrb[0].mxu0
    %v8017 = vadd.f32 0.0, %v8016
    %v8018 = vpop.f32.mrb[0].mxu0
    %8019 = vmatprep.mubr.f32.mxu0 0.0
    %8020 = vmatmul.mubr.f32.gmra.mrb[0].mxu0 %v7924
    %v8021 = vpop.f32.mrb[0].mxu0
    %v8022 = vadd.f32 0.0, %v8021
    %v8023 = vpop.f32.mrb[0].mxu0
    %8024 = vmatprep.mubr.f32.mxu0 0.0
    %8025 = vmatmul.mubr.f32.gmra.mrb[0].mxu0 %v7927
    %v8026 = vpop.f32.mrb[0].mxu0
    %v8027 = vadd.f32 0.0, %v8026
    %v8028 = vpop.f32.mrb[0].mxu0
    %8029 = vmatprep.mubr.f32.mxu0 0.0
    %8030 = vmatmul.mubr.f32.gmra.mrb[0].mxu0 %v7930
    %v8031 = vpop.f32.mrb[0].mxu0
    %v8032 = vadd.f32 0.0, %v8031
    %v8033 = vpop.f32.mrb[0].mxu0
    %8034 = vmatprep.mubr.f32.mxu0 0.0
    %8035 = vmatmul.mubr.f32.gmra.mrb[0].mxu0 %v7933
    %v8036 = vpop.f32.mrb[0].mxu0
    %v8037 = vadd.f32 0.0, %v8036
    %v8038 = vpop.f32.mrb[0].mxu0
    %8039 = vdwg.mxu0
    %8040 = vrot.lane.b32.xlu0 %v7600, 120
    %v8041 = vpop.permute.xlu0 %8040
    %8042 = vrot.lane.b32.xlu0 %v7605, 120
    %v8043 = vpop.permute.xlu0 %8042
    %8044 = vrot.lane.b32.xlu0 %v7610, 120
    %v8045 = vpop.permute.xlu0 %8044
    %8046 = vrot.lane.b32.xlu0 %v7615, 120
    %v8047 = vpop.permute.xlu0 %8046
    %8048 = vrot.lane.b32.xlu0 %v7620, 120
    %v8049 = vpop.permute.xlu0 %8048
    %8050 = vrot.lane.b32.xlu0 %v7625, 120
    %v8051 = vpop.permute.xlu0 %8050
    %8052 = vrot.lane.b32.xlu0 %v7630, 120
    %v8053 = vpop.permute.xlu0 %8052
    %8054 = vrot.lane.b32.xlu0 %v7635, 120
    %v8055 = vpop.permute.xlu0 %8054
    %8056 = vrot.lane.b32.xlu0 %v7600, 88
    %v8057 = vpop.permute.xlu0 %8056
    %8058 = vrot.lane.b32.xlu0 %v7605, 88
    %v8059 = vpop.permute.xlu0 %8058
    %8060 = vrot.lane.b32.xlu0 %v7610, 88
    %v8061 = vpop.permute.xlu0 %8060
    %8062 = vrot.lane.b32.xlu0 %v7615, 88
    %v8063 = vpop.permute.xlu0 %8062
    %8064 = vrot.lane.b32.xlu0 %v7620, 88
    %v8065 = vpop.permute.xlu0 %8064
    %8066 = vrot.lane.b32.xlu0 %v7625, 88
    %v8067 = vpop.permute.xlu0 %8066
    %8068 = vrot.lane.b32.xlu0 %v7630, 88
    %v8069 = vpop.permute.xlu0 %8068
    %8070 = vrot.lane.b32.xlu0 %v7635, 88
    %v8071 = vpop.permute.xlu0 %8070
    %v8072 = vsel %vm522, %v8041, 0
    %v8074 = vsel %vm522, %v8043, 0
    %v8076 = vsel %vm522, %v8045, 0
    %v8078 = vsel %vm522, %v8047, 0
    %v8080 = vsel %vm522, %v8049, 0
    %v8082 = vsel %vm522, %v8051, 0
    %v8084 = vsel %vm522, %v8053, 0
    %v8086 = vsel %vm522, %v8055, 0
    %v8088 = vsel %vm522, %v8057, 0
    %v8090 = vsel %vm522, %v8059, 0
    %v8092 = vsel %vm522, %v8061, 0
    %v8094 = vsel %vm522, %v8063, 0
    %v8096 = vsel %vm522, %v8065, 0
    %v8098 = vsel %vm522, %v8067, 0
    %v8100 = vsel %vm522, %v8069, 0
    %v8102 = vsel %vm522, %v8071, 0
    %8104 = vmatprep.subr.mxu0 0.0
    %8105 = vmatpush1.xpose.msra.mxu0 %v8088
    %8106 = vmatprep.subr.mxu0 0.0
    %8107 = vmatpush1.xpose.msra.mxu0 %v8090
    %8108 = vmatprep.subr.mxu0 0.0
    %8109 = vmatpush1.xpose.msra.mxu0 %v8092
    %8110 = vmatprep.subr.mxu0 0.0
    %8111 = vmatpush1.xpose.msra.mxu0 %v8094
    %8112 = vmatprep.subr.mxu0 0.0
    %8113 = vmatpush1.xpose.msra.mxu0 %v8096
    %8114 = vmatprep.subr.mxu0 0.0
    %8115 = vmatpush1.xpose.msra.mxu0 %v8098
    %8116 = vmatprep.subr.mxu0 0.0
    %8117 = vmatpush1.xpose.msra.mxu0 %v8100
    %8118 = vmatprep.subr.mxu0 0.0
    %8119 = vmatpush1.xpose.msra.mxu0 %v8102
    %8120 = vmatprep.subr.mxu0 0.0
    %8121 = vmatpush1.xpose.msra.mxu0 0.0
    %8122 = vmatprep.subr.mxu0 0.0
    %8123 = vmatpush1.xpose.msra.mxu0 0.0
    %8124 = vmatprep.subr.mxu0 0.0
    %8125 = vmatpush1.xpose.msra.mxu0 0.0
    %8126 = vmatprep.subr.mxu0 0.0
    %8127 = vmatpush1.xpose.msra.mxu0 0.0
    %8128 = vmatprep.subr.mxu0 0.0
    %8129 = vmatpush1.xpose.msra.mxu0 0.0
    %8130 = vmatprep.subr.mxu0 0.0
    %8131 = vmatpush1.xpose.msra.mxu0 0.0
    %8132 = vmatprep.subr.mxu0 0.0
    %8133 = vmatpush1.xpose.msra.mxu0 0.0
    %8134 = vmatprep.subr.mxu0 0.0
    %8135 = vmatpush1.xpose.msra.mxu0 0.0
    %8136 = vmatprep.subr.mxu0 0.0
    %8137 = vmatpush1.xpose.msra.mxu0 0.0
    %8138 = vmatprep.subr.mxu0 0.0
    %8139 = vmatpush1.xpose.msra.mxu0 0.0
    %8140 = vmatprep.subr.mxu0 0.0
    %8141 = vmatpush1.xpose.msra.mxu0 0.0
    %8142 = vmatprep.subr.mxu0 0.0
    %8143 = vmatpush1.xpose.msra.mxu0 0.0
    %8144 = vmatprep.subr.mxu0 0.0
    %8145 = vmatpush1.xpose.msra.mxu0 0.0
    %8146 = vmatprep.subr.mxu0 0.0
    %8147 = vmatpush1.xpose.msra.mxu0 0.0
    %8148 = vmatprep.subr.mxu0 0.0
    %8149 = vmatpush1.xpose.msra.mxu0 0.0
    %8150 = vmatprep.subr.mxu0 0.0
    %8151 = vmatpush1.xpose.msra.mxu0 0.0
    %8152 = vmatprep.subr.mxu0 0.0
    %8153 = vmatpush1.xpose.msra.mxu0 0.0
    %8154 = vmatprep.subr.mxu0 0.0
    %8155 = vmatpush1.xpose.msra.mxu0 0.0
    %8156 = vmatprep.subr.mxu0 0.0
    %8157 = vmatpush1.xpose.msra.mxu0 0.0
    %8158 = vmatprep.subr.mxu0 0.0
    %8159 = vmatpush1.xpose.msra.mxu0 0.0
    %8160 = vmatprep.subr.mxu0 0.0
    %8161 = vmatpush1.xpose.msra.mxu0 0.0
    %8162 = vmatprep.subr.mxu0 0.0
    %8163 = vmatpush1.xpose.msra.mxu0 0.0
    %8164 = vmatprep.subr.mxu0 0.0
    %8165 = vmatpush1.xpose.msra.mxu0 0.0
    %8166 = vmatprep.subr.mxu0 0.0
    %8167 = vmatpush1.xpose.msra.mxu0 0.0
    %8168 = vmatprep.mubr.f32.mxu0 0.0
    %8169 = vmatmul.mubr.f32.gmra.mrb[0].mxu0 %v8072
    %v8170 = vpop.f32.mrb[0].mxu0
    %v8171 = vadd.f32 %v5100, %v8170
    %v8172 = vpop.f32.mrb[0].mxu0
    %8173 = vmatprep.mubr.f32.mxu0 0.0
    %8174 = vmatmul.mubr.f32.gmra.mrb[0].mxu0 %v8074
    %v8175 = vpop.f32.mrb[0].mxu0
    %v8176 = vadd.f32 %v5101, %v8175
    %v8177 = vpop.f32.mrb[0].mxu0
    %8178 = vmatprep.mubr.f32.mxu0 0.0
    %8179 = vmatmul.mubr.f32.gmra.mrb[0].mxu0 %v8076
    %v8180 = vpop.f32.mrb[0].mxu0
    %v8181 = vadd.f32 %v5102, %v8180
    %v8182 = vpop.f32.mrb[0].mxu0
    %8183 = vmatprep.mubr.f32.mxu0 0.0
    %8184 = vmatmul.mubr.f32.gmra.mrb[0].mxu0 %v8078
    %v8185 = vpop.f32.mrb[0].mxu0
    %v8186 = vadd.f32 %v5103, %v8185
    %v8187 = vpop.f32.mrb[0].mxu0
    %8188 = vmatprep.mubr.f32.mxu0 0.0
    %8189 = vmatmul.mubr.f32.gmra.mrb[0].mxu0 %v8080
    %v8190 = vpop.f32.mrb[0].mxu0
    %v8191 = vadd.f32 %v5104, %v8190
    %v8192 = vpop.f32.mrb[0].mxu0
    %8193 = vmatprep.mubr.f32.mxu0 0.0
    %8194 = vmatmul.mubr.f32.gmra.mrb[0].mxu0 %v8082
    %v8195 = vpop.f32.mrb[0].mxu0
    %v8196 = vadd.f32 %v5105, %v8195
    %v8197 = vpop.f32.mrb[0].mxu0
    %8198 = vmatprep.mubr.f32.mxu0 0.0
    %8199 = vmatmul.mubr.f32.gmra.mrb[0].mxu0 %v8084
    %v8200 = vpop.f32.mrb[0].mxu0
    %v8201 = vadd.f32 %v5106, %v8200
    %v8202 = vpop.f32.mrb[0].mxu0
    %8203 = vmatprep.mubr.f32.mxu0 0.0
    %8204 = vmatmul.mubr.f32.gmra.mrb[0].mxu0 %v8086
    %v8205 = vpop.f32.mrb[0].mxu0
    %v8206 = vadd.f32 %v5107, %v8205
    %v8207 = vpop.f32.mrb[0].mxu0
    %8208 = vdwg.mxu0
    %v8209 = vsel %vm660, %v8171, -inf
    %8210 = vmax.xlane.f32.xlu0 %v8209
    %v8211 = vpop.xlane.xlu0 %8210
    %v8212 = vsel %vm660, %v8176, -inf
    %8213 = vmax.xlane.f32.xlu0 %v8212
    %v8214 = vpop.xlane.xlu0 %8213
    %v8215 = vsel %vm660, %v8181, -inf
    %8216 = vmax.xlane.f32.xlu0 %v8215
    %v8217 = vpop.xlane.xlu0 %8216
    %v8218 = vsel %vm660, %v8186, -inf
    %8219 = vmax.xlane.f32.xlu0 %v8218
    %v8220 = vpop.xlane.xlu0 %8219
    %v8221 = vsel %vm660, %v8191, -inf
    %8222 = vmax.xlane.f32.xlu0 %v8221
    %v8223 = vpop.xlane.xlu0 %8222
    %v8224 = vsel %vm660, %v8196, -inf
    %8225 = vmax.xlane.f32.xlu0 %v8224
    %v8226 = vpop.xlane.xlu0 %8225
    %v8227 = vsel %vm660, %v8201, -inf
    %8228 = vmax.xlane.f32.xlu0 %v8227
    %v8229 = vpop.xlane.xlu0 %8228
    %v8230 = vsel %vm660, %v8206, -inf
    %8231 = vmax.xlane.f32.xlu0 %v8230
    %v8232 = vpop.xlane.xlu0 %8231
    %v8233 = vsub.f32 %v8171, %v8211
    %v8234 = vsub.f32 %v8176, %v8214
    %v8235 = vsub.f32 %v8181, %v8217
    %v8236 = vsub.f32 %v8186, %v8220
    %v8237 = vsub.f32 %v8191, %v8223
    %v8238 = vsub.f32 %v8196, %v8226
    %v8239 = vsub.f32 %v8201, %v8229
    %v8240 = vsub.f32 %v8206, %v8232
    %v8241 = vmul.f32 %v8233, 1.442695
    %v8242 = vpow.pop %v8241
    %v8243 = vmul.f32 %v8234, 1.442695
    %v8244 = vpow.pop %v8243
    %v8245 = vmul.f32 %v8235, 1.442695
    %v8246 = vpow.pop %v8245
    %v8247 = vmul.f32 %v8236, 1.442695
    %v8248 = vpow.pop %v8247
    %v8249 = vmul.f32 %v8237, 1.442695
    %v8250 = vpow.pop %v8249
    %v8251 = vmul.f32 %v8238, 1.442695
    %v8252 = vpow.pop %v8251
    %v8253 = vmul.f32 %v8239, 1.442695
    %v8254 = vpow.pop %v8253
    %v8255 = vmul.f32 %v8240, 1.442695
    %v8256 = vpow.pop %v8255
    %v8257 = vsel %vm660, %v8242, 0.0
    %8258 = vadd.xlane.f32.xlu0 %v8257
    %v8259 = vpop.xlane.xlu0 %8258
    %v8260 = vsel %vm660, %v8244, 0.0
    %8261 = vadd.xlane.f32.xlu0 %v8260
    %v8262 = vpop.xlane.xlu0 %8261
    %v8263 = vsel %vm660, %v8246, 0.0
    %8264 = vadd.xlane.f32.xlu0 %v8263
    %v8265 = vpop.xlane.xlu0 %8264
    %v8266 = vsel %vm660, %v8248, 0.0
    %8267 = vadd.xlane.f32.xlu0 %v8266
    %v8268 = vpop.xlane.xlu0 %8267
    %v8269 = vsel %vm660, %v8250, 0.0
    %8270 = vadd.xlane.f32.xlu0 %v8269
    %v8271 = vpop.xlane.xlu0 %8270
    %v8272 = vsel %vm660, %v8252, 0.0
    %8273 = vadd.xlane.f32.xlu0 %v8272
    %v8274 = vpop.xlane.xlu0 %8273
    %v8275 = vsel %vm660, %v8254, 0.0
    %8276 = vadd.xlane.f32.xlu0 %v8275
    %v8277 = vpop.xlane.xlu0 %8276
    %v8278 = vsel %vm660, %v8256, 0.0
    %8279 = vadd.xlane.f32.xlu0 %v8278
    %v8280 = vpop.xlane.xlu0 %8279
    %v8281 = vrcp.pop %v8259
    %v8282 = vrcp.pop %v8262
    %v8283 = vrcp.pop %v8265
    %v8284 = vrcp.pop %v8268
    %v8285 = vrcp.pop %v8271
    %v8286 = vrcp.pop %v8274
    %v8287 = vrcp.pop %v8277
    %v8288 = vrcp.pop %v8280
    %v8289 = vmul.f32 %v8242, %v8281
    %v8290 = vmul.f32 %v8244, %v8282
    %v8291 = vmul.f32 %v8246, %v8283
    %v8292 = vmul.f32 %v8248, %v8284
    %v8293 = vmul.f32 %v8250, %v8285
    %v8294 = vmul.f32 %v8252, %v8286
    %v8295 = vmul.f32 %v8254, %v8287
    %v8296 = vmul.f32 %v8256, %v8288
    %8297 = vrot.lane.b32.xlu0 %v7600, 56
    %v8298 = vpop.permute.xlu0 %8297
    %8299 = vrot.lane.b32.xlu0 %v7605, 56
    %v8300 = vpop.permute.xlu0 %8299
    %8301 = vrot.lane.b32.xlu0 %v7610, 56
    %v8302 = vpop.permute.xlu0 %8301
    %8303 = vrot.lane.b32.xlu0 %v7615, 56
    %v8304 = vpop.permute.xlu0 %8303
    %8305 = vrot.lane.b32.xlu0 %v7620, 56
    %v8306 = vpop.permute.xlu0 %8305
    %8307 = vrot.lane.b32.xlu0 %v7625, 56
    %v8308 = vpop.permute.xlu0 %8307
    %8309 = vrot.lane.b32.xlu0 %v7630, 56
    %v8310 = vpop.permute.xlu0 %8309
    %8311 = vrot.lane.b32.xlu0 %v7635, 56
    %v8312 = vpop.permute.xlu0 %8311
    %v8322 = vsel %vm660, %v8289, 0
    %v8325 = vsel %vm660, %v8290, 0
    %v8328 = vsel %vm660, %v8291, 0
    %v8331 = vsel %vm660, %v8292, 0
    %v8334 = vsel %vm660, %v8293, 0
    %v8337 = vsel %vm660, %v8294, 0
    %v8340 = vsel %vm660, %v8295, 0
    %v8343 = vsel %vm660, %v8296, 0
    %8345 = vmatprep.subr.mxu0 0.0
    %8346 = vmatpush1.msra.mxu0 %v8298
    %8347 = vmatprep.subr.mxu0 0.0
    %8348 = vmatpush1.msra.mxu0 %v8300
    %8349 = vmatprep.subr.mxu0 0.0
    %8350 = vmatpush1.msra.mxu0 %v8302
    %8351 = vmatprep.subr.mxu0 0.0
    %8352 = vmatpush1.msra.mxu0 %v8304
    %8353 = vmatprep.subr.mxu0 0.0
    %8354 = vmatpush1.msra.mxu0 %v8306
    %8355 = vmatprep.subr.mxu0 0.0
    %8356 = vmatpush1.msra.mxu0 %v8308
    %8357 = vmatprep.subr.mxu0 0.0
    %8358 = vmatpush1.msra.mxu0 %v8310
    %8359 = vmatprep.subr.mxu0 0.0
    %8360 = vmatpush1.msra.mxu0 %v8312
    %8361 = vmatprep.subr.mxu0 0.0
    %8362 = vmatpush1.msra.mxu0 0.0
    %8363 = vmatprep.subr.mxu0 0.0
    %8364 = vmatpush1.msra.mxu0 0.0
    %8365 = vmatprep.subr.mxu0 0.0
    %8366 = vmatpush1.msra.mxu0 0.0
    %8367 = vmatprep.subr.mxu0 0.0
    %8368 = vmatpush1.msra.mxu0 0.0
    %8369 = vmatprep.subr.mxu0 0.0
    %8370 = vmatpush1.msra.mxu0 0.0
    %8371 = vmatprep.subr.mxu0 0.0
    %8372 = vmatpush1.msra.mxu0 0.0
    %8373 = vmatprep.subr.mxu0 0.0
    %8374 = vmatpush1.msra.mxu0 0.0
    %8375 = vmatprep.subr.mxu0 0.0
    %8376 = vmatpush1.msra.mxu0 0.0
    %8377 = vmatprep.subr.mxu0 0.0
    %8378 = vmatpush1.msra.mxu0 0.0
    %8379 = vmatprep.subr.mxu0 0.0
    %8380 = vmatpush1.msra.mxu0 0.0
    %8381 = vmatprep.subr.mxu0 0.0
    %8382 = vmatpush1.msra.mxu0 0.0
    %8383 = vmatprep.subr.mxu0 0.0
    %8384 = vmatpush1.msra.mxu0 0.0
    %8385 = vmatprep.subr.mxu0 0.0
    %8386 = vmatpush1.msra.mxu0 0.0
    %8387 = vmatprep.subr.mxu0 0.0
    %8388 = vmatpush1.msra.mxu0 0.0
    %8389 = vmatprep.subr.mxu0 0.0
    %8390 = vmatpush1.msra.mxu0 0.0
    %8391 = vmatprep.subr.mxu0 0.0
    %8392 = vmatpush1.msra.mxu0 0.0
    %8393 = vmatprep.subr.mxu0 0.0
    %8394 = vmatpush1.msra.mxu0 0.0
    %8395 = vmatprep.subr.mxu0 0.0
    %8396 = vmatpush1.msra.mxu0 0.0
    %8397 = vmatprep.subr.mxu0 0.0
    %8398 = vmatpush1.msra.mxu0 0.0
    %8399 = vmatprep.subr.mxu0 0.0
    %8400 = vmatpush1.msra.mxu0 0.0
    %8401 = vmatprep.subr.mxu0 0.0
    %8402 = vmatpush1.msra.mxu0 0.0
    %8403 = vmatprep.subr.mxu0 0.0
    %8404 = vmatpush1.msra.mxu0 0.0
    %8405 = vmatprep.subr.mxu0 0.0
    %8406 = vmatpush1.msra.mxu0 0.0
    %8407 = vmatprep.subr.mxu0 0.0
    %8408 = vmatpush1.msra.mxu0 0.0
    %8409 = vmatprep.mubr.f32.mxu0 0.0
    %8410 = vmatmul.mubr.f32.gmra.mrb[0].mxu0 %v8322
    %v8411 = vpop.f32.mrb[0].mxu0
    %v8412 = vadd.f32 0.0, %v8411
    %v8413 = vpop.f32.mrb[0].mxu0
    %8414 = vmatprep.mubr.f32.mxu0 0.0
    %8415 = vmatmul.mubr.f32.gmra.mrb[0].mxu0 %v8325
    %v8416 = vpop.f32.mrb[0].mxu0
    %v8417 = vadd.f32 0.0, %v8416
    %v8418 = vpop.f32.mrb[0].mxu0
    %8419 = vmatprep.mubr.f32.mxu0 0.0
    %8420 = vmatmul.mubr.f32.gmra.mrb[0].mxu0 %v8328
    %v8421 = vpop.f32.mrb[0].mxu0
    %v8422 = vadd.f32 0.0, %v8421
    %v8423 = vpop.f32.mrb[0].mxu0
    %8424 = vmatprep.mubr.f32.mxu0 0.0
    %8425 = vmatmul.mubr.f32.gmra.mrb[0].mxu0 %v8331
    %v8426 = vpop.f32.mrb[0].mxu0
    %v8427 = vadd.f32 0.0, %v8426
    %v8428 = vpop.f32.mrb[0].mxu0
    %8429 = vmatprep.mubr.f32.mxu0 0.0
    %8430 = vmatmul.mubr.f32.gmra.mrb[0].mxu0 %v8334
    %v8431 = vpop.f32.mrb[0].mxu0
    %v8432 = vadd.f32 0.0, %v8431
    %v8433 = vpop.f32.mrb[0].mxu0
    %8434 = vmatprep.mubr.f32.mxu0 0.0
    %8435 = vmatmul.mubr.f32.gmra.mrb[0].mxu0 %v8337
    %v8436 = vpop.f32.mrb[0].mxu0
    %v8437 = vadd.f32 0.0, %v8436
    %v8438 = vpop.f32.mrb[0].mxu0
    %8439 = vmatprep.mubr.f32.mxu0 0.0
    %8440 = vmatmul.mubr.f32.gmra.mrb[0].mxu0 %v8340
    %v8441 = vpop.f32.mrb[0].mxu0
    %v8442 = vadd.f32 0.0, %v8441
    %v8443 = vpop.f32.mrb[0].mxu0
    %8444 = vmatprep.mubr.f32.mxu0 0.0
    %8445 = vmatmul.mubr.f32.gmra.mrb[0].mxu0 %v8343
    %v8446 = vpop.f32.mrb[0].mxu0
    %v8447 = vadd.f32 0.0, %v8446
    %v8448 = vpop.f32.mrb[0].mxu0
    %8449 = vdwg.mxu0
    %8450 = vrot.lane.b32.xlu0 %v7600, 112
    %v8451 = vpop.permute.xlu0 %8450
    %8452 = vrot.lane.b32.xlu0 %v7605, 112
    %v8453 = vpop.permute.xlu0 %8452
    %8454 = vrot.lane.b32.xlu0 %v7610, 112
    %v8455 = vpop.permute.xlu0 %8454
    %8456 = vrot.lane.b32.xlu0 %v7615, 112
    %v8457 = vpop.permute.xlu0 %8456
    %8458 = vrot.lane.b32.xlu0 %v7620, 112
    %v8459 = vpop.permute.xlu0 %8458
    %8460 = vrot.lane.b32.xlu0 %v7625, 112
    %v8461 = vpop.permute.xlu0 %8460
    %8462 = vrot.lane.b32.xlu0 %v7630, 112
    %v8463 = vpop.permute.xlu0 %8462
    %8464 = vrot.lane.b32.xlu0 %v7635, 112
    %v8465 = vpop.permute.xlu0 %8464
    %8466 = vrot.lane.b32.xlu0 %v7600, 80
    %v8467 = vpop.permute.xlu0 %8466
    %8468 = vrot.lane.b32.xlu0 %v7605, 80
    %v8469 = vpop.permute.xlu0 %8468
    %8470 = vrot.lane.b32.xlu0 %v7610, 80
    %v8471 = vpop.permute.xlu0 %8470
    %8472 = vrot.lane.b32.xlu0 %v7615, 80
    %v8473 = vpop.permute.xlu0 %8472
    %8474 = vrot.lane.b32.xlu0 %v7620, 80
    %v8475 = vpop.permute.xlu0 %8474
    %8476 = vrot.lane.b32.xlu0 %v7625, 80
    %v8477 = vpop.permute.xlu0 %8476
    %8478 = vrot.lane.b32.xlu0 %v7630, 80
    %v8479 = vpop.permute.xlu0 %8478
    %8480 = vrot.lane.b32.xlu0 %v7635, 80
    %v8481 = vpop.permute.xlu0 %8480
    %v8482 = vsel %vm522, %v8451, 0
    %v8484 = vsel %vm522, %v8453, 0
    %v8486 = vsel %vm522, %v8455, 0
    %v8488 = vsel %vm522, %v8457, 0
    %v8490 = vsel %vm522, %v8459, 0
    %v8492 = vsel %vm522, %v8461, 0
    %v8494 = vsel %vm522, %v8463, 0
    %v8496 = vsel %vm522, %v8465, 0
    %v8498 = vsel %vm522, %v8467, 0
    %v8500 = vsel %vm522, %v8469, 0
    %v8502 = vsel %vm522, %v8471, 0
    %v8504 = vsel %vm522, %v8473, 0
    %v8506 = vsel %vm522, %v8475, 0
    %v8508 = vsel %vm522, %v8477, 0
    %v8510 = vsel %vm522, %v8479, 0
    %v8512 = vsel %vm522, %v8481, 0
    %8514 = vmatprep.subr.mxu0 0.0
    %8515 = vmatpush1.xpose.msra.mxu0 %v8498
    %8516 = vmatprep.subr.mxu0 0.0
    %8517 = vmatpush1.xpose.msra.mxu0 %v8500
    %8518 = vmatprep.subr.mxu0 0.0
    %8519 = vmatpush1.xpose.msra.mxu0 %v8502
    %8520 = vmatprep.subr.mxu0 0.0
    %8521 = vmatpush1.xpose.msra.mxu0 %v8504
    %8522 = vmatprep.subr.mxu0 0.0
    %8523 = vmatpush1.xpose.msra.mxu0 %v8506
    %8524 = vmatprep.subr.mxu0 0.0
    %8525 = vmatpush1.xpose.msra.mxu0 %v8508
    %8526 = vmatprep.subr.mxu0 0.0
    %8527 = vmatpush1.xpose.msra.mxu0 %v8510
    %8528 = vmatprep.subr.mxu0 0.0
    %8529 = vmatpush1.xpose.msra.mxu0 %v8512
    %8530 = vmatprep.subr.mxu0 0.0
    %8531 = vmatpush1.xpose.msra.mxu0 0.0
    %8532 = vmatprep.subr.mxu0 0.0
    %8533 = vmatpush1.xpose.msra.mxu0 0.0
    %8534 = vmatprep.subr.mxu0 0.0
    %8535 = vmatpush1.xpose.msra.mxu0 0.0
    %8536 = vmatprep.subr.mxu0 0.0
    %8537 = vmatpush1.xpose.msra.mxu0 0.0
    %8538 = vmatprep.subr.mxu0 0.0
    %8539 = vmatpush1.xpose.msra.mxu0 0.0
    %8540 = vmatprep.subr.mxu0 0.0
    %8541 = vmatpush1.xpose.msra.mxu0 0.0
    %8542 = vmatprep.subr.mxu0 0.0
    %8543 = vmatpush1.xpose.msra.mxu0 0.0
    %8544 = vmatprep.subr.mxu0 0.0
    %8545 = vmatpush1.xpose.msra.mxu0 0.0
    %8546 = vmatprep.subr.mxu0 0.0
    %8547 = vmatpush1.xpose.msra.mxu0 0.0
    %8548 = vmatprep.subr.mxu0 0.0
    %8549 = vmatpush1.xpose.msra.mxu0 0.0
    %8550 = vmatprep.subr.mxu0 0.0
    %8551 = vmatpush1.xpose.msra.mxu0 0.0
    %8552 = vmatprep.subr.mxu0 0.0
    %8553 = vmatpush1.xpose.msra.mxu0 0.0
    %8554 = vmatprep.subr.mxu0 0.0
    %8555 = vmatpush1.xpose.msra.mxu0 0.0
    %8556 = vmatprep.subr.mxu0 0.0
    %8557 = vmatpush1.xpose.msra.mxu0 0.0
    %8558 = vmatprep.subr.mxu0 0.0
    %8559 = vmatpush1.xpose.msra.mxu0 0.0
    %8560 = vmatprep.subr.mxu0 0.0
    %8561 = vmatpush1.xpose.msra.mxu0 0.0
    %8562 = vmatprep.subr.mxu0 0.0
    %8563 = vmatpush1.xpose.msra.mxu0 0.0
    %8564 = vmatprep.subr.mxu0 0.0
    %8565 = vmatpush1.xpose.msra.mxu0 0.0
    %8566 = vmatprep.subr.mxu0 0.0
    %8567 = vmatpush1.xpose.msra.mxu0 0.0
    %8568 = vmatprep.subr.mxu0 0.0
    %8569 = vmatpush1.xpose.msra.mxu0 0.0
    %8570 = vmatprep.subr.mxu0 0.0
    %8571 = vmatpush1.xpose.msra.mxu0 0.0
    %8572 = vmatprep.subr.mxu0 0.0
    %8573 = vmatpush1.xpose.msra.mxu0 0.0
    %8574 = vmatprep.subr.mxu0 0.0
    %8575 = vmatpush1.xpose.msra.mxu0 0.0
    %8576 = vmatprep.subr.mxu0 0.0
    %8577 = vmatpush1.xpose.msra.mxu0 0.0
    %8578 = vmatprep.mubr.f32.mxu0 0.0
    %8579 = vmatmul.mubr.f32.gmra.mrb[0].mxu0 %v8482
    %v8580 = vpop.f32.mrb[0].mxu0
    %v8581 = vadd.f32 %v5100, %v8580
    %v8582 = vpop.f32.mrb[0].mxu0
    %8583 = vmatprep.mubr.f32.mxu0 0.0
    %8584 = vmatmul.mubr.f32.gmra.mrb[0].mxu0 %v8484
    %v8585 = vpop.f32.mrb[0].mxu0
    %v8586 = vadd.f32 %v5101, %v8585
    %v8587 = vpop.f32.mrb[0].mxu0
    %8588 = vmatprep.mubr.f32.mxu0 0.0
    %8589 = vmatmul.mubr.f32.gmra.mrb[0].mxu0 %v8486
    %v8590 = vpop.f32.mrb[0].mxu0
    %v8591 = vadd.f32 %v5102, %v8590
    %v8592 = vpop.f32.mrb[0].mxu0
    %8593 = vmatprep.mubr.f32.mxu0 0.0
    %8594 = vmatmul.mubr.f32.gmra.mrb[0].mxu0 %v8488
    %v8595 = vpop.f32.mrb[0].mxu0
    %v8596 = vadd.f32 %v5103, %v8595
    %v8597 = vpop.f32.mrb[0].mxu0
    %8598 = vmatprep.mubr.f32.mxu0 0.0
    %8599 = vmatmul.mubr.f32.gmra.mrb[0].mxu0 %v8490
    %v8600 = vpop.f32.mrb[0].mxu0
    %v8601 = vadd.f32 %v5104, %v8600
    %v8602 = vpop.f32.mrb[0].mxu0
    %8603 = vmatprep.mubr.f32.mxu0 0.0
    %8604 = vmatmul.mubr.f32.gmra.mrb[0].mxu0 %v8492
    %v8605 = vpop.f32.mrb[0].mxu0
    %v8606 = vadd.f32 %v5105, %v8605
    %v8607 = vpop.f32.mrb[0].mxu0
    %8608 = vmatprep.mubr.f32.mxu0 0.0
    %8609 = vmatmul.mubr.f32.gmra.mrb[0].mxu0 %v8494
    %v8610 = vpop.f32.mrb[0].mxu0
    %v8611 = vadd.f32 %v5106, %v8610
    %v8612 = vpop.f32.mrb[0].mxu0
    %8613 = vmatprep.mubr.f32.mxu0 0.0
    %8614 = vmatmul.mubr.f32.gmra.mrb[0].mxu0 %v8496
    %v8615 = vpop.f32.mrb[0].mxu0
    %v8616 = vadd.f32 %v5107, %v8615
    %v8617 = vpop.f32.mrb[0].mxu0
    %8618 = vdwg.mxu0
    %v8619 = vsel %vm660, %v8581, -inf
    %8620 = vmax.xlane.f32.xlu0 %v8619
    %v8621 = vpop.xlane.xlu0 %8620
    %v8622 = vsel %vm660, %v8586, -inf
    %8623 = vmax.xlane.f32.xlu0 %v8622
    %v8624 = vpop.xlane.xlu0 %8623
    %v8625 = vsel %vm660, %v8591, -inf
    %8626 = vmax.xlane.f32.xlu0 %v8625
    %v8627 = vpop.xlane.xlu0 %8626
    %v8628 = vsel %vm660, %v8596, -inf
    %8629 = vmax.xlane.f32.xlu0 %v8628
    %v8630 = vpop.xlane.xlu0 %8629
    %v8631 = vsel %vm660, %v8601, -inf
    %8632 = vmax.xlane.f32.xlu0 %v8631
    %v8633 = vpop.xlane.xlu0 %8632
    %v8634 = vsel %vm660, %v8606, -inf
    %8635 = vmax.xlane.f32.xlu0 %v8634
    %v8636 = vpop.xlane.xlu0 %8635
    %v8637 = vsel %vm660, %v8611, -inf
    %8638 = vmax.xlane.f32.xlu0 %v8637
    %v8639 = vpop.xlane.xlu0 %8638
    %v8640 = vsel %vm660, %v8616, -inf
    %8641 = vmax.xlane.f32.xlu0 %v8640
    %v8642 = vpop.xlane.xlu0 %8641
    %v8643 = vsub.f32 %v8581, %v8621
    %v8644 = vsub.f32 %v8586, %v8624
    %v8645 = vsub.f32 %v8591, %v8627
    %v8646 = vsub.f32 %v8596, %v8630
    %v8647 = vsub.f32 %v8601, %v8633
    %v8648 = vsub.f32 %v8606, %v8636
    %v8649 = vsub.f32 %v8611, %v8639
    %v8650 = vsub.f32 %v8616, %v8642
    %v8651 = vmul.f32 %v8643, 1.442695
    %v8652 = vpow.pop %v8651
    %v8653 = vmul.f32 %v8644, 1.442695
    %v8654 = vpow.pop %v8653
    %v8655 = vmul.f32 %v8645, 1.442695
    %v8656 = vpow.pop %v8655
    %v8657 = vmul.f32 %v8646, 1.442695
    %v8658 = vpow.pop %v8657
    %v8659 = vmul.f32 %v8647, 1.442695
    %v8660 = vpow.pop %v8659
    %v8661 = vmul.f32 %v8648, 1.442695
    %v8662 = vpow.pop %v8661
    %v8663 = vmul.f32 %v8649, 1.442695
    %v8664 = vpow.pop %v8663
    %v8665 = vmul.f32 %v8650, 1.442695
    %v8666 = vpow.pop %v8665
    %v8667 = vsel %vm660, %v8652, 0.0
    %8668 = vadd.xlane.f32.xlu0 %v8667
    %v8669 = vpop.xlane.xlu0 %8668
    %v8670 = vsel %vm660, %v8654, 0.0
    %8671 = vadd.xlane.f32.xlu0 %v8670
    %v8672 = vpop.xlane.xlu0 %8671
    %v8673 = vsel %vm660, %v8656, 0.0
    %8674 = vadd.xlane.f32.xlu0 %v8673
    %v8675 = vpop.xlane.xlu0 %8674
    %v8676 = vsel %vm660, %v8658, 0.0
    %8677 = vadd.xlane.f32.xlu0 %v8676
    %v8678 = vpop.xlane.xlu0 %8677
    %v8679 = vsel %vm660, %v8660, 0.0
    %8680 = vadd.xlane.f32.xlu0 %v8679
    %v8681 = vpop.xlane.xlu0 %8680
    %v8682 = vsel %vm660, %v8662, 0.0
    %8683 = vadd.xlane.f32.xlu0 %v8682
    %v8684 = vpop.xlane.xlu0 %8683
    %v8685 = vsel %vm660, %v8664, 0.0
    %8686 = vadd.xlane.f32.xlu0 %v8685
    %v8687 = vpop.xlane.xlu0 %8686
    %v8688 = vsel %vm660, %v8666, 0.0
    %8689 = vadd.xlane.f32.xlu0 %v8688
    %v8690 = vpop.xlane.xlu0 %8689
    %v8691 = vrcp.pop %v8669
    %v8692 = vrcp.pop %v8672
    %v8693 = vrcp.pop %v8675
    %v8694 = vrcp.pop %v8678
    %v8695 = vrcp.pop %v8681
    %v8696 = vrcp.pop %v8684
    %v8697 = vrcp.pop %v8687
    %v8698 = vrcp.pop %v8690
    %v8699 = vmul.f32 %v8652, %v8691
    %v8700 = vmul.f32 %v8654, %v8692
    %v8701 = vmul.f32 %v8656, %v8693
    %v8702 = vmul.f32 %v8658, %v8694
    %v8703 = vmul.f32 %v8660, %v8695
    %v8704 = vmul.f32 %v8662, %v8696
    %v8705 = vmul.f32 %v8664, %v8697
    %v8706 = vmul.f32 %v8666, %v8698
    %8707 = vrot.lane.b32.xlu0 %v7600, 48
    %v8708 = vpop.permute.xlu0 %8707
    %8709 = vrot.lane.b32.xlu0 %v7605, 48
    %v8710 = vpop.permute.xlu0 %8709
    %8711 = vrot.lane.b32.xlu0 %v7610, 48
    %v8712 = vpop.permute.xlu0 %8711
    %8713 = vrot.lane.b32.xlu0 %v7615, 48
    %v8714 = vpop.permute.xlu0 %8713
    %8715 = vrot.lane.b32.xlu0 %v7620, 48
    %v8716 = vpop.permute.xlu0 %8715
    %8717 = vrot.lane.b32.xlu0 %v7625, 48
    %v8718 = vpop.permute.xlu0 %8717
    %8719 = vrot.lane.b32.xlu0 %v7630, 48
    %v8720 = vpop.permute.xlu0 %8719
    %8721 = vrot.lane.b32.xlu0 %v7635, 48
    %v8722 = vpop.permute.xlu0 %8721
    %v8732 = vsel %vm660, %v8699, 0
    %v8735 = vsel %vm660, %v8700, 0
    %v8738 = vsel %vm660, %v8701, 0
    %v8741 = vsel %vm660, %v8702, 0
    %v8744 = vsel %vm660, %v8703, 0
    %v8747 = vsel %vm660, %v8704, 0
    %v8750 = vsel %vm660, %v8705, 0
    %v8753 = vsel %vm660, %v8706, 0
    %8755 = vmatprep.subr.mxu0 0.0
    %8756 = vmatpush1.msra.mxu0 %v8708
    %8757 = vmatprep.subr.mxu0 0.0
    %8758 = vmatpush1.msra.mxu0 %v8710
    %8759 = vmatprep.subr.mxu0 0.0
    %8760 = vmatpush1.msra.mxu0 %v8712
    %8761 = vmatprep.subr.mxu0 0.0
    %8762 = vmatpush1.msra.mxu0 %v8714
    %8763 = vmatprep.subr.mxu0 0.0
    %8764 = vmatpush1.msra.mxu0 %v8716
    %8765 = vmatprep.subr.mxu0 0.0
    %8766 = vmatpush1.msra.mxu0 %v8718
    %8767 = vmatprep.subr.mxu0 0.0
    %8768 = vmatpush1.msra.mxu0 %v8720
    %8769 = vmatprep.subr.mxu0 0.0
    %8770 = vmatpush1.msra.mxu0 %v8722
    %8771 = vmatprep.subr.mxu0 0.0
    %8772 = vmatpush1.msra.mxu0 0.0
    %8773 = vmatprep.subr.mxu0 0.0
    %8774 = vmatpush1.msra.mxu0 0.0
    %8775 = vmatprep.subr.mxu0 0.0
    %8776 = vmatpush1.msra.mxu0 0.0
    %8777 = vmatprep.subr.mxu0 0.0
    %8778 = vmatpush1.msra.mxu0 0.0
    %8779 = vmatprep.subr.mxu0 0.0
    %8780 = vmatpush1.msra.mxu0 0.0
    %8781 = vmatprep.subr.mxu0 0.0
    %8782 = vmatpush1.msra.mxu0 0.0
    %8783 = vmatprep.subr.mxu0 0.0
    %8784 = vmatpush1.msra.mxu0 0.0
    %8785 = vmatprep.subr.mxu0 0.0
    %8786 = vmatpush1.msra.mxu0 0.0
    %8787 = vmatprep.subr.mxu0 0.0
    %8788 = vmatpush1.msra.mxu0 0.0
    %8789 = vmatprep.subr.mxu0 0.0
    %8790 = vmatpush1.msra.mxu0 0.0
    %8791 = vmatprep.subr.mxu0 0.0
    %8792 = vmatpush1.msra.mxu0 0.0
    %8793 = vmatprep.subr.mxu0 0.0
    %8794 = vmatpush1.msra.mxu0 0.0
    %8795 = vmatprep.subr.mxu0 0.0
    %8796 = vmatpush1.msra.mxu0 0.0
    %8797 = vmatprep.subr.mxu0 0.0
    %8798 = vmatpush1.msra.mxu0 0.0
    %8799 = vmatprep.subr.mxu0 0.0
    %8800 = vmatpush1.msra.mxu0 0.0
    %8801 = vmatprep.subr.mxu0 0.0
    %8802 = vmatpush1.msra.mxu0 0.0
    %8803 = vmatprep.subr.mxu0 0.0
    %8804 = vmatpush1.msra.mxu0 0.0
    %8805 = vmatprep.subr.mxu0 0.0
    %8806 = vmatpush1.msra.mxu0 0.0
    %8807 = vmatprep.subr.mxu0 0.0
    %8808 = vmatpush1.msra.mxu0 0.0
    %8809 = vmatprep.subr.mxu0 0.0
    %8810 = vmatpush1.msra.mxu0 0.0
    %8811 = vmatprep.subr.mxu0 0.0
    %8812 = vmatpush1.msra.mxu0 0.0
    %8813 = vmatprep.subr.mxu0 0.0
    %8814 = vmatpush1.msra.mxu0 0.0
    %8815 = vmatprep.subr.mxu0 0.0
    %8816 = vmatpush1.msra.mxu0 0.0
    %8817 = vmatprep.subr.mxu0 0.0
    %8818 = vmatpush1.msra.mxu0 0.0
    %8819 = vmatprep.mubr.f32.mxu0 0.0
    %8820 = vmatmul.mubr.f32.gmra.mrb[0].mxu0 %v8732
    %v8821 = vpop.f32.mrb[0].mxu0
    %v8822 = vadd.f32 0.0, %v8821
    %v8823 = vpop.f32.mrb[0].mxu0
    %8824 = vmatprep.mubr.f32.mxu0 0.0
    %8825 = vmatmul.mubr.f32.gmra.mrb[0].mxu0 %v8735
    %v8826 = vpop.f32.mrb[0].mxu0
    %v8827 = vadd.f32 0.0, %v8826
    %v8828 = vpop.f32.mrb[0].mxu0
    %8829 = vmatprep.mubr.f32.mxu0 0.0
    %8830 = vmatmul.mubr.f32.gmra.mrb[0].mxu0 %v8738
    %v8831 = vpop.f32.mrb[0].mxu0
    %v8832 = vadd.f32 0.0, %v8831
    %v8833 = vpop.f32.mrb[0].mxu0
    %8834 = vmatprep.mubr.f32.mxu0 0.0
    %8835 = vmatmul.mubr.f32.gmra.mrb[0].mxu0 %v8741
    %v8836 = vpop.f32.mrb[0].mxu0
    %v8837 = vadd.f32 0.0, %v8836
    %v8838 = vpop.f32.mrb[0].mxu0
    %8839 = vmatprep.mubr.f32.mxu0 0.0
    %8840 = vmatmul.mubr.f32.gmra.mrb[0].mxu0 %v8744
    %v8841 = vpop.f32.mrb[0].mxu0
    %v8842 = vadd.f32 0.0, %v8841
    %v8843 = vpop.f32.mrb[0].mxu0
    %8844 = vmatprep.mubr.f32.mxu0 0.0
    %8845 = vmatmul.mubr.f32.gmra.mrb[0].mxu0 %v8747
    %v8846 = vpop.f32.mrb[0].mxu0
    %v8847 = vadd.f32 0.0, %v8846
    %v8848 = vpop.f32.mrb[0].mxu0
    %8849 = vmatprep.mubr.f32.mxu0 0.0
    %8850 = vmatmul.mubr.f32.gmra.mrb[0].mxu0 %v8750
    %v8851 = vpop.f32.mrb[0].mxu0
    %v8852 = vadd.f32 0.0, %v8851
    %v8853 = vpop.f32.mrb[0].mxu0
    %8854 = vmatprep.mubr.f32.mxu0 0.0
    %8855 = vmatmul.mubr.f32.gmra.mrb[0].mxu0 %v8753
    %v8856 = vpop.f32.mrb[0].mxu0
    %v8857 = vadd.f32 0.0, %v8856
    %v8858 = vpop.f32.mrb[0].mxu0
    %8859 = vdwg.mxu0
    %8860 = vrot.lane.b32.xlu0 %v7600, 104
    %v8861 = vpop.permute.xlu0 %8860
    %8862 = vrot.lane.b32.xlu0 %v7605, 104
    %v8863 = vpop.permute.xlu0 %8862
    %8864 = vrot.lane.b32.xlu0 %v7610, 104
    %v8865 = vpop.permute.xlu0 %8864
    %8866 = vrot.lane.b32.xlu0 %v7615, 104
    %v8867 = vpop.permute.xlu0 %8866
    %8868 = vrot.lane.b32.xlu0 %v7620, 104
    %v8869 = vpop.permute.xlu0 %8868
    %8870 = vrot.lane.b32.xlu0 %v7625, 104
    %v8871 = vpop.permute.xlu0 %8870
    %8872 = vrot.lane.b32.xlu0 %v7630, 104
    %v8873 = vpop.permute.xlu0 %8872
    %8874 = vrot.lane.b32.xlu0 %v7635, 104
    %v8875 = vpop.permute.xlu0 %8874
    %8876 = vrot.lane.b32.xlu0 %v7600, 72
    %v8877 = vpop.permute.xlu0 %8876
    %8878 = vrot.lane.b32.xlu0 %v7605, 72
    %v8879 = vpop.permute.xlu0 %8878
    %8880 = vrot.lane.b32.xlu0 %v7610, 72
    %v8881 = vpop.permute.xlu0 %8880
    %8882 = vrot.lane.b32.xlu0 %v7615, 72
    %v8883 = vpop.permute.xlu0 %8882
    %8884 = vrot.lane.b32.xlu0 %v7620, 72
    %v8885 = vpop.permute.xlu0 %8884
    %8886 = vrot.lane.b32.xlu0 %v7625, 72
    %v8887 = vpop.permute.xlu0 %8886
    %8888 = vrot.lane.b32.xlu0 %v7630, 72
    %v8889 = vpop.permute.xlu0 %8888
    %8890 = vrot.lane.b32.xlu0 %v7635, 72
    %v8891 = vpop.permute.xlu0 %8890
    %v8892 = vsel %vm522, %v8861, 0
    %v8894 = vsel %vm522, %v8863, 0
    %v8896 = vsel %vm522, %v8865, 0
    %v8898 = vsel %vm522, %v8867, 0
    %v8900 = vsel %vm522, %v8869, 0
    %v8902 = vsel %vm522, %v8871, 0
    %v8904 = vsel %vm522, %v8873, 0
    %v8906 = vsel %vm522, %v8875, 0
    %v8908 = vsel %vm522, %v8877, 0
    %v8910 = vsel %vm522, %v8879, 0
    %v8912 = vsel %vm522, %v8881, 0
    %v8914 = vsel %vm522, %v8883, 0
    %v8916 = vsel %vm522, %v8885, 0
    %v8918 = vsel %vm522, %v8887, 0
    %v8920 = vsel %vm522, %v8889, 0
    %v8922 = vsel %vm522, %v8891, 0
    %8924 = vmatprep.subr.mxu0 0.0
    %8925 = vmatpush1.xpose.msra.mxu0 %v8908
    %8926 = vmatprep.subr.mxu0 0.0
    %8927 = vmatpush1.xpose.msra.mxu0 %v8910
    %8928 = vmatprep.subr.mxu0 0.0
    %8929 = vmatpush1.xpose.msra.mxu0 %v8912
    %8930 = vmatprep.subr.mxu0 0.0
    %8931 = vmatpush1.xpose.msra.mxu0 %v8914
    %8932 = vmatprep.subr.mxu0 0.0
    %8933 = vmatpush1.xpose.msra.mxu0 %v8916
    %8934 = vmatprep.subr.mxu0 0.0
    %8935 = vmatpush1.xpose.msra.mxu0 %v8918
    %8936 = vmatprep.subr.mxu0 0.0
    %8937 = vmatpush1.xpose.msra.mxu0 %v8920
    %8938 = vmatprep.subr.mxu0 0.0
    %8939 = vmatpush1.xpose.msra.mxu0 %v8922
    %8940 = vmatprep.subr.mxu0 0.0
    %8941 = vmatpush1.xpose.msra.mxu0 0.0
    %8942 = vmatprep.subr.mxu0 0.0
    %8943 = vmatpush1.xpose.msra.mxu0 0.0
    %8944 = vmatprep.subr.mxu0 0.0
    %8945 = vmatpush1.xpose.msra.mxu0 0.0
    %8946 = vmatprep.subr.mxu0 0.0
    %8947 = vmatpush1.xpose.msra.mxu0 0.0
    %8948 = vmatprep.subr.mxu0 0.0
    %8949 = vmatpush1.xpose.msra.mxu0 0.0
    %8950 = vmatprep.subr.mxu0 0.0
    %8951 = vmatpush1.xpose.msra.mxu0 0.0
    %8952 = vmatprep.subr.mxu0 0.0
    %8953 = vmatpush1.xpose.msra.mxu0 0.0
    %8954 = vmatprep.subr.mxu0 0.0
    %8955 = vmatpush1.xpose.msra.mxu0 0.0
    %8956 = vmatprep.subr.mxu0 0.0
    %8957 = vmatpush1.xpose.msra.mxu0 0.0
    %8958 = vmatprep.subr.mxu0 0.0
    %8959 = vmatpush1.xpose.msra.mxu0 0.0
    %8960 = vmatprep.subr.mxu0 0.0
    %8961 = vmatpush1.xpose.msra.mxu0 0.0
    %8962 = vmatprep.subr.mxu0 0.0
    %8963 = vmatpush1.xpose.msra.mxu0 0.0
    %8964 = vmatprep.subr.mxu0 0.0
    %8965 = vmatpush1.xpose.msra.mxu0 0.0
    %8966 = vmatprep.subr.mxu0 0.0
    %8967 = vmatpush1.xpose.msra.mxu0 0.0
    %8968 = vmatprep.subr.mxu0 0.0
    %8969 = vmatpush1.xpose.msra.mxu0 0.0
    %8970 = vmatprep.subr.mxu0 0.0
    %8971 = vmatpush1.xpose.msra.mxu0 0.0
    %8972 = vmatprep.subr.mxu0 0.0
    %8973 = vmatpush1.xpose.msra.mxu0 0.0
    %8974 = vmatprep.subr.mxu0 0.0
    %8975 = vmatpush1.xpose.msra.mxu0 0.0
    %8976 = vmatprep.subr.mxu0 0.0
    %8977 = vmatpush1.xpose.msra.mxu0 0.0
    %8978 = vmatprep.subr.mxu0 0.0
    %8979 = vmatpush1.xpose.msra.mxu0 0.0
    %8980 = vmatprep.subr.mxu0 0.0
    %8981 = vmatpush1.xpose.msra.mxu0 0.0
    %8982 = vmatprep.subr.mxu0 0.0
    %8983 = vmatpush1.xpose.msra.mxu0 0.0
    %8984 = vmatprep.subr.mxu0 0.0
    %8985 = vmatpush1.xpose.msra.mxu0 0.0
    %8986 = vmatprep.subr.mxu0 0.0
    %8987 = vmatpush1.xpose.msra.mxu0 0.0
    %8988 = vmatprep.mubr.f32.mxu0 0.0
    %8989 = vmatmul.mubr.f32.gmra.mrb[0].mxu0 %v8892
    %v8990 = vpop.f32.mrb[0].mxu0
    %v8991 = vadd.f32 %v5100, %v8990
    %v8992 = vpop.f32.mrb[0].mxu0
    %8993 = vmatprep.mubr.f32.mxu0 0.0
    %8994 = vmatmul.mubr.f32.gmra.mrb[0].mxu0 %v8894
    %v8995 = vpop.f32.mrb[0].mxu0
    %v8996 = vadd.f32 %v5101, %v8995
    %v8997 = vpop.f32.mrb[0].mxu0
    %8998 = vmatprep.mubr.f32.mxu0 0.0
    %8999 = vmatmul.mubr.f32.gmra.mrb[0].mxu0 %v8896
    %v9000 = vpop.f32.mrb[0].mxu0
    %v9001 = vadd.f32 %v5102, %v9000
    %v9002 = vpop.f32.mrb[0].mxu0
    %9003 = vmatprep.mubr.f32.mxu0 0.0
    %9004 = vmatmul.mubr.f32.gmra.mrb[0].mxu0 %v8898
    %v9005 = vpop.f32.mrb[0].mxu0
    %v9006 = vadd.f32 %v5103, %v9005
    %v9007 = vpop.f32.mrb[0].mxu0
    %9008 = vmatprep.mubr.f32.mxu0 0.0
    %9009 = vmatmul.mubr.f32.gmra.mrb[0].mxu0 %v8900
    %v9010 = vpop.f32.mrb[0].mxu0
    %v9011 = vadd.f32 %v5104, %v9010
    %v9012 = vpop.f32.mrb[0].mxu0
    %9013 = vmatprep.mubr.f32.mxu0 0.0
    %9014 = vmatmul.mubr.f32.gmra.mrb[0].mxu0 %v8902
    %v9015 = vpop.f32.mrb[0].mxu0
    %v9016 = vadd.f32 %v5105, %v9015
    %v9017 = vpop.f32.mrb[0].mxu0
    %9018 = vmatprep.mubr.f32.mxu0 0.0
    %9019 = vmatmul.mubr.f32.gmra.mrb[0].mxu0 %v8904
    %v9020 = vpop.f32.mrb[0].mxu0
    %v9021 = vadd.f32 %v5106, %v9020
    %v9022 = vpop.f32.mrb[0].mxu0
    %9023 = vmatprep.mubr.f32.mxu0 0.0
    %9024 = vmatmul.mubr.f32.gmra.mrb[0].mxu0 %v8906
    %v9025 = vpop.f32.mrb[0].mxu0
    %v9026 = vadd.f32 %v5107, %v9025
    %v9027 = vpop.f32.mrb[0].mxu0
    %9028 = vdwg.mxu0
    %v9029 = vsel %vm660, %v8991, -inf
    %9030 = vmax.xlane.f32.xlu0 %v9029
    %v9031 = vpop.xlane.xlu0 %9030
    %v9032 = vsel %vm660, %v8996, -inf
    %9033 = vmax.xlane.f32.xlu0 %v9032
    %v9034 = vpop.xlane.xlu0 %9033
    %v9035 = vsel %vm660, %v9001, -inf
    %9036 = vmax.xlane.f32.xlu0 %v9035
    %v9037 = vpop.xlane.xlu0 %9036
    %v9038 = vsel %vm660, %v9006, -inf
    %9039 = vmax.xlane.f32.xlu0 %v9038
    %v9040 = vpop.xlane.xlu0 %9039
    %v9041 = vsel %vm660, %v9011, -inf
    %9042 = vmax.xlane.f32.xlu0 %v9041
    %v9043 = vpop.xlane.xlu0 %9042
    %v9044 = vsel %vm660, %v9016, -inf
    %9045 = vmax.xlane.f32.xlu0 %v9044
    %v9046 = vpop.xlane.xlu0 %9045
    %v9047 = vsel %vm660, %v9021, -inf
    %9048 = vmax.xlane.f32.xlu0 %v9047
    %v9049 = vpop.xlane.xlu0 %9048
    %v9050 = vsel %vm660, %v9026, -inf
    %9051 = vmax.xlane.f32.xlu0 %v9050
    %v9052 = vpop.xlane.xlu0 %9051
    %v9053 = vsub.f32 %v8991, %v9031
    %v9054 = vsub.f32 %v8996, %v9034
    %v9055 = vsub.f32 %v9001, %v9037
    %v9056 = vsub.f32 %v9006, %v9040
    %v9057 = vsub.f32 %v9011, %v9043
    %v9058 = vsub.f32 %v9016, %v9046
    %v9059 = vsub.f32 %v9021, %v9049
    %v9060 = vsub.f32 %v9026, %v9052
    %v9061 = vmul.f32 %v9053, 1.442695
    %v9062 = vpow.pop %v9061
    %v9063 = vmul.f32 %v9054, 1.442695
    %v9064 = vpow.pop %v9063
    %v9065 = vmul.f32 %v9055, 1.442695
    %v9066 = vpow.pop %v9065
    %v9067 = vmul.f32 %v9056, 1.442695
    %v9068 = vpow.pop %v9067
    %v9069 = vmul.f32 %v9057, 1.442695
    %v9070 = vpow.pop %v9069
    %v9071 = vmul.f32 %v9058, 1.442695
    %v9072 = vpow.pop %v9071
    %v9073 = vmul.f32 %v9059, 1.442695
    %v9074 = vpow.pop %v9073
    %v9075 = vmul.f32 %v9060, 1.442695
    %v9076 = vpow.pop %v9075
    %v9077 = vsel %vm660, %v9062, 0.0
    %9078 = vadd.xlane.f32.xlu0 %v9077
    %v9079 = vpop.xlane.xlu0 %9078
    %v9080 = vsel %vm660, %v9064, 0.0
    %9081 = vadd.xlane.f32.xlu0 %v9080
    %v9082 = vpop.xlane.xlu0 %9081
    %v9083 = vsel %vm660, %v9066, 0.0
    %9084 = vadd.xlane.f32.xlu0 %v9083
    %v9085 = vpop.xlane.xlu0 %9084
    %v9086 = vsel %vm660, %v9068, 0.0
    %9087 = vadd.xlane.f32.xlu0 %v9086
    %v9088 = vpop.xlane.xlu0 %9087
    %v9089 = vsel %vm660, %v9070, 0.0
    %9090 = vadd.xlane.f32.xlu0 %v9089
    %v9091 = vpop.xlane.xlu0 %9090
    %v9092 = vsel %vm660, %v9072, 0.0
    %9093 = vadd.xlane.f32.xlu0 %v9092
    %v9094 = vpop.xlane.xlu0 %9093
    %v9095 = vsel %vm660, %v9074, 0.0
    %9096 = vadd.xlane.f32.xlu0 %v9095
    %v9097 = vpop.xlane.xlu0 %9096
    %v9098 = vsel %vm660, %v9076, 0.0
    %9099 = vadd.xlane.f32.xlu0 %v9098
    %v9100 = vpop.xlane.xlu0 %9099
    %v9101 = vrcp.pop %v9079
    %v9102 = vrcp.pop %v9082
    %v9103 = vrcp.pop %v9085
    %v9104 = vrcp.pop %v9088
    %v9105 = vrcp.pop %v9091
    %v9106 = vrcp.pop %v9094
    %v9107 = vrcp.pop %v9097
    %v9108 = vrcp.pop %v9100
    %v9109 = vmul.f32 %v9062, %v9101
    %v9110 = vmul.f32 %v9064, %v9102
    %v9111 = vmul.f32 %v9066, %v9103
    %v9112 = vmul.f32 %v9068, %v9104
    %v9113 = vmul.f32 %v9070, %v9105
    %v9114 = vmul.f32 %v9072, %v9106
    %v9115 = vmul.f32 %v9074, %v9107
    %v9116 = vmul.f32 %v9076, %v9108
    %9117 = vrot.lane.b32.xlu0 %v7600, 40
    %v9118 = vpop.permute.xlu0 %9117
    %9119 = vrot.lane.b32.xlu0 %v7605, 40
    %v9120 = vpop.permute.xlu0 %9119
    %9121 = vrot.lane.b32.xlu0 %v7610, 40
    %v9122 = vpop.permute.xlu0 %9121
    %9123 = vrot.lane.b32.xlu0 %v7615, 40
    %v9124 = vpop.permute.xlu0 %9123
    %9125 = vrot.lane.b32.xlu0 %v7620, 40
    %v9126 = vpop.permute.xlu0 %9125
    %9127 = vrot.lane.b32.xlu0 %v7625, 40
    %v9128 = vpop.permute.xlu0 %9127
    %9129 = vrot.lane.b32.xlu0 %v7630, 40
    %v9130 = vpop.permute.xlu0 %9129
    %9131 = vrot.lane.b32.xlu0 %v7635, 40
    %v9132 = vpop.permute.xlu0 %9131
    %v9142 = vsel %vm660, %v9109, 0
    %v9145 = vsel %vm660, %v9110, 0
    %v9148 = vsel %vm660, %v9111, 0
    %v9151 = vsel %vm660, %v9112, 0
    %v9154 = vsel %vm660, %v9113, 0
    %v9157 = vsel %vm660, %v9114, 0
    %v9160 = vsel %vm660, %v9115, 0
    %v9163 = vsel %vm660, %v9116, 0
    %9165 = vmatprep.subr.mxu0 0.0
    %9166 = vmatpush1.msra.mxu0 %v9118
    %9167 = vmatprep.subr.mxu0 0.0
    %9168 = vmatpush1.msra.mxu0 %v9120
    %9169 = vmatprep.subr.mxu0 0.0
    %9170 = vmatpush1.msra.mxu0 %v9122
    %9171 = vmatprep.subr.mxu0 0.0
    %9172 = vmatpush1.msra.mxu0 %v9124
    %9173 = vmatprep.subr.mxu0 0.0
    %9174 = vmatpush1.msra.mxu0 %v9126
    %9175 = vmatprep.subr.mxu0 0.0
    %9176 = vmatpush1.msra.mxu0 %v9128
    %9177 = vmatprep.subr.mxu0 0.0
    %9178 = vmatpush1.msra.mxu0 %v9130
    %9179 = vmatprep.subr.mxu0 0.0
    %9180 = vmatpush1.msra.mxu0 %v9132
    %9181 = vmatprep.subr.mxu0 0.0
    %9182 = vmatpush1.msra.mxu0 0.0
    %9183 = vmatprep.subr.mxu0 0.0
    %9184 = vmatpush1.msra.mxu0 0.0
    %9185 = vmatprep.subr.mxu0 0.0
    %9186 = vmatpush1.msra.mxu0 0.0
    %9187 = vmatprep.subr.mxu0 0.0
    %9188 = vmatpush1.msra.mxu0 0.0
    %9189 = vmatprep.subr.mxu0 0.0
    %9190 = vmatpush1.msra.mxu0 0.0
    %9191 = vmatprep.subr.mxu0 0.0
    %9192 = vmatpush1.msra.mxu0 0.0
    %9193 = vmatprep.subr.mxu0 0.0
    %9194 = vmatpush1.msra.mxu0 0.0
    %9195 = vmatprep.subr.mxu0 0.0
    %9196 = vmatpush1.msra.mxu0 0.0
    %9197 = vmatprep.subr.mxu0 0.0
    %9198 = vmatpush1.msra.mxu0 0.0
    %9199 = vmatprep.subr.mxu0 0.0
    %9200 = vmatpush1.msra.mxu0 0.0
    %9201 = vmatprep.subr.mxu0 0.0
    %9202 = vmatpush1.msra.mxu0 0.0
    %9203 = vmatprep.subr.mxu0 0.0
    %9204 = vmatpush1.msra.mxu0 0.0
    %9205 = vmatprep.subr.mxu0 0.0
    %9206 = vmatpush1.msra.mxu0 0.0
    %9207 = vmatprep.subr.mxu0 0.0
    %9208 = vmatpush1.msra.mxu0 0.0
    %9209 = vmatprep.subr.mxu0 0.0
    %9210 = vmatpush1.msra.mxu0 0.0
    %9211 = vmatprep.subr.mxu0 0.0
    %9212 = vmatpush1.msra.mxu0 0.0
    %9213 = vmatprep.subr.mxu0 0.0
    %9214 = vmatpush1.msra.mxu0 0.0
    %9215 = vmatprep.subr.mxu0 0.0
    %9216 = vmatpush1.msra.mxu0 0.0
    %9217 = vmatprep.subr.mxu0 0.0
    %9218 = vmatpush1.msra.mxu0 0.0
    %9219 = vmatprep.subr.mxu0 0.0
    %9220 = vmatpush1.msra.mxu0 0.0
    %9221 = vmatprep.subr.mxu0 0.0
    %9222 = vmatpush1.msra.mxu0 0.0
    %9223 = vmatprep.subr.mxu0 0.0
    %9224 = vmatpush1.msra.mxu0 0.0
    %9225 = vmatprep.subr.mxu0 0.0
    %9226 = vmatpush1.msra.mxu0 0.0
    %9227 = vmatprep.subr.mxu0 0.0
    %9228 = vmatpush1.msra.mxu0 0.0
    %9229 = vmatprep.mubr.f32.mxu0 0.0
    %9230 = vmatmul.mubr.f32.gmra.mrb[0].mxu0 %v9142
    %v9231 = vpop.f32.mrb[0].mxu0
    %v9232 = vadd.f32 0.0, %v9231
    %v9233 = vpop.f32.mrb[0].mxu0
    %9234 = vmatprep.mubr.f32.mxu0 0.0
    %9235 = vmatmul.mubr.f32.gmra.mrb[0].mxu0 %v9145
    %v9236 = vpop.f32.mrb[0].mxu0
    %v9237 = vadd.f32 0.0, %v9236
    %v9238 = vpop.f32.mrb[0].mxu0
    %9239 = vmatprep.mubr.f32.mxu0 0.0
    %9240 = vmatmul.mubr.f32.gmra.mrb[0].mxu0 %v9148
    %v9241 = vpop.f32.mrb[0].mxu0
    %v9242 = vadd.f32 0.0, %v9241
    %v9243 = vpop.f32.mrb[0].mxu0
    %9244 = vmatprep.mubr.f32.mxu0 0.0
    %9245 = vmatmul.mubr.f32.gmra.mrb[0].mxu0 %v9151
    %v9246 = vpop.f32.mrb[0].mxu0
    %v9247 = vadd.f32 0.0, %v9246
    %v9248 = vpop.f32.mrb[0].mxu0
    %9249 = vmatprep.mubr.f32.mxu0 0.0
    %9250 = vmatmul.mubr.f32.gmra.mrb[0].mxu0 %v9154
    %v9251 = vpop.f32.mrb[0].mxu0
    %v9252 = vadd.f32 0.0, %v9251
    %v9253 = vpop.f32.mrb[0].mxu0
    %9254 = vmatprep.mubr.f32.mxu0 0.0
    %9255 = vmatmul.mubr.f32.gmra.mrb[0].mxu0 %v9157
    %v9256 = vpop.f32.mrb[0].mxu0
    %v9257 = vadd.f32 0.0, %v9256
    %v9258 = vpop.f32.mrb[0].mxu0
    %9259 = vmatprep.mubr.f32.mxu0 0.0
    %9260 = vmatmul.mubr.f32.gmra.mrb[0].mxu0 %v9160
    %v9261 = vpop.f32.mrb[0].mxu0
    %v9262 = vadd.f32 0.0, %v9261
    %v9263 = vpop.f32.mrb[0].mxu0
    %9264 = vmatprep.mubr.f32.mxu0 0.0
    %9265 = vmatmul.mubr.f32.gmra.mrb[0].mxu0 %v9163
    %v9266 = vpop.f32.mrb[0].mxu0
    %v9267 = vadd.f32 0.0, %v9266
    %v9268 = vpop.f32.mrb[0].mxu0
    %9269 = vdwg.mxu0
    %9278 = vrot.lane.b32.xlu0 %v8412, 8
    %v9279 = vpop.permute.xlu0 %9278
    %9280 = vrot.lane.b32.xlu0 %v8417, 8
    %v9281 = vpop.permute.xlu0 %9280
    %9282 = vrot.lane.b32.xlu0 %v8422, 8
    %v9283 = vpop.permute.xlu0 %9282
    %9284 = vrot.lane.b32.xlu0 %v8427, 8
    %v9285 = vpop.permute.xlu0 %9284
    %9286 = vrot.lane.b32.xlu0 %v8432, 8
    %v9287 = vpop.permute.xlu0 %9286
    %9288 = vrot.lane.b32.xlu0 %v8437, 8
    %v9289 = vpop.permute.xlu0 %9288
    %9290 = vrot.lane.b32.xlu0 %v8442, 8
    %v9291 = vpop.permute.xlu0 %9290
    %9292 = vrot.lane.b32.xlu0 %v8447, 8
    %v9293 = vpop.permute.xlu0 %9292
    %9310 = vrot.lane.b32.xlu0 %v8822, 16
    %v9311 = vpop.permute.xlu0 %9310
    %9312 = vrot.lane.b32.xlu0 %v8827, 16
    %v9313 = vpop.permute.xlu0 %9312
    %9314 = vrot.lane.b32.xlu0 %v8832, 16
    %v9315 = vpop.permute.xlu0 %9314
    %9316 = vrot.lane.b32.xlu0 %v8837, 16
    %v9317 = vpop.permute.xlu0 %9316
    %9318 = vrot.lane.b32.xlu0 %v8842, 16
    %v9319 = vpop.permute.xlu0 %9318
    %9320 = vrot.lane.b32.xlu0 %v8847, 16
    %v9321 = vpop.permute.xlu0 %9320
    %9322 = vrot.lane.b32.xlu0 %v8852, 16
    %v9323 = vpop.permute.xlu0 %9322
    %9324 = vrot.lane.b32.xlu0 %v8857, 16
    %v9325 = vpop.permute.xlu0 %9324
    %9342 = vrot.lane.b32.xlu0 %v9232, 24
    %v9343 = vpop.permute.xlu0 %9342
    %9344 = vrot.lane.b32.xlu0 %v9237, 24
    %v9345 = vpop.permute.xlu0 %9344
    %9346 = vrot.lane.b32.xlu0 %v9242, 24
    %v9347 = vpop.permute.xlu0 %9346
    %9348 = vrot.lane.b32.xlu0 %v9247, 24
    %v9349 = vpop.permute.xlu0 %9348
    %9350 = vrot.lane.b32.xlu0 %v9252, 24
    %v9351 = vpop.permute.xlu0 %9350
    %9352 = vrot.lane.b32.xlu0 %v9257, 24
    %v9353 = vpop.permute.xlu0 %9352
    %9354 = vrot.lane.b32.xlu0 %v9262, 24
    %v9355 = vpop.permute.xlu0 %9354
    %9356 = vrot.lane.b32.xlu0 %v9267, 24
    %v9357 = vpop.permute.xlu0 %9356
    %v9366 = vsel %vm522, %v8002, %v9279
    %v9367 = vsel %vm522, %v8007, %v9281
    %v9368 = vsel %vm522, %v8012, %v9283
    %v9369 = vsel %vm522, %v8017, %v9285
    %v9370 = vsel %vm522, %v8022, %v9287
    %v9371 = vsel %vm522, %v8027, %v9289
    %v9372 = vsel %vm522, %v8032, %v9291
    %v9373 = vsel %vm522, %v8037, %v9293
    %v9374 = vsel %vm2236, %v9366, %v9311
    %v9375 = vsel %vm2236, %v9367, %v9313
    %v9376 = vsel %vm2236, %v9368, %v9315
    %v9377 = vsel %vm2236, %v9369, %v9317
    %v9378 = vsel %vm2236, %v9370, %v9319
    %v9379 = vsel %vm2236, %v9371, %v9321
    %v9380 = vsel %vm2236, %v9372, %v9323
    %v9381 = vsel %vm2236, %v9373, %v9325
    %v9382 = vsel %vm2245, %v9374, %v9343
    %v9383 = vsel %vm2245, %v9375, %v9345
    %v9384 = vsel %vm2245, %v9376, %v9347
    %v9385 = vsel %vm2245, %v9377, %v9349
    %v9386 = vsel %vm2245, %v9378, %v9351
    %v9387 = vsel %vm2245, %v9379, %v9353
    %v9388 = vsel %vm2245, %v9380, %v9355
    %v9389 = vsel %vm2245, %v9381, %v9357
    %v9391 = vsel %vm109, %v7364, 0
    %v9394 = vsel %vm109, %v7365, 0
    %v9397 = vsel %vm109, %v7366, 0
    %v9400 = vsel %vm109, %v7367, 0
    %v9403 = vsel %vm109, %v7368, 0
    %v9406 = vsel %vm109, %v7369, 0
    %v9409 = vsel %vm109, %v7370, 0
    %v9412 = vsel %vm109, %v7371, 0
    %v9415 = vsel %vm109, %v9382, 0
    %v9418 = vsel %vm109, %v9383, 0
    %v9421 = vsel %vm109, %v9384, 0
    %v9424 = vsel %vm109, %v9385, 0
    %v9427 = vsel %vm109, %v9386, 0
    %v9430 = vsel %vm109, %v9387, 0
    %v9433 = vsel %vm109, %v9388, 0
    %v9436 = vsel %vm109, %v9389, 0
    %9438 = vmatprep.subr.mxu0 0.0
    %9439 = vmatpush1.msra.mxu0 %v5095
    %9440 = vmatprep.subr.mxu0 0.0
    %9441 = vmatpush1.msra.mxu0 %v5096
    %9442 = vmatprep.subr.mxu0 0.0
    %9443 = vmatpush1.msra.mxu0 %v5097
    %9444 = vmatprep.subr.mxu0 0.0
    %9445 = vmatpush1.msra.mxu0 %v5098
    %9446 = vmatprep.subr.mxu0 0.0
    %9447 = vmatpush1.msra.mxu0 0.0
    %9448 = vmatprep.subr.mxu0 0.0
    %9449 = vmatpush1.msra.mxu0 0.0
    %9450 = vmatprep.subr.mxu0 0.0
    %9451 = vmatpush1.msra.mxu0 0.0
    %9452 = vmatprep.subr.mxu0 0.0
    %9453 = vmatpush1.msra.mxu0 0.0
    %9454 = vmatprep.subr.mxu0 0.0
    %9455 = vmatpush1.msra.mxu0 0.0
    %9456 = vmatprep.subr.mxu0 0.0
    %9457 = vmatpush1.msra.mxu0 0.0
    %9458 = vmatprep.subr.mxu0 0.0
    %9459 = vmatpush1.msra.mxu0 0.0
    %9460 = vmatprep.subr.mxu0 0.0
    %9461 = vmatpush1.msra.mxu0 0.0
    %9462 = vmatprep.subr.mxu0 0.0
    %9463 = vmatpush1.msra.mxu0 0.0
    %9464 = vmatprep.subr.mxu0 0.0
    %9465 = vmatpush1.msra.mxu0 0.0
    %9466 = vmatprep.subr.mxu0 0.0
    %9467 = vmatpush1.msra.mxu0 0.0
    %9468 = vmatprep.subr.mxu0 0.0
    %9469 = vmatpush1.msra.mxu0 0.0
    %9470 = vmatprep.subr.mxu0 0.0
    %9471 = vmatpush1.msra.mxu0 0.0
    %9472 = vmatprep.subr.mxu0 0.0
    %9473 = vmatpush1.msra.mxu0 0.0
    %9474 = vmatprep.subr.mxu0 0.0
    %9475 = vmatpush1.msra.mxu0 0.0
    %9476 = vmatprep.subr.mxu0 0.0
    %9477 = vmatpush1.msra.mxu0 0.0
    %9478 = vmatprep.subr.mxu0 0.0
    %9479 = vmatpush1.msra.mxu0 0.0
    %9480 = vmatprep.subr.mxu0 0.0
    %9481 = vmatpush1.msra.mxu0 0.0
    %9482 = vmatprep.subr.mxu0 0.0
    %9483 = vmatpush1.msra.mxu0 0.0
    %9484 = vmatprep.subr.mxu0 0.0
    %9485 = vmatpush1.msra.mxu0 0.0
    %9486 = vmatprep.subr.mxu0 0.0
    %9487 = vmatpush1.msra.mxu0 0.0
    %9488 = vmatprep.subr.mxu0 0.0
    %9489 = vmatpush1.msra.mxu0 0.0
    %9490 = vmatprep.subr.mxu0 0.0
    %9491 = vmatpush1.msra.mxu0 0.0
    %9492 = vmatprep.subr.mxu0 0.0
    %9493 = vmatpush1.msra.mxu0 0.0
    %9494 = vmatprep.subr.mxu0 0.0
    %9495 = vmatpush1.msra.mxu0 0.0
    %9496 = vmatprep.subr.mxu0 0.0
    %9497 = vmatpush1.msra.mxu0 0.0
    %9498 = vmatprep.subr.mxu0 0.0
    %9499 = vmatpush1.msra.mxu0 0.0
    %9500 = vmatprep.subr.mxu0 0.0
    %9501 = vmatpush1.msra.mxu0 0.0
    %9502 = vmatprep.mubr.f32.mxu0 0.0
    %9503 = vmatmul.mubr.f32.gmra.mrb[0].mxu0 %v9391
    %v9504 = vpop.f32.mrb[0].mxu0
    %v9505 = vadd.f32 0.0, %v9504
    %v9506 = vpop.f32.mrb[0].mxu0
    %9507 = vmatprep.mubr.f32.mxu0 0.0
    %9508 = vmatmul.mubr.f32.gmra.mrb[0].mxu0 %v9394
    %v9509 = vpop.f32.mrb[0].mxu0
    %v9510 = vadd.f32 0.0, %v9509
    %v9511 = vpop.f32.mrb[0].mxu0
    %9512 = vmatprep.mubr.f32.mxu0 0.0
    %9513 = vmatmul.mubr.f32.gmra.mrb[0].mxu0 %v9397
    %v9514 = vpop.f32.mrb[0].mxu0
    %v9515 = vadd.f32 0.0, %v9514
    %v9516 = vpop.f32.mrb[0].mxu0
    %9517 = vmatprep.mubr.f32.mxu0 0.0
    %9518 = vmatmul.mubr.f32.gmra.mrb[0].mxu0 %v9400
    %v9519 = vpop.f32.mrb[0].mxu0
    %v9520 = vadd.f32 0.0, %v9519
    %v9521 = vpop.f32.mrb[0].mxu0
    %9522 = vmatprep.mubr.f32.mxu0 0.0
    %9523 = vmatmul.mubr.f32.gmra.mrb[0].mxu0 %v9403
    %v9524 = vpop.f32.mrb[0].mxu0
    %v9525 = vadd.f32 0.0, %v9524
    %v9526 = vpop.f32.mrb[0].mxu0
    %9527 = vmatprep.mubr.f32.mxu0 0.0
    %9528 = vmatmul.mubr.f32.gmra.mrb[0].mxu0 %v9406
    %v9529 = vpop.f32.mrb[0].mxu0
    %v9530 = vadd.f32 0.0, %v9529
    %v9531 = vpop.f32.mrb[0].mxu0
    %9532 = vmatprep.mubr.f32.mxu0 0.0
    %9533 = vmatmul.mubr.f32.gmra.mrb[0].mxu0 %v9409
    %v9534 = vpop.f32.mrb[0].mxu0
    %v9535 = vadd.f32 0.0, %v9534
    %v9536 = vpop.f32.mrb[0].mxu0
    %9537 = vmatprep.mubr.f32.mxu0 0.0
    %9538 = vmatmul.mubr.f32.gmra.mrb[0].mxu0 %v9412
    %v9539 = vpop.f32.mrb[0].mxu0
    %v9540 = vadd.f32 0.0, %v9539
    %v9541 = vpop.f32.mrb[0].mxu0
    %9542 = vmatprep.mubr.f32.mxu0 0.0
    %9543 = vmatmul.mubr.f32.gmra.mrb[0].mxu0 %v9415
    %v9544 = vpop.f32.mrb[0].mxu0
    %v9545 = vadd.f32 0.0, %v9544
    %v9546 = vpop.f32.mrb[0].mxu0
    %9547 = vmatprep.mubr.f32.mxu0 0.0
    %9548 = vmatmul.mubr.f32.gmra.mrb[0].mxu0 %v9418
    %v9549 = vpop.f32.mrb[0].mxu0
    %v9550 = vadd.f32 0.0, %v9549
    %v9551 = vpop.f32.mrb[0].mxu0
    %9552 = vmatprep.mubr.f32.mxu0 0.0
    %9553 = vmatmul.mubr.f32.gmra.mrb[0].mxu0 %v9421
    %v9554 = vpop.f32.mrb[0].mxu0
    %v9555 = vadd.f32 0.0, %v9554
    %v9556 = vpop.f32.mrb[0].mxu0
    %9557 = vmatprep.mubr.f32.mxu0 0.0
    %9558 = vmatmul.mubr.f32.gmra.mrb[0].mxu0 %v9424
    %v9559 = vpop.f32.mrb[0].mxu0
    %v9560 = vadd.f32 0.0, %v9559
    %v9561 = vpop.f32.mrb[0].mxu0
    %9562 = vmatprep.mubr.f32.mxu0 0.0
    %9563 = vmatmul.mubr.f32.gmra.mrb[0].mxu0 %v9427
    %v9564 = vpop.f32.mrb[0].mxu0
    %v9565 = vadd.f32 0.0, %v9564
    %v9566 = vpop.f32.mrb[0].mxu0
    %9567 = vmatprep.mubr.f32.mxu0 0.0
    %9568 = vmatmul.mubr.f32.gmra.mrb[0].mxu0 %v9430
    %v9569 = vpop.f32.mrb[0].mxu0
    %v9570 = vadd.f32 0.0, %v9569
    %v9571 = vpop.f32.mrb[0].mxu0
    %9572 = vmatprep.mubr.f32.mxu0 0.0
    %9573 = vmatmul.mubr.f32.gmra.mrb[0].mxu0 %v9433
    %v9574 = vpop.f32.mrb[0].mxu0
    %v9575 = vadd.f32 0.0, %v9574
    %v9576 = vpop.f32.mrb[0].mxu0
    %9577 = vmatprep.mubr.f32.mxu0 0.0
    %9578 = vmatmul.mubr.f32.gmra.mrb[0].mxu0 %v9436
    %v9579 = vpop.f32.mrb[0].mxu0
    %v9580 = vadd.f32 0.0, %v9579
    %v9581 = vpop.f32.mrb[0].mxu0
    %9582 = vdwg.mxu0
    %v9583 = vadd.f32 %v5074, %v9505
    %v9584 = vadd.f32 %v5075, %v9510
    %v9585 = vadd.f32 %v5076, %v9515
    %v9586 = vadd.f32 %v5077, %v9520
    %v9587 = vadd.f32 %v5078, %v9525
    %v9588 = vadd.f32 %v5079, %v9530
    %v9589 = vadd.f32 %v5080, %v9535
    %v9590 = vadd.f32 %v5081, %v9540
    %v9591 = vadd.f32 %v5082, %v9545
    %v9592 = vadd.f32 %v5083, %v9550
    %v9593 = vadd.f32 %v5084, %v9555
    %v9594 = vadd.f32 %v5085, %v9560
    %v9595 = vadd.f32 %v5086, %v9565
    %v9596 = vadd.f32 %v5087, %v9570
    %v9597 = vadd.f32 %v5088, %v9575
    %v9598 = vadd.f32 %v5089, %v9580
    %v9600 = vlaneseq
    %v9601 = vshrl.u32 %v9600, 7
    %v9602 = vsub.s32 0, %v9601
    %v9603 = vrot.slane %v5099, %v9602
    %v9605 = vadd.f32 %v9583, %v9603
    %v9606 = vadd.f32 %v9584, %v9603
    %v9607 = vadd.f32 %v9585, %v9603
    %v9608 = vadd.f32 %v9586, %v9603
    %v9609 = vadd.f32 %v9587, %v9603
    %v9610 = vadd.f32 %v9588, %v9603
    %v9611 = vadd.f32 %v9589, %v9603
    %v9612 = vadd.f32 %v9590, %v9603
    %v9613 = vadd.f32 %v9591, %v9603
    %v9614 = vadd.f32 %v9592, %v9603
    %v9615 = vadd.f32 %v9593, %v9603
    %v9616 = vadd.f32 %v9594, %v9603
    %v9617 = vadd.f32 %v9595, %v9603
    %v9618 = vadd.f32 %v9596, %v9603
    %v9619 = vadd.f32 %v9597, %v9603
    %v9620 = vadd.f32 %v9598, %v9603
    %v9621 = vsel %vm109, %v9605, 0.0
    %9622 = vadd.xlane.f32.xlu0 %v9621
    %v9623 = vpop.xlane.xlu0 %9622
    %v9624 = vsel %vm109, %v9606, 0.0
    %9625 = vadd.xlane.f32.xlu0 %v9624
    %v9626 = vpop.xlane.xlu0 %9625
    %v9627 = vsel %vm109, %v9607, 0.0
    %9628 = vadd.xlane.f32.xlu0 %v9627
    %v9629 = vpop.xlane.xlu0 %9628
    %v9630 = vsel %vm109, %v9608, 0.0
    %9631 = vadd.xlane.f32.xlu0 %v9630
    %v9632 = vpop.xlane.xlu0 %9631
    %v9633 = vsel %vm109, %v9609, 0.0
    %9634 = vadd.xlane.f32.xlu0 %v9633
    %v9635 = vpop.xlane.xlu0 %9634
    %v9636 = vsel %vm109, %v9610, 0.0
    %9637 = vadd.xlane.f32.xlu0 %v9636
    %v9638 = vpop.xlane.xlu0 %9637
    %v9639 = vsel %vm109, %v9611, 0.0
    %9640 = vadd.xlane.f32.xlu0 %v9639
    %v9641 = vpop.xlane.xlu0 %9640
    %v9642 = vsel %vm109, %v9612, 0.0
    %9643 = vadd.xlane.f32.xlu0 %v9642
    %v9644 = vpop.xlane.xlu0 %9643
    %v9645 = vsel %vm109, %v9613, 0.0
    %9646 = vadd.xlane.f32.xlu0 %v9645
    %v9647 = vpop.xlane.xlu0 %9646
    %v9648 = vsel %vm109, %v9614, 0.0
    %9649 = vadd.xlane.f32.xlu0 %v9648
    %v9650 = vpop.xlane.xlu0 %9649
    %v9651 = vsel %vm109, %v9615, 0.0
    %9652 = vadd.xlane.f32.xlu0 %v9651
    %v9653 = vpop.xlane.xlu0 %9652
    %v9654 = vsel %vm109, %v9616, 0.0
    %9655 = vadd.xlane.f32.xlu0 %v9654
    %v9656 = vpop.xlane.xlu0 %9655
    %v9657 = vsel %vm109, %v9617, 0.0
    %9658 = vadd.xlane.f32.xlu0 %v9657
    %v9659 = vpop.xlane.xlu0 %9658
    %v9660 = vsel %vm109, %v9618, 0.0
    %9661 = vadd.xlane.f32.xlu0 %v9660
    %v9662 = vpop.xlane.xlu0 %9661
    %v9663 = vsel %vm109, %v9619, 0.0
    %9664 = vadd.xlane.f32.xlu0 %v9663
    %v9665 = vpop.xlane.xlu0 %9664
    %v9666 = vsel %vm109, %v9620, 0.0
    %9667 = vadd.xlane.f32.xlu0 %v9666
    %v9668 = vpop.xlane.xlu0 %9667
    %v9669 = vmul.f32 %v9623, %v158
    %v9670 = vmul.f32 %v9626, %v158
    %v9671 = vmul.f32 %v9629, %v158
    %v9672 = vmul.f32 %v9632, %v158
    %v9673 = vmul.f32 %v9635, %v158
    %v9674 = vmul.f32 %v9638, %v158
    %v9675 = vmul.f32 %v9641, %v158
    %v9676 = vmul.f32 %v9644, %v158
    %v9677 = vmul.f32 %v9647, %v158
    %v9678 = vmul.f32 %v9650, %v158
    %v9679 = vmul.f32 %v9653, %v158
    %v9680 = vmul.f32 %v9656, %v158
    %v9681 = vmul.f32 %v9659, %v158
    %v9682 = vmul.f32 %v9662, %v158
    %v9683 = vmul.f32 %v9665, %v158
    %v9684 = vmul.f32 %v9668, %v158
    %v9685 = vsub.f32 %v9605, %v9669
    %v9686 = vsub.f32 %v9606, %v9670
    %v9687 = vsub.f32 %v9607, %v9671
    %v9688 = vsub.f32 %v9608, %v9672
    %v9689 = vsub.f32 %v9609, %v9673
    %v9690 = vsub.f32 %v9610, %v9674
    %v9691 = vsub.f32 %v9611, %v9675
    %v9692 = vsub.f32 %v9612, %v9676
    %v9693 = vsub.f32 %v9613, %v9677
    %v9694 = vsub.f32 %v9614, %v9678
    %v9695 = vsub.f32 %v9615, %v9679
    %v9696 = vsub.f32 %v9616, %v9680
    %v9697 = vsub.f32 %v9617, %v9681
    %v9698 = vsub.f32 %v9618, %v9682
    %v9699 = vsub.f32 %v9619, %v9683
    %v9700 = vsub.f32 %v9620, %v9684
    %v9701 = vmul.f32 %v9685, %v9685
    %v9702 = vmul.f32 %v9686, %v9686
    %v9703 = vmul.f32 %v9687, %v9687
    %v9704 = vmul.f32 %v9688, %v9688
    %v9705 = vmul.f32 %v9689, %v9689
    %v9706 = vmul.f32 %v9690, %v9690
    %v9707 = vmul.f32 %v9691, %v9691
    %v9708 = vmul.f32 %v9692, %v9692
    %v9709 = vmul.f32 %v9693, %v9693
    %v9710 = vmul.f32 %v9694, %v9694
    %v9711 = vmul.f32 %v9695, %v9695
    %v9712 = vmul.f32 %v9696, %v9696
    %v9713 = vmul.f32 %v9697, %v9697
    %v9714 = vmul.f32 %v9698, %v9698
    %v9715 = vmul.f32 %v9699, %v9699
    %v9716 = vmul.f32 %v9700, %v9700
    %v9717 = vsel %vm109, %v9701, 0.0
    %9718 = vadd.xlane.f32.xlu0 %v9717
    %v9719 = vpop.xlane.xlu0 %9718
    %v9720 = vsel %vm109, %v9702, 0.0
    %9721 = vadd.xlane.f32.xlu0 %v9720
    %v9722 = vpop.xlane.xlu0 %9721
    %v9723 = vsel %vm109, %v9703, 0.0
    %9724 = vadd.xlane.f32.xlu0 %v9723
    %v9725 = vpop.xlane.xlu0 %9724
    %v9726 = vsel %vm109, %v9704, 0.0
    %9727 = vadd.xlane.f32.xlu0 %v9726
    %v9728 = vpop.xlane.xlu0 %9727
    %v9729 = vsel %vm109, %v9705, 0.0
    %9730 = vadd.xlane.f32.xlu0 %v9729
    %v9731 = vpop.xlane.xlu0 %9730
    %v9732 = vsel %vm109, %v9706, 0.0
    %9733 = vadd.xlane.f32.xlu0 %v9732
    %v9734 = vpop.xlane.xlu0 %9733
    %v9735 = vsel %vm109, %v9707, 0.0
    %9736 = vadd.xlane.f32.xlu0 %v9735
    %v9737 = vpop.xlane.xlu0 %9736
    %v9738 = vsel %vm109, %v9708, 0.0
    %9739 = vadd.xlane.f32.xlu0 %v9738
    %v9740 = vpop.xlane.xlu0 %9739
    %v9741 = vsel %vm109, %v9709, 0.0
    %9742 = vadd.xlane.f32.xlu0 %v9741
    %v9743 = vpop.xlane.xlu0 %9742
    %v9744 = vsel %vm109, %v9710, 0.0
    %9745 = vadd.xlane.f32.xlu0 %v9744
    %v9746 = vpop.xlane.xlu0 %9745
    %v9747 = vsel %vm109, %v9711, 0.0
    %9748 = vadd.xlane.f32.xlu0 %v9747
    %v9749 = vpop.xlane.xlu0 %9748
    %v9750 = vsel %vm109, %v9712, 0.0
    %9751 = vadd.xlane.f32.xlu0 %v9750
    %v9752 = vpop.xlane.xlu0 %9751
    %v9753 = vsel %vm109, %v9713, 0.0
    %9754 = vadd.xlane.f32.xlu0 %v9753
    %v9755 = vpop.xlane.xlu0 %9754
    %v9756 = vsel %vm109, %v9714, 0.0
    %9757 = vadd.xlane.f32.xlu0 %v9756
    %v9758 = vpop.xlane.xlu0 %9757
    %v9759 = vsel %vm109, %v9715, 0.0
    %9760 = vadd.xlane.f32.xlu0 %v9759
    %v9761 = vpop.xlane.xlu0 %9760
    %v9762 = vsel %vm109, %v9716, 0.0
    %9763 = vadd.xlane.f32.xlu0 %v9762
    %v9764 = vpop.xlane.xlu0 %9763
    %v9765 = vmul.f32 %v9719, %v158
    %v9766 = vmul.f32 %v9722, %v158
    %v9767 = vmul.f32 %v9725, %v158
    %v9768 = vmul.f32 %v9728, %v158
    %v9769 = vmul.f32 %v9731, %v158
    %v9770 = vmul.f32 %v9734, %v158
    %v9771 = vmul.f32 %v9737, %v158
    %v9772 = vmul.f32 %v9740, %v158
    %v9773 = vmul.f32 %v9743, %v158
    %v9774 = vmul.f32 %v9746, %v158
    %v9775 = vmul.f32 %v9749, %v158
    %v9776 = vmul.f32 %v9752, %v158
    %v9777 = vmul.f32 %v9755, %v158
    %v9778 = vmul.f32 %v9758, %v158
    %v9779 = vmul.f32 %v9761, %v158
    %v9780 = vmul.f32 %v9764, %v158
    %v9781 = vadd.f32 %v9765, 1e-05
    %v9782 = vadd.f32 %v9766, 1e-05
    %v9783 = vadd.f32 %v9767, 1e-05
    %v9784 = vadd.f32 %v9768, 1e-05
    %v9785 = vadd.f32 %v9769, 1e-05
    %v9786 = vadd.f32 %v9770, 1e-05
    %v9787 = vadd.f32 %v9771, 1e-05
    %v9788 = vadd.f32 %v9772, 1e-05
    %v9789 = vadd.f32 %v9773, 1e-05
    %v9790 = vadd.f32 %v9774, 1e-05
    %v9791 = vadd.f32 %v9775, 1e-05
    %v9792 = vadd.f32 %v9776, 1e-05
    %v9793 = vadd.f32 %v9777, 1e-05
    %v9794 = vadd.f32 %v9778, 1e-05
    %v9795 = vadd.f32 %v9779, 1e-05
    %v9796 = vadd.f32 %v9780, 1e-05
    %v9797 = vrsqrt.pop %v9781
    %v9798 = vrsqrt.pop %v9782
    %v9799 = vrsqrt.pop %v9783
    %v9800 = vrsqrt.pop %v9784
    %v9801 = vrsqrt.pop %v9785
    %v9802 = vrsqrt.pop %v9786
    %v9803 = vrsqrt.pop %v9787
    %v9804 = vrsqrt.pop %v9788
    %v9805 = vrsqrt.pop %v9789
    %v9806 = vrsqrt.pop %v9790
    %v9807 = vrsqrt.pop %v9791
    %v9808 = vrsqrt.pop %v9792
    %v9809 = vrsqrt.pop %v9793
    %v9810 = vrsqrt.pop %v9794
    %v9811 = vrsqrt.pop %v9795
    %v9812 = vrsqrt.pop %v9796
    %v9813 = vmul.f32 %v9685, %v9797
    %v9814 = vmul.f32 %v9686, %v9798
    %v9815 = vmul.f32 %v9687, %v9799
    %v9816 = vmul.f32 %v9688, %v9800
    %v9817 = vmul.f32 %v9689, %v9801
    %v9818 = vmul.f32 %v9690, %v9802
    %v9819 = vmul.f32 %v9691, %v9803
    %v9820 = vmul.f32 %v9692, %v9804
    %v9821 = vmul.f32 %v9693, %v9805
    %v9822 = vmul.f32 %v9694, %v9806
    %v9823 = vmul.f32 %v9695, %v9807
    %v9824 = vmul.f32 %v9696, %v9808
    %v9825 = vmul.f32 %v9697, %v9809
    %v9826 = vmul.f32 %v9698, %v9810
    %v9827 = vmul.f32 %v9699, %v9811
    %v9828 = vmul.f32 %v9700, %v9812
    %v9829 = vmul.f32 %v9813, %v323
    %v9830 = vmul.f32 %v9814, %v323
    %v9831 = vmul.f32 %v9815, %v323
    %v9832 = vmul.f32 %v9816, %v323
    %v9833 = vmul.f32 %v9817, %v323
    %v9834 = vmul.f32 %v9818, %v323
    %v9835 = vmul.f32 %v9819, %v323
    %v9836 = vmul.f32 %v9820, %v323
    %v9837 = vmul.f32 %v9821, %v323
    %v9838 = vmul.f32 %v9822, %v323
    %v9839 = vmul.f32 %v9823, %v323
    %v9840 = vmul.f32 %v9824, %v323
    %v9841 = vmul.f32 %v9825, %v323
    %v9842 = vmul.f32 %v9826, %v323
    %v9843 = vmul.f32 %v9827, %v323
    %v9844 = vmul.f32 %v9828, %v323
    %v9845 = vadd.f32 %v9829, %v345
    %v9846 = vadd.f32 %v9830, %v345
    %v9847 = vadd.f32 %v9831, %v345
    %v9848 = vadd.f32 %v9832, %v345
    %v9849 = vadd.f32 %v9833, %v345
    %v9850 = vadd.f32 %v9834, %v345
    %v9851 = vadd.f32 %v9835, %v345
    %v9852 = vadd.f32 %v9836, %v345
    %v9853 = vadd.f32 %v9837, %v345
    %v9854 = vadd.f32 %v9838, %v345
    %v9855 = vadd.f32 %v9839, %v345
    %v9856 = vadd.f32 %v9840, %v345
    %v9857 = vadd.f32 %v9841, %v345
    %v9858 = vadd.f32 %v9842, %v345
    %v9859 = vadd.f32 %v9843, %v345
    %v9860 = vadd.f32 %v9844, %v345
    %v9861 = vld [vmem:[#allocation2] sm:$0xff]
    %v9862 = vld [vmem:[#allocation2 + $0x8] sm:$0xff]
    %v9863 = vld [vmem:[#allocation2 + $0x10] sm:$0xff]
    %v9864 = vld [vmem:[#allocation2 + $0x18] sm:$0xff]
    %v9865 = vld [vmem:[%s15] sm:$0x1]
    %v9867 = vlaneseq
    %v9868 = vshrl.u32 %v9867, 7
    %v9869 = vsub.s32 0, %v9868
    %v9870 = vrot.slane %v9865, %v9869
    %v9873 = vsel %vm109, %v9845, 0
    %v9876 = vsel %vm109, %v9846, 0
    %v9879 = vsel %vm109, %v9847, 0
    %v9882 = vsel %vm109, %v9848, 0
    %v9885 = vsel %vm109, %v9849, 0
    %v9888 = vsel %vm109, %v9850, 0
    %v9891 = vsel %vm109, %v9851, 0
    %v9894 = vsel %vm109, %v9852, 0
    %v9897 = vsel %vm109, %v9853, 0
    %v9900 = vsel %vm109, %v9854, 0
    %v9903 = vsel %vm109, %v9855, 0
    %v9906 = vsel %vm109, %v9856, 0
    %v9909 = vsel %vm109, %v9857, 0
    %v9912 = vsel %vm109, %v9858, 0
    %v9915 = vsel %vm109, %v9859, 0
    %v9918 = vsel %vm109, %v9860, 0
    %9920 = vmatprep.subr.mxu0 0.0
    %9921 = vmatpush1.msra.mxu0 %v9861
    %9922 = vmatprep.subr.mxu0 0.0
    %9923 = vmatpush1.msra.mxu0 %v9862
    %9924 = vmatprep.subr.mxu0 0.0
    %9925 = vmatpush1.msra.mxu0 %v9863
    %9926 = vmatprep.subr.mxu0 0.0
    %9927 = vmatpush1.msra.mxu0 %v9864
    %9928 = vmatprep.subr.mxu0 0.0
    %9929 = vmatpush1.msra.mxu0 0.0
    %9930 = vmatprep.subr.mxu0 0.0
    %9931 = vmatpush1.msra.mxu0 0.0
    %9932 = vmatprep.subr.mxu0 0.0
    %9933 = vmatpush1.msra.mxu0 0.0
    %9934 = vmatprep.subr.mxu0 0.0
    %9935 = vmatpush1.msra.mxu0 0.0
    %9936 = vmatprep.subr.mxu0 0.0
    %9937 = vmatpush1.msra.mxu0 0.0
    %9938 = vmatprep.subr.mxu0 0.0
    %9939 = vmatpush1.msra.mxu0 0.0
    %9940 = vmatprep.subr.mxu0 0.0
    %9941 = vmatpush1.msra.mxu0 0.0
    %9942 = vmatprep.subr.mxu0 0.0
    %9943 = vmatpush1.msra.mxu0 0.0
    %9944 = vmatprep.subr.mxu0 0.0
    %9945 = vmatpush1.msra.mxu0 0.0
    %9946 = vmatprep.subr.mxu0 0.0
    %9947 = vmatpush1.msra.mxu0 0.0
    %9948 = vmatprep.subr.mxu0 0.0
    %9949 = vmatpush1.msra.mxu0 0.0
    %9950 = vmatprep.subr.mxu0 0.0
    %9951 = vmatpush1.msra.mxu0 0.0
    %9952 = vmatprep.subr.mxu0 0.0
    %9953 = vmatpush1.msra.mxu0 0.0
    %9954 = vmatprep.subr.mxu0 0.0
    %9955 = vmatpush1.msra.mxu0 0.0
    %9956 = vmatprep.subr.mxu0 0.0
    %9957 = vmatpush1.msra.mxu0 0.0
    %9958 = vmatprep.subr.mxu0 0.0
    %9959 = vmatpush1.msra.mxu0 0.0
    %9960 = vmatprep.subr.mxu0 0.0
    %9961 = vmatpush1.msra.mxu0 0.0
    %9962 = vmatprep.subr.mxu0 0.0
    %9963 = vmatpush1.msra.mxu0 0.0
    %9964 = vmatprep.subr.mxu0 0.0
    %9965 = vmatpush1.msra.mxu0 0.0
    %9966 = vmatprep.subr.mxu0 0.0
    %9967 = vmatpush1.msra.mxu0 0.0
    %9968 = vmatprep.subr.mxu0 0.0
    %9969 = vmatpush1.msra.mxu0 0.0
    %9970 = vmatprep.subr.mxu0 0.0
    %9971 = vmatpush1.msra.mxu0 0.0
    %9972 = vmatprep.subr.mxu0 0.0
    %9973 = vmatpush1.msra.mxu0 0.0
    %9974 = vmatprep.subr.mxu0 0.0
    %9975 = vmatpush1.msra.mxu0 0.0
    %9976 = vmatprep.subr.mxu0 0.0
    %9977 = vmatpush1.msra.mxu0 0.0
    %9978 = vmatprep.subr.mxu0 0.0
    %9979 = vmatpush1.msra.mxu0 0.0
    %9980 = vmatprep.subr.mxu0 0.0
    %9981 = vmatpush1.msra.mxu0 0.0
    %9982 = vmatprep.subr.mxu0 0.0
    %9983 = vmatpush1.msra.mxu0 0.0
    %9984 = vmatprep.mubr.f32.mxu0 0.0
    %9985 = vmatmul.mubr.f32.gmra.mrb[0].mxu0 %v9873
    %v9986 = vpop.f32.mrb[0].mxu0
    %v9987 = vadd.f32 %v9870, %v9986
    %v9988 = vpop.f32.mrb[0].mxu0
    %9989 = vmatprep.mubr.f32.mxu0 0.0
    %9990 = vmatmul.mubr.f32.gmra.mrb[0].mxu0 %v9876
    %v9991 = vpop.f32.mrb[0].mxu0
    %v9992 = vadd.f32 %v9870, %v9991
    %v9993 = vpop.f32.mrb[0].mxu0
    %9994 = vmatprep.mubr.f32.mxu0 0.0
    %9995 = vmatmul.mubr.f32.gmra.mrb[0].mxu0 %v9879
    %v9996 = vpop.f32.mrb[0].mxu0
    %v9997 = vadd.f32 %v9870, %v9996
    %v9998 = vpop.f32.mrb[0].mxu0
    %9999 = vmatprep.mubr.f32.mxu0 0.0
    %10000 = vmatmul.mubr.f32.gmra.mrb[0].mxu0 %v9882
    %v10001 = vpop.f32.mrb[0].mxu0
    %v10002 = vadd.f32 %v9870, %v10001
    %v10003 = vpop.f32.mrb[0].mxu0
    %10004 = vmatprep.mubr.f32.mxu0 0.0
    %10005 = vmatmul.mubr.f32.gmra.mrb[0].mxu0 %v9885
    %v10006 = vpop.f32.mrb[0].mxu0
    %v10007 = vadd.f32 %v9870, %v10006
    %v10008 = vpop.f32.mrb[0].mxu0
    %10009 = vmatprep.mubr.f32.mxu0 0.0
    %10010 = vmatmul.mubr.f32.gmra.mrb[0].mxu0 %v9888
    %v10011 = vpop.f32.mrb[0].mxu0
    %v10012 = vadd.f32 %v9870, %v10011
    %v10013 = vpop.f32.mrb[0].mxu0
    %10014 = vmatprep.mubr.f32.mxu0 0.0
    %10015 = vmatmul.mubr.f32.gmra.mrb[0].mxu0 %v9891
    %v10016 = vpop.f32.mrb[0].mxu0
    %v10017 = vadd.f32 %v9870, %v10016
    %v10018 = vpop.f32.mrb[0].mxu0
    %10019 = vmatprep.mubr.f32.mxu0 0.0
    %10020 = vmatmul.mubr.f32.gmra.mrb[0].mxu0 %v9894
    %v10021 = vpop.f32.mrb[0].mxu0
    %v10022 = vadd.f32 %v9870, %v10021
    %v10023 = vpop.f32.mrb[0].mxu0
    %10024 = vmatprep.mubr.f32.mxu0 0.0
    %10025 = vmatmul.mubr.f32.gmra.mrb[0].mxu0 %v9897
    %v10026 = vpop.f32.mrb[0].mxu0
    %v10027 = vadd.f32 %v9870, %v10026
    %v10028 = vpop.f32.mrb[0].mxu0
    %10029 = vmatprep.mubr.f32.mxu0 0.0
    %10030 = vmatmul.mubr.f32.gmra.mrb[0].mxu0 %v9900
    %v10031 = vpop.f32.mrb[0].mxu0
    %v10032 = vadd.f32 %v9870, %v10031
    %v10033 = vpop.f32.mrb[0].mxu0
    %10034 = vmatprep.mubr.f32.mxu0 0.0
    %10035 = vmatmul.mubr.f32.gmra.mrb[0].mxu0 %v9903
    %v10036 = vpop.f32.mrb[0].mxu0
    %v10037 = vadd.f32 %v9870, %v10036
    %v10038 = vpop.f32.mrb[0].mxu0
    %10039 = vmatprep.mubr.f32.mxu0 0.0
    %10040 = vmatmul.mubr.f32.gmra.mrb[0].mxu0 %v9906
    %v10041 = vpop.f32.mrb[0].mxu0
    %v10042 = vadd.f32 %v9870, %v10041
    %v10043 = vpop.f32.mrb[0].mxu0
    %10044 = vmatprep.mubr.f32.mxu0 0.0
    %10045 = vmatmul.mubr.f32.gmra.mrb[0].mxu0 %v9909
    %v10046 = vpop.f32.mrb[0].mxu0
    %v10047 = vadd.f32 %v9870, %v10046
    %v10048 = vpop.f32.mrb[0].mxu0
    %10049 = vmatprep.mubr.f32.mxu0 0.0
    %10050 = vmatmul.mubr.f32.gmra.mrb[0].mxu0 %v9912
    %v10051 = vpop.f32.mrb[0].mxu0
    %v10052 = vadd.f32 %v9870, %v10051
    %v10053 = vpop.f32.mrb[0].mxu0
    %10054 = vmatprep.mubr.f32.mxu0 0.0
    %10055 = vmatmul.mubr.f32.gmra.mrb[0].mxu0 %v9915
    %v10056 = vpop.f32.mrb[0].mxu0
    %v10057 = vadd.f32 %v9870, %v10056
    %v10058 = vpop.f32.mrb[0].mxu0
    %10059 = vmatprep.mubr.f32.mxu0 0.0
    %10060 = vmatmul.mubr.f32.gmra.mrb[0].mxu0 %v9918
    %v10061 = vpop.f32.mrb[0].mxu0
    %v10062 = vadd.f32 %v9870, %v10061
    %v10063 = vpop.f32.mrb[0].mxu0
    %10064 = vdwg.mxu0
    %v10065 = vmul.f32 %v9987, 0.5
    %v10066 = vmul.f32 %v9992, 0.5
    %v10067 = vmul.f32 %v9997, 0.5
    %v10068 = vmul.f32 %v10002, 0.5
    %v10069 = vmul.f32 %v10007, 0.5
    %v10070 = vmul.f32 %v10012, 0.5
    %v10071 = vmul.f32 %v10017, 0.5
    %v10072 = vmul.f32 %v10022, 0.5
    %v10073 = vmul.f32 %v10027, 0.5
    %v10074 = vmul.f32 %v10032, 0.5
    %v10075 = vmul.f32 %v10037, 0.5
    %v10076 = vmul.f32 %v10042, 0.5
    %v10077 = vmul.f32 %v10047, 0.5
    %v10078 = vmul.f32 %v10052, 0.5
    %v10079 = vmul.f32 %v10057, 0.5
    %v10080 = vmul.f32 %v10062, 0.5
    %v10081 = vmul.f32 %v9987, 0.70710677
    %v10082 = vmul.f32 %v9992, 0.70710677
    %v10083 = vmul.f32 %v9997, 0.70710677
    %v10084 = vmul.f32 %v10002, 0.70710677
    %v10085 = vmul.f32 %v10007, 0.70710677
    %v10086 = vmul.f32 %v10012, 0.70710677
    %v10087 = vmul.f32 %v10017, 0.70710677
    %v10088 = vmul.f32 %v10022, 0.70710677
    %v10089 = vmul.f32 %v10027, 0.70710677
    %v10090 = vmul.f32 %v10032, 0.70710677
    %v10091 = vmul.f32 %v10037, 0.70710677
    %v10092 = vmul.f32 %v10042, 0.70710677
    %v10093 = vmul.f32 %v10047, 0.70710677
    %v10094 = vmul.f32 %v10052, 0.70710677
    %v10095 = vmul.f32 %v10057, 0.70710677
    %v10096 = vmul.f32 %v10062, 0.70710677
    %v10097 = verf.f32.pop %v10081
    %v10098 = verf.f32.pop %v10082
    %v10099 = verf.f32.pop %v10083
    %v10100 = verf.f32.pop %v10084
    %v10101 = verf.f32.pop %v10085
    %v10102 = verf.f32.pop %v10086
    %v10103 = verf.f32.pop %v10087
    %v10104 = verf.f32.pop %v10088
    %v10105 = verf.f32.pop %v10089
    %v10106 = verf.f32.pop %v10090
    %v10107 = verf.f32.pop %v10091
    %v10108 = verf.f32.pop %v10092
    %v10109 = verf.f32.pop %v10093
    %v10110 = verf.f32.pop %v10094
    %v10111 = verf.f32.pop %v10095
    %v10112 = verf.f32.pop %v10096
    %v10113 = vadd.f32 %v10097, 1.0
    %v10114 = vadd.f32 %v10098, 1.0
    %v10115 = vadd.f32 %v10099, 1.0
    %v10116 = vadd.f32 %v10100, 1.0
    %v10117 = vadd.f32 %v10101, 1.0
    %v10118 = vadd.f32 %v10102, 1.0
    %v10119 = vadd.f32 %v10103, 1.0
    %v10120 = vadd.f32 %v10104, 1.0
    %v10121 = vadd.f32 %v10105, 1.0
    %v10122 = vadd.f32 %v10106, 1.0
    %v10123 = vadd.f32 %v10107, 1.0
    %v10124 = vadd.f32 %v10108, 1.0
    %v10125 = vadd.f32 %v10109, 1.0
    %v10126 = vadd.f32 %v10110, 1.0
    %v10127 = vadd.f32 %v10111, 1.0
    %v10128 = vadd.f32 %v10112, 1.0
    %v10129 = vmul.f32 %v10065, %v10113
    %v10130 = vmul.f32 %v10066, %v10114
    %v10131 = vmul.f32 %v10067, %v10115
    %v10132 = vmul.f32 %v10068, %v10116
    %v10133 = vmul.f32 %v10069, %v10117
    %v10134 = vmul.f32 %v10070, %v10118
    %v10135 = vmul.f32 %v10071, %v10119
    %v10136 = vmul.f32 %v10072, %v10120
    %v10137 = vmul.f32 %v10073, %v10121
    %v10138 = vmul.f32 %v10074, %v10122
    %v10139 = vmul.f32 %v10075, %v10123
    %v10140 = vmul.f32 %v10076, %v10124
    %v10141 = vmul.f32 %v10077, %v10125
    %v10142 = vmul.f32 %v10078, %v10126
    %v10143 = vmul.f32 %v10079, %v10127
    %v10144 = vmul.f32 %v10080, %v10128
    %v10145 = vld [vmem:[%s16] sm:$0xff]
    %v10146 = vld [vmem:[%s16 + $0x8] sm:$0xff]
    %v10147 = vld [vmem:[%s16 + $0x10] sm:$0xff]
    %v10148 = vld [vmem:[%s16 + $0x18] sm:$0xff]
    %v10149 = vld [vmem:[%s16 + $0x20] sm:$0xff]
    %v10150 = vld [vmem:[%s16 + $0x28] sm:$0xff]
    %v10151 = vld [vmem:[%s16 + $0x30] sm:$0xff]
    %v10152 = vld [vmem:[%s16 + $0x38] sm:$0xff]
    %v10153 = vld [vmem:[%s16 + $0x40] sm:$0xff]
    %v10154 = vld [vmem:[%s16 + $0x48] sm:$0xff]
    %v10155 = vld [vmem:[%s16 + $0x50] sm:$0xff]
    %v10156 = vld [vmem:[%s16 + $0x58] sm:$0xff]
    %v10157 = vld [vmem:[%s16 + $0x60] sm:$0xff]
    %v10158 = vld [vmem:[%s16 + $0x68] sm:$0xff]
    %v10159 = vld [vmem:[%s16 + $0x70] sm:$0xff]
    %v10160 = vld [vmem:[%s16 + $0x78] sm:$0xff]
    %10161 = vmatprep.subr.mxu0 0.0
    %10162 = vmatpush1.msra.mxu0 %v10145
    %10163 = vmatprep.subr.mxu0 0.0
    %10164 = vmatpush1.msra.mxu0 %v10146
    %10165 = vmatprep.subr.mxu0 0.0
    %10166 = vmatpush1.msra.mxu0 %v10147
    %10167 = vmatprep.subr.mxu0 0.0
    %10168 = vmatpush1.msra.mxu0 %v10148
    %10169 = vmatprep.subr.mxu0 0.0
    %10170 = vmatpush1.msra.mxu0 %v10149
    %10171 = vmatprep.subr.mxu0 0.0
    %10172 = vmatpush1.msra.mxu0 %v10150
    %10173 = vmatprep.subr.mxu0 0.0
    %10174 = vmatpush1.msra.mxu0 %v10151
    %10175 = vmatprep.subr.mxu0 0.0
    %10176 = vmatpush1.msra.mxu0 %v10152
    %10177 = vmatprep.subr.mxu0 0.0
    %10178 = vmatpush1.msra.mxu0 %v10153
    %10179 = vmatprep.subr.mxu0 0.0
    %10180 = vmatpush1.msra.mxu0 %v10154
    %10181 = vmatprep.subr.mxu0 0.0
    %10182 = vmatpush1.msra.mxu0 %v10155
    %10183 = vmatprep.subr.mxu0 0.0
    %10184 = vmatpush1.msra.mxu0 %v10156
    %10185 = vmatprep.subr.mxu0 0.0
    %10186 = vmatpush1.msra.mxu0 %v10157
    %10187 = vmatprep.subr.mxu0 0.0
    %10188 = vmatpush1.msra.mxu0 %v10158
    %10189 = vmatprep.subr.mxu0 0.0
    %10190 = vmatpush1.msra.mxu0 %v10159
    %10191 = vmatprep.subr.mxu0 0.0
    %10192 = vmatpush1.msra.mxu0 %v10160
    %10193 = vmatprep.subr.mxu0 0.0
    %10194 = vmatpush1.msra.mxu0 0.0
    %10195 = vmatprep.subr.mxu0 0.0
    %10196 = vmatpush1.msra.mxu0 0.0
    %10197 = vmatprep.subr.mxu0 0.0
    %10198 = vmatpush1.msra.mxu0 0.0
    %10199 = vmatprep.subr.mxu0 0.0
    %10200 = vmatpush1.msra.mxu0 0.0
    %10201 = vmatprep.subr.mxu0 0.0
    %10202 = vmatpush1.msra.mxu0 0.0
    %10203 = vmatprep.subr.mxu0 0.0
    %10204 = vmatpush1.msra.mxu0 0.0
    %10205 = vmatprep.subr.mxu0 0.0
    %10206 = vmatpush1.msra.mxu0 0.0
    %10207 = vmatprep.subr.mxu0 0.0
    %10208 = vmatpush1.msra.mxu0 0.0
    %10209 = vmatprep.subr.mxu0 0.0
    %10210 = vmatpush1.msra.mxu0 0.0
    %10211 = vmatprep.subr.mxu0 0.0
    %10212 = vmatpush1.msra.mxu0 0.0
    %10213 = vmatprep.subr.mxu0 0.0
    %10214 = vmatpush1.msra.mxu0 0.0
    %10215 = vmatprep.subr.mxu0 0.0
    %10216 = vmatpush1.msra.mxu0 0.0
    %10217 = vmatprep.subr.mxu0 0.0
    %10218 = vmatpush1.msra.mxu0 0.0
    %10219 = vmatprep.subr.mxu0 0.0
    %10220 = vmatpush1.msra.mxu0 0.0
    %10221 = vmatprep.subr.mxu0 0.0
    %10222 = vmatpush1.msra.mxu0 0.0
    %10223 = vmatprep.subr.mxu0 0.0
    %10224 = vmatpush1.msra.mxu0 0.0
    %10225 = vmatprep.mubr.f32.mxu0 0.0
    %10226 = vmatmul.mubr.f32.gmra.mrb[0].mxu0 %v10129
    %v10227 = vpop.f32.mrb[0].mxu0
    %v10228 = vadd.f32 0.0, %v10227
    %v10229 = vpop.f32.mrb[0].mxu0
    %10230 = vmatprep.mubr.f32.mxu0 0.0
    %10231 = vmatmul.mubr.f32.gmra.mrb[0].mxu0 %v10130
    %v10232 = vpop.f32.mrb[0].mxu0
    %v10233 = vadd.f32 0.0, %v10232
    %v10234 = vpop.f32.mrb[0].mxu0
    %10235 = vmatprep.mubr.f32.mxu0 0.0
    %10236 = vmatmul.mubr.f32.gmra.mrb[0].mxu0 %v10131
    %v10237 = vpop.f32.mrb[0].mxu0
    %v10238 = vadd.f32 0.0, %v10237
    %v10239 = vpop.f32.mrb[0].mxu0
    %10240 = vmatprep.mubr.f32.mxu0 0.0
    %10241 = vmatmul.mubr.f32.gmra.mrb[0].mxu0 %v10132
    %v10242 = vpop.f32.mrb[0].mxu0
    %v10243 = vadd.f32 0.0, %v10242
    %v10244 = vpop.f32.mrb[0].mxu0
    %10245 = vmatprep.mubr.f32.mxu0 0.0
    %10246 = vmatmul.mubr.f32.gmra.mrb[0].mxu0 %v10133
    %v10247 = vpop.f32.mrb[0].mxu0
    %v10248 = vadd.f32 0.0, %v10247
    %v10249 = vpop.f32.mrb[0].mxu0
    %10250 = vmatprep.mubr.f32.mxu0 0.0
    %10251 = vmatmul.mubr.f32.gmra.mrb[0].mxu0 %v10134
    %v10252 = vpop.f32.mrb[0].mxu0
    %v10253 = vadd.f32 0.0, %v10252
    %v10254 = vpop.f32.mrb[0].mxu0
    %10255 = vmatprep.mubr.f32.mxu0 0.0
    %10256 = vmatmul.mubr.f32.gmra.mrb[0].mxu0 %v10135
    %v10257 = vpop.f32.mrb[0].mxu0
    %v10258 = vadd.f32 0.0, %v10257
    %v10259 = vpop.f32.mrb[0].mxu0
    %10260 = vmatprep.mubr.f32.mxu0 0.0
    %10261 = vmatmul.mubr.f32.gmra.mrb[0].mxu0 %v10136
    %v10262 = vpop.f32.mrb[0].mxu0
    %v10263 = vadd.f32 0.0, %v10262
    %v10264 = vpop.f32.mrb[0].mxu0
    %10265 = vmatprep.mubr.f32.mxu0 0.0
    %10266 = vmatmul.mubr.f32.gmra.mrb[0].mxu0 %v10137
    %v10267 = vpop.f32.mrb[0].mxu0
    %v10268 = vadd.f32 0.0, %v10267
    %v10269 = vpop.f32.mrb[0].mxu0
    %10270 = vmatprep.mubr.f32.mxu0 0.0
    %10271 = vmatmul.mubr.f32.gmra.mrb[0].mxu0 %v10138
    %v10272 = vpop.f32.mrb[0].mxu0
    %v10273 = vadd.f32 0.0, %v10272
    %v10274 = vpop.f32.mrb[0].mxu0
    %10275 = vmatprep.mubr.f32.mxu0 0.0
    %10276 = vmatmul.mubr.f32.gmra.mrb[0].mxu0 %v10139
    %v10277 = vpop.f32.mrb[0].mxu0
    %v10278 = vadd.f32 0.0, %v10277
    %v10279 = vpop.f32.mrb[0].mxu0
    %10280 = vmatprep.mubr.f32.mxu0 0.0
    %10281 = vmatmul.mubr.f32.gmra.mrb[0].mxu0 %v10140
    %v10282 = vpop.f32.mrb[0].mxu0
    %v10283 = vadd.f32 0.0, %v10282
    %v10284 = vpop.f32.mrb[0].mxu0
    %10285 = vmatprep.mubr.f32.mxu0 0.0
    %10286 = vmatmul.mubr.f32.gmra.mrb[0].mxu0 %v10141
    %v10287 = vpop.f32.mrb[0].mxu0
    %v10288 = vadd.f32 0.0, %v10287
    %v10289 = vpop.f32.mrb[0].mxu0
    %10290 = vmatprep.mubr.f32.mxu0 0.0
    %10291 = vmatmul.mubr.f32.gmra.mrb[0].mxu0 %v10142
    %v10292 = vpop.f32.mrb[0].mxu0
    %v10293 = vadd.f32 0.0, %v10292
    %v10294 = vpop.f32.mrb[0].mxu0
    %10295 = vmatprep.mubr.f32.mxu0 0.0
    %10296 = vmatmul.mubr.f32.gmra.mrb[0].mxu0 %v10143
    %v10297 = vpop.f32.mrb[0].mxu0
    %v10298 = vadd.f32 0.0, %v10297
    %v10299 = vpop.f32.mrb[0].mxu0
    %10300 = vmatprep.mubr.f32.mxu0 0.0
    %10301 = vmatmul.mubr.f32.gmra.mrb[0].mxu0 %v10144
    %v10302 = vpop.f32.mrb[0].mxu0
    %v10303 = vadd.f32 0.0, %v10302
    %v10304 = vpop.f32.mrb[0].mxu0
    %10305 = vdwg.mxu0
    %v10306 = vadd.f32 %v9605, %v10228
    %v10307 = vadd.f32 %v9606, %v10233
    %v10308 = vadd.f32 %v9607, %v10238
    %v10309 = vadd.f32 %v9608, %v10243
    %v10310 = vadd.f32 %v9609, %v10248
    %v10311 = vadd.f32 %v9610, %v10253
    %v10312 = vadd.f32 %v9611, %v10258
    %v10313 = vadd.f32 %v9612, %v10263
    %v10314 = vadd.f32 %v9613, %v10268
    %v10315 = vadd.f32 %v9614, %v10273
    %v10316 = vadd.f32 %v9615, %v10278
    %v10317 = vadd.f32 %v9616, %v10283
    %v10318 = vadd.f32 %v9617, %v10288
    %v10319 = vadd.f32 %v9618, %v10293
    %v10320 = vadd.f32 %v9619, %v10298
    %v10321 = vadd.f32 %v9620, %v10303
    %v10322 = vld [vmem:[%s17] sm:$0x1]
    %v10324 = vlaneseq
    %v10325 = vshrl.u32 %v10324, 7
    %v10326 = vsub.s32 0, %v10325
    %v10327 = vrot.slane %v10322, %v10326
    %v10329 = vadd.f32 %v10306, %v10327
    %v10330 = vadd.f32 %v10307, %v10327
    %v10331 = vadd.f32 %v10308, %v10327
    %v10332 = vadd.f32 %v10309, %v10327
    %v10333 = vadd.f32 %v10310, %v10327
    %v10334 = vadd.f32 %v10311, %v10327
    %v10335 = vadd.f32 %v10312, %v10327
    %v10336 = vadd.f32 %v10313, %v10327
    %v10337 = vadd.f32 %v10314, %v10327
    %v10338 = vadd.f32 %v10315, %v10327
    %v10339 = vadd.f32 %v10316, %v10327
    %v10340 = vadd.f32 %v10317, %v10327
    %v10341 = vadd.f32 %v10318, %v10327
    %v10342 = vadd.f32 %v10319, %v10327
    %v10343 = vadd.f32 %v10320, %v10327
    %v10344 = vadd.f32 %v10321, %v10327
    %10345 = vst.msk [vmem:[%s18] sm:$0xff] %vm109, %v10329
    %10346 = vst.msk [vmem:[%s18 + $0x8] sm:$0xff] %vm109, %v10330
    %10347 = vst.msk [vmem:[%s18 + $0x10] sm:$0xff] %vm109, %v10331
    %10348 = vst.msk [vmem:[%s18 + $0x18] sm:$0xff] %vm109, %v10332
    %10349 = vst.msk [vmem:[%s18 + $0x20] sm:$0xff] %vm109, %v10333
    %10350 = vst.msk [vmem:[%s18 + $0x28] sm:$0xff] %vm109, %v10334
    %10351 = vst.msk [vmem:[%s18 + $0x30] sm:$0xff] %vm109, %v10335
    %10352 = vst.msk [vmem:[%s18 + $0x38] sm:$0xff] %vm109, %v10336
    %10353 = vst.msk [vmem:[%s18 + $0x40] sm:$0xff] %vm109, %v10337
    %10354 = vst.msk [vmem:[%s18 + $0x48] sm:$0xff] %vm109, %v10338
    %10355 = vst.msk [vmem:[%s18 + $0x50] sm:$0xff] %vm109, %v10339
    %10356 = vst.msk [vmem:[%s18 + $0x58] sm:$0xff] %vm109, %v10340
    %10357 = vst.msk [vmem:[%s18 + $0x60] sm:$0xff] %vm109, %v10341
    %10358 = vst.msk [vmem:[%s18 + $0x68] sm:$0xff] %vm109, %v10342
    %10359 = vst.msk [vmem:[%s18 + $0x70] sm:$0xff] %vm109, %v10343
    %10360 = vst.msk [vmem:[%s18 + $0x78] sm:$0xff] %vm109, %v10344
    // Predicated region
    $region78: #{swin_encoder_forward.1} parent=1 // pred_check
      _
    $region79: #{swin_encoder_forward.1} parent=1 // pred_check_branch
      %10362 = sbr.rel (0) target = $region81
    $region80: #{swin_encoder_forward.1} parent=1 // pred_region
      _
    $region81: #{swin_encoder_forward.1} parent=1 // pred_fallthru
      _
    // Predicated region
    $region82: #{swin_encoder_forward.1} parent=1 // pred_check
      _
    $region83: #{swin_encoder_forward.1} parent=1 // pred_check_branch
      %10364 = sbr.rel (0) target = $region85
    $region84: #{swin_encoder_forward.1} parent=1 // pred_region
      _
    $region85: #{swin_encoder_forward.1} parent=1 // pred_fallthru
      _
    %10365 = vsyncpa [#allocation3], 1

</llo_original>
